<compile_context>
chip_gen: v6e
topology: v6e:2x2x1
jax: 0.10.0
libtpu: 0.0.40
codegen_flags: <defaults>
</compile_context>

<pallas_src>
import jax
import jax.numpy as jnp
from jax import lax
from jax.experimental import pallas as pl
from jax.experimental.pallas import tpu as pltpu


def resblock_kernel(x_ref, w1_ref, s1_ref, b1_ref, w2_ref, s2_ref, b2_ref,
                    out_ref, pad_ref, col_ref):
    # x_ref  : (1, H, W, Cp)  f32 input block (channels already lane-padded)
    # w*_ref : (9*Cp, Cp)     bf16 conv weights, HWIO flattened over (ky,kx,cin)
    # s*/b*  : (1, Cp)        f32 folded BN scale / bias
    # out_ref: (1, H, W, Cp)  f32 output block (lane-dense: last dim = Cp)
    # pad_ref: (H+2, W+2, Cp) f32 scratch, spatially padded activation
    # col_ref: (H*W, 9*Cp)    bf16 scratch, im2col patches
    H = out_ref.shape[1]
    W = out_ref.shape[2]
    Cp = out_ref.shape[3]

    x = x_ref[0]                                   # (H, W, Cp) f32

    # ---- zero only the 1-pixel halo of the padded scratch (interior is ----
    # ---- fully overwritten below, every step, so this is core-safe).   ----
    zrow = jnp.zeros((1, W + 2, Cp), pad_ref.dtype)
    zcol = jnp.zeros((H + 2, 1, Cp), pad_ref.dtype)
    pad_ref[0:1, :, :] = zrow
    pad_ref[H + 1:H + 2, :, :] = zrow
    pad_ref[:, 0:1, :] = zcol
    pad_ref[:, W + 1:W + 2, :] = zcol

    def im2col():
        # 9 shifted taps -> one (H*W, 9*Cp) patch matrix (lane-aligned stores).
        for dy in range(3):
            for dx in range(3):
                t = dy * 3 + dx
                patch = pad_ref[dy:dy + H, dx:dx + W, :].reshape(H * W, Cp)
                col_ref[:, t * Cp:(t + 1) * Cp] = patch.astype(col_ref.dtype)

    # ---- conv1: one MXU matmul (M=H*W, K=9*Cp, N=Cp), f32 accumulation ----
    pad_ref[1:H + 1, 1:W + 1, :] = x
    im2col()
    acc1 = jnp.dot(col_ref[...], w1_ref[...],
                   preferred_element_type=jnp.float32)      # (H*W, Cp) f32

    # ---- bn1 (folded affine) + relu, in f32 ----
    h = jnp.maximum(acc1 * s1_ref[0] + b1_ref[0], 0.0)

    # ---- conv2: reuse the same padded scratch (halo still zero) ----
    pad_ref[1:H + 1, 1:W + 1, :] = h.reshape(H, W, Cp)
    im2col()
    acc2 = jnp.dot(col_ref[...], w2_ref[...],
                   preferred_element_type=jnp.float32)      # (H*W, Cp) f32

    # ---- bn2 + residual add + relu (f32), lane-dense store ----
    residual = x.reshape(H * W, Cp)
    out = jnp.maximum(acc2 * s2_ref[0] + b2_ref[0] + residual, 0.0)
    out_ref[0] = out.reshape(H, W, Cp).astype(out_ref.dtype)


def resblock_pallas(x_nhwc, w1, gamma1, beta1, mean1, var1,
                    w2, gamma2, beta2, mean2, var2, eps=1e-5):
    B, H, W, C = x_nhwc.shape
    LANE = 128
    Cp = ((C + LANE - 1) // LANE) * LANE          # lane-friendly channel pad

    # ---- fold BN running stats into per-channel scale/bias (eval mode) ----
    def fold_bn(gamma, beta, mean, var):
        s = gamma / jnp.sqrt(var + eps)
        b = beta - mean * s
        s = jnp.pad(s.astype(jnp.float32), (0, Cp - C)).reshape(1, Cp)
        b = jnp.pad(b.astype(jnp.float32), (0, Cp - C)).reshape(1, Cp)
        return s, b

    s1, b1 = fold_bn(gamma1, beta1, mean1, var1)
    s2, b2 = fold_bn(gamma2, beta2, mean2, var2)

    # ---- conv weights: HWIO -> channel-pad -> (9*Cp, Cp), bf16 for MXU ----
    def prep_w(w):
        wp = jnp.pad(w, ((0, 0), (0, 0), (0, Cp - C), (0, Cp - C)))
        return wp.reshape(9 * Cp, Cp).astype(jnp.bfloat16)

    w1r = prep_w(w1)
    w2r = prep_w(w2)

    # Channel-pad the input (zeros), keep f32 for the residual path.
    xp = jnp.pad(x_nhwc.astype(jnp.float32),
                 ((0, 0), (0, 0), (0, 0), (0, Cp - C)))

    flops = int(2 * 2 * B * H * W * Cp * Cp * 9)             # two 3x3 convs
    bytes_accessed = int(B * H * W * Cp * 4 * 2              # in + out
                         + 2 * 9 * Cp * Cp * 2               # weights (bf16)
                         + 4 * Cp * 4)                       # scale/bias

    out = pl.pallas_call(
        resblock_kernel,
        out_shape=jax.ShapeDtypeStruct((B, H, W, Cp), jnp.float32),
        grid_spec=pltpu.PrefetchScalarGridSpec(
            num_scalar_prefetch=0,
            grid=(B,),
            in_specs=[
                pl.BlockSpec((1, H, W, Cp), lambda b: (b, 0, 0, 0)),
                pl.BlockSpec((9 * Cp, Cp), lambda b: (0, 0)),
                pl.BlockSpec((1, Cp), lambda b: (0, 0)),
                pl.BlockSpec((1, Cp), lambda b: (0, 0)),
                pl.BlockSpec((9 * Cp, Cp), lambda b: (0, 0)),
                pl.BlockSpec((1, Cp), lambda b: (0, 0)),
                pl.BlockSpec((1, Cp), lambda b: (0, 0)),
            ],
            out_specs=pl.BlockSpec((1, H, W, Cp), lambda b: (b, 0, 0, 0)),
            scratch_shapes=[
                pltpu.VMEM((H + 2, W + 2, Cp), jnp.float32),   # padded act
                pltpu.VMEM((H * W, 9 * Cp), jnp.bfloat16),     # im2col
            ],
        ),
        compiler_params=pltpu.CompilerParams(
            dimension_semantics=("parallel",),     # v7x: 2 TCs split the batch
            vmem_limit_bytes=32 * 1024 * 1024),
        cost_estimate=pl.CostEstimate(flops=flops, transcendentals=0,
                                      bytes_accessed=bytes_accessed),
    )(xp, w1r, s1, b1, w2r, s2, b2)

    return out[..., :C]                            # strip channel padding


def resblock_reference(x_nhwc, w1, gamma1, beta1, mean1, var1,
                       w2, gamma2, beta2, mean2, var2, eps=1e-5):
    dn = ("NHWC", "HWIO", "NHWC")

    def bn(y, g, b, m, v):
        return (y - m) / jnp.sqrt(v + eps) * g + b

    out = lax.conv_general_dilated(x_nhwc, w1, (1, 1), "SAME",
                                   dimension_numbers=dn)
    out = jnp.maximum(bn(out, gamma1, beta1, mean1, var1), 0.0)
    out = lax.conv_general_dilated(out, w2, (1, 1), "SAME",
                                   dimension_numbers=dn)
    out = bn(out, gamma2, beta2, mean2, var2) + x_nhwc
    return jnp.maximum(out, 0.0)


if __name__ == "__main__":
    B, C, H, W = 2, 4, 16, 16  # PyTorch NCHW x: (2, 4, 16, 16)
    key = jax.random.PRNGKey(0)
    kx, k1, k2, kb = jax.random.split(key, 4)

    # Input (generated NCHW like PyTorch, converted to NHWC for the kernel).
    x_nchw = jax.random.normal(kx, (B, C, H, W), jnp.float32)
    x_nhwc = jnp.transpose(x_nchw, (0, 2, 3, 1))

    # Conv weights, HWIO (3, 3, Cin, Cout); no bias (matches nn.Conv2d bias=False).
    w1 = jax.random.normal(k1, (3, 3, C, C), jnp.float32) * 0.1
    w2 = jax.random.normal(k2, (3, 3, C, C), jnp.float32) * 0.1

    # BatchNorm params + running stats (deterministic, non-trivial).
    kb1, kb2, kb3, kb4, kb5, kb6 = jax.random.split(kb, 6)
    gamma1 = 1.0 + 0.1 * jax.random.normal(kb1, (C,), jnp.float32)
    beta1 = 0.1 * jax.random.normal(kb2, (C,), jnp.float32)
    mean1 = 0.1 * jax.random.normal(kb3, (C,), jnp.float32)
    var1 = 1.0 + 0.1 * jax.random.uniform(kb4, (C,), jnp.float32)
    gamma2 = 1.0 + 0.1 * jax.random.normal(kb5, (C,), jnp.float32)
    beta2 = 0.1 * jax.random.normal(kb6, (C,), jnp.float32)
    mean2 = 0.05 * jnp.arange(C, dtype=jnp.float32)
    var2 = 1.0 + 0.05 * jnp.arange(C, dtype=jnp.float32)

    out = resblock_pallas(x_nhwc, w1, gamma1, beta1, mean1, var1,
                          w2, gamma2, beta2, mean2, var2)
    out = jax.block_until_ready(out)

    ref = resblock_reference(x_nhwc, w1, gamma1, beta1, mean1, var1,
                             w2, gamma2, beta2, mean2, var2)
    assert out.shape == (B, H, W, C)
    # bf16 MXU operands (f32 accumulation) -> slightly looser tolerance.
    assert jnp.allclose(out, ref, atol=2e-2, rtol=2e-2), \
        float(jnp.max(jnp.abs(out - ref)))

    print("KERNEL_OK")
</pallas_src>

<mosaic_0001>
module attributes {stable_mosaic.version = 11 : i64} {
  func.func @resblock_kernel(%arg0: i32, %arg1: memref<1x16x16x128xf32, #tpu.memory_space<vmem>>, %arg2: memref<1152x128xbf16, #tpu.memory_space<vmem>>, %arg3: memref<1x128xf32, #tpu.memory_space<vmem>>, %arg4: memref<1x128xf32, #tpu.memory_space<vmem>>, %arg5: memref<1152x128xbf16, #tpu.memory_space<vmem>>, %arg6: memref<1x128xf32, #tpu.memory_space<vmem>>, %arg7: memref<1x128xf32, #tpu.memory_space<vmem>>, %arg8: memref<1x16x16x128xf32, #tpu.memory_space<vmem>>, %arg9: memref<18x18x128xf32, #tpu.memory_space<vmem>>, %arg10: memref<256x1152xbf16, #tpu.memory_space<vmem>>) attributes {dimension_semantics = [#tpu.dimension_semantics<parallel>], iteration_bounds = array<i64: 2>, scalar_prefetch = 0 : i64, scratch_operands = 2 : i64, tpu.core_type = #tpu.core_type<tc>, window_params = [{transform_indices = @transform_0, window_bounds = array<i64: 1, 16, 16, 128>}, {pipeline_mode = #tpu.pipeline_mode<synchronous>, transform_indices = @transform_1, window_bounds = array<i64: 1152, 128>}, {pipeline_mode = #tpu.pipeline_mode<synchronous>, transform_indices = @transform_2, window_bounds = array<i64: 1, 128>}, {pipeline_mode = #tpu.pipeline_mode<synchronous>, transform_indices = @transform_3, window_bounds = array<i64: 1, 128>}, {pipeline_mode = #tpu.pipeline_mode<synchronous>, transform_indices = @transform_4, window_bounds = array<i64: 1152, 128>}, {pipeline_mode = #tpu.pipeline_mode<synchronous>, transform_indices = @transform_5, window_bounds = array<i64: 1, 128>}, {pipeline_mode = #tpu.pipeline_mode<synchronous>, transform_indices = @transform_6, window_bounds = array<i64: 1, 128>}, {transform_indices = @transform_7, window_bounds = array<i64: 1, 16, 16, 128>}]} {
    %c0 = arith.constant 0 : index
    %c0_0 = arith.constant 0 : index
    %c0_1 = arith.constant 0 : index
    %c0_2 = arith.constant 0 : index
    %0 = vector.load %arg1[%c0, %c0_0, %c0_1, %c0_2] : memref<1x16x16x128xf32, #tpu.memory_space<vmem>>, vector<1x16x16x128xf32>
    %1 = vector.shape_cast %0 : vector<1x16x16x128xf32> to vector<16x16x128xf32>
    %cst = arith.constant 0.000000e+00 : f32
    %2 = vector.broadcast %cst : f32 to vector<1x18x128xf32>
    %cst_3 = arith.constant 0.000000e+00 : f32
    %3 = vector.broadcast %cst_3 : f32 to vector<18x1x128xf32>
    %c0_4 = arith.constant 0 : index
    %c0_5 = arith.constant 0 : index
    %c0_6 = arith.constant 0 : index
    %4 = vector.load %arg9[%c0_4, %c0_5, %c0_6] : memref<18x18x128xf32, #tpu.memory_space<vmem>>, vector<1x18x128xf32>
    tpu.vector_store %arg9[%c0_4, %c0_5, %c0_6], %2 {strides = array<i32>} : memref<18x18x128xf32, #tpu.memory_space<vmem>>, vector<1x18x128xf32>,
    %c17 = arith.constant 17 : index
    %c0_7 = arith.constant 0 : index
    %c0_8 = arith.constant 0 : index
    %5 = vector.load %arg9[%c17, %c0_7, %c0_8] : memref<18x18x128xf32, #tpu.memory_space<vmem>>, vector<1x18x128xf32>
    tpu.vector_store %arg9[%c17, %c0_7, %c0_8], %2 {strides = array<i32>} : memref<18x18x128xf32, #tpu.memory_space<vmem>>, vector<1x18x128xf32>,
    %c0_9 = arith.constant 0 : index
    %c0_10 = arith.constant 0 : index
    %c0_11 = arith.constant 0 : index
    %6 = vector.load %arg9[%c0_9, %c0_10, %c0_11] : memref<18x18x128xf32, #tpu.memory_space<vmem>>, vector<18x1x128xf32>
    tpu.vector_store %arg9[%c0_9, %c0_10, %c0_11], %3 {strides = array<i32>} : memref<18x18x128xf32, #tpu.memory_space<vmem>>, vector<18x1x128xf32>,
    %c0_12 = arith.constant 0 : index
    %c17_13 = arith.constant 17 : index
    %c0_14 = arith.constant 0 : index
    %7 = vector.load %arg9[%c0_12, %c17_13, %c0_14] : memref<18x18x128xf32, #tpu.memory_space<vmem>>, vector<18x1x128xf32>
    tpu.vector_store %arg9[%c0_12, %c17_13, %c0_14], %3 {strides = array<i32>} : memref<18x18x128xf32, #tpu.memory_space<vmem>>, vector<18x1x128xf32>,
    %c1 = arith.constant 1 : index
    %c1_15 = arith.constant 1 : index
    %c0_16 = arith.constant 0 : index
    %8 = vector.load %arg9[%c1, %c1_15, %c0_16] : memref<18x18x128xf32, #tpu.memory_space<vmem>>, vector<16x16x128xf32>
    tpu.vector_store %arg9[%c1, %c1_15, %c0_16], %1 {strides = array<i32>} : memref<18x18x128xf32, #tpu.memory_space<vmem>>, vector<16x16x128xf32>,
    %c0_17 = arith.constant 0 : index
    %c0_18 = arith.constant 0 : index
    %c0_19 = arith.constant 0 : index
    %9 = vector.load %arg9[%c0_17, %c0_18, %c0_19] : memref<18x18x128xf32, #tpu.memory_space<vmem>>, vector<16x16x128xf32>
    %10 = vector.shape_cast %9 : vector<16x16x128xf32> to vector<256x128xf32>
    %11 = arith.truncf %10 : vector<256x128xf32> to vector<256x128xbf16>
    %c0_20 = arith.constant 0 : index
    %c0_21 = arith.constant 0 : index
    %12 = vector.load %arg10[%c0_20, %c0_21] : memref<256x1152xbf16, #tpu.memory_space<vmem>>, vector<256x128xbf16>
    tpu.vector_store %arg10[%c0_20, %c0_21], %11 {strides = array<i32>} : memref<256x1152xbf16, #tpu.memory_space<vmem>>, vector<256x128xbf16>,
    %c0_22 = arith.constant 0 : index
    %c1_23 = arith.constant 1 : index
    %c0_24 = arith.constant 0 : index
    %13 = vector.load %arg9[%c0_22, %c1_23, %c0_24] : memref<18x18x128xf32, #tpu.memory_space<vmem>>, vector<16x16x128xf32>
    %14 = vector.shape_cast %13 : vector<16x16x128xf32> to vector<256x128xf32>
    %15 = arith.truncf %14 : vector<256x128xf32> to vector<256x128xbf16>
    %c0_25 = arith.constant 0 : index
    %c128 = arith.constant 128 : index
    %16 = vector.load %arg10[%c0_25, %c128] : memref<256x1152xbf16, #tpu.memory_space<vmem>>, vector<256x128xbf16>
    tpu.vector_store %arg10[%c0_25, %c128], %15 {strides = array<i32>} : memref<256x1152xbf16, #tpu.memory_space<vmem>>, vector<256x128xbf16>,
    %c0_26 = arith.constant 0 : index
    %c2 = arith.constant 2 : index
    %c0_27 = arith.constant 0 : index
    %17 = vector.load %arg9[%c0_26, %c2, %c0_27] : memref<18x18x128xf32, #tpu.memory_space<vmem>>, vector<16x16x128xf32>
    %18 = vector.shape_cast %17 : vector<16x16x128xf32> to vector<256x128xf32>
    %19 = arith.truncf %18 : vector<256x128xf32> to vector<256x128xbf16>
    %c0_28 = arith.constant 0 : index
    %c256 = arith.constant 256 : index
    %20 = vector.load %arg10[%c0_28, %c256] : memref<256x1152xbf16, #tpu.memory_space<vmem>>, vector<256x128xbf16>
    tpu.vector_store %arg10[%c0_28, %c256], %19 {strides = array<i32>} : memref<256x1152xbf16, #tpu.memory_space<vmem>>, vector<256x128xbf16>,
    %c1_29 = arith.constant 1 : index
    %c0_30 = arith.constant 0 : index
    %c0_31 = arith.constant 0 : index
    %21 = vector.load %arg9[%c1_29, %c0_30, %c0_31] : memref<18x18x128xf32, #tpu.memory_space<vmem>>, vector<16x16x128xf32>
    %22 = vector.shape_cast %21 : vector<16x16x128xf32> to vector<256x128xf32>
    %23 = arith.truncf %22 : vector<256x128xf32> to vector<256x128xbf16>
    %c0_32 = arith.constant 0 : index
    %c384 = arith.constant 384 : index
    %24 = vector.load %arg10[%c0_32, %c384] : memref<256x1152xbf16, #tpu.memory_space<vmem>>, vector<256x128xbf16>
    tpu.vector_store %arg10[%c0_32, %c384], %23 {strides = array<i32>} : memref<256x1152xbf16, #tpu.memory_space<vmem>>, vector<256x128xbf16>,
    %c1_33 = arith.constant 1 : index
    %c1_34 = arith.constant 1 : index
    %c0_35 = arith.constant 0 : index
    %25 = vector.load %arg9[%c1_33, %c1_34, %c0_35] : memref<18x18x128xf32, #tpu.memory_space<vmem>>, vector<16x16x128xf32>
    %26 = vector.shape_cast %25 : vector<16x16x128xf32> to vector<256x128xf32>
    %27 = arith.truncf %26 : vector<256x128xf32> to vector<256x128xbf16>
    %c0_36 = arith.constant 0 : index
    %c512 = arith.constant 512 : index
    %28 = vector.load %arg10[%c0_36, %c512] : memref<256x1152xbf16, #tpu.memory_space<vmem>>, vector<256x128xbf16>
    tpu.vector_store %arg10[%c0_36, %c512], %27 {strides = array<i32>} : memref<256x1152xbf16, #tpu.memory_space<vmem>>, vector<256x128xbf16>,
    %c1_37 = arith.constant 1 : index
    %c2_38 = arith.constant 2 : index
    %c0_39 = arith.constant 0 : index
    %29 = vector.load %arg9[%c1_37, %c2_38, %c0_39] : memref<18x18x128xf32, #tpu.memory_space<vmem>>, vector<16x16x128xf32>
    %30 = vector.shape_cast %29 : vector<16x16x128xf32> to vector<256x128xf32>
    %31 = arith.truncf %30 : vector<256x128xf32> to vector<256x128xbf16>
    %c0_40 = arith.constant 0 : index
    %c640 = arith.constant 640 : index
    %32 = vector.load %arg10[%c0_40, %c640] : memref<256x1152xbf16, #tpu.memory_space<vmem>>, vector<256x128xbf16>
    tpu.vector_store %arg10[%c0_40, %c640], %31 {strides = array<i32>} : memref<256x1152xbf16, #tpu.memory_space<vmem>>, vector<256x128xbf16>,
    %c2_41 = arith.constant 2 : index
    %c0_42 = arith.constant 0 : index
    %c0_43 = arith.constant 0 : index
    %33 = vector.load %arg9[%c2_41, %c0_42, %c0_43] : memref<18x18x128xf32, #tpu.memory_space<vmem>>, vector<16x16x128xf32>
    %34 = vector.shape_cast %33 : vector<16x16x128xf32> to vector<256x128xf32>
    %35 = arith.truncf %34 : vector<256x128xf32> to vector<256x128xbf16>
    %c0_44 = arith.constant 0 : index
    %c768 = arith.constant 768 : index
    %36 = vector.load %arg10[%c0_44, %c768] : memref<256x1152xbf16, #tpu.memory_space<vmem>>, vector<256x128xbf16>
    tpu.vector_store %arg10[%c0_44, %c768], %35 {strides = array<i32>} : memref<256x1152xbf16, #tpu.memory_space<vmem>>, vector<256x128xbf16>,
    %c2_45 = arith.constant 2 : index
    %c1_46 = arith.constant 1 : index
    %c0_47 = arith.constant 0 : index
    %37 = vector.load %arg9[%c2_45, %c1_46, %c0_47] : memref<18x18x128xf32, #tpu.memory_space<vmem>>, vector<16x16x128xf32>
    %38 = vector.shape_cast %37 : vector<16x16x128xf32> to vector<256x128xf32>
    %39 = arith.truncf %38 : vector<256x128xf32> to vector<256x128xbf16>
    %c0_48 = arith.constant 0 : index
    %c896 = arith.constant 896 : index
    %40 = vector.load %arg10[%c0_48, %c896] : memref<256x1152xbf16, #tpu.memory_space<vmem>>, vector<256x128xbf16>
    tpu.vector_store %arg10[%c0_48, %c896], %39 {strides = array<i32>} : memref<256x1152xbf16, #tpu.memory_space<vmem>>, vector<256x128xbf16>,
    %c2_49 = arith.constant 2 : index
    %c2_50 = arith.constant 2 : index
    %c0_51 = arith.constant 0 : index
    %41 = vector.load %arg9[%c2_49, %c2_50, %c0_51] : memref<18x18x128xf32, #tpu.memory_space<vmem>>, vector<16x16x128xf32>
    %42 = vector.shape_cast %41 : vector<16x16x128xf32> to vector<256x128xf32>
    %43 = arith.truncf %42 : vector<256x128xf32> to vector<256x128xbf16>
    %c0_52 = arith.constant 0 : index
    %c1024 = arith.constant 1024 : index
    %44 = vector.load %arg10[%c0_52, %c1024] : memref<256x1152xbf16, #tpu.memory_space<vmem>>, vector<256x128xbf16>
    tpu.vector_store %arg10[%c0_52, %c1024], %43 {strides = array<i32>} : memref<256x1152xbf16, #tpu.memory_space<vmem>>, vector<256x128xbf16>,
    %c0_53 = arith.constant 0 : index
    %c0_54 = arith.constant 0 : index
    %45 = vector.load %arg10[%c0_53, %c0_54] : memref<256x1152xbf16, #tpu.memory_space<vmem>>, vector<256x1152xbf16>
    %c0_55 = arith.constant 0 : index
    %c0_56 = arith.constant 0 : index
    %46 = vector.load %arg2[%c0_55, %c0_56] : memref<1152x128xbf16, #tpu.memory_space<vmem>>, vector<1152x128xbf16>
    %cst_57 = arith.constant dense<0.000000e+00> : vector<256x128xf32>
    %47 = tpu.matmul %45, %46, %cst_57 {dimension_numbers = #tpu.dot_dimension_numbers<[1], [0], [0], [1], [0, 0, 1, 1], [], []>} : vector<256x1152xbf16>, vector<1152x128xbf16>, vector<256x128xf32> -> vector<256x128xf32>
    %c0_58 = arith.constant 0 : index
    %c0_59 = arith.constant 0 : index
    %48 = vector.load %arg3[%c0_58, %c0_59] : memref<1x128xf32, #tpu.memory_space<vmem>>, vector<1x128xf32>
    %49 = vector.shape_cast %48 : vector<1x128xf32> to vector<128xf32>
    %50 = vector.shape_cast %49 : vector<128xf32> to vector<1x128xf32>
    %51 = vector.broadcast %50 : vector<1x128xf32> to vector<256x128xf32>
    %52 = arith.mulf %47, %51 : vector<256x128xf32>
    %c0_60 = arith.constant 0 : index
    %c0_61 = arith.constant 0 : index
    %53 = vector.load %arg4[%c0_60, %c0_61] : memref<1x128xf32, #tpu.memory_space<vmem>>, vector<1x128xf32>
    %54 = vector.shape_cast %53 : vector<1x128xf32> to vector<128xf32>
    %55 = vector.shape_cast %54 : vector<128xf32> to vector<1x128xf32>
    %56 = vector.broadcast %55 : vector<1x128xf32> to vector<256x128xf32>
    %57 = arith.addf %52, %56 : vector<256x128xf32>
    %cst_62 = arith.constant 0.000000e+00 : f32
    %58 = vector.broadcast %cst_62 : f32 to vector<256x128xf32>
    %59 = arith.maximumf %57, %58 : vector<256x128xf32>
    %60 = vector.shape_cast %59 : vector<256x128xf32> to vector<16x16x128xf32>
    %c1_63 = arith.constant 1 : index
    %c1_64 = arith.constant 1 : index
    %c0_65 = arith.constant 0 : index
    %61 = vector.load %arg9[%c1_63, %c1_64, %c0_65] : memref<18x18x128xf32, #tpu.memory_space<vmem>>, vector<16x16x128xf32>
    tpu.vector_store %arg9[%c1_63, %c1_64, %c0_65], %60 {strides = array<i32>} : memref<18x18x128xf32, #tpu.memory_space<vmem>>, vector<16x16x128xf32>,
    %c0_66 = arith.constant 0 : index
    %c0_67 = arith.constant 0 : index
    %c0_68 = arith.constant 0 : index
    %62 = vector.load %arg9[%c0_66, %c0_67, %c0_68] : memref<18x18x128xf32, #tpu.memory_space<vmem>>, vector<16x16x128xf32>
    %63 = vector.shape_cast %62 : vector<16x16x128xf32> to vector<256x128xf32>
    %64 = arith.truncf %63 : vector<256x128xf32> to vector<256x128xbf16>
    %c0_69 = arith.constant 0 : index
    %c0_70 = arith.constant 0 : index
    %65 = vector.load %arg10[%c0_69, %c0_70] : memref<256x1152xbf16, #tpu.memory_space<vmem>>, vector<256x128xbf16>
    tpu.vector_store %arg10[%c0_69, %c0_70], %64 {strides = array<i32>} : memref<256x1152xbf16, #tpu.memory_space<vmem>>, vector<256x128xbf16>,
    %c0_71 = arith.constant 0 : index
    %c1_72 = arith.constant 1 : index
    %c0_73 = arith.constant 0 : index
    %66 = vector.load %arg9[%c0_71, %c1_72, %c0_73] : memref<18x18x128xf32, #tpu.memory_space<vmem>>, vector<16x16x128xf32>
    %67 = vector.shape_cast %66 : vector<16x16x128xf32> to vector<256x128xf32>
    %68 = arith.truncf %67 : vector<256x128xf32> to vector<256x128xbf16>
    %c0_74 = arith.constant 0 : index
    %c128_75 = arith.constant 128 : index
    %69 = vector.load %arg10[%c0_74, %c128_75] : memref<256x1152xbf16, #tpu.memory_space<vmem>>, vector<256x128xbf16>
    tpu.vector_store %arg10[%c0_74, %c128_75], %68 {strides = array<i32>} : memref<256x1152xbf16, #tpu.memory_space<vmem>>, vector<256x128xbf16>,
    %c0_76 = arith.constant 0 : index
    %c2_77 = arith.constant 2 : index
    %c0_78 = arith.constant 0 : index
    %70 = vector.load %arg9[%c0_76, %c2_77, %c0_78] : memref<18x18x128xf32, #tpu.memory_space<vmem>>, vector<16x16x128xf32>
    %71 = vector.shape_cast %70 : vector<16x16x128xf32> to vector<256x128xf32>
    %72 = arith.truncf %71 : vector<256x128xf32> to vector<256x128xbf16>
    %c0_79 = arith.constant 0 : index
    %c256_80 = arith.constant 256 : index
    %73 = vector.load %arg10[%c0_79, %c256_80] : memref<256x1152xbf16, #tpu.memory_space<vmem>>, vector<256x128xbf16>
    tpu.vector_store %arg10[%c0_79, %c256_80], %72 {strides = array<i32>} : memref<256x1152xbf16, #tpu.memory_space<vmem>>, vector<256x128xbf16>,
    %c1_81 = arith.constant 1 : index
    %c0_82 = arith.constant 0 : index
    %c0_83 = arith.constant 0 : index
    %74 = vector.load %arg9[%c1_81, %c0_82, %c0_83] : memref<18x18x128xf32, #tpu.memory_space<vmem>>, vector<16x16x128xf32>
    %75 = vector.shape_cast %74 : vector<16x16x128xf32> to vector<256x128xf32>
    %76 = arith.truncf %75 : vector<256x128xf32> to vector<256x128xbf16>
    %c0_84 = arith.constant 0 : index
    %c384_85 = arith.constant 384 : index
    %77 = vector.load %arg10[%c0_84, %c384_85] : memref<256x1152xbf16, #tpu.memory_space<vmem>>, vector<256x128xbf16>
    tpu.vector_store %arg10[%c0_84, %c384_85], %76 {strides = array<i32>} : memref<256x1152xbf16, #tpu.memory_space<vmem>>, vector<256x128xbf16>,
    %c1_86 = arith.constant 1 : index
    %c1_87 = arith.constant 1 : index
    %c0_88 = arith.constant 0 : index
    %78 = vector.load %arg9[%c1_86, %c1_87, %c0_88] : memref<18x18x128xf32, #tpu.memory_space<vmem>>, vector<16x16x128xf32>
    %79 = vector.shape_cast %78 : vector<16x16x128xf32> to vector<256x128xf32>
    %80 = arith.truncf %79 : vector<256x128xf32> to vector<256x128xbf16>
    %c0_89 = arith.constant 0 : index
    %c512_90 = arith.constant 512 : index
    %81 = vector.load %arg10[%c0_89, %c512_90] : memref<256x1152xbf16, #tpu.memory_space<vmem>>, vector<256x128xbf16>
    tpu.vector_store %arg10[%c0_89, %c512_90], %80 {strides = array<i32>} : memref<256x1152xbf16, #tpu.memory_space<vmem>>, vector<256x128xbf16>,
    %c1_91 = arith.constant 1 : index
    %c2_92 = arith.constant 2 : index
    %c0_93 = arith.constant 0 : index
    %82 = vector.load %arg9[%c1_91, %c2_92, %c0_93] : memref<18x18x128xf32, #tpu.memory_space<vmem>>, vector<16x16x128xf32>
    %83 = vector.shape_cast %82 : vector<16x16x128xf32> to vector<256x128xf32>
    %84 = arith.truncf %83 : vector<256x128xf32> to vector<256x128xbf16>
    %c0_94 = arith.constant 0 : index
    %c640_95 = arith.constant 640 : index
    %85 = vector.load %arg10[%c0_94, %c640_95] : memref<256x1152xbf16, #tpu.memory_space<vmem>>, vector<256x128xbf16>
    tpu.vector_store %arg10[%c0_94, %c640_95], %84 {strides = array<i32>} : memref<256x1152xbf16, #tpu.memory_space<vmem>>, vector<256x128xbf16>,
    %c2_96 = arith.constant 2 : index
    %c0_97 = arith.constant 0 : index
    %c0_98 = arith.constant 0 : index
    %86 = vector.load %arg9[%c2_96, %c0_97, %c0_98] : memref<18x18x128xf32, #tpu.memory_space<vmem>>, vector<16x16x128xf32>
    %87 = vector.shape_cast %86 : vector<16x16x128xf32> to vector<256x128xf32>
    %88 = arith.truncf %87 : vector<256x128xf32> to vector<256x128xbf16>
    %c0_99 = arith.constant 0 : index
    %c768_100 = arith.constant 768 : index
    %89 = vector.load %arg10[%c0_99, %c768_100] : memref<256x1152xbf16, #tpu.memory_space<vmem>>, vector<256x128xbf16>
    tpu.vector_store %arg10[%c0_99, %c768_100], %88 {strides = array<i32>} : memref<256x1152xbf16, #tpu.memory_space<vmem>>, vector<256x128xbf16>,
    %c2_101 = arith.constant 2 : index
    %c1_102 = arith.constant 1 : index
    %c0_103 = arith.constant 0 : index
    %90 = vector.load %arg9[%c2_101, %c1_102, %c0_103] : memref<18x18x128xf32, #tpu.memory_space<vmem>>, vector<16x16x128xf32>
    %91 = vector.shape_cast %90 : vector<16x16x128xf32> to vector<256x128xf32>
    %92 = arith.truncf %91 : vector<256x128xf32> to vector<256x128xbf16>
    %c0_104 = arith.constant 0 : index
    %c896_105 = arith.constant 896 : index
    %93 = vector.load %arg10[%c0_104, %c896_105] : memref<256x1152xbf16, #tpu.memory_space<vmem>>, vector<256x128xbf16>
    tpu.vector_store %arg10[%c0_104, %c896_105], %92 {strides = array<i32>} : memref<256x1152xbf16, #tpu.memory_space<vmem>>, vector<256x128xbf16>,
    %c2_106 = arith.constant 2 : index
    %c2_107 = arith.constant 2 : index
    %c0_108 = arith.constant 0 : index
    %94 = vector.load %arg9[%c2_106, %c2_107, %c0_108] : memref<18x18x128xf32, #tpu.memory_space<vmem>>, vector<16x16x128xf32>
    %95 = vector.shape_cast %94 : vector<16x16x128xf32> to vector<256x128xf32>
    %96 = arith.truncf %95 : vector<256x128xf32> to vector<256x128xbf16>
    %c0_109 = arith.constant 0 : index
    %c1024_110 = arith.constant 1024 : index
    %97 = vector.load %arg10[%c0_109, %c1024_110] : memref<256x1152xbf16, #tpu.memory_space<vmem>>, vector<256x128xbf16>
    tpu.vector_store %arg10[%c0_109, %c1024_110], %96 {strides = array<i32>} : memref<256x1152xbf16, #tpu.memory_space<vmem>>, vector<256x128xbf16>,
    %c0_111 = arith.constant 0 : index
    %c0_112 = arith.constant 0 : index
    %98 = vector.load %arg10[%c0_111, %c0_112] : memref<256x1152xbf16, #tpu.memory_space<vmem>>, vector<256x1152xbf16>
    %c0_113 = arith.constant 0 : index
    %c0_114 = arith.constant 0 : index
    %99 = vector.load %arg5[%c0_113, %c0_114] : memref<1152x128xbf16, #tpu.memory_space<vmem>>, vector<1152x128xbf16>
    %cst_115 = arith.constant dense<0.000000e+00> : vector<256x128xf32>
    %100 = tpu.matmul %98, %99, %cst_115 {dimension_numbers = #tpu.dot_dimension_numbers<[1], [0], [0], [1], [0, 0, 1, 1], [], []>} : vector<256x1152xbf16>, vector<1152x128xbf16>, vector<256x128xf32> -> vector<256x128xf32>
    %101 = vector.shape_cast %1 : vector<16x16x128xf32> to vector<256x128xf32>
    %c0_116 = arith.constant 0 : index
    %c0_117 = arith.constant 0 : index
    %102 = vector.load %arg6[%c0_116, %c0_117] : memref<1x128xf32, #tpu.memory_space<vmem>>, vector<1x128xf32>
    %103 = vector.shape_cast %102 : vector<1x128xf32> to vector<128xf32>
    %104 = vector.shape_cast %103 : vector<128xf32> to vector<1x128xf32>
    %105 = vector.broadcast %104 : vector<1x128xf32> to vector<256x128xf32>
    %106 = arith.mulf %100, %105 : vector<256x128xf32>
    %c0_118 = arith.constant 0 : index
    %c0_119 = arith.constant 0 : index
    %107 = vector.load %arg7[%c0_118, %c0_119] : memref<1x128xf32, #tpu.memory_space<vmem>>, vector<1x128xf32>
    %108 = vector.shape_cast %107 : vector<1x128xf32> to vector<128xf32>
    %109 = vector.shape_cast %108 : vector<128xf32> to vector<1x128xf32>
    %110 = vector.broadcast %109 : vector<1x128xf32> to vector<256x128xf32>
    %111 = arith.addf %106, %110 : vector<256x128xf32>
    %112 = arith.addf %111, %101 : vector<256x128xf32>
    %cst_120 = arith.constant 0.000000e+00 : f32
    %113 = vector.broadcast %cst_120 : f32 to vector<256x128xf32>
    %114 = arith.maximumf %112, %113 : vector<256x128xf32>
    %115 = vector.shape_cast %114 : vector<256x128xf32> to vector<16x16x128xf32>
    %c0_121 = arith.constant 0 : index
    %c0_122 = arith.constant 0 : index
    %c0_123 = arith.constant 0 : index
    %c0_124 = arith.constant 0 : index
    %116 = vector.load %arg8[%c0_121, %c0_122, %c0_123, %c0_124] : memref<1x16x16x128xf32, #tpu.memory_space<vmem>>, vector<1x16x16x128xf32>
    %117 = vector.shape_cast %116 : vector<1x16x16x128xf32> to vector<16x16x128xf32>
    %118 = vector.shape_cast %115 : vector<16x16x128xf32> to vector<1x16x16x128xf32>
    tpu.vector_store %arg8[%c0_121, %c0_122, %c0_123, %c0_124], %118 {strides = array<i32>} : memref<1x16x16x128xf32, #tpu.memory_space<vmem>>, vector<1x16x16x128xf32>,
    return
  }
  func.func @transform_0(%arg0: i32) -> (i32, i32, i32, i32) {
    %c0_i32 = arith.constant 0 : i32
    %c0_i32_0 = arith.constant 0 : i32
    %c0_i32_1 = arith.constant 0 : i32
    %c0_i32_2 = arith.constant 0 : i32
    return %arg0, %c0_i32, %c0_i32_0, %c0_i32_1 : i32, i32, i32, i32
  }
  func.func @transform_1(%arg0: i32) -> (i32, i32) {
    %c0_i32 = arith.constant 0 : i32
    %c0_i32_0 = arith.constant 0 : i32
    %c0_i32_1 = arith.constant 0 : i32
    return %c0_i32, %c0_i32_0 : i32, i32
  }
  func.func @transform_2(%arg0: i32) -> (i32, i32) {
    %c0_i32 = arith.constant 0 : i32
    %c0_i32_0 = arith.constant 0 : i32
    %c0_i32_1 = arith.constant 0 : i32
    return %c0_i32, %c0_i32_0 : i32, i32
  }
  func.func @transform_3(%arg0: i32) -> (i32, i32) {
    %c0_i32 = arith.constant 0 : i32
    %c0_i32_0 = arith.constant 0 : i32
    %c0_i32_1 = arith.constant 0 : i32
    return %c0_i32, %c0_i32_0 : i32, i32
  }
  func.func @transform_4(%arg0: i32) -> (i32, i32) {
    %c0_i32 = arith.constant 0 : i32
    %c0_i32_0 = arith.constant 0 : i32
    %c0_i32_1 = arith.constant 0 : i32
    return %c0_i32, %c0_i32_0 : i32, i32
  }
  func.func @transform_5(%arg0: i32) -> (i32, i32) {
    %c0_i32 = arith.constant 0 : i32
    %c0_i32_0 = arith.constant 0 : i32
    %c0_i32_1 = arith.constant 0 : i32
    return %c0_i32, %c0_i32_0 : i32, i32
  }
  func.func @transform_6(%arg0: i32) -> (i32, i32) {
    %c0_i32 = arith.constant 0 : i32
    %c0_i32_0 = arith.constant 0 : i32
    %c0_i32_1 = arith.constant 0 : i32
    return %c0_i32, %c0_i32_0 : i32, i32
  }
  func.func @transform_7(%arg0: i32) -> (i32, i32, i32, i32) {
    %c0_i32 = arith.constant 0 : i32
    %c0_i32_0 = arith.constant 0 : i32
    %c0_i32_1 = arith.constant 0 : i32
    %c0_i32_2 = arith.constant 0 : i32
    return %arg0, %c0_i32, %c0_i32_0, %c0_i32_1 : i32, i32, i32, i32
  }
}

</mosaic_0001>

<llo_original>
// kernel: tpu_custom_call.1
$region0: #{tpu_custom_call.1}
  #allocation0 [shape = 'u32[]', space=smem, size = 0x4, offset = 0x4, fixed_abs, tag = 'smem constant byte address 0x4 - core index']
  #allocation1 [shape = 'u32[144,128]{1,0:T(1,128)}', space=vmem, size = 0x12000, scoped, tag = 'internal scratch']
  #allocation2 [shape = 'f32[18,18,128]{2,1,0:T(8,128)}', space=vmem, size = 0x36000, scoped, tag = 'scratch operand']
  #allocation3 [shape = 'bf16[256,1152]{1,0:T(8,128)(2,1)}', space=vmem, size = 0x90000, scoped, tag = 'scratch operand']
  %s0 = inlined_call_operand.hbm [shape: f32[2,16,16,128], index: 0, kind: input, shape index: {}]
  %s1 = inlined_call_operand.hbm [shape: bf16[1152,128], index: 1, kind: input, shape index: {}]
  %s2 = inlined_call_operand.vmem [shape: f32[1,128], index: 2, kind: input, shape index: {}]
  %s3 = inlined_call_operand.vmem [shape: f32[1,128], index: 3, kind: input, shape index: {}]
  %s4 = inlined_call_operand.hbm [shape: bf16[1152,128], index: 4, kind: input, shape index: {}]
  %s5 = inlined_call_operand.vmem [shape: f32[1,128], index: 5, kind: input, shape index: {}]
  %s6 = inlined_call_operand.vmem [shape: f32[1,128], index: 6, kind: input, shape index: {}]
  %s7 = inlined_call_operand.hbm [shape: f32[2,16,16,128], index: 7, kind: output, shape index: {}]
  %s8 = sld [smem:[#allocation0]]
  $region73: #{tpu_custom_call.1} parent=0
    _
  %s10 = ssub.s32 1, %s8
  %s11 = scalar_select 0, %s10, %s8
  $region1: #{tpu_custom_call.1} parent=0
    #allocation4 [shape = 'u8[262144]{0}', space=vmem, size = 0x40000, scoped, tag = 'input window, operand 0']
    #allocation5 [shape = 's32[2]{0}', space=sflag, size = 0x8, scoped, tag = 'scoped memory for tpu_custom_call.1']
    #allocation6 [shape = 's32[2]{0}', space=sflag, size = 0x8, scoped, tag = 'scoped memory for tpu_custom_call.1']
    #allocation7 [shape = 'u8[294912]{0}', space=vmem, size = 0x48000, scoped, tag = 'input window, operand 1, single buffered']
    #allocation8 [shape = 's32[1]{0}', space=sflag, size = 0x4, scoped, tag = 'scoped memory for tpu_custom_call.1']
    #allocation9 [shape = 'u8[294912]{0}', space=vmem, size = 0x48000, scoped, tag = 'input window, operand 4, single buffered']
    #allocation10 [shape = 'u8[262144]{0}', space=vmem, size = 0x40000, scoped, tag = 'output window, operand 0']
    %12 = vsyncpa [#allocation5], 0
    %s13 = scalar_lea.sflag [#allocation5], 1
    %14 = vsyncpa %s13, 0
    %15 = vsyncpa [#allocation8], 0
    %16 = vsyncpa [#allocation6], 0
    %s17 = scalar_lea.sflag [#allocation6], 1
    %18 = vsyncpa %s17, 0
    loop: start=0, step=1, limit=4
    $region2: #{tpu_custom_call.1} parent=1 // loop_pre_header
      _
    $region3: #{tpu_custom_call.1} parent=1 // loop_header
      %s20 = sphi 0, %s24
      %p21 = scmp.ge.s32.totalorder %s20, 4
      %s30 = sphi 0, %s32
      %s33 = sphi 0, %s30
      %s34 = sphi 0, %s33
      %s50 = sphi 0, %s34
      %s54 = sphi 0, %s54
      %s56 = sphi 0, %s54
      %s57 = sphi 0, %s56
      %s71 = sphi 0, %s57
      %s75 = sphi 0, %s75
      %s77 = sphi 0, %s75
      %s78 = sphi 0, %s77
      %s92 = sphi 0, %s78
      %s96 = sphi 0, %s96
      %s98 = sphi 0, %s96
      %s99 = sphi 0, %s98
      %s113 = sphi 0, %s99
      %s117 = sphi 0, %s117
      %s119 = sphi 0, %s117
      %s120 = sphi 0, %s119
      %s134 = sphi 0, %s120
      %s138 = sphi 0, %s138
      %s140 = sphi 0, %s138
      %s141 = sphi 0, %s140
      %s155 = sphi 0, %s141
      %s159 = sphi 0, %s159
      %s161 = sphi 0, %s159
      %s162 = sphi 0, %s161
      %s176 = sphi 0, %s162
      %s182 = sphi 0, %s184
      %s185 = sphi 0, %s182
      %s186 = sphi 0, %s185
      %s202 = sphi 0, %s186
    $region4: #{tpu_custom_call.1} parent=1 // loop_header_branch
      %23 = sbr.rel (%p21) target = $region8
    $region5: #{tpu_custom_call.1} parent=1 // loop_body
      %s25 = ssub.s32 %s20, 1
      %s26 = ssub.s32 %s20, 2
      %s27 = sadd.s32 %s20, 1
      %s28 = ssub.s32 %s20, %s27
      %p29 = scmp.eq.s32.totalorder %s28, 0
      %s31 = sadd.s32 %s30, 1
      %s32 = scalar_select %p29, %s30, %s31
      %p35 = pneg %p29
      %p36 = scmp.eq.s32.totalorder %s20, 1
      %p37 = por %p35, %p36
      %p38 = scmp.ne.s32.totalorder %s30, %s33
      %p39 = scmp.eq.s32.totalorder %s20, 0
      %p40 = por %p38, %p39
      %p41 = scmp.ne.s32.totalorder %s30, %s33
      %p42 = scmp.eq.s32.totalorder %s25, 1
      %p43 = por %p41, %p42
      %p44 = scmp.ne.s32.totalorder %s33, %s34
      %p45 = scmp.eq.s32.totalorder %s25, 0
      %p46 = por %p44, %p45
      %p47 = scmp.ne.s32.totalorder %s33, %s34
      %p48 = scmp.eq.s32.totalorder %s26, 1
      %p49 = por %p47, %p48
      %p51 = scmp.ne.s32.totalorder %s34, %s50
      %p52 = scmp.eq.s32.totalorder %s26, 0
      %p53 = por %p51, %p52
      %s55 = sadd.s32 %s54, 1
      %p58 = scmp.eq.s32.totalorder %s20, 1
      %p59 = scmp.ne.s32.totalorder %s54, %s56
      %p60 = scmp.eq.s32.totalorder %s20, 0
      %p61 = por %p59, %p60
      %p62 = scmp.ne.s32.totalorder %s54, %s56
      %p63 = scmp.eq.s32.totalorder %s25, 1
      %p64 = por %p62, %p63
      %p65 = scmp.ne.s32.totalorder %s56, %s57
      %p66 = scmp.eq.s32.totalorder %s25, 0
      %p67 = por %p65, %p66
      %p68 = scmp.ne.s32.totalorder %s56, %s57
      %p69 = scmp.eq.s32.totalorder %s26, 1
      %p70 = por %p68, %p69
      %p72 = scmp.ne.s32.totalorder %s57, %s71
      %p73 = scmp.eq.s32.totalorder %s26, 0
      %p74 = por %p72, %p73
      %s76 = sadd.s32 %s75, 1
      %p79 = scmp.eq.s32.totalorder %s20, 1
      %p80 = scmp.ne.s32.totalorder %s75, %s77
      %p81 = scmp.eq.s32.totalorder %s20, 0
      %p82 = por %p80, %p81
      %p83 = scmp.ne.s32.totalorder %s75, %s77
      %p84 = scmp.eq.s32.totalorder %s25, 1
      %p85 = por %p83, %p84
      %p86 = scmp.ne.s32.totalorder %s77, %s78
      %p87 = scmp.eq.s32.totalorder %s25, 0
      %p88 = por %p86, %p87
      %p89 = scmp.ne.s32.totalorder %s77, %s78
      %p90 = scmp.eq.s32.totalorder %s26, 1
      %p91 = por %p89, %p90
      %p93 = scmp.ne.s32.totalorder %s78, %s92
      %p94 = scmp.eq.s32.totalorder %s26, 0
      %p95 = por %p93, %p94
      %s97 = sadd.s32 %s96, 1
      %p100 = scmp.eq.s32.totalorder %s20, 1
      %p101 = scmp.ne.s32.totalorder %s96, %s98
      %p102 = scmp.eq.s32.totalorder %s20, 0
      %p103 = por %p101, %p102
      %p104 = scmp.ne.s32.totalorder %s96, %s98
      %p105 = scmp.eq.s32.totalorder %s25, 1
      %p106 = por %p104, %p105
      %p107 = scmp.ne.s32.totalorder %s98, %s99
      %p108 = scmp.eq.s32.totalorder %s25, 0
      %p109 = por %p107, %p108
      %p110 = scmp.ne.s32.totalorder %s98, %s99
      %p111 = scmp.eq.s32.totalorder %s26, 1
      %p112 = por %p110, %p111
      %p114 = scmp.ne.s32.totalorder %s99, %s113
      %p115 = scmp.eq.s32.totalorder %s26, 0
      %p116 = por %p114, %p115
      %s118 = sadd.s32 %s117, 1
      %p121 = scmp.eq.s32.totalorder %s20, 1
      %p122 = scmp.ne.s32.totalorder %s117, %s119
      %p123 = scmp.eq.s32.totalorder %s20, 0
      %p124 = por %p122, %p123
      %p125 = scmp.ne.s32.totalorder %s117, %s119
      %p126 = scmp.eq.s32.totalorder %s25, 1
      %p127 = por %p125, %p126
      %p128 = scmp.ne.s32.totalorder %s119, %s120
      %p129 = scmp.eq.s32.totalorder %s25, 0
      %p130 = por %p128, %p129
      %p131 = scmp.ne.s32.totalorder %s119, %s120
      %p132 = scmp.eq.s32.totalorder %s26, 1
      %p133 = por %p131, %p132
      %p135 = scmp.ne.s32.totalorder %s120, %s134
      %p136 = scmp.eq.s32.totalorder %s26, 0
      %p137 = por %p135, %p136
      %s139 = sadd.s32 %s138, 1
      %p142 = scmp.eq.s32.totalorder %s20, 1
      %p143 = scmp.ne.s32.totalorder %s138, %s140
      %p144 = scmp.eq.s32.totalorder %s20, 0
      %p145 = por %p143, %p144
      %p146 = scmp.ne.s32.totalorder %s138, %s140
      %p147 = scmp.eq.s32.totalorder %s25, 1
      %p148 = por %p146, %p147
      %p149 = scmp.ne.s32.totalorder %s140, %s141
      %p150 = scmp.eq.s32.totalorder %s25, 0
      %p151 = por %p149, %p150
      %p152 = scmp.ne.s32.totalorder %s140, %s141
      %p153 = scmp.eq.s32.totalorder %s26, 1
      %p154 = por %p152, %p153
      %p156 = scmp.ne.s32.totalorder %s141, %s155
      %p157 = scmp.eq.s32.totalorder %s26, 0
      %p158 = por %p156, %p157
      %s160 = sadd.s32 %s159, 1
      %p163 = scmp.eq.s32.totalorder %s20, 1
      %p164 = scmp.ne.s32.totalorder %s159, %s161
      %p165 = scmp.eq.s32.totalorder %s20, 0
      %p166 = por %p164, %p165
      %p167 = scmp.ne.s32.totalorder %s159, %s161
      %p168 = scmp.eq.s32.totalorder %s25, 1
      %p169 = por %p167, %p168
      %p170 = scmp.ne.s32.totalorder %s161, %s162
      %p171 = scmp.eq.s32.totalorder %s25, 0
      %p172 = por %p170, %p171
      %p173 = scmp.ne.s32.totalorder %s161, %s162
      %p174 = scmp.eq.s32.totalorder %s26, 1
      %p175 = por %p173, %p174
      %p177 = scmp.ne.s32.totalorder %s162, %s176
      %p178 = scmp.eq.s32.totalorder %s26, 0
      %p179 = por %p177, %p178
      %s180 = ssub.s32 %s20, %s27
      %p181 = scmp.eq.s32.totalorder %s180, 0
      %s183 = sadd.s32 %s182, 1
      %s184 = scalar_select %p181, %s182, %s183
      %p187 = pneg %p181
      %p188 = scmp.eq.s32.totalorder %s20, 1
      %p189 = por %p187, %p188
      %p190 = scmp.ne.s32.totalorder %s182, %s185
      %p191 = scmp.eq.s32.totalorder %s20, 0
      %p192 = por %p190, %p191
      %p193 = scmp.ne.s32.totalorder %s182, %s185
      %p194 = scmp.eq.s32.totalorder %s25, 1
      %p195 = por %p193, %p194
      %p196 = scmp.ne.s32.totalorder %s185, %s186
      %p197 = scmp.eq.s32.totalorder %s25, 0
      %p198 = por %p196, %p197
      %p199 = scmp.ne.s32.totalorder %s185, %s186
      %p200 = scmp.eq.s32.totalorder %s26, 1
      %p201 = por %p199, %p200
      %p203 = scmp.ne.s32.totalorder %s186, %s202
      %p204 = scmp.eq.s32.totalorder %s26, 0
      %p205 = por %p203, %p204
      %p206 = scmp.le.s32.totalorder 1, %s20
      %p207 = scmp.lt.s32.totalorder %s20, 3
      %p208 = pnand %p206, %p207
      %p209 = pneg %p208
      // Predicated region
      $region9: #{tpu_custom_call.1} parent=5 // pred_check
        _
      $region10: #{tpu_custom_call.1} parent=5 // pred_check_branch
        %211 = sbr.rel (%p208) target = $region12
      $region11: #{tpu_custom_call.1} parent=5 // pred_region
        %s212 = ssub.s32 %s20, 1
        // Predicated region
        $region13: #{tpu_custom_call.1} parent=11 // pred_check
          %p213 = pneg %p67
        $region14: #{tpu_custom_call.1} parent=11 // pred_check_branch
          %215 = sbr.rel (%p213) target = $region16
        $region15: #{tpu_custom_call.1} parent=11 // pred_region
          %s217 = ssub.s32 9216, 9216
          %218 = vsyncadd [#allocation8], %s217
          %s219 = sshll.u32 [#allocation7], 4
          %s220 = int_to_ptr.vmem [resolvable:$true] %s219
          %225 = dma.hbm_to_vmem [thread:$0]  %s1, 9216, %s220, [#allocation8], 64, 64, 4
        $region16: #{tpu_custom_call.1} parent=11 // pred_fallthru
          _
        // Predicated region
        $region17: #{tpu_custom_call.1} parent=11 // pred_check
          %p226 = pneg %p88
        $region18: #{tpu_custom_call.1} parent=11 // pred_check_branch
          %228 = sbr.rel (%p226) target = $region20
        $region19: #{tpu_custom_call.1} parent=11 // pred_region
          _
        $region20: #{tpu_custom_call.1} parent=11 // pred_fallthru
          _
        // Predicated region
        $region21: #{tpu_custom_call.1} parent=11 // pred_check
          %p229 = pneg %p109
        $region22: #{tpu_custom_call.1} parent=11 // pred_check_branch
          %231 = sbr.rel (%p229) target = $region24
        $region23: #{tpu_custom_call.1} parent=11 // pred_region
          _
        $region24: #{tpu_custom_call.1} parent=11 // pred_fallthru
          _
        // Predicated region
        $region25: #{tpu_custom_call.1} parent=11 // pred_check
          %p232 = pneg %p130
        $region26: #{tpu_custom_call.1} parent=11 // pred_check_branch
          %234 = sbr.rel (%p232) target = $region28
        $region27: #{tpu_custom_call.1} parent=11 // pred_region
          %s236 = ssub.s32 9216, 9216
          %237 = vsyncadd [#allocation8], %s236
          %s238 = sshll.u32 [#allocation9], 4
          %s239 = int_to_ptr.vmem [resolvable:$true] %s238
          %244 = dma.hbm_to_vmem [thread:$0]  %s4, 9216, %s239, [#allocation8], 64, 64, 4
        $region28: #{tpu_custom_call.1} parent=11 // pred_fallthru
          _
        // Predicated region
        $region29: #{tpu_custom_call.1} parent=11 // pred_check
          %p245 = pneg %p151
        $region30: #{tpu_custom_call.1} parent=11 // pred_check_branch
          %247 = sbr.rel (%p245) target = $region32
        $region31: #{tpu_custom_call.1} parent=11 // pred_region
          _
        $region32: #{tpu_custom_call.1} parent=11 // pred_fallthru
          _
        // Predicated region
        $region33: #{tpu_custom_call.1} parent=11 // pred_check
          %p248 = pneg %p172
        $region34: #{tpu_custom_call.1} parent=11 // pred_check_branch
          %250 = sbr.rel (%p248) target = $region36
        $region35: #{tpu_custom_call.1} parent=11 // pred_region
          _
        $region36: #{tpu_custom_call.1} parent=11 // pred_fallthru
          _
      $region12: #{tpu_custom_call.1} parent=5 // pred_fallthru
        _
      %p251 = scmp.lt.s32.totalorder %s20, 2
      // Predicated region
      $region37: #{tpu_custom_call.1} parent=5 // pred_check
        %p252 = pneg %p251
      $region38: #{tpu_custom_call.1} parent=5 // pred_check_branch
        %254 = sbr.rel (%p252) target = $region40
      $region39: #{tpu_custom_call.1} parent=5 // pred_region
        // Predicated region
        $region41: #{tpu_custom_call.1} parent=39 // pred_check
          %p255 = pneg %p40
        $region42: #{tpu_custom_call.1} parent=39 // pred_check_branch
          %257 = sbr.rel (%p255) target = $region44
        $region43: #{tpu_custom_call.1} parent=39 // pred_region
          %s258 = sand.u32 %s30, 1
          %s259 = scalar_lea.sflag [#allocation5], %s258
          %s260 = sand.u32 %s30, 1
          %s261 = smul.addr %s260, 256
          %s262 = scalar_lea.vmem [#allocation4], %s261
          %s264 = ssub.s32 4096, 4096
          %265 = vsyncadd %s259, %s264
          %s266 = smul.addr %s20, 32
          %s267 = smul.addr %s266, 128
          %s268 = scalar_lea.hbm %s0, %s267
          %s269 = sshll.u32 %s262, 4
          %s270 = int_to_ptr.vmem [resolvable:$true] %s269
          %275 = dma.hbm_to_vmem [thread:$0]  %s268, 4096, %s270, %s259, 128, 128, 8
        $region44: #{tpu_custom_call.1} parent=39 // pred_fallthru
          _
      $region40: #{tpu_custom_call.1} parent=5 // pred_fallthru
        _
      %p276 = scmp.le.s32.totalorder 1, %s20
      %p277 = scmp.lt.s32.totalorder %s20, 3
      %p278 = pnand %p276, %p277
      %p279 = pneg %p278
      // Predicated region
      $region45: #{tpu_custom_call.1} parent=5 // pred_check
        _
      $region46: #{tpu_custom_call.1} parent=5 // pred_check_branch
        %281 = sbr.rel (%p278) target = $region48
      $region47: #{tpu_custom_call.1} parent=5 // pred_region
        %s282 = ssub.s32 %s20, 1
        %s283 = sand.u32 %s33, 1
        %s284 = scalar_lea.sflag [#allocation5], %s283
        %s285 = sand.u32 %s33, 1
        %s286 = smul.addr %s285, 256
        %s287 = scalar_lea.vmem [#allocation4], %s286
        // Predicated region
        $region49: #{tpu_custom_call.1} parent=47 // pred_check
          %p288 = pneg %p46
        $region50: #{tpu_custom_call.1} parent=47 // pred_check_branch
          %290 = sbr.rel (%p288) target = $region52
        $region51: #{tpu_custom_call.1} parent=47 // pred_region
          %291 = dma.done %s284, 4096
        $region52: #{tpu_custom_call.1} parent=47 // pred_fallthru
          _
        // Predicated region
        $region53: #{tpu_custom_call.1} parent=47 // pred_check
          %p292 = pneg %p67
        $region54: #{tpu_custom_call.1} parent=47 // pred_check_branch
          %294 = sbr.rel (%p292) target = $region56
        $region55: #{tpu_custom_call.1} parent=47 // pred_region
          %295 = dma.done [#allocation8], 9216
        $region56: #{tpu_custom_call.1} parent=47 // pred_fallthru
          _
        // Predicated region
        $region57: #{tpu_custom_call.1} parent=47 // pred_check
          %p296 = pneg %p130
        $region58: #{tpu_custom_call.1} parent=47 // pred_check_branch
          %298 = sbr.rel (%p296) target = $region60
        $region59: #{tpu_custom_call.1} parent=47 // pred_region
          %299 = dma.done [#allocation8], 9216
        $region60: #{tpu_custom_call.1} parent=47 // pred_fallthru
          _
        %s300 = sand.u32 %s33, 1
        %s301 = scalar_lea.sflag [#allocation5], %s300
        %s302 = sand.u32 %s33, 1
        %s303 = smul.addr %s302, 256
        %s304 = scalar_lea.vmem [#allocation4], %s303
        %p305 = pneg %p46
        %p306 = pneg %p43
        %p307 = pneg %p67
        %p308 = pneg %p64
        %p309 = pneg %p88
        %p310 = pneg %p85
        %p311 = pneg %p109
        %p312 = pneg %p106
        %p313 = pneg %p130
        %p314 = pneg %p127
        %p315 = pneg %p151
        %p316 = pneg %p148
        %p317 = pneg %p172
        %p318 = pneg %p169
        %p319 = pneg %p198
        %p320 = pneg %p195
        %s321 = sand.u32 %s185, 1
        %s322 = scalar_lea.sflag [#allocation6], %s321
        %s323 = sand.u32 %s185, 1
        %s324 = smul.addr %s323, 256
        %s325 = scalar_lea.vmem [#allocation10], %s324
        %v327 = vld [vmem:[%s287] sm:$0xff]
        %v328 = vld [vmem:[%s287 + $0x8] sm:$0xff]
        %v329 = vld [vmem:[%s287 + $0x10] sm:$0xff]
        %v330 = vld [vmem:[%s287 + $0x18] sm:$0xff]
        %v331 = vld [vmem:[%s287 + $0x20] sm:$0xff]
        %v332 = vld [vmem:[%s287 + $0x28] sm:$0xff]
        %v333 = vld [vmem:[%s287 + $0x30] sm:$0xff]
        %v334 = vld [vmem:[%s287 + $0x38] sm:$0xff]
        %v335 = vld [vmem:[%s287 + $0x40] sm:$0xff]
        %v336 = vld [vmem:[%s287 + $0x48] sm:$0xff]
        %v337 = vld [vmem:[%s287 + $0x50] sm:$0xff]
        %v338 = vld [vmem:[%s287 + $0x58] sm:$0xff]
        %v339 = vld [vmem:[%s287 + $0x60] sm:$0xff]
        %v340 = vld [vmem:[%s287 + $0x68] sm:$0xff]
        %v341 = vld [vmem:[%s287 + $0x70] sm:$0xff]
        %v342 = vld [vmem:[%s287 + $0x78] sm:$0xff]
        %v343 = vld [vmem:[%s287 + $0x80] sm:$0xff]
        %v344 = vld [vmem:[%s287 + $0x88] sm:$0xff]
        %v345 = vld [vmem:[%s287 + $0x90] sm:$0xff]
        %v346 = vld [vmem:[%s287 + $0x98] sm:$0xff]
        %v347 = vld [vmem:[%s287 + $0xa0] sm:$0xff]
        %v348 = vld [vmem:[%s287 + $0xa8] sm:$0xff]
        %v349 = vld [vmem:[%s287 + $0xb0] sm:$0xff]
        %v350 = vld [vmem:[%s287 + $0xb8] sm:$0xff]
        %v351 = vld [vmem:[%s287 + $0xc0] sm:$0xff]
        %v352 = vld [vmem:[%s287 + $0xc8] sm:$0xff]
        %v353 = vld [vmem:[%s287 + $0xd0] sm:$0xff]
        %v354 = vld [vmem:[%s287 + $0xd8] sm:$0xff]
        %v355 = vld [vmem:[%s287 + $0xe0] sm:$0xff]
        %v356 = vld [vmem:[%s287 + $0xe8] sm:$0xff]
        %v357 = vld [vmem:[%s287 + $0xf0] sm:$0xff]
        %v358 = vld [vmem:[%s287 + $0xf8] sm:$0xff]
        %359 = vst [vmem:[#allocation2] sm:$0xff] 0.0
        %360 = vst [vmem:[#allocation2 + $0x8] sm:$0xff] 0.0
        %361 = vst [vmem:[#allocation2 + $0x10] sm:$0x3] 0.0
        %s362 = scalar_lea.vmem [#allocation2], 408
        %363 = vst [vmem:[%s362] sm:$0xff] 0.0
        %364 = vst [vmem:[%s362 + $0x8] sm:$0xff] 0.0
        %365 = vst [vmem:[%s362 + $0x10] sm:$0x3] 0.0
        %366 = vst [vmem:[#allocation2] sm:$0x1] 0.0
        %367 = vst [vmem:[#allocation2 + $0x18] sm:$0x1] 0.0
        %368 = vst [vmem:[#allocation2 + $0x30] sm:$0x1] 0.0
        %369 = vst [vmem:[#allocation2 + $0x48] sm:$0x1] 0.0
        %370 = vst [vmem:[#allocation2 + $0x60] sm:$0x1] 0.0
        %371 = vst [vmem:[#allocation2 + $0x78] sm:$0x1] 0.0
        %372 = vst [vmem:[#allocation2 + $0x90] sm:$0x1] 0.0
        %373 = vst [vmem:[#allocation2 + $0xa8] sm:$0x1] 0.0
        %374 = vst [vmem:[#allocation2 + $0xc0] sm:$0x1] 0.0
        %375 = vst [vmem:[#allocation2 + $0xd8] sm:$0x1] 0.0
        %376 = vst [vmem:[#allocation2 + $0xf0] sm:$0x1] 0.0
        %377 = vst [vmem:[#allocation2 + $0x108] sm:$0x1] 0.0
        %378 = vst [vmem:[#allocation2 + $0x120] sm:$0x1] 0.0
        %379 = vst [vmem:[#allocation2 + $0x138] sm:$0x1] 0.0
        %380 = vst [vmem:[#allocation2 + $0x150] sm:$0x1] 0.0
        %381 = vst [vmem:[#allocation2 + $0x168] sm:$0x1] 0.0
        %382 = vst [vmem:[#allocation2 + $0x180] sm:$0x1] 0.0
        %383 = vst [vmem:[#allocation2 + $0x198] sm:$0x1] 0.0
        %384 = vst [vmem:[#allocation2 + $0x11] sm:$0x1] 0.0
        %385 = vst [vmem:[#allocation2 + $0x29] sm:$0x1] 0.0
        %386 = vst [vmem:[#allocation2 + $0x41] sm:$0x1] 0.0
        %387 = vst [vmem:[#allocation2 + $0x59] sm:$0x1] 0.0
        %388 = vst [vmem:[#allocation2 + $0x71] sm:$0x1] 0.0
        %389 = vst [vmem:[#allocation2 + $0x89] sm:$0x1] 0.0
        %390 = vst [vmem:[#allocation2 + $0xa1] sm:$0x1] 0.0
        %391 = vst [vmem:[#allocation2 + $0xb9] sm:$0x1] 0.0
        %392 = vst [vmem:[#allocation2 + $0xd1] sm:$0x1] 0.0
        %393 = vst [vmem:[#allocation2 + $0xe9] sm:$0x1] 0.0
        %394 = vst [vmem:[#allocation2 + $0x101] sm:$0x1] 0.0
        %395 = vst [vmem:[#allocation2 + $0x119] sm:$0x1] 0.0
        %396 = vst [vmem:[#allocation2 + $0x131] sm:$0x1] 0.0
        %397 = vst [vmem:[#allocation2 + $0x149] sm:$0x1] 0.0
        %398 = vst [vmem:[#allocation2 + $0x161] sm:$0x1] 0.0
        %399 = vst [vmem:[#allocation2 + $0x179] sm:$0x1] 0.0
        %400 = vst [vmem:[#allocation2 + $0x191] sm:$0x1] 0.0
        %401 = vst [vmem:[#allocation2 + $0x1a9] sm:$0x1] 0.0
        %s402 = scalar_lea.vmem [#allocation2], 24
        %403 = vst [vmem:[%s402 + $0x1] sm:$0xff] %v327
        %404 = vst [vmem:[%s402 + $0x9] sm:$0xff] %v328
        %405 = vst [vmem:[%s402 + $0x19] sm:$0xff] %v329
        %406 = vst [vmem:[%s402 + $0x21] sm:$0xff] %v330
        %407 = vst [vmem:[%s402 + $0x31] sm:$0xff] %v331
        %408 = vst [vmem:[%s402 + $0x39] sm:$0xff] %v332
        %409 = vst [vmem:[%s402 + $0x49] sm:$0xff] %v333
        %410 = vst [vmem:[%s402 + $0x51] sm:$0xff] %v334
        %411 = vst [vmem:[%s402 + $0x61] sm:$0xff] %v335
        %412 = vst [vmem:[%s402 + $0x69] sm:$0xff] %v336
        %413 = vst [vmem:[%s402 + $0x79] sm:$0xff] %v337
        %414 = vst [vmem:[%s402 + $0x81] sm:$0xff] %v338
        %415 = vst [vmem:[%s402 + $0x91] sm:$0xff] %v339
        %416 = vst [vmem:[%s402 + $0x99] sm:$0xff] %v340
        %417 = vst [vmem:[%s402 + $0xa9] sm:$0xff] %v341
        %418 = vst [vmem:[%s402 + $0xb1] sm:$0xff] %v342
        %419 = vst [vmem:[%s402 + $0xc1] sm:$0xff] %v343
        %420 = vst [vmem:[%s402 + $0xc9] sm:$0xff] %v344
        %421 = vst [vmem:[%s402 + $0xd9] sm:$0xff] %v345
        %422 = vst [vmem:[%s402 + $0xe1] sm:$0xff] %v346
        %423 = vst [vmem:[%s402 + $0xf1] sm:$0xff] %v347
        %424 = vst [vmem:[%s402 + $0xf9] sm:$0xff] %v348
        %425 = vst [vmem:[%s402 + $0x109] sm:$0xff] %v349
        %426 = vst [vmem:[%s402 + $0x111] sm:$0xff] %v350
        %427 = vst [vmem:[%s402 + $0x121] sm:$0xff] %v351
        %428 = vst [vmem:[%s402 + $0x129] sm:$0xff] %v352
        %429 = vst [vmem:[%s402 + $0x139] sm:$0xff] %v353
        %430 = vst [vmem:[%s402 + $0x141] sm:$0xff] %v354
        %431 = vst [vmem:[%s402 + $0x151] sm:$0xff] %v355
        %432 = vst [vmem:[%s402 + $0x159] sm:$0xff] %v356
        %433 = vst [vmem:[%s402 + $0x169] sm:$0xff] %v357
        %434 = vst [vmem:[%s402 + $0x171] sm:$0xff] %v358
        %v435 = vld [vmem:[#allocation2] sm:$0xff]
        %v436 = vld [vmem:[#allocation2 + $0x8] sm:$0xff]
        %v437 = vld [vmem:[#allocation2 + $0x18] sm:$0xff]
        %v438 = vld [vmem:[#allocation2 + $0x20] sm:$0xff]
        %v439 = vld [vmem:[#allocation2 + $0x30] sm:$0xff]
        %v440 = vld [vmem:[#allocation2 + $0x38] sm:$0xff]
        %v441 = vld [vmem:[#allocation2 + $0x48] sm:$0xff]
        %v442 = vld [vmem:[#allocation2 + $0x50] sm:$0xff]
        %v443 = vld [vmem:[#allocation2 + $0x60] sm:$0xff]
        %v444 = vld [vmem:[#allocation2 + $0x68] sm:$0xff]
        %v445 = vld [vmem:[#allocation2 + $0x78] sm:$0xff]
        %v446 = vld [vmem:[#allocation2 + $0x80] sm:$0xff]
        %v447 = vld [vmem:[#allocation2 + $0x90] sm:$0xff]
        %v448 = vld [vmem:[#allocation2 + $0x98] sm:$0xff]
        %v449 = vld [vmem:[#allocation2 + $0xa8] sm:$0xff]
        %v450 = vld [vmem:[#allocation2 + $0xb0] sm:$0xff]
        %v451 = vld [vmem:[#allocation2 + $0xc0] sm:$0xff]
        %v452 = vld [vmem:[#allocation2 + $0xc8] sm:$0xff]
        %v453 = vld [vmem:[#allocation2 + $0xd8] sm:$0xff]
        %v454 = vld [vmem:[#allocation2 + $0xe0] sm:$0xff]
        %v455 = vld [vmem:[#allocation2 + $0xf0] sm:$0xff]
        %v456 = vld [vmem:[#allocation2 + $0xf8] sm:$0xff]
        %v457 = vld [vmem:[#allocation2 + $0x108] sm:$0xff]
        %v458 = vld [vmem:[#allocation2 + $0x110] sm:$0xff]
        %v459 = vld [vmem:[#allocation2 + $0x120] sm:$0xff]
        %v460 = vld [vmem:[#allocation2 + $0x128] sm:$0xff]
        %v461 = vld [vmem:[#allocation2 + $0x138] sm:$0xff]
        %v462 = vld [vmem:[#allocation2 + $0x140] sm:$0xff]
        %v463 = vld [vmem:[#allocation2 + $0x150] sm:$0xff]
        %v464 = vld [vmem:[#allocation2 + $0x158] sm:$0xff]
        %v465 = vld [vmem:[#allocation2 + $0x168] sm:$0xff]
        %v466 = vld [vmem:[#allocation2 + $0x170] sm:$0xff]
        %v467 = vpack.c.bf16 %v436, %v435
        %v468 = vpack.c.bf16 %v438, %v437
        %v469 = vpack.c.bf16 %v440, %v439
        %v470 = vpack.c.bf16 %v442, %v441
        %v471 = vpack.c.bf16 %v444, %v443
        %v472 = vpack.c.bf16 %v446, %v445
        %v473 = vpack.c.bf16 %v448, %v447
        %v474 = vpack.c.bf16 %v450, %v449
        %v475 = vpack.c.bf16 %v452, %v451
        %v476 = vpack.c.bf16 %v454, %v453
        %v477 = vpack.c.bf16 %v456, %v455
        %v478 = vpack.c.bf16 %v458, %v457
        %v479 = vpack.c.bf16 %v460, %v459
        %v480 = vpack.c.bf16 %v462, %v461
        %v481 = vpack.c.bf16 %v464, %v463
        %v482 = vpack.c.bf16 %v466, %v465
        %v499 = vunpack.c.l.b16 %v467
        %v500 = vunpack.c.h.b16 %v467
        %v501 = vunpack.c.l.b16 %v468
        %v502 = vunpack.c.h.b16 %v468
        %v503 = vunpack.c.l.b16 %v469
        %v504 = vunpack.c.h.b16 %v469
        %v505 = vunpack.c.l.b16 %v470
        %v506 = vunpack.c.h.b16 %v470
        %v507 = vunpack.c.l.b16 %v471
        %v508 = vunpack.c.h.b16 %v471
        %v509 = vunpack.c.l.b16 %v472
        %v510 = vunpack.c.h.b16 %v472
        %v511 = vunpack.c.l.b16 %v473
        %v512 = vunpack.c.h.b16 %v473
        %v513 = vunpack.c.l.b16 %v474
        %v514 = vunpack.c.h.b16 %v474
        %v515 = vunpack.c.l.b16 %v475
        %v516 = vunpack.c.h.b16 %v475
        %v517 = vunpack.c.l.b16 %v476
        %v518 = vunpack.c.h.b16 %v476
        %v519 = vunpack.c.l.b16 %v477
        %v520 = vunpack.c.h.b16 %v477
        %v521 = vunpack.c.l.b16 %v478
        %v522 = vunpack.c.h.b16 %v478
        %v523 = vunpack.c.l.b16 %v479
        %v524 = vunpack.c.h.b16 %v479
        %v525 = vunpack.c.l.b16 %v480
        %v526 = vunpack.c.h.b16 %v480
        %v527 = vunpack.c.l.b16 %v481
        %v528 = vunpack.c.h.b16 %v481
        %v529 = vunpack.c.l.b16 %v482
        %v530 = vunpack.c.h.b16 %v482
        %v531 = vpack.c.b16 %v499, %v499
        %v532 = vpack.c.b16 %v500, %v500
        %v533 = vpack.c.b16 %v501, %v501
        %v534 = vpack.c.b16 %v502, %v502
        %v535 = vpack.c.b16 %v503, %v503
        %v536 = vpack.c.b16 %v504, %v504
        %v537 = vpack.c.b16 %v505, %v505
        %v538 = vpack.c.b16 %v506, %v506
        %v539 = vpack.c.b16 %v507, %v507
        %v540 = vpack.c.b16 %v508, %v508
        %v541 = vpack.c.b16 %v509, %v509
        %v542 = vpack.c.b16 %v510, %v510
        %v543 = vpack.c.b16 %v511, %v511
        %v544 = vpack.c.b16 %v512, %v512
        %v545 = vpack.c.b16 %v513, %v513
        %v546 = vpack.c.b16 %v514, %v514
        %v547 = vpack.c.b16 %v515, %v515
        %v548 = vpack.c.b16 %v516, %v516
        %v549 = vpack.c.b16 %v517, %v517
        %v550 = vpack.c.b16 %v518, %v518
        %v551 = vpack.c.b16 %v519, %v519
        %v552 = vpack.c.b16 %v520, %v520
        %v553 = vpack.c.b16 %v521, %v521
        %v554 = vpack.c.b16 %v522, %v522
        %v555 = vpack.c.b16 %v523, %v523
        %v556 = vpack.c.b16 %v524, %v524
        %v557 = vpack.c.b16 %v525, %v525
        %v558 = vpack.c.b16 %v526, %v526
        %v559 = vpack.c.b16 %v527, %v527
        %v560 = vpack.c.b16 %v528, %v528
        %v561 = vpack.c.b16 %v529, %v529
        %v562 = vpack.c.b16 %v530, %v530
        %595 = vst [vmem:[#allocation3] sm:$0xf] %v531
        %596 = vst [vmem:[#allocation3 + $0x24] sm:$0xf] %v532
        %597 = vst [vmem:[#allocation3 + $0x48] sm:$0xf] %v533
        %598 = vst [vmem:[#allocation3 + $0x6c] sm:$0xf] %v534
        %599 = vst [vmem:[#allocation3 + $0x90] sm:$0xf] %v535
        %600 = vst [vmem:[#allocation3 + $0xb4] sm:$0xf] %v536
        %601 = vst [vmem:[#allocation3 + $0xd8] sm:$0xf] %v537
        %602 = vst [vmem:[#allocation3 + $0xfc] sm:$0xf] %v538
        %603 = vst [vmem:[#allocation3 + $0x120] sm:$0xf] %v539
        %604 = vst [vmem:[#allocation3 + $0x144] sm:$0xf] %v540
        %605 = vst [vmem:[#allocation3 + $0x168] sm:$0xf] %v541
        %606 = vst [vmem:[#allocation3 + $0x18c] sm:$0xf] %v542
        %607 = vst [vmem:[#allocation3 + $0x1b0] sm:$0xf] %v543
        %608 = vst [vmem:[#allocation3 + $0x1d4] sm:$0xf] %v544
        %609 = vst [vmem:[#allocation3 + $0x1f8] sm:$0xf] %v545
        %610 = vst [vmem:[#allocation3 + $0x21c] sm:$0xf] %v546
        %611 = vst [vmem:[#allocation3 + $0x240] sm:$0xf] %v547
        %612 = vst [vmem:[#allocation3 + $0x264] sm:$0xf] %v548
        %613 = vst [vmem:[#allocation3 + $0x288] sm:$0xf] %v549
        %614 = vst [vmem:[#allocation3 + $0x2ac] sm:$0xf] %v550
        %615 = vst [vmem:[#allocation3 + $0x2d0] sm:$0xf] %v551
        %616 = vst [vmem:[#allocation3 + $0x2f4] sm:$0xf] %v552
        %617 = vst [vmem:[#allocation3 + $0x318] sm:$0xf] %v553
        %618 = vst [vmem:[#allocation3 + $0x33c] sm:$0xf] %v554
        %619 = vst [vmem:[#allocation3 + $0x360] sm:$0xf] %v555
        %620 = vst [vmem:[#allocation3 + $0x384] sm:$0xf] %v556
        %621 = vst [vmem:[#allocation3 + $0x3a8] sm:$0xf] %v557
        %622 = vst [vmem:[#allocation3 + $0x3cc] sm:$0xf] %v558
        %623 = vst [vmem:[#allocation3 + $0x3f0] sm:$0xf] %v559
        %624 = vst [vmem:[#allocation3 + $0x414] sm:$0xf] %v560
        %625 = vst [vmem:[#allocation3 + $0x438] sm:$0xf] %v561
        %626 = vst [vmem:[#allocation3 + $0x45c] sm:$0xf] %v562
        %v627 = vld [vmem:[#allocation2 + $0x1] sm:$0xff]
        %v628 = vld [vmem:[#allocation2 + $0x9] sm:$0xff]
        %v629 = vld [vmem:[#allocation2 + $0x19] sm:$0xff]
        %v630 = vld [vmem:[#allocation2 + $0x21] sm:$0xff]
        %v631 = vld [vmem:[#allocation2 + $0x31] sm:$0xff]
        %v632 = vld [vmem:[#allocation2 + $0x39] sm:$0xff]
        %v633 = vld [vmem:[#allocation2 + $0x49] sm:$0xff]
        %v634 = vld [vmem:[#allocation2 + $0x51] sm:$0xff]
        %v635 = vld [vmem:[#allocation2 + $0x61] sm:$0xff]
        %v636 = vld [vmem:[#allocation2 + $0x69] sm:$0xff]
        %v637 = vld [vmem:[#allocation2 + $0x79] sm:$0xff]
        %v638 = vld [vmem:[#allocation2 + $0x81] sm:$0xff]
        %v639 = vld [vmem:[#allocation2 + $0x91] sm:$0xff]
        %v640 = vld [vmem:[#allocation2 + $0x99] sm:$0xff]
        %v641 = vld [vmem:[#allocation2 + $0xa9] sm:$0xff]
        %v642 = vld [vmem:[#allocation2 + $0xb1] sm:$0xff]
        %v643 = vld [vmem:[#allocation2 + $0xc1] sm:$0xff]
        %v644 = vld [vmem:[#allocation2 + $0xc9] sm:$0xff]
        %v645 = vld [vmem:[#allocation2 + $0xd9] sm:$0xff]
        %v646 = vld [vmem:[#allocation2 + $0xe1] sm:$0xff]
        %v647 = vld [vmem:[#allocation2 + $0xf1] sm:$0xff]
        %v648 = vld [vmem:[#allocation2 + $0xf9] sm:$0xff]
        %v649 = vld [vmem:[#allocation2 + $0x109] sm:$0xff]
        %v650 = vld [vmem:[#allocation2 + $0x111] sm:$0xff]
        %v651 = vld [vmem:[#allocation2 + $0x121] sm:$0xff]
        %v652 = vld [vmem:[#allocation2 + $0x129] sm:$0xff]
        %v653 = vld [vmem:[#allocation2 + $0x139] sm:$0xff]
        %v654 = vld [vmem:[#allocation2 + $0x141] sm:$0xff]
        %v655 = vld [vmem:[#allocation2 + $0x151] sm:$0xff]
        %v656 = vld [vmem:[#allocation2 + $0x159] sm:$0xff]
        %v657 = vld [vmem:[#allocation2 + $0x169] sm:$0xff]
        %v658 = vld [vmem:[#allocation2 + $0x171] sm:$0xff]
        %v659 = vpack.c.bf16 %v628, %v627
        %v660 = vpack.c.bf16 %v630, %v629
        %v661 = vpack.c.bf16 %v632, %v631
        %v662 = vpack.c.bf16 %v634, %v633
        %v663 = vpack.c.bf16 %v636, %v635
        %v664 = vpack.c.bf16 %v638, %v637
        %v665 = vpack.c.bf16 %v640, %v639
        %v666 = vpack.c.bf16 %v642, %v641
        %v667 = vpack.c.bf16 %v644, %v643
        %v668 = vpack.c.bf16 %v646, %v645
        %v669 = vpack.c.bf16 %v648, %v647
        %v670 = vpack.c.bf16 %v650, %v649
        %v671 = vpack.c.bf16 %v652, %v651
        %v672 = vpack.c.bf16 %v654, %v653
        %v673 = vpack.c.bf16 %v656, %v655
        %v674 = vpack.c.bf16 %v658, %v657
        %v691 = vunpack.c.l.b16 %v659
        %v692 = vunpack.c.h.b16 %v659
        %v693 = vunpack.c.l.b16 %v660
        %v694 = vunpack.c.h.b16 %v660
        %v695 = vunpack.c.l.b16 %v661
        %v696 = vunpack.c.h.b16 %v661
        %v697 = vunpack.c.l.b16 %v662
        %v698 = vunpack.c.h.b16 %v662
        %v699 = vunpack.c.l.b16 %v663
        %v700 = vunpack.c.h.b16 %v663
        %v701 = vunpack.c.l.b16 %v664
        %v702 = vunpack.c.h.b16 %v664
        %v703 = vunpack.c.l.b16 %v665
        %v704 = vunpack.c.h.b16 %v665
        %v705 = vunpack.c.l.b16 %v666
        %v706 = vunpack.c.h.b16 %v666
        %v707 = vunpack.c.l.b16 %v667
        %v708 = vunpack.c.h.b16 %v667
        %v709 = vunpack.c.l.b16 %v668
        %v710 = vunpack.c.h.b16 %v668
        %v711 = vunpack.c.l.b16 %v669
        %v712 = vunpack.c.h.b16 %v669
        %v713 = vunpack.c.l.b16 %v670
        %v714 = vunpack.c.h.b16 %v670
        %v715 = vunpack.c.l.b16 %v671
        %v716 = vunpack.c.h.b16 %v671
        %v717 = vunpack.c.l.b16 %v672
        %v718 = vunpack.c.h.b16 %v672
        %v719 = vunpack.c.l.b16 %v673
        %v720 = vunpack.c.h.b16 %v673
        %v721 = vunpack.c.l.b16 %v674
        %v722 = vunpack.c.h.b16 %v674
        %v723 = vpack.c.b16 %v691, %v691
        %v724 = vpack.c.b16 %v692, %v692
        %v725 = vpack.c.b16 %v693, %v693
        %v726 = vpack.c.b16 %v694, %v694
        %v727 = vpack.c.b16 %v695, %v695
        %v728 = vpack.c.b16 %v696, %v696
        %v729 = vpack.c.b16 %v697, %v697
        %v730 = vpack.c.b16 %v698, %v698
        %v731 = vpack.c.b16 %v699, %v699
        %v732 = vpack.c.b16 %v700, %v700
        %v733 = vpack.c.b16 %v701, %v701
        %v734 = vpack.c.b16 %v702, %v702
        %v735 = vpack.c.b16 %v703, %v703
        %v736 = vpack.c.b16 %v704, %v704
        %v737 = vpack.c.b16 %v705, %v705
        %v738 = vpack.c.b16 %v706, %v706
        %v739 = vpack.c.b16 %v707, %v707
        %v740 = vpack.c.b16 %v708, %v708
        %v741 = vpack.c.b16 %v709, %v709
        %v742 = vpack.c.b16 %v710, %v710
        %v743 = vpack.c.b16 %v711, %v711
        %v744 = vpack.c.b16 %v712, %v712
        %v745 = vpack.c.b16 %v713, %v713
        %v746 = vpack.c.b16 %v714, %v714
        %v747 = vpack.c.b16 %v715, %v715
        %v748 = vpack.c.b16 %v716, %v716
        %v749 = vpack.c.b16 %v717, %v717
        %v750 = vpack.c.b16 %v718, %v718
        %v751 = vpack.c.b16 %v719, %v719
        %v752 = vpack.c.b16 %v720, %v720
        %v753 = vpack.c.b16 %v721, %v721
        %v754 = vpack.c.b16 %v722, %v722
        %787 = vst [vmem:[#allocation3 + $0x4] sm:$0xf] %v723
        %788 = vst [vmem:[#allocation3 + $0x28] sm:$0xf] %v724
        %789 = vst [vmem:[#allocation3 + $0x4c] sm:$0xf] %v725
        %790 = vst [vmem:[#allocation3 + $0x70] sm:$0xf] %v726
        %791 = vst [vmem:[#allocation3 + $0x94] sm:$0xf] %v727
        %792 = vst [vmem:[#allocation3 + $0xb8] sm:$0xf] %v728
        %793 = vst [vmem:[#allocation3 + $0xdc] sm:$0xf] %v729
        %794 = vst [vmem:[#allocation3 + $0x100] sm:$0xf] %v730
        %795 = vst [vmem:[#allocation3 + $0x124] sm:$0xf] %v731
        %796 = vst [vmem:[#allocation3 + $0x148] sm:$0xf] %v732
        %797 = vst [vmem:[#allocation3 + $0x16c] sm:$0xf] %v733
        %798 = vst [vmem:[#allocation3 + $0x190] sm:$0xf] %v734
        %799 = vst [vmem:[#allocation3 + $0x1b4] sm:$0xf] %v735
        %800 = vst [vmem:[#allocation3 + $0x1d8] sm:$0xf] %v736
        %801 = vst [vmem:[#allocation3 + $0x1fc] sm:$0xf] %v737
        %802 = vst [vmem:[#allocation3 + $0x220] sm:$0xf] %v738
        %803 = vst [vmem:[#allocation3 + $0x244] sm:$0xf] %v739
        %804 = vst [vmem:[#allocation3 + $0x268] sm:$0xf] %v740
        %805 = vst [vmem:[#allocation3 + $0x28c] sm:$0xf] %v741
        %806 = vst [vmem:[#allocation3 + $0x2b0] sm:$0xf] %v742
        %807 = vst [vmem:[#allocation3 + $0x2d4] sm:$0xf] %v743
        %808 = vst [vmem:[#allocation3 + $0x2f8] sm:$0xf] %v744
        %809 = vst [vmem:[#allocation3 + $0x31c] sm:$0xf] %v745
        %810 = vst [vmem:[#allocation3 + $0x340] sm:$0xf] %v746
        %811 = vst [vmem:[#allocation3 + $0x364] sm:$0xf] %v747
        %812 = vst [vmem:[#allocation3 + $0x388] sm:$0xf] %v748
        %813 = vst [vmem:[#allocation3 + $0x3ac] sm:$0xf] %v749
        %814 = vst [vmem:[#allocation3 + $0x3d0] sm:$0xf] %v750
        %815 = vst [vmem:[#allocation3 + $0x3f4] sm:$0xf] %v751
        %816 = vst [vmem:[#allocation3 + $0x418] sm:$0xf] %v752
        %817 = vst [vmem:[#allocation3 + $0x43c] sm:$0xf] %v753
        %818 = vst [vmem:[#allocation3 + $0x460] sm:$0xf] %v754
        %v819 = vld [vmem:[#allocation2 + $0x2] sm:$0xff]
        %v820 = vld [vmem:[#allocation2 + $0xa] sm:$0xff]
        %v821 = vld [vmem:[#allocation2 + $0x1a] sm:$0xff]
        %v822 = vld [vmem:[#allocation2 + $0x22] sm:$0xff]
        %v823 = vld [vmem:[#allocation2 + $0x32] sm:$0xff]
        %v824 = vld [vmem:[#allocation2 + $0x3a] sm:$0xff]
        %v825 = vld [vmem:[#allocation2 + $0x4a] sm:$0xff]
        %v826 = vld [vmem:[#allocation2 + $0x52] sm:$0xff]
        %v827 = vld [vmem:[#allocation2 + $0x62] sm:$0xff]
        %v828 = vld [vmem:[#allocation2 + $0x6a] sm:$0xff]
        %v829 = vld [vmem:[#allocation2 + $0x7a] sm:$0xff]
        %v830 = vld [vmem:[#allocation2 + $0x82] sm:$0xff]
        %v831 = vld [vmem:[#allocation2 + $0x92] sm:$0xff]
        %v832 = vld [vmem:[#allocation2 + $0x9a] sm:$0xff]
        %v833 = vld [vmem:[#allocation2 + $0xaa] sm:$0xff]
        %v834 = vld [vmem:[#allocation2 + $0xb2] sm:$0xff]
        %v835 = vld [vmem:[#allocation2 + $0xc2] sm:$0xff]
        %v836 = vld [vmem:[#allocation2 + $0xca] sm:$0xff]
        %v837 = vld [vmem:[#allocation2 + $0xda] sm:$0xff]
        %v838 = vld [vmem:[#allocation2 + $0xe2] sm:$0xff]
        %v839 = vld [vmem:[#allocation2 + $0xf2] sm:$0xff]
        %v840 = vld [vmem:[#allocation2 + $0xfa] sm:$0xff]
        %v841 = vld [vmem:[#allocation2 + $0x10a] sm:$0xff]
        %v842 = vld [vmem:[#allocation2 + $0x112] sm:$0xff]
        %v843 = vld [vmem:[#allocation2 + $0x122] sm:$0xff]
        %v844 = vld [vmem:[#allocation2 + $0x12a] sm:$0xff]
        %v845 = vld [vmem:[#allocation2 + $0x13a] sm:$0xff]
        %v846 = vld [vmem:[#allocation2 + $0x142] sm:$0xff]
        %v847 = vld [vmem:[#allocation2 + $0x152] sm:$0xff]
        %v848 = vld [vmem:[#allocation2 + $0x15a] sm:$0xff]
        %v849 = vld [vmem:[#allocation2 + $0x16a] sm:$0xff]
        %v850 = vld [vmem:[#allocation2 + $0x172] sm:$0xff]
        %v851 = vpack.c.bf16 %v820, %v819
        %v852 = vpack.c.bf16 %v822, %v821
        %v853 = vpack.c.bf16 %v824, %v823
        %v854 = vpack.c.bf16 %v826, %v825
        %v855 = vpack.c.bf16 %v828, %v827
        %v856 = vpack.c.bf16 %v830, %v829
        %v857 = vpack.c.bf16 %v832, %v831
        %v858 = vpack.c.bf16 %v834, %v833
        %v859 = vpack.c.bf16 %v836, %v835
        %v860 = vpack.c.bf16 %v838, %v837
        %v861 = vpack.c.bf16 %v840, %v839
        %v862 = vpack.c.bf16 %v842, %v841
        %v863 = vpack.c.bf16 %v844, %v843
        %v864 = vpack.c.bf16 %v846, %v845
        %v865 = vpack.c.bf16 %v848, %v847
        %v866 = vpack.c.bf16 %v850, %v849
        %v883 = vunpack.c.l.b16 %v851
        %v884 = vunpack.c.h.b16 %v851
        %v885 = vunpack.c.l.b16 %v852
        %v886 = vunpack.c.h.b16 %v852
        %v887 = vunpack.c.l.b16 %v853
        %v888 = vunpack.c.h.b16 %v853
        %v889 = vunpack.c.l.b16 %v854
        %v890 = vunpack.c.h.b16 %v854
        %v891 = vunpack.c.l.b16 %v855
        %v892 = vunpack.c.h.b16 %v855
        %v893 = vunpack.c.l.b16 %v856
        %v894 = vunpack.c.h.b16 %v856
        %v895 = vunpack.c.l.b16 %v857
        %v896 = vunpack.c.h.b16 %v857
        %v897 = vunpack.c.l.b16 %v858
        %v898 = vunpack.c.h.b16 %v858
        %v899 = vunpack.c.l.b16 %v859
        %v900 = vunpack.c.h.b16 %v859
        %v901 = vunpack.c.l.b16 %v860
        %v902 = vunpack.c.h.b16 %v860
        %v903 = vunpack.c.l.b16 %v861
        %v904 = vunpack.c.h.b16 %v861
        %v905 = vunpack.c.l.b16 %v862
        %v906 = vunpack.c.h.b16 %v862
        %v907 = vunpack.c.l.b16 %v863
        %v908 = vunpack.c.h.b16 %v863
        %v909 = vunpack.c.l.b16 %v864
        %v910 = vunpack.c.h.b16 %v864
        %v911 = vunpack.c.l.b16 %v865
        %v912 = vunpack.c.h.b16 %v865
        %v913 = vunpack.c.l.b16 %v866
        %v914 = vunpack.c.h.b16 %v866
        %v915 = vpack.c.b16 %v883, %v883
        %v916 = vpack.c.b16 %v884, %v884
        %v917 = vpack.c.b16 %v885, %v885
        %v918 = vpack.c.b16 %v886, %v886
        %v919 = vpack.c.b16 %v887, %v887
        %v920 = vpack.c.b16 %v888, %v888
        %v921 = vpack.c.b16 %v889, %v889
        %v922 = vpack.c.b16 %v890, %v890
        %v923 = vpack.c.b16 %v891, %v891
        %v924 = vpack.c.b16 %v892, %v892
        %v925 = vpack.c.b16 %v893, %v893
        %v926 = vpack.c.b16 %v894, %v894
        %v927 = vpack.c.b16 %v895, %v895
        %v928 = vpack.c.b16 %v896, %v896
        %v929 = vpack.c.b16 %v897, %v897
        %v930 = vpack.c.b16 %v898, %v898
        %v931 = vpack.c.b16 %v899, %v899
        %v932 = vpack.c.b16 %v900, %v900
        %v933 = vpack.c.b16 %v901, %v901
        %v934 = vpack.c.b16 %v902, %v902
        %v935 = vpack.c.b16 %v903, %v903
        %v936 = vpack.c.b16 %v904, %v904
        %v937 = vpack.c.b16 %v905, %v905
        %v938 = vpack.c.b16 %v906, %v906
        %v939 = vpack.c.b16 %v907, %v907
        %v940 = vpack.c.b16 %v908, %v908
        %v941 = vpack.c.b16 %v909, %v909
        %v942 = vpack.c.b16 %v910, %v910
        %v943 = vpack.c.b16 %v911, %v911
        %v944 = vpack.c.b16 %v912, %v912
        %v945 = vpack.c.b16 %v913, %v913
        %v946 = vpack.c.b16 %v914, %v914
        %979 = vst [vmem:[#allocation3 + $0x8] sm:$0xf] %v915
        %980 = vst [vmem:[#allocation3 + $0x2c] sm:$0xf] %v916
        %981 = vst [vmem:[#allocation3 + $0x50] sm:$0xf] %v917
        %982 = vst [vmem:[#allocation3 + $0x74] sm:$0xf] %v918
        %983 = vst [vmem:[#allocation3 + $0x98] sm:$0xf] %v919
        %984 = vst [vmem:[#allocation3 + $0xbc] sm:$0xf] %v920
        %985 = vst [vmem:[#allocation3 + $0xe0] sm:$0xf] %v921
        %986 = vst [vmem:[#allocation3 + $0x104] sm:$0xf] %v922
        %987 = vst [vmem:[#allocation3 + $0x128] sm:$0xf] %v923
        %988 = vst [vmem:[#allocation3 + $0x14c] sm:$0xf] %v924
        %989 = vst [vmem:[#allocation3 + $0x170] sm:$0xf] %v925
        %990 = vst [vmem:[#allocation3 + $0x194] sm:$0xf] %v926
        %991 = vst [vmem:[#allocation3 + $0x1b8] sm:$0xf] %v927
        %992 = vst [vmem:[#allocation3 + $0x1dc] sm:$0xf] %v928
        %993 = vst [vmem:[#allocation3 + $0x200] sm:$0xf] %v929
        %994 = vst [vmem:[#allocation3 + $0x224] sm:$0xf] %v930
        %995 = vst [vmem:[#allocation3 + $0x248] sm:$0xf] %v931
        %996 = vst [vmem:[#allocation3 + $0x26c] sm:$0xf] %v932
        %997 = vst [vmem:[#allocation3 + $0x290] sm:$0xf] %v933
        %998 = vst [vmem:[#allocation3 + $0x2b4] sm:$0xf] %v934
        %999 = vst [vmem:[#allocation3 + $0x2d8] sm:$0xf] %v935
        %1000 = vst [vmem:[#allocation3 + $0x2fc] sm:$0xf] %v936
        %1001 = vst [vmem:[#allocation3 + $0x320] sm:$0xf] %v937
        %1002 = vst [vmem:[#allocation3 + $0x344] sm:$0xf] %v938
        %1003 = vst [vmem:[#allocation3 + $0x368] sm:$0xf] %v939
        %1004 = vst [vmem:[#allocation3 + $0x38c] sm:$0xf] %v940
        %1005 = vst [vmem:[#allocation3 + $0x3b0] sm:$0xf] %v941
        %1006 = vst [vmem:[#allocation3 + $0x3d4] sm:$0xf] %v942
        %1007 = vst [vmem:[#allocation3 + $0x3f8] sm:$0xf] %v943
        %1008 = vst [vmem:[#allocation3 + $0x41c] sm:$0xf] %v944
        %1009 = vst [vmem:[#allocation3 + $0x440] sm:$0xf] %v945
        %1010 = vst [vmem:[#allocation3 + $0x464] sm:$0xf] %v946
        %v1011 = vld [vmem:[%s402] sm:$0xff]
        %v1012 = vld [vmem:[%s402 + $0x8] sm:$0xff]
        %v1013 = vld [vmem:[%s402 + $0x18] sm:$0xff]
        %v1014 = vld [vmem:[%s402 + $0x20] sm:$0xff]
        %v1015 = vld [vmem:[%s402 + $0x30] sm:$0xff]
        %v1016 = vld [vmem:[%s402 + $0x38] sm:$0xff]
        %v1017 = vld [vmem:[%s402 + $0x48] sm:$0xff]
        %v1018 = vld [vmem:[%s402 + $0x50] sm:$0xff]
        %v1019 = vld [vmem:[%s402 + $0x60] sm:$0xff]
        %v1020 = vld [vmem:[%s402 + $0x68] sm:$0xff]
        %v1021 = vld [vmem:[%s402 + $0x78] sm:$0xff]
        %v1022 = vld [vmem:[%s402 + $0x80] sm:$0xff]
        %v1023 = vld [vmem:[%s402 + $0x90] sm:$0xff]
        %v1024 = vld [vmem:[%s402 + $0x98] sm:$0xff]
        %v1025 = vld [vmem:[%s402 + $0xa8] sm:$0xff]
        %v1026 = vld [vmem:[%s402 + $0xb0] sm:$0xff]
        %v1027 = vld [vmem:[%s402 + $0xc0] sm:$0xff]
        %v1028 = vld [vmem:[%s402 + $0xc8] sm:$0xff]
        %v1029 = vld [vmem:[%s402 + $0xd8] sm:$0xff]
        %v1030 = vld [vmem:[%s402 + $0xe0] sm:$0xff]
        %v1031 = vld [vmem:[%s402 + $0xf0] sm:$0xff]
        %v1032 = vld [vmem:[%s402 + $0xf8] sm:$0xff]
        %v1033 = vld [vmem:[%s402 + $0x108] sm:$0xff]
        %v1034 = vld [vmem:[%s402 + $0x110] sm:$0xff]
        %v1035 = vld [vmem:[%s402 + $0x120] sm:$0xff]
        %v1036 = vld [vmem:[%s402 + $0x128] sm:$0xff]
        %v1037 = vld [vmem:[%s402 + $0x138] sm:$0xff]
        %v1038 = vld [vmem:[%s402 + $0x140] sm:$0xff]
        %v1039 = vld [vmem:[%s402 + $0x150] sm:$0xff]
        %v1040 = vld [vmem:[%s402 + $0x158] sm:$0xff]
        %v1041 = vld [vmem:[%s402 + $0x168] sm:$0xff]
        %v1042 = vld [vmem:[%s402 + $0x170] sm:$0xff]
        %v1043 = vpack.c.bf16 %v1012, %v1011
        %v1044 = vpack.c.bf16 %v1014, %v1013
        %v1045 = vpack.c.bf16 %v1016, %v1015
        %v1046 = vpack.c.bf16 %v1018, %v1017
        %v1047 = vpack.c.bf16 %v1020, %v1019
        %v1048 = vpack.c.bf16 %v1022, %v1021
        %v1049 = vpack.c.bf16 %v1024, %v1023
        %v1050 = vpack.c.bf16 %v1026, %v1025
        %v1051 = vpack.c.bf16 %v1028, %v1027
        %v1052 = vpack.c.bf16 %v1030, %v1029
        %v1053 = vpack.c.bf16 %v1032, %v1031
        %v1054 = vpack.c.bf16 %v1034, %v1033
        %v1055 = vpack.c.bf16 %v1036, %v1035
        %v1056 = vpack.c.bf16 %v1038, %v1037
        %v1057 = vpack.c.bf16 %v1040, %v1039
        %v1058 = vpack.c.bf16 %v1042, %v1041
        %v1075 = vunpack.c.l.b16 %v1043
        %v1076 = vunpack.c.h.b16 %v1043
        %v1077 = vunpack.c.l.b16 %v1044
        %v1078 = vunpack.c.h.b16 %v1044
        %v1079 = vunpack.c.l.b16 %v1045
        %v1080 = vunpack.c.h.b16 %v1045
        %v1081 = vunpack.c.l.b16 %v1046
        %v1082 = vunpack.c.h.b16 %v1046
        %v1083 = vunpack.c.l.b16 %v1047
        %v1084 = vunpack.c.h.b16 %v1047
        %v1085 = vunpack.c.l.b16 %v1048
        %v1086 = vunpack.c.h.b16 %v1048
        %v1087 = vunpack.c.l.b16 %v1049
        %v1088 = vunpack.c.h.b16 %v1049
        %v1089 = vunpack.c.l.b16 %v1050
        %v1090 = vunpack.c.h.b16 %v1050
        %v1091 = vunpack.c.l.b16 %v1051
        %v1092 = vunpack.c.h.b16 %v1051
        %v1093 = vunpack.c.l.b16 %v1052
        %v1094 = vunpack.c.h.b16 %v1052
        %v1095 = vunpack.c.l.b16 %v1053
        %v1096 = vunpack.c.h.b16 %v1053
        %v1097 = vunpack.c.l.b16 %v1054
        %v1098 = vunpack.c.h.b16 %v1054
        %v1099 = vunpack.c.l.b16 %v1055
        %v1100 = vunpack.c.h.b16 %v1055
        %v1101 = vunpack.c.l.b16 %v1056
        %v1102 = vunpack.c.h.b16 %v1056
        %v1103 = vunpack.c.l.b16 %v1057
        %v1104 = vunpack.c.h.b16 %v1057
        %v1105 = vunpack.c.l.b16 %v1058
        %v1106 = vunpack.c.h.b16 %v1058
        %v1107 = vpack.c.b16 %v1075, %v1075
        %v1108 = vpack.c.b16 %v1076, %v1076
        %v1109 = vpack.c.b16 %v1077, %v1077
        %v1110 = vpack.c.b16 %v1078, %v1078
        %v1111 = vpack.c.b16 %v1079, %v1079
        %v1112 = vpack.c.b16 %v1080, %v1080
        %v1113 = vpack.c.b16 %v1081, %v1081
        %v1114 = vpack.c.b16 %v1082, %v1082
        %v1115 = vpack.c.b16 %v1083, %v1083
        %v1116 = vpack.c.b16 %v1084, %v1084
        %v1117 = vpack.c.b16 %v1085, %v1085
        %v1118 = vpack.c.b16 %v1086, %v1086
        %v1119 = vpack.c.b16 %v1087, %v1087
        %v1120 = vpack.c.b16 %v1088, %v1088
        %v1121 = vpack.c.b16 %v1089, %v1089
        %v1122 = vpack.c.b16 %v1090, %v1090
        %v1123 = vpack.c.b16 %v1091, %v1091
        %v1124 = vpack.c.b16 %v1092, %v1092
        %v1125 = vpack.c.b16 %v1093, %v1093
        %v1126 = vpack.c.b16 %v1094, %v1094
        %v1127 = vpack.c.b16 %v1095, %v1095
        %v1128 = vpack.c.b16 %v1096, %v1096
        %v1129 = vpack.c.b16 %v1097, %v1097
        %v1130 = vpack.c.b16 %v1098, %v1098
        %v1131 = vpack.c.b16 %v1099, %v1099
        %v1132 = vpack.c.b16 %v1100, %v1100
        %v1133 = vpack.c.b16 %v1101, %v1101
        %v1134 = vpack.c.b16 %v1102, %v1102
        %v1135 = vpack.c.b16 %v1103, %v1103
        %v1136 = vpack.c.b16 %v1104, %v1104
        %v1137 = vpack.c.b16 %v1105, %v1105
        %v1138 = vpack.c.b16 %v1106, %v1106
        %1171 = vst [vmem:[#allocation3 + $0xc] sm:$0xf] %v1107
        %1172 = vst [vmem:[#allocation3 + $0x30] sm:$0xf] %v1108
        %1173 = vst [vmem:[#allocation3 + $0x54] sm:$0xf] %v1109
        %1174 = vst [vmem:[#allocation3 + $0x78] sm:$0xf] %v1110
        %1175 = vst [vmem:[#allocation3 + $0x9c] sm:$0xf] %v1111
        %1176 = vst [vmem:[#allocation3 + $0xc0] sm:$0xf] %v1112
        %1177 = vst [vmem:[#allocation3 + $0xe4] sm:$0xf] %v1113
        %1178 = vst [vmem:[#allocation3 + $0x108] sm:$0xf] %v1114
        %1179 = vst [vmem:[#allocation3 + $0x12c] sm:$0xf] %v1115
        %1180 = vst [vmem:[#allocation3 + $0x150] sm:$0xf] %v1116
        %1181 = vst [vmem:[#allocation3 + $0x174] sm:$0xf] %v1117
        %1182 = vst [vmem:[#allocation3 + $0x198] sm:$0xf] %v1118
        %1183 = vst [vmem:[#allocation3 + $0x1bc] sm:$0xf] %v1119
        %1184 = vst [vmem:[#allocation3 + $0x1e0] sm:$0xf] %v1120
        %1185 = vst [vmem:[#allocation3 + $0x204] sm:$0xf] %v1121
        %1186 = vst [vmem:[#allocation3 + $0x228] sm:$0xf] %v1122
        %1187 = vst [vmem:[#allocation3 + $0x24c] sm:$0xf] %v1123
        %1188 = vst [vmem:[#allocation3 + $0x270] sm:$0xf] %v1124
        %1189 = vst [vmem:[#allocation3 + $0x294] sm:$0xf] %v1125
        %1190 = vst [vmem:[#allocation3 + $0x2b8] sm:$0xf] %v1126
        %1191 = vst [vmem:[#allocation3 + $0x2dc] sm:$0xf] %v1127
        %1192 = vst [vmem:[#allocation3 + $0x300] sm:$0xf] %v1128
        %1193 = vst [vmem:[#allocation3 + $0x324] sm:$0xf] %v1129
        %1194 = vst [vmem:[#allocation3 + $0x348] sm:$0xf] %v1130
        %1195 = vst [vmem:[#allocation3 + $0x36c] sm:$0xf] %v1131
        %1196 = vst [vmem:[#allocation3 + $0x390] sm:$0xf] %v1132
        %1197 = vst [vmem:[#allocation3 + $0x3b4] sm:$0xf] %v1133
        %1198 = vst [vmem:[#allocation3 + $0x3d8] sm:$0xf] %v1134
        %1199 = vst [vmem:[#allocation3 + $0x3fc] sm:$0xf] %v1135
        %1200 = vst [vmem:[#allocation3 + $0x420] sm:$0xf] %v1136
        %1201 = vst [vmem:[#allocation3 + $0x444] sm:$0xf] %v1137
        %1202 = vst [vmem:[#allocation3 + $0x468] sm:$0xf] %v1138
        %v1203 = vld [vmem:[%s402 + $0x1] sm:$0xff]
        %v1204 = vld [vmem:[%s402 + $0x9] sm:$0xff]
        %v1205 = vld [vmem:[%s402 + $0x19] sm:$0xff]
        %v1206 = vld [vmem:[%s402 + $0x21] sm:$0xff]
        %v1207 = vld [vmem:[%s402 + $0x31] sm:$0xff]
        %v1208 = vld [vmem:[%s402 + $0x39] sm:$0xff]
        %v1209 = vld [vmem:[%s402 + $0x49] sm:$0xff]
        %v1210 = vld [vmem:[%s402 + $0x51] sm:$0xff]
        %v1211 = vld [vmem:[%s402 + $0x61] sm:$0xff]
        %v1212 = vld [vmem:[%s402 + $0x69] sm:$0xff]
        %v1213 = vld [vmem:[%s402 + $0x79] sm:$0xff]
        %v1214 = vld [vmem:[%s402 + $0x81] sm:$0xff]
        %v1215 = vld [vmem:[%s402 + $0x91] sm:$0xff]
        %v1216 = vld [vmem:[%s402 + $0x99] sm:$0xff]
        %v1217 = vld [vmem:[%s402 + $0xa9] sm:$0xff]
        %v1218 = vld [vmem:[%s402 + $0xb1] sm:$0xff]
        %v1219 = vld [vmem:[%s402 + $0xc1] sm:$0xff]
        %v1220 = vld [vmem:[%s402 + $0xc9] sm:$0xff]
        %v1221 = vld [vmem:[%s402 + $0xd9] sm:$0xff]
        %v1222 = vld [vmem:[%s402 + $0xe1] sm:$0xff]
        %v1223 = vld [vmem:[%s402 + $0xf1] sm:$0xff]
        %v1224 = vld [vmem:[%s402 + $0xf9] sm:$0xff]
        %v1225 = vld [vmem:[%s402 + $0x109] sm:$0xff]
        %v1226 = vld [vmem:[%s402 + $0x111] sm:$0xff]
        %v1227 = vld [vmem:[%s402 + $0x121] sm:$0xff]
        %v1228 = vld [vmem:[%s402 + $0x129] sm:$0xff]
        %v1229 = vld [vmem:[%s402 + $0x139] sm:$0xff]
        %v1230 = vld [vmem:[%s402 + $0x141] sm:$0xff]
        %v1231 = vld [vmem:[%s402 + $0x151] sm:$0xff]
        %v1232 = vld [vmem:[%s402 + $0x159] sm:$0xff]
        %v1233 = vld [vmem:[%s402 + $0x169] sm:$0xff]
        %v1234 = vld [vmem:[%s402 + $0x171] sm:$0xff]
        %v1235 = vpack.c.bf16 %v1204, %v1203
        %v1236 = vpack.c.bf16 %v1206, %v1205
        %v1237 = vpack.c.bf16 %v1208, %v1207
        %v1238 = vpack.c.bf16 %v1210, %v1209
        %v1239 = vpack.c.bf16 %v1212, %v1211
        %v1240 = vpack.c.bf16 %v1214, %v1213
        %v1241 = vpack.c.bf16 %v1216, %v1215
        %v1242 = vpack.c.bf16 %v1218, %v1217
        %v1243 = vpack.c.bf16 %v1220, %v1219
        %v1244 = vpack.c.bf16 %v1222, %v1221
        %v1245 = vpack.c.bf16 %v1224, %v1223
        %v1246 = vpack.c.bf16 %v1226, %v1225
        %v1247 = vpack.c.bf16 %v1228, %v1227
        %v1248 = vpack.c.bf16 %v1230, %v1229
        %v1249 = vpack.c.bf16 %v1232, %v1231
        %v1250 = vpack.c.bf16 %v1234, %v1233
        %v1267 = vunpack.c.l.b16 %v1235
        %v1268 = vunpack.c.h.b16 %v1235
        %v1269 = vunpack.c.l.b16 %v1236
        %v1270 = vunpack.c.h.b16 %v1236
        %v1271 = vunpack.c.l.b16 %v1237
        %v1272 = vunpack.c.h.b16 %v1237
        %v1273 = vunpack.c.l.b16 %v1238
        %v1274 = vunpack.c.h.b16 %v1238
        %v1275 = vunpack.c.l.b16 %v1239
        %v1276 = vunpack.c.h.b16 %v1239
        %v1277 = vunpack.c.l.b16 %v1240
        %v1278 = vunpack.c.h.b16 %v1240
        %v1279 = vunpack.c.l.b16 %v1241
        %v1280 = vunpack.c.h.b16 %v1241
        %v1281 = vunpack.c.l.b16 %v1242
        %v1282 = vunpack.c.h.b16 %v1242
        %v1283 = vunpack.c.l.b16 %v1243
        %v1284 = vunpack.c.h.b16 %v1243
        %v1285 = vunpack.c.l.b16 %v1244
        %v1286 = vunpack.c.h.b16 %v1244
        %v1287 = vunpack.c.l.b16 %v1245
        %v1288 = vunpack.c.h.b16 %v1245
        %v1289 = vunpack.c.l.b16 %v1246
        %v1290 = vunpack.c.h.b16 %v1246
        %v1291 = vunpack.c.l.b16 %v1247
        %v1292 = vunpack.c.h.b16 %v1247
        %v1293 = vunpack.c.l.b16 %v1248
        %v1294 = vunpack.c.h.b16 %v1248
        %v1295 = vunpack.c.l.b16 %v1249
        %v1296 = vunpack.c.h.b16 %v1249
        %v1297 = vunpack.c.l.b16 %v1250
        %v1298 = vunpack.c.h.b16 %v1250
        %v1299 = vpack.c.b16 %v1267, %v1267
        %v1300 = vpack.c.b16 %v1268, %v1268
        %v1301 = vpack.c.b16 %v1269, %v1269
        %v1302 = vpack.c.b16 %v1270, %v1270
        %v1303 = vpack.c.b16 %v1271, %v1271
        %v1304 = vpack.c.b16 %v1272, %v1272
        %v1305 = vpack.c.b16 %v1273, %v1273
        %v1306 = vpack.c.b16 %v1274, %v1274
        %v1307 = vpack.c.b16 %v1275, %v1275
        %v1308 = vpack.c.b16 %v1276, %v1276
        %v1309 = vpack.c.b16 %v1277, %v1277
        %v1310 = vpack.c.b16 %v1278, %v1278
        %v1311 = vpack.c.b16 %v1279, %v1279
        %v1312 = vpack.c.b16 %v1280, %v1280
        %v1313 = vpack.c.b16 %v1281, %v1281
        %v1314 = vpack.c.b16 %v1282, %v1282
        %v1315 = vpack.c.b16 %v1283, %v1283
        %v1316 = vpack.c.b16 %v1284, %v1284
        %v1317 = vpack.c.b16 %v1285, %v1285
        %v1318 = vpack.c.b16 %v1286, %v1286
        %v1319 = vpack.c.b16 %v1287, %v1287
        %v1320 = vpack.c.b16 %v1288, %v1288
        %v1321 = vpack.c.b16 %v1289, %v1289
        %v1322 = vpack.c.b16 %v1290, %v1290
        %v1323 = vpack.c.b16 %v1291, %v1291
        %v1324 = vpack.c.b16 %v1292, %v1292
        %v1325 = vpack.c.b16 %v1293, %v1293
        %v1326 = vpack.c.b16 %v1294, %v1294
        %v1327 = vpack.c.b16 %v1295, %v1295
        %v1328 = vpack.c.b16 %v1296, %v1296
        %v1329 = vpack.c.b16 %v1297, %v1297
        %v1330 = vpack.c.b16 %v1298, %v1298
        %1363 = vst [vmem:[#allocation3 + $0x10] sm:$0xf] %v1299
        %1364 = vst [vmem:[#allocation3 + $0x34] sm:$0xf] %v1300
        %1365 = vst [vmem:[#allocation3 + $0x58] sm:$0xf] %v1301
        %1366 = vst [vmem:[#allocation3 + $0x7c] sm:$0xf] %v1302
        %1367 = vst [vmem:[#allocation3 + $0xa0] sm:$0xf] %v1303
        %1368 = vst [vmem:[#allocation3 + $0xc4] sm:$0xf] %v1304
        %1369 = vst [vmem:[#allocation3 + $0xe8] sm:$0xf] %v1305
        %1370 = vst [vmem:[#allocation3 + $0x10c] sm:$0xf] %v1306
        %1371 = vst [vmem:[#allocation3 + $0x130] sm:$0xf] %v1307
        %1372 = vst [vmem:[#allocation3 + $0x154] sm:$0xf] %v1308
        %1373 = vst [vmem:[#allocation3 + $0x178] sm:$0xf] %v1309
        %1374 = vst [vmem:[#allocation3 + $0x19c] sm:$0xf] %v1310
        %1375 = vst [vmem:[#allocation3 + $0x1c0] sm:$0xf] %v1311
        %1376 = vst [vmem:[#allocation3 + $0x1e4] sm:$0xf] %v1312
        %1377 = vst [vmem:[#allocation3 + $0x208] sm:$0xf] %v1313
        %1378 = vst [vmem:[#allocation3 + $0x22c] sm:$0xf] %v1314
        %1379 = vst [vmem:[#allocation3 + $0x250] sm:$0xf] %v1315
        %1380 = vst [vmem:[#allocation3 + $0x274] sm:$0xf] %v1316
        %1381 = vst [vmem:[#allocation3 + $0x298] sm:$0xf] %v1317
        %1382 = vst [vmem:[#allocation3 + $0x2bc] sm:$0xf] %v1318
        %1383 = vst [vmem:[#allocation3 + $0x2e0] sm:$0xf] %v1319
        %1384 = vst [vmem:[#allocation3 + $0x304] sm:$0xf] %v1320
        %1385 = vst [vmem:[#allocation3 + $0x328] sm:$0xf] %v1321
        %1386 = vst [vmem:[#allocation3 + $0x34c] sm:$0xf] %v1322
        %1387 = vst [vmem:[#allocation3 + $0x370] sm:$0xf] %v1323
        %1388 = vst [vmem:[#allocation3 + $0x394] sm:$0xf] %v1324
        %1389 = vst [vmem:[#allocation3 + $0x3b8] sm:$0xf] %v1325
        %1390 = vst [vmem:[#allocation3 + $0x3dc] sm:$0xf] %v1326
        %1391 = vst [vmem:[#allocation3 + $0x400] sm:$0xf] %v1327
        %1392 = vst [vmem:[#allocation3 + $0x424] sm:$0xf] %v1328
        %1393 = vst [vmem:[#allocation3 + $0x448] sm:$0xf] %v1329
        %1394 = vst [vmem:[#allocation3 + $0x46c] sm:$0xf] %v1330
        %v1395 = vld [vmem:[%s402 + $0x2] sm:$0xff]
        %v1396 = vld [vmem:[%s402 + $0xa] sm:$0xff]
        %v1397 = vld [vmem:[%s402 + $0x1a] sm:$0xff]
        %v1398 = vld [vmem:[%s402 + $0x22] sm:$0xff]
        %v1399 = vld [vmem:[%s402 + $0x32] sm:$0xff]
        %v1400 = vld [vmem:[%s402 + $0x3a] sm:$0xff]
        %v1401 = vld [vmem:[%s402 + $0x4a] sm:$0xff]
        %v1402 = vld [vmem:[%s402 + $0x52] sm:$0xff]
        %v1403 = vld [vmem:[%s402 + $0x62] sm:$0xff]
        %v1404 = vld [vmem:[%s402 + $0x6a] sm:$0xff]
        %v1405 = vld [vmem:[%s402 + $0x7a] sm:$0xff]
        %v1406 = vld [vmem:[%s402 + $0x82] sm:$0xff]
        %v1407 = vld [vmem:[%s402 + $0x92] sm:$0xff]
        %v1408 = vld [vmem:[%s402 + $0x9a] sm:$0xff]
        %v1409 = vld [vmem:[%s402 + $0xaa] sm:$0xff]
        %v1410 = vld [vmem:[%s402 + $0xb2] sm:$0xff]
        %v1411 = vld [vmem:[%s402 + $0xc2] sm:$0xff]
        %v1412 = vld [vmem:[%s402 + $0xca] sm:$0xff]
        %v1413 = vld [vmem:[%s402 + $0xda] sm:$0xff]
        %v1414 = vld [vmem:[%s402 + $0xe2] sm:$0xff]
        %v1415 = vld [vmem:[%s402 + $0xf2] sm:$0xff]
        %v1416 = vld [vmem:[%s402 + $0xfa] sm:$0xff]
        %v1417 = vld [vmem:[%s402 + $0x10a] sm:$0xff]
        %v1418 = vld [vmem:[%s402 + $0x112] sm:$0xff]
        %v1419 = vld [vmem:[%s402 + $0x122] sm:$0xff]
        %v1420 = vld [vmem:[%s402 + $0x12a] sm:$0xff]
        %v1421 = vld [vmem:[%s402 + $0x13a] sm:$0xff]
        %v1422 = vld [vmem:[%s402 + $0x142] sm:$0xff]
        %v1423 = vld [vmem:[%s402 + $0x152] sm:$0xff]
        %v1424 = vld [vmem:[%s402 + $0x15a] sm:$0xff]
        %v1425 = vld [vmem:[%s402 + $0x16a] sm:$0xff]
        %v1426 = vld [vmem:[%s402 + $0x172] sm:$0xff]
        %v1427 = vpack.c.bf16 %v1396, %v1395
        %v1428 = vpack.c.bf16 %v1398, %v1397
        %v1429 = vpack.c.bf16 %v1400, %v1399
        %v1430 = vpack.c.bf16 %v1402, %v1401
        %v1431 = vpack.c.bf16 %v1404, %v1403
        %v1432 = vpack.c.bf16 %v1406, %v1405
        %v1433 = vpack.c.bf16 %v1408, %v1407
        %v1434 = vpack.c.bf16 %v1410, %v1409
        %v1435 = vpack.c.bf16 %v1412, %v1411
        %v1436 = vpack.c.bf16 %v1414, %v1413
        %v1437 = vpack.c.bf16 %v1416, %v1415
        %v1438 = vpack.c.bf16 %v1418, %v1417
        %v1439 = vpack.c.bf16 %v1420, %v1419
        %v1440 = vpack.c.bf16 %v1422, %v1421
        %v1441 = vpack.c.bf16 %v1424, %v1423
        %v1442 = vpack.c.bf16 %v1426, %v1425
        %v1459 = vunpack.c.l.b16 %v1427
        %v1460 = vunpack.c.h.b16 %v1427
        %v1461 = vunpack.c.l.b16 %v1428
        %v1462 = vunpack.c.h.b16 %v1428
        %v1463 = vunpack.c.l.b16 %v1429
        %v1464 = vunpack.c.h.b16 %v1429
        %v1465 = vunpack.c.l.b16 %v1430
        %v1466 = vunpack.c.h.b16 %v1430
        %v1467 = vunpack.c.l.b16 %v1431
        %v1468 = vunpack.c.h.b16 %v1431
        %v1469 = vunpack.c.l.b16 %v1432
        %v1470 = vunpack.c.h.b16 %v1432
        %v1471 = vunpack.c.l.b16 %v1433
        %v1472 = vunpack.c.h.b16 %v1433
        %v1473 = vunpack.c.l.b16 %v1434
        %v1474 = vunpack.c.h.b16 %v1434
        %v1475 = vunpack.c.l.b16 %v1435
        %v1476 = vunpack.c.h.b16 %v1435
        %v1477 = vunpack.c.l.b16 %v1436
        %v1478 = vunpack.c.h.b16 %v1436
        %v1479 = vunpack.c.l.b16 %v1437
        %v1480 = vunpack.c.h.b16 %v1437
        %v1481 = vunpack.c.l.b16 %v1438
        %v1482 = vunpack.c.h.b16 %v1438
        %v1483 = vunpack.c.l.b16 %v1439
        %v1484 = vunpack.c.h.b16 %v1439
        %v1485 = vunpack.c.l.b16 %v1440
        %v1486 = vunpack.c.h.b16 %v1440
        %v1487 = vunpack.c.l.b16 %v1441
        %v1488 = vunpack.c.h.b16 %v1441
        %v1489 = vunpack.c.l.b16 %v1442
        %v1490 = vunpack.c.h.b16 %v1442
        %v1491 = vpack.c.b16 %v1459, %v1459
        %v1492 = vpack.c.b16 %v1460, %v1460
        %v1493 = vpack.c.b16 %v1461, %v1461
        %v1494 = vpack.c.b16 %v1462, %v1462
        %v1495 = vpack.c.b16 %v1463, %v1463
        %v1496 = vpack.c.b16 %v1464, %v1464
        %v1497 = vpack.c.b16 %v1465, %v1465
        %v1498 = vpack.c.b16 %v1466, %v1466
        %v1499 = vpack.c.b16 %v1467, %v1467
        %v1500 = vpack.c.b16 %v1468, %v1468
        %v1501 = vpack.c.b16 %v1469, %v1469
        %v1502 = vpack.c.b16 %v1470, %v1470
        %v1503 = vpack.c.b16 %v1471, %v1471
        %v1504 = vpack.c.b16 %v1472, %v1472
        %v1505 = vpack.c.b16 %v1473, %v1473
        %v1506 = vpack.c.b16 %v1474, %v1474
        %v1507 = vpack.c.b16 %v1475, %v1475
        %v1508 = vpack.c.b16 %v1476, %v1476
        %v1509 = vpack.c.b16 %v1477, %v1477
        %v1510 = vpack.c.b16 %v1478, %v1478
        %v1511 = vpack.c.b16 %v1479, %v1479
        %v1512 = vpack.c.b16 %v1480, %v1480
        %v1513 = vpack.c.b16 %v1481, %v1481
        %v1514 = vpack.c.b16 %v1482, %v1482
        %v1515 = vpack.c.b16 %v1483, %v1483
        %v1516 = vpack.c.b16 %v1484, %v1484
        %v1517 = vpack.c.b16 %v1485, %v1485
        %v1518 = vpack.c.b16 %v1486, %v1486
        %v1519 = vpack.c.b16 %v1487, %v1487
        %v1520 = vpack.c.b16 %v1488, %v1488
        %v1521 = vpack.c.b16 %v1489, %v1489
        %v1522 = vpack.c.b16 %v1490, %v1490
        %1555 = vst [vmem:[#allocation3 + $0x14] sm:$0xf] %v1491
        %1556 = vst [vmem:[#allocation3 + $0x38] sm:$0xf] %v1492
        %1557 = vst [vmem:[#allocation3 + $0x5c] sm:$0xf] %v1493
        %1558 = vst [vmem:[#allocation3 + $0x80] sm:$0xf] %v1494
        %1559 = vst [vmem:[#allocation3 + $0xa4] sm:$0xf] %v1495
        %1560 = vst [vmem:[#allocation3 + $0xc8] sm:$0xf] %v1496
        %1561 = vst [vmem:[#allocation3 + $0xec] sm:$0xf] %v1497
        %1562 = vst [vmem:[#allocation3 + $0x110] sm:$0xf] %v1498
        %1563 = vst [vmem:[#allocation3 + $0x134] sm:$0xf] %v1499
        %1564 = vst [vmem:[#allocation3 + $0x158] sm:$0xf] %v1500
        %1565 = vst [vmem:[#allocation3 + $0x17c] sm:$0xf] %v1501
        %1566 = vst [vmem:[#allocation3 + $0x1a0] sm:$0xf] %v1502
        %1567 = vst [vmem:[#allocation3 + $0x1c4] sm:$0xf] %v1503
        %1568 = vst [vmem:[#allocation3 + $0x1e8] sm:$0xf] %v1504
        %1569 = vst [vmem:[#allocation3 + $0x20c] sm:$0xf] %v1505
        %1570 = vst [vmem:[#allocation3 + $0x230] sm:$0xf] %v1506
        %1571 = vst [vmem:[#allocation3 + $0x254] sm:$0xf] %v1507
        %1572 = vst [vmem:[#allocation3 + $0x278] sm:$0xf] %v1508
        %1573 = vst [vmem:[#allocation3 + $0x29c] sm:$0xf] %v1509
        %1574 = vst [vmem:[#allocation3 + $0x2c0] sm:$0xf] %v1510
        %1575 = vst [vmem:[#allocation3 + $0x2e4] sm:$0xf] %v1511
        %1576 = vst [vmem:[#allocation3 + $0x308] sm:$0xf] %v1512
        %1577 = vst [vmem:[#allocation3 + $0x32c] sm:$0xf] %v1513
        %1578 = vst [vmem:[#allocation3 + $0x350] sm:$0xf] %v1514
        %1579 = vst [vmem:[#allocation3 + $0x374] sm:$0xf] %v1515
        %1580 = vst [vmem:[#allocation3 + $0x398] sm:$0xf] %v1516
        %1581 = vst [vmem:[#allocation3 + $0x3bc] sm:$0xf] %v1517
        %1582 = vst [vmem:[#allocation3 + $0x3e0] sm:$0xf] %v1518
        %1583 = vst [vmem:[#allocation3 + $0x404] sm:$0xf] %v1519
        %1584 = vst [vmem:[#allocation3 + $0x428] sm:$0xf] %v1520
        %1585 = vst [vmem:[#allocation3 + $0x44c] sm:$0xf] %v1521
        %1586 = vst [vmem:[#allocation3 + $0x470] sm:$0xf] %v1522
        %s1587 = scalar_lea.vmem [#allocation2], 48
        %v1588 = vld [vmem:[%s1587] sm:$0xff]
        %v1589 = vld [vmem:[%s1587 + $0x8] sm:$0xff]
        %v1590 = vld [vmem:[%s1587 + $0x18] sm:$0xff]
        %v1591 = vld [vmem:[%s1587 + $0x20] sm:$0xff]
        %v1592 = vld [vmem:[%s1587 + $0x30] sm:$0xff]
        %v1593 = vld [vmem:[%s1587 + $0x38] sm:$0xff]
        %v1594 = vld [vmem:[%s1587 + $0x48] sm:$0xff]
        %v1595 = vld [vmem:[%s1587 + $0x50] sm:$0xff]
        %v1596 = vld [vmem:[%s1587 + $0x60] sm:$0xff]
        %v1597 = vld [vmem:[%s1587 + $0x68] sm:$0xff]
        %v1598 = vld [vmem:[%s1587 + $0x78] sm:$0xff]
        %v1599 = vld [vmem:[%s1587 + $0x80] sm:$0xff]
        %v1600 = vld [vmem:[%s1587 + $0x90] sm:$0xff]
        %v1601 = vld [vmem:[%s1587 + $0x98] sm:$0xff]
        %v1602 = vld [vmem:[%s1587 + $0xa8] sm:$0xff]
        %v1603 = vld [vmem:[%s1587 + $0xb0] sm:$0xff]
        %v1604 = vld [vmem:[%s1587 + $0xc0] sm:$0xff]
        %v1605 = vld [vmem:[%s1587 + $0xc8] sm:$0xff]
        %v1606 = vld [vmem:[%s1587 + $0xd8] sm:$0xff]
        %v1607 = vld [vmem:[%s1587 + $0xe0] sm:$0xff]
        %v1608 = vld [vmem:[%s1587 + $0xf0] sm:$0xff]
        %v1609 = vld [vmem:[%s1587 + $0xf8] sm:$0xff]
        %v1610 = vld [vmem:[%s1587 + $0x108] sm:$0xff]
        %v1611 = vld [vmem:[%s1587 + $0x110] sm:$0xff]
        %v1612 = vld [vmem:[%s1587 + $0x120] sm:$0xff]
        %v1613 = vld [vmem:[%s1587 + $0x128] sm:$0xff]
        %v1614 = vld [vmem:[%s1587 + $0x138] sm:$0xff]
        %v1615 = vld [vmem:[%s1587 + $0x140] sm:$0xff]
        %v1616 = vld [vmem:[%s1587 + $0x150] sm:$0xff]
        %v1617 = vld [vmem:[%s1587 + $0x158] sm:$0xff]
        %v1618 = vld [vmem:[%s1587 + $0x168] sm:$0xff]
        %v1619 = vld [vmem:[%s1587 + $0x170] sm:$0xff]
        %v1620 = vpack.c.bf16 %v1589, %v1588
        %v1621 = vpack.c.bf16 %v1591, %v1590
        %v1622 = vpack.c.bf16 %v1593, %v1592
        %v1623 = vpack.c.bf16 %v1595, %v1594
        %v1624 = vpack.c.bf16 %v1597, %v1596
        %v1625 = vpack.c.bf16 %v1599, %v1598
        %v1626 = vpack.c.bf16 %v1601, %v1600
        %v1627 = vpack.c.bf16 %v1603, %v1602
        %v1628 = vpack.c.bf16 %v1605, %v1604
        %v1629 = vpack.c.bf16 %v1607, %v1606
        %v1630 = vpack.c.bf16 %v1609, %v1608
        %v1631 = vpack.c.bf16 %v1611, %v1610
        %v1632 = vpack.c.bf16 %v1613, %v1612
        %v1633 = vpack.c.bf16 %v1615, %v1614
        %v1634 = vpack.c.bf16 %v1617, %v1616
        %v1635 = vpack.c.bf16 %v1619, %v1618
        %v1652 = vunpack.c.l.b16 %v1620
        %v1653 = vunpack.c.h.b16 %v1620
        %v1654 = vunpack.c.l.b16 %v1621
        %v1655 = vunpack.c.h.b16 %v1621
        %v1656 = vunpack.c.l.b16 %v1622
        %v1657 = vunpack.c.h.b16 %v1622
        %v1658 = vunpack.c.l.b16 %v1623
        %v1659 = vunpack.c.h.b16 %v1623
        %v1660 = vunpack.c.l.b16 %v1624
        %v1661 = vunpack.c.h.b16 %v1624
        %v1662 = vunpack.c.l.b16 %v1625
        %v1663 = vunpack.c.h.b16 %v1625
        %v1664 = vunpack.c.l.b16 %v1626
        %v1665 = vunpack.c.h.b16 %v1626
        %v1666 = vunpack.c.l.b16 %v1627
        %v1667 = vunpack.c.h.b16 %v1627
        %v1668 = vunpack.c.l.b16 %v1628
        %v1669 = vunpack.c.h.b16 %v1628
        %v1670 = vunpack.c.l.b16 %v1629
        %v1671 = vunpack.c.h.b16 %v1629
        %v1672 = vunpack.c.l.b16 %v1630
        %v1673 = vunpack.c.h.b16 %v1630
        %v1674 = vunpack.c.l.b16 %v1631
        %v1675 = vunpack.c.h.b16 %v1631
        %v1676 = vunpack.c.l.b16 %v1632
        %v1677 = vunpack.c.h.b16 %v1632
        %v1678 = vunpack.c.l.b16 %v1633
        %v1679 = vunpack.c.h.b16 %v1633
        %v1680 = vunpack.c.l.b16 %v1634
        %v1681 = vunpack.c.h.b16 %v1634
        %v1682 = vunpack.c.l.b16 %v1635
        %v1683 = vunpack.c.h.b16 %v1635
        %v1684 = vpack.c.b16 %v1652, %v1652
        %v1685 = vpack.c.b16 %v1653, %v1653
        %v1686 = vpack.c.b16 %v1654, %v1654
        %v1687 = vpack.c.b16 %v1655, %v1655
        %v1688 = vpack.c.b16 %v1656, %v1656
        %v1689 = vpack.c.b16 %v1657, %v1657
        %v1690 = vpack.c.b16 %v1658, %v1658
        %v1691 = vpack.c.b16 %v1659, %v1659
        %v1692 = vpack.c.b16 %v1660, %v1660
        %v1693 = vpack.c.b16 %v1661, %v1661
        %v1694 = vpack.c.b16 %v1662, %v1662
        %v1695 = vpack.c.b16 %v1663, %v1663
        %v1696 = vpack.c.b16 %v1664, %v1664
        %v1697 = vpack.c.b16 %v1665, %v1665
        %v1698 = vpack.c.b16 %v1666, %v1666
        %v1699 = vpack.c.b16 %v1667, %v1667
        %v1700 = vpack.c.b16 %v1668, %v1668
        %v1701 = vpack.c.b16 %v1669, %v1669
        %v1702 = vpack.c.b16 %v1670, %v1670
        %v1703 = vpack.c.b16 %v1671, %v1671
        %v1704 = vpack.c.b16 %v1672, %v1672
        %v1705 = vpack.c.b16 %v1673, %v1673
        %v1706 = vpack.c.b16 %v1674, %v1674
        %v1707 = vpack.c.b16 %v1675, %v1675
        %v1708 = vpack.c.b16 %v1676, %v1676
        %v1709 = vpack.c.b16 %v1677, %v1677
        %v1710 = vpack.c.b16 %v1678, %v1678
        %v1711 = vpack.c.b16 %v1679, %v1679
        %v1712 = vpack.c.b16 %v1680, %v1680
        %v1713 = vpack.c.b16 %v1681, %v1681
        %v1714 = vpack.c.b16 %v1682, %v1682
        %v1715 = vpack.c.b16 %v1683, %v1683
        %1748 = vst [vmem:[#allocation3 + $0x18] sm:$0xf] %v1684
        %1749 = vst [vmem:[#allocation3 + $0x3c] sm:$0xf] %v1685
        %1750 = vst [vmem:[#allocation3 + $0x60] sm:$0xf] %v1686
        %1751 = vst [vmem:[#allocation3 + $0x84] sm:$0xf] %v1687
        %1752 = vst [vmem:[#allocation3 + $0xa8] sm:$0xf] %v1688
        %1753 = vst [vmem:[#allocation3 + $0xcc] sm:$0xf] %v1689
        %1754 = vst [vmem:[#allocation3 + $0xf0] sm:$0xf] %v1690
        %1755 = vst [vmem:[#allocation3 + $0x114] sm:$0xf] %v1691
        %1756 = vst [vmem:[#allocation3 + $0x138] sm:$0xf] %v1692
        %1757 = vst [vmem:[#allocation3 + $0x15c] sm:$0xf] %v1693
        %1758 = vst [vmem:[#allocation3 + $0x180] sm:$0xf] %v1694
        %1759 = vst [vmem:[#allocation3 + $0x1a4] sm:$0xf] %v1695
        %1760 = vst [vmem:[#allocation3 + $0x1c8] sm:$0xf] %v1696
        %1761 = vst [vmem:[#allocation3 + $0x1ec] sm:$0xf] %v1697
        %1762 = vst [vmem:[#allocation3 + $0x210] sm:$0xf] %v1698
        %1763 = vst [vmem:[#allocation3 + $0x234] sm:$0xf] %v1699
        %1764 = vst [vmem:[#allocation3 + $0x258] sm:$0xf] %v1700
        %1765 = vst [vmem:[#allocation3 + $0x27c] sm:$0xf] %v1701
        %1766 = vst [vmem:[#allocation3 + $0x2a0] sm:$0xf] %v1702
        %1767 = vst [vmem:[#allocation3 + $0x2c4] sm:$0xf] %v1703
        %1768 = vst [vmem:[#allocation3 + $0x2e8] sm:$0xf] %v1704
        %1769 = vst [vmem:[#allocation3 + $0x30c] sm:$0xf] %v1705
        %1770 = vst [vmem:[#allocation3 + $0x330] sm:$0xf] %v1706
        %1771 = vst [vmem:[#allocation3 + $0x354] sm:$0xf] %v1707
        %1772 = vst [vmem:[#allocation3 + $0x378] sm:$0xf] %v1708
        %1773 = vst [vmem:[#allocation3 + $0x39c] sm:$0xf] %v1709
        %1774 = vst [vmem:[#allocation3 + $0x3c0] sm:$0xf] %v1710
        %1775 = vst [vmem:[#allocation3 + $0x3e4] sm:$0xf] %v1711
        %1776 = vst [vmem:[#allocation3 + $0x408] sm:$0xf] %v1712
        %1777 = vst [vmem:[#allocation3 + $0x42c] sm:$0xf] %v1713
        %1778 = vst [vmem:[#allocation3 + $0x450] sm:$0xf] %v1714
        %1779 = vst [vmem:[#allocation3 + $0x474] sm:$0xf] %v1715
        %v1780 = vld [vmem:[%s1587 + $0x1] sm:$0xff]
        %v1781 = vld [vmem:[%s1587 + $0x9] sm:$0xff]
        %v1782 = vld [vmem:[%s1587 + $0x19] sm:$0xff]
        %v1783 = vld [vmem:[%s1587 + $0x21] sm:$0xff]
        %v1784 = vld [vmem:[%s1587 + $0x31] sm:$0xff]
        %v1785 = vld [vmem:[%s1587 + $0x39] sm:$0xff]
        %v1786 = vld [vmem:[%s1587 + $0x49] sm:$0xff]
        %v1787 = vld [vmem:[%s1587 + $0x51] sm:$0xff]
        %v1788 = vld [vmem:[%s1587 + $0x61] sm:$0xff]
        %v1789 = vld [vmem:[%s1587 + $0x69] sm:$0xff]
        %v1790 = vld [vmem:[%s1587 + $0x79] sm:$0xff]
        %v1791 = vld [vmem:[%s1587 + $0x81] sm:$0xff]
        %v1792 = vld [vmem:[%s1587 + $0x91] sm:$0xff]
        %v1793 = vld [vmem:[%s1587 + $0x99] sm:$0xff]
        %v1794 = vld [vmem:[%s1587 + $0xa9] sm:$0xff]
        %v1795 = vld [vmem:[%s1587 + $0xb1] sm:$0xff]
        %v1796 = vld [vmem:[%s1587 + $0xc1] sm:$0xff]
        %v1797 = vld [vmem:[%s1587 + $0xc9] sm:$0xff]
        %v1798 = vld [vmem:[%s1587 + $0xd9] sm:$0xff]
        %v1799 = vld [vmem:[%s1587 + $0xe1] sm:$0xff]
        %v1800 = vld [vmem:[%s1587 + $0xf1] sm:$0xff]
        %v1801 = vld [vmem:[%s1587 + $0xf9] sm:$0xff]
        %v1802 = vld [vmem:[%s1587 + $0x109] sm:$0xff]
        %v1803 = vld [vmem:[%s1587 + $0x111] sm:$0xff]
        %v1804 = vld [vmem:[%s1587 + $0x121] sm:$0xff]
        %v1805 = vld [vmem:[%s1587 + $0x129] sm:$0xff]
        %v1806 = vld [vmem:[%s1587 + $0x139] sm:$0xff]
        %v1807 = vld [vmem:[%s1587 + $0x141] sm:$0xff]
        %v1808 = vld [vmem:[%s1587 + $0x151] sm:$0xff]
        %v1809 = vld [vmem:[%s1587 + $0x159] sm:$0xff]
        %v1810 = vld [vmem:[%s1587 + $0x169] sm:$0xff]
        %v1811 = vld [vmem:[%s1587 + $0x171] sm:$0xff]
        %v1812 = vpack.c.bf16 %v1781, %v1780
        %v1813 = vpack.c.bf16 %v1783, %v1782
        %v1814 = vpack.c.bf16 %v1785, %v1784
        %v1815 = vpack.c.bf16 %v1787, %v1786
        %v1816 = vpack.c.bf16 %v1789, %v1788
        %v1817 = vpack.c.bf16 %v1791, %v1790
        %v1818 = vpack.c.bf16 %v1793, %v1792
        %v1819 = vpack.c.bf16 %v1795, %v1794
        %v1820 = vpack.c.bf16 %v1797, %v1796
        %v1821 = vpack.c.bf16 %v1799, %v1798
        %v1822 = vpack.c.bf16 %v1801, %v1800
        %v1823 = vpack.c.bf16 %v1803, %v1802
        %v1824 = vpack.c.bf16 %v1805, %v1804
        %v1825 = vpack.c.bf16 %v1807, %v1806
        %v1826 = vpack.c.bf16 %v1809, %v1808
        %v1827 = vpack.c.bf16 %v1811, %v1810
        %v1844 = vunpack.c.l.b16 %v1812
        %v1845 = vunpack.c.h.b16 %v1812
        %v1846 = vunpack.c.l.b16 %v1813
        %v1847 = vunpack.c.h.b16 %v1813
        %v1848 = vunpack.c.l.b16 %v1814
        %v1849 = vunpack.c.h.b16 %v1814
        %v1850 = vunpack.c.l.b16 %v1815
        %v1851 = vunpack.c.h.b16 %v1815
        %v1852 = vunpack.c.l.b16 %v1816
        %v1853 = vunpack.c.h.b16 %v1816
        %v1854 = vunpack.c.l.b16 %v1817
        %v1855 = vunpack.c.h.b16 %v1817
        %v1856 = vunpack.c.l.b16 %v1818
        %v1857 = vunpack.c.h.b16 %v1818
        %v1858 = vunpack.c.l.b16 %v1819
        %v1859 = vunpack.c.h.b16 %v1819
        %v1860 = vunpack.c.l.b16 %v1820
        %v1861 = vunpack.c.h.b16 %v1820
        %v1862 = vunpack.c.l.b16 %v1821
        %v1863 = vunpack.c.h.b16 %v1821
        %v1864 = vunpack.c.l.b16 %v1822
        %v1865 = vunpack.c.h.b16 %v1822
        %v1866 = vunpack.c.l.b16 %v1823
        %v1867 = vunpack.c.h.b16 %v1823
        %v1868 = vunpack.c.l.b16 %v1824
        %v1869 = vunpack.c.h.b16 %v1824
        %v1870 = vunpack.c.l.b16 %v1825
        %v1871 = vunpack.c.h.b16 %v1825
        %v1872 = vunpack.c.l.b16 %v1826
        %v1873 = vunpack.c.h.b16 %v1826
        %v1874 = vunpack.c.l.b16 %v1827
        %v1875 = vunpack.c.h.b16 %v1827
        %v1876 = vpack.c.b16 %v1844, %v1844
        %v1877 = vpack.c.b16 %v1845, %v1845
        %v1878 = vpack.c.b16 %v1846, %v1846
        %v1879 = vpack.c.b16 %v1847, %v1847
        %v1880 = vpack.c.b16 %v1848, %v1848
        %v1881 = vpack.c.b16 %v1849, %v1849
        %v1882 = vpack.c.b16 %v1850, %v1850
        %v1883 = vpack.c.b16 %v1851, %v1851
        %v1884 = vpack.c.b16 %v1852, %v1852
        %v1885 = vpack.c.b16 %v1853, %v1853
        %v1886 = vpack.c.b16 %v1854, %v1854
        %v1887 = vpack.c.b16 %v1855, %v1855
        %v1888 = vpack.c.b16 %v1856, %v1856
        %v1889 = vpack.c.b16 %v1857, %v1857
        %v1890 = vpack.c.b16 %v1858, %v1858
        %v1891 = vpack.c.b16 %v1859, %v1859
        %v1892 = vpack.c.b16 %v1860, %v1860
        %v1893 = vpack.c.b16 %v1861, %v1861
        %v1894 = vpack.c.b16 %v1862, %v1862
        %v1895 = vpack.c.b16 %v1863, %v1863
        %v1896 = vpack.c.b16 %v1864, %v1864
        %v1897 = vpack.c.b16 %v1865, %v1865
        %v1898 = vpack.c.b16 %v1866, %v1866
        %v1899 = vpack.c.b16 %v1867, %v1867
        %v1900 = vpack.c.b16 %v1868, %v1868
        %v1901 = vpack.c.b16 %v1869, %v1869
        %v1902 = vpack.c.b16 %v1870, %v1870
        %v1903 = vpack.c.b16 %v1871, %v1871
        %v1904 = vpack.c.b16 %v1872, %v1872
        %v1905 = vpack.c.b16 %v1873, %v1873
        %v1906 = vpack.c.b16 %v1874, %v1874
        %v1907 = vpack.c.b16 %v1875, %v1875
        %1940 = vst [vmem:[#allocation3 + $0x1c] sm:$0xf] %v1876
        %1941 = vst [vmem:[#allocation3 + $0x40] sm:$0xf] %v1877
        %1942 = vst [vmem:[#allocation3 + $0x64] sm:$0xf] %v1878
        %1943 = vst [vmem:[#allocation3 + $0x88] sm:$0xf] %v1879
        %1944 = vst [vmem:[#allocation3 + $0xac] sm:$0xf] %v1880
        %1945 = vst [vmem:[#allocation3 + $0xd0] sm:$0xf] %v1881
        %1946 = vst [vmem:[#allocation3 + $0xf4] sm:$0xf] %v1882
        %1947 = vst [vmem:[#allocation3 + $0x118] sm:$0xf] %v1883
        %1948 = vst [vmem:[#allocation3 + $0x13c] sm:$0xf] %v1884
        %1949 = vst [vmem:[#allocation3 + $0x160] sm:$0xf] %v1885
        %1950 = vst [vmem:[#allocation3 + $0x184] sm:$0xf] %v1886
        %1951 = vst [vmem:[#allocation3 + $0x1a8] sm:$0xf] %v1887
        %1952 = vst [vmem:[#allocation3 + $0x1cc] sm:$0xf] %v1888
        %1953 = vst [vmem:[#allocation3 + $0x1f0] sm:$0xf] %v1889
        %1954 = vst [vmem:[#allocation3 + $0x214] sm:$0xf] %v1890
        %1955 = vst [vmem:[#allocation3 + $0x238] sm:$0xf] %v1891
        %1956 = vst [vmem:[#allocation3 + $0x25c] sm:$0xf] %v1892
        %1957 = vst [vmem:[#allocation3 + $0x280] sm:$0xf] %v1893
        %1958 = vst [vmem:[#allocation3 + $0x2a4] sm:$0xf] %v1894
        %1959 = vst [vmem:[#allocation3 + $0x2c8] sm:$0xf] %v1895
        %1960 = vst [vmem:[#allocation3 + $0x2ec] sm:$0xf] %v1896
        %1961 = vst [vmem:[#allocation3 + $0x310] sm:$0xf] %v1897
        %1962 = vst [vmem:[#allocation3 + $0x334] sm:$0xf] %v1898
        %1963 = vst [vmem:[#allocation3 + $0x358] sm:$0xf] %v1899
        %1964 = vst [vmem:[#allocation3 + $0x37c] sm:$0xf] %v1900
        %1965 = vst [vmem:[#allocation3 + $0x3a0] sm:$0xf] %v1901
        %1966 = vst [vmem:[#allocation3 + $0x3c4] sm:$0xf] %v1902
        %1967 = vst [vmem:[#allocation3 + $0x3e8] sm:$0xf] %v1903
        %1968 = vst [vmem:[#allocation3 + $0x40c] sm:$0xf] %v1904
        %1969 = vst [vmem:[#allocation3 + $0x430] sm:$0xf] %v1905
        %1970 = vst [vmem:[#allocation3 + $0x454] sm:$0xf] %v1906
        %1971 = vst [vmem:[#allocation3 + $0x478] sm:$0xf] %v1907
        %v1972 = vld [vmem:[%s1587 + $0x2] sm:$0xff]
        %v1973 = vld [vmem:[%s1587 + $0xa] sm:$0xff]
        %v1974 = vld [vmem:[%s1587 + $0x1a] sm:$0xff]
        %v1975 = vld [vmem:[%s1587 + $0x22] sm:$0xff]
        %v1976 = vld [vmem:[%s1587 + $0x32] sm:$0xff]
        %v1977 = vld [vmem:[%s1587 + $0x3a] sm:$0xff]
        %v1978 = vld [vmem:[%s1587 + $0x4a] sm:$0xff]
        %v1979 = vld [vmem:[%s1587 + $0x52] sm:$0xff]
        %v1980 = vld [vmem:[%s1587 + $0x62] sm:$0xff]
        %v1981 = vld [vmem:[%s1587 + $0x6a] sm:$0xff]
        %v1982 = vld [vmem:[%s1587 + $0x7a] sm:$0xff]
        %v1983 = vld [vmem:[%s1587 + $0x82] sm:$0xff]
        %v1984 = vld [vmem:[%s1587 + $0x92] sm:$0xff]
        %v1985 = vld [vmem:[%s1587 + $0x9a] sm:$0xff]
        %v1986 = vld [vmem:[%s1587 + $0xaa] sm:$0xff]
        %v1987 = vld [vmem:[%s1587 + $0xb2] sm:$0xff]
        %v1988 = vld [vmem:[%s1587 + $0xc2] sm:$0xff]
        %v1989 = vld [vmem:[%s1587 + $0xca] sm:$0xff]
        %v1990 = vld [vmem:[%s1587 + $0xda] sm:$0xff]
        %v1991 = vld [vmem:[%s1587 + $0xe2] sm:$0xff]
        %v1992 = vld [vmem:[%s1587 + $0xf2] sm:$0xff]
        %v1993 = vld [vmem:[%s1587 + $0xfa] sm:$0xff]
        %v1994 = vld [vmem:[%s1587 + $0x10a] sm:$0xff]
        %v1995 = vld [vmem:[%s1587 + $0x112] sm:$0xff]
        %v1996 = vld [vmem:[%s1587 + $0x122] sm:$0xff]
        %v1997 = vld [vmem:[%s1587 + $0x12a] sm:$0xff]
        %v1998 = vld [vmem:[%s1587 + $0x13a] sm:$0xff]
        %v1999 = vld [vmem:[%s1587 + $0x142] sm:$0xff]
        %v2000 = vld [vmem:[%s1587 + $0x152] sm:$0xff]
        %v2001 = vld [vmem:[%s1587 + $0x15a] sm:$0xff]
        %v2002 = vld [vmem:[%s1587 + $0x16a] sm:$0xff]
        %v2003 = vld [vmem:[%s1587 + $0x172] sm:$0xff]
        %v2004 = vpack.c.bf16 %v1973, %v1972
        %v2005 = vpack.c.bf16 %v1975, %v1974
        %v2006 = vpack.c.bf16 %v1977, %v1976
        %v2007 = vpack.c.bf16 %v1979, %v1978
        %v2008 = vpack.c.bf16 %v1981, %v1980
        %v2009 = vpack.c.bf16 %v1983, %v1982
        %v2010 = vpack.c.bf16 %v1985, %v1984
        %v2011 = vpack.c.bf16 %v1987, %v1986
        %v2012 = vpack.c.bf16 %v1989, %v1988
        %v2013 = vpack.c.bf16 %v1991, %v1990
        %v2014 = vpack.c.bf16 %v1993, %v1992
        %v2015 = vpack.c.bf16 %v1995, %v1994
        %v2016 = vpack.c.bf16 %v1997, %v1996
        %v2017 = vpack.c.bf16 %v1999, %v1998
        %v2018 = vpack.c.bf16 %v2001, %v2000
        %v2019 = vpack.c.bf16 %v2003, %v2002
        %v2036 = vunpack.c.l.b16 %v2004
        %v2037 = vunpack.c.h.b16 %v2004
        %v2038 = vunpack.c.l.b16 %v2005
        %v2039 = vunpack.c.h.b16 %v2005
        %v2040 = vunpack.c.l.b16 %v2006
        %v2041 = vunpack.c.h.b16 %v2006
        %v2042 = vunpack.c.l.b16 %v2007
        %v2043 = vunpack.c.h.b16 %v2007
        %v2044 = vunpack.c.l.b16 %v2008
        %v2045 = vunpack.c.h.b16 %v2008
        %v2046 = vunpack.c.l.b16 %v2009
        %v2047 = vunpack.c.h.b16 %v2009
        %v2048 = vunpack.c.l.b16 %v2010
        %v2049 = vunpack.c.h.b16 %v2010
        %v2050 = vunpack.c.l.b16 %v2011
        %v2051 = vunpack.c.h.b16 %v2011
        %v2052 = vunpack.c.l.b16 %v2012
        %v2053 = vunpack.c.h.b16 %v2012
        %v2054 = vunpack.c.l.b16 %v2013
        %v2055 = vunpack.c.h.b16 %v2013
        %v2056 = vunpack.c.l.b16 %v2014
        %v2057 = vunpack.c.h.b16 %v2014
        %v2058 = vunpack.c.l.b16 %v2015
        %v2059 = vunpack.c.h.b16 %v2015
        %v2060 = vunpack.c.l.b16 %v2016
        %v2061 = vunpack.c.h.b16 %v2016
        %v2062 = vunpack.c.l.b16 %v2017
        %v2063 = vunpack.c.h.b16 %v2017
        %v2064 = vunpack.c.l.b16 %v2018
        %v2065 = vunpack.c.h.b16 %v2018
        %v2066 = vunpack.c.l.b16 %v2019
        %v2067 = vunpack.c.h.b16 %v2019
        %v2068 = vpack.c.b16 %v2036, %v2036
        %v2069 = vpack.c.b16 %v2037, %v2037
        %v2070 = vpack.c.b16 %v2038, %v2038
        %v2071 = vpack.c.b16 %v2039, %v2039
        %v2072 = vpack.c.b16 %v2040, %v2040
        %v2073 = vpack.c.b16 %v2041, %v2041
        %v2074 = vpack.c.b16 %v2042, %v2042
        %v2075 = vpack.c.b16 %v2043, %v2043
        %v2076 = vpack.c.b16 %v2044, %v2044
        %v2077 = vpack.c.b16 %v2045, %v2045
        %v2078 = vpack.c.b16 %v2046, %v2046
        %v2079 = vpack.c.b16 %v2047, %v2047
        %v2080 = vpack.c.b16 %v2048, %v2048
        %v2081 = vpack.c.b16 %v2049, %v2049
        %v2082 = vpack.c.b16 %v2050, %v2050
        %v2083 = vpack.c.b16 %v2051, %v2051
        %v2084 = vpack.c.b16 %v2052, %v2052
        %v2085 = vpack.c.b16 %v2053, %v2053
        %v2086 = vpack.c.b16 %v2054, %v2054
        %v2087 = vpack.c.b16 %v2055, %v2055
        %v2088 = vpack.c.b16 %v2056, %v2056
        %v2089 = vpack.c.b16 %v2057, %v2057
        %v2090 = vpack.c.b16 %v2058, %v2058
        %v2091 = vpack.c.b16 %v2059, %v2059
        %v2092 = vpack.c.b16 %v2060, %v2060
        %v2093 = vpack.c.b16 %v2061, %v2061
        %v2094 = vpack.c.b16 %v2062, %v2062
        %v2095 = vpack.c.b16 %v2063, %v2063
        %v2096 = vpack.c.b16 %v2064, %v2064
        %v2097 = vpack.c.b16 %v2065, %v2065
        %v2098 = vpack.c.b16 %v2066, %v2066
        %v2099 = vpack.c.b16 %v2067, %v2067
        %2132 = vst [vmem:[#allocation3 + $0x20] sm:$0xf] %v2068
        %2133 = vst [vmem:[#allocation3 + $0x44] sm:$0xf] %v2069
        %2134 = vst [vmem:[#allocation3 + $0x68] sm:$0xf] %v2070
        %2135 = vst [vmem:[#allocation3 + $0x8c] sm:$0xf] %v2071
        %2136 = vst [vmem:[#allocation3 + $0xb0] sm:$0xf] %v2072
        %2137 = vst [vmem:[#allocation3 + $0xd4] sm:$0xf] %v2073
        %2138 = vst [vmem:[#allocation3 + $0xf8] sm:$0xf] %v2074
        %2139 = vst [vmem:[#allocation3 + $0x11c] sm:$0xf] %v2075
        %2140 = vst [vmem:[#allocation3 + $0x140] sm:$0xf] %v2076
        %2141 = vst [vmem:[#allocation3 + $0x164] sm:$0xf] %v2077
        %2142 = vst [vmem:[#allocation3 + $0x188] sm:$0xf] %v2078
        %2143 = vst [vmem:[#allocation3 + $0x1ac] sm:$0xf] %v2079
        %2144 = vst [vmem:[#allocation3 + $0x1d0] sm:$0xf] %v2080
        %2145 = vst [vmem:[#allocation3 + $0x1f4] sm:$0xf] %v2081
        %2146 = vst [vmem:[#allocation3 + $0x218] sm:$0xf] %v2082
        %2147 = vst [vmem:[#allocation3 + $0x23c] sm:$0xf] %v2083
        %2148 = vst [vmem:[#allocation3 + $0x260] sm:$0xf] %v2084
        %2149 = vst [vmem:[#allocation3 + $0x284] sm:$0xf] %v2085
        %2150 = vst [vmem:[#allocation3 + $0x2a8] sm:$0xf] %v2086
        %2151 = vst [vmem:[#allocation3 + $0x2cc] sm:$0xf] %v2087
        %2152 = vst [vmem:[#allocation3 + $0x2f0] sm:$0xf] %v2088
        %2153 = vst [vmem:[#allocation3 + $0x314] sm:$0xf] %v2089
        %2154 = vst [vmem:[#allocation3 + $0x338] sm:$0xf] %v2090
        %2155 = vst [vmem:[#allocation3 + $0x35c] sm:$0xf] %v2091
        %2156 = vst [vmem:[#allocation3 + $0x380] sm:$0xf] %v2092
        %2157 = vst [vmem:[#allocation3 + $0x3a4] sm:$0xf] %v2093
        %2158 = vst [vmem:[#allocation3 + $0x3c8] sm:$0xf] %v2094
        %2159 = vst [vmem:[#allocation3 + $0x3ec] sm:$0xf] %v2095
        %2160 = vst [vmem:[#allocation3 + $0x410] sm:$0xf] %v2096
        %2161 = vst [vmem:[#allocation3 + $0x434] sm:$0xf] %v2097
        %2162 = vst [vmem:[#allocation3 + $0x458] sm:$0xf] %v2098
        %2163 = vst [vmem:[#allocation3 + $0x47c] sm:$0xf] %v2099
        %v2164 = vld [vmem:[#allocation3] sm:$0xff]
        %v2165 = vld [vmem:[#allocation3 + $0x8] sm:$0xff]
        %v2166 = vld [vmem:[#allocation3 + $0x10] sm:$0xff]
        %v2167 = vld [vmem:[#allocation3 + $0x18] sm:$0xff]
        %v2168 = vld [vmem:[#allocation3 + $0x20] sm:$0xf]
        %v2169 = vld [vmem:[#allocation3 + $0x24] sm:$0xff]
        %v2170 = vld [vmem:[#allocation3 + $0x2c] sm:$0xff]
        %v2171 = vld [vmem:[#allocation3 + $0x34] sm:$0xff]
        %v2172 = vld [vmem:[#allocation3 + $0x3c] sm:$0xff]
        %v2173 = vld [vmem:[#allocation3 + $0x44] sm:$0xf]
        %v2174 = vld [vmem:[#allocation3 + $0x48] sm:$0xff]
        %v2175 = vld [vmem:[#allocation3 + $0x50] sm:$0xff]
        %v2176 = vld [vmem:[#allocation3 + $0x58] sm:$0xff]
        %v2177 = vld [vmem:[#allocation3 + $0x60] sm:$0xff]
        %v2178 = vld [vmem:[#allocation3 + $0x68] sm:$0xf]
        %v2179 = vld [vmem:[#allocation3 + $0x6c] sm:$0xff]
        %v2180 = vld [vmem:[#allocation3 + $0x74] sm:$0xff]
        %v2181 = vld [vmem:[#allocation3 + $0x7c] sm:$0xff]
        %v2182 = vld [vmem:[#allocation3 + $0x84] sm:$0xff]
        %v2183 = vld [vmem:[#allocation3 + $0x8c] sm:$0xf]
        %v2184 = vld [vmem:[#allocation3 + $0x90] sm:$0xff]
        %v2185 = vld [vmem:[#allocation3 + $0x98] sm:$0xff]
        %v2186 = vld [vmem:[#allocation3 + $0xa0] sm:$0xff]
        %v2187 = vld [vmem:[#allocation3 + $0xa8] sm:$0xff]
        %v2188 = vld [vmem:[#allocation3 + $0xb0] sm:$0xf]
        %v2189 = vld [vmem:[#allocation3 + $0xb4] sm:$0xff]
        %v2190 = vld [vmem:[#allocation3 + $0xbc] sm:$0xff]
        %v2191 = vld [vmem:[#allocation3 + $0xc4] sm:$0xff]
        %v2192 = vld [vmem:[#allocation3 + $0xcc] sm:$0xff]
        %v2193 = vld [vmem:[#allocation3 + $0xd4] sm:$0xf]
        %v2194 = vld [vmem:[#allocation3 + $0xd8] sm:$0xff]
        %v2195 = vld [vmem:[#allocation3 + $0xe0] sm:$0xff]
        %v2196 = vld [vmem:[#allocation3 + $0xe8] sm:$0xff]
        %v2197 = vld [vmem:[#allocation3 + $0xf0] sm:$0xff]
        %v2198 = vld [vmem:[#allocation3 + $0xf8] sm:$0xf]
        %v2199 = vld [vmem:[#allocation3 + $0xfc] sm:$0xff]
        %v2200 = vld [vmem:[#allocation3 + $0x104] sm:$0xff]
        %v2201 = vld [vmem:[#allocation3 + $0x10c] sm:$0xff]
        %v2202 = vld [vmem:[#allocation3 + $0x114] sm:$0xff]
        %v2203 = vld [vmem:[#allocation3 + $0x11c] sm:$0xf]
        %v2204 = vld [vmem:[#allocation3 + $0x120] sm:$0xff]
        %v2205 = vld [vmem:[#allocation3 + $0x128] sm:$0xff]
        %v2206 = vld [vmem:[#allocation3 + $0x130] sm:$0xff]
        %v2207 = vld [vmem:[#allocation3 + $0x138] sm:$0xff]
        %v2208 = vld [vmem:[#allocation3 + $0x140] sm:$0xf]
        %v2209 = vld [vmem:[#allocation3 + $0x144] sm:$0xff]
        %v2210 = vld [vmem:[#allocation3 + $0x14c] sm:$0xff]
        %v2211 = vld [vmem:[#allocation3 + $0x154] sm:$0xff]
        %v2212 = vld [vmem:[#allocation3 + $0x15c] sm:$0xff]
        %v2213 = vld [vmem:[#allocation3 + $0x164] sm:$0xf]
        %v2214 = vld [vmem:[#allocation3 + $0x168] sm:$0xff]
        %v2215 = vld [vmem:[#allocation3 + $0x170] sm:$0xff]
        %v2216 = vld [vmem:[#allocation3 + $0x178] sm:$0xff]
        %v2217 = vld [vmem:[#allocation3 + $0x180] sm:$0xff]
        %v2218 = vld [vmem:[#allocation3 + $0x188] sm:$0xf]
        %v2219 = vld [vmem:[#allocation3 + $0x18c] sm:$0xff]
        %v2220 = vld [vmem:[#allocation3 + $0x194] sm:$0xff]
        %v2221 = vld [vmem:[#allocation3 + $0x19c] sm:$0xff]
        %v2222 = vld [vmem:[#allocation3 + $0x1a4] sm:$0xff]
        %v2223 = vld [vmem:[#allocation3 + $0x1ac] sm:$0xf]
        %v2224 = vld [vmem:[#allocation3 + $0x1b0] sm:$0xff]
        %v2225 = vld [vmem:[#allocation3 + $0x1b8] sm:$0xff]
        %v2226 = vld [vmem:[#allocation3 + $0x1c0] sm:$0xff]
        %v2227 = vld [vmem:[#allocation3 + $0x1c8] sm:$0xff]
        %v2228 = vld [vmem:[#allocation3 + $0x1d0] sm:$0xf]
        %v2229 = vld [vmem:[#allocation3 + $0x1d4] sm:$0xff]
        %v2230 = vld [vmem:[#allocation3 + $0x1dc] sm:$0xff]
        %v2231 = vld [vmem:[#allocation3 + $0x1e4] sm:$0xff]
        %v2232 = vld [vmem:[#allocation3 + $0x1ec] sm:$0xff]
        %v2233 = vld [vmem:[#allocation3 + $0x1f4] sm:$0xf]
        %v2234 = vld [vmem:[#allocation3 + $0x1f8] sm:$0xff]
        %v2235 = vld [vmem:[#allocation3 + $0x200] sm:$0xff]
        %v2236 = vld [vmem:[#allocation3 + $0x208] sm:$0xff]
        %v2237 = vld [vmem:[#allocation3 + $0x210] sm:$0xff]
        %v2238 = vld [vmem:[#allocation3 + $0x218] sm:$0xf]
        %v2239 = vld [vmem:[#allocation3 + $0x21c] sm:$0xff]
        %v2240 = vld [vmem:[#allocation3 + $0x224] sm:$0xff]
        %v2241 = vld [vmem:[#allocation3 + $0x22c] sm:$0xff]
        %v2242 = vld [vmem:[#allocation3 + $0x234] sm:$0xff]
        %v2243 = vld [vmem:[#allocation3 + $0x23c] sm:$0xf]
        %v2244 = vld [vmem:[#allocation3 + $0x240] sm:$0xff]
        %v2245 = vld [vmem:[#allocation3 + $0x248] sm:$0xff]
        %v2246 = vld [vmem:[#allocation3 + $0x250] sm:$0xff]
        %v2247 = vld [vmem:[#allocation3 + $0x258] sm:$0xff]
        %v2248 = vld [vmem:[#allocation3 + $0x260] sm:$0xf]
        %v2249 = vld [vmem:[#allocation3 + $0x264] sm:$0xff]
        %v2250 = vld [vmem:[#allocation3 + $0x26c] sm:$0xff]
        %v2251 = vld [vmem:[#allocation3 + $0x274] sm:$0xff]
        %v2252 = vld [vmem:[#allocation3 + $0x27c] sm:$0xff]
        %v2253 = vld [vmem:[#allocation3 + $0x284] sm:$0xf]
        %v2254 = vld [vmem:[#allocation3 + $0x288] sm:$0xff]
        %v2255 = vld [vmem:[#allocation3 + $0x290] sm:$0xff]
        %v2256 = vld [vmem:[#allocation3 + $0x298] sm:$0xff]
        %v2257 = vld [vmem:[#allocation3 + $0x2a0] sm:$0xff]
        %v2258 = vld [vmem:[#allocation3 + $0x2a8] sm:$0xf]
        %v2259 = vld [vmem:[#allocation3 + $0x2ac] sm:$0xff]
        %v2260 = vld [vmem:[#allocation3 + $0x2b4] sm:$0xff]
        %v2261 = vld [vmem:[#allocation3 + $0x2bc] sm:$0xff]
        %v2262 = vld [vmem:[#allocation3 + $0x2c4] sm:$0xff]
        %v2263 = vld [vmem:[#allocation3 + $0x2cc] sm:$0xf]
        %v2264 = vld [vmem:[#allocation3 + $0x2d0] sm:$0xff]
        %v2265 = vld [vmem:[#allocation3 + $0x2d8] sm:$0xff]
        %v2266 = vld [vmem:[#allocation3 + $0x2e0] sm:$0xff]
        %v2267 = vld [vmem:[#allocation3 + $0x2e8] sm:$0xff]
        %v2268 = vld [vmem:[#allocation3 + $0x2f0] sm:$0xf]
        %v2269 = vld [vmem:[#allocation3 + $0x2f4] sm:$0xff]
        %v2270 = vld [vmem:[#allocation3 + $0x2fc] sm:$0xff]
        %v2271 = vld [vmem:[#allocation3 + $0x304] sm:$0xff]
        %v2272 = vld [vmem:[#allocation3 + $0x30c] sm:$0xff]
        %v2273 = vld [vmem:[#allocation3 + $0x314] sm:$0xf]
        %v2274 = vld [vmem:[#allocation3 + $0x318] sm:$0xff]
        %v2275 = vld [vmem:[#allocation3 + $0x320] sm:$0xff]
        %v2276 = vld [vmem:[#allocation3 + $0x328] sm:$0xff]
        %v2277 = vld [vmem:[#allocation3 + $0x330] sm:$0xff]
        %v2278 = vld [vmem:[#allocation3 + $0x338] sm:$0xf]
        %v2279 = vld [vmem:[#allocation3 + $0x33c] sm:$0xff]
        %v2280 = vld [vmem:[#allocation3 + $0x344] sm:$0xff]
        %v2281 = vld [vmem:[#allocation3 + $0x34c] sm:$0xff]
        %v2282 = vld [vmem:[#allocation3 + $0x354] sm:$0xff]
        %v2283 = vld [vmem:[#allocation3 + $0x35c] sm:$0xf]
        %v2284 = vld [vmem:[#allocation3 + $0x360] sm:$0xff]
        %v2285 = vld [vmem:[#allocation3 + $0x368] sm:$0xff]
        %v2286 = vld [vmem:[#allocation3 + $0x370] sm:$0xff]
        %v2287 = vld [vmem:[#allocation3 + $0x378] sm:$0xff]
        %v2288 = vld [vmem:[#allocation3 + $0x380] sm:$0xf]
        %v2289 = vld [vmem:[#allocation3 + $0x384] sm:$0xff]
        %v2290 = vld [vmem:[#allocation3 + $0x38c] sm:$0xff]
        %v2291 = vld [vmem:[#allocation3 + $0x394] sm:$0xff]
        %v2292 = vld [vmem:[#allocation3 + $0x39c] sm:$0xff]
        %v2293 = vld [vmem:[#allocation3 + $0x3a4] sm:$0xf]
        %v2294 = vld [vmem:[#allocation3 + $0x3a8] sm:$0xff]
        %v2295 = vld [vmem:[#allocation3 + $0x3b0] sm:$0xff]
        %v2296 = vld [vmem:[#allocation3 + $0x3b8] sm:$0xff]
        %v2297 = vld [vmem:[#allocation3 + $0x3c0] sm:$0xff]
        %v2298 = vld [vmem:[#allocation3 + $0x3c8] sm:$0xf]
        %v2299 = vld [vmem:[#allocation3 + $0x3cc] sm:$0xff]
        %v2300 = vld [vmem:[#allocation3 + $0x3d4] sm:$0xff]
        %v2301 = vld [vmem:[#allocation3 + $0x3dc] sm:$0xff]
        %v2302 = vld [vmem:[#allocation3 + $0x3e4] sm:$0xff]
        %v2303 = vld [vmem:[#allocation3 + $0x3ec] sm:$0xf]
        %v2304 = vld [vmem:[#allocation3 + $0x3f0] sm:$0xff]
        %v2305 = vld [vmem:[#allocation3 + $0x3f8] sm:$0xff]
        %v2306 = vld [vmem:[#allocation3 + $0x400] sm:$0xff]
        %v2307 = vld [vmem:[#allocation3 + $0x408] sm:$0xff]
        %v2308 = vld [vmem:[#allocation3 + $0x410] sm:$0xf]
        %v2309 = vld [vmem:[#allocation3 + $0x414] sm:$0xff]
        %v2310 = vld [vmem:[#allocation3 + $0x41c] sm:$0xff]
        %v2311 = vld [vmem:[#allocation3 + $0x424] sm:$0xff]
        %v2312 = vld [vmem:[#allocation3 + $0x42c] sm:$0xff]
        %v2313 = vld [vmem:[#allocation3 + $0x434] sm:$0xf]
        %v2314 = vld [vmem:[#allocation3 + $0x438] sm:$0xff]
        %v2315 = vld [vmem:[#allocation3 + $0x440] sm:$0xff]
        %v2316 = vld [vmem:[#allocation3 + $0x448] sm:$0xff]
        %v2317 = vld [vmem:[#allocation3 + $0x450] sm:$0xff]
        %v2318 = vld [vmem:[#allocation3 + $0x458] sm:$0xf]
        %v2319 = vld [vmem:[#allocation3 + $0x45c] sm:$0xff]
        %v2320 = vld [vmem:[#allocation3 + $0x464] sm:$0xff]
        %v2321 = vld [vmem:[#allocation3 + $0x46c] sm:$0xff]
        %v2322 = vld [vmem:[#allocation3 + $0x474] sm:$0xff]
        %v2323 = vld [vmem:[#allocation3 + $0x47c] sm:$0xf]
        %v2324 = vld [vmem:[#allocation7] sm:$0xf]
        %v2325 = vld [vmem:[#allocation7 + $0x4] sm:$0xf]
        %v2326 = vld [vmem:[#allocation7 + $0x8] sm:$0xf]
        %v2327 = vld [vmem:[#allocation7 + $0xc] sm:$0xf]
        %v2328 = vld [vmem:[#allocation7 + $0x10] sm:$0xf]
        %v2329 = vld [vmem:[#allocation7 + $0x14] sm:$0xf]
        %v2330 = vld [vmem:[#allocation7 + $0x18] sm:$0xf]
        %v2331 = vld [vmem:[#allocation7 + $0x1c] sm:$0xf]
        %v2332 = vld [vmem:[#allocation7 + $0x20] sm:$0xf]
        %v2333 = vld [vmem:[#allocation7 + $0x24] sm:$0xf]
        %v2334 = vld [vmem:[#allocation7 + $0x28] sm:$0xf]
        %v2335 = vld [vmem:[#allocation7 + $0x2c] sm:$0xf]
        %v2336 = vld [vmem:[#allocation7 + $0x30] sm:$0xf]
        %v2337 = vld [vmem:[#allocation7 + $0x34] sm:$0xf]
        %v2338 = vld [vmem:[#allocation7 + $0x38] sm:$0xf]
        %v2339 = vld [vmem:[#allocation7 + $0x3c] sm:$0xf]
        %v2340 = vld [vmem:[#allocation7 + $0x40] sm:$0xf]
        %v2341 = vld [vmem:[#allocation7 + $0x44] sm:$0xf]
        %v2342 = vld [vmem:[#allocation7 + $0x48] sm:$0xf]
        %v2343 = vld [vmem:[#allocation7 + $0x4c] sm:$0xf]
        %v2344 = vld [vmem:[#allocation7 + $0x50] sm:$0xf]
        %v2345 = vld [vmem:[#allocation7 + $0x54] sm:$0xf]
        %v2346 = vld [vmem:[#allocation7 + $0x58] sm:$0xf]
        %v2347 = vld [vmem:[#allocation7 + $0x5c] sm:$0xf]
        %v2348 = vld [vmem:[#allocation7 + $0x60] sm:$0xf]
        %v2349 = vld [vmem:[#allocation7 + $0x64] sm:$0xf]
        %v2350 = vld [vmem:[#allocation7 + $0x68] sm:$0xf]
        %v2351 = vld [vmem:[#allocation7 + $0x6c] sm:$0xf]
        %v2352 = vld [vmem:[#allocation7 + $0x70] sm:$0xf]
        %v2353 = vld [vmem:[#allocation7 + $0x74] sm:$0xf]
        %v2354 = vld [vmem:[#allocation7 + $0x78] sm:$0xf]
        %v2355 = vld [vmem:[#allocation7 + $0x7c] sm:$0xf]
        %v2356 = vld [vmem:[#allocation7 + $0x80] sm:$0xf]
        %v2357 = vld [vmem:[#allocation7 + $0x84] sm:$0xf]
        %v2358 = vld [vmem:[#allocation7 + $0x88] sm:$0xf]
        %v2359 = vld [vmem:[#allocation7 + $0x8c] sm:$0xf]
        %v2360 = vld [vmem:[#allocation7 + $0x90] sm:$0xf]
        %v2361 = vld [vmem:[#allocation7 + $0x94] sm:$0xf]
        %v2362 = vld [vmem:[#allocation7 + $0x98] sm:$0xf]
        %v2363 = vld [vmem:[#allocation7 + $0x9c] sm:$0xf]
        %v2364 = vld [vmem:[#allocation7 + $0xa0] sm:$0xf]
        %v2365 = vld [vmem:[#allocation7 + $0xa4] sm:$0xf]
        %v2366 = vld [vmem:[#allocation7 + $0xa8] sm:$0xf]
        %v2367 = vld [vmem:[#allocation7 + $0xac] sm:$0xf]
        %v2368 = vld [vmem:[#allocation7 + $0xb0] sm:$0xf]
        %v2369 = vld [vmem:[#allocation7 + $0xb4] sm:$0xf]
        %v2370 = vld [vmem:[#allocation7 + $0xb8] sm:$0xf]
        %v2371 = vld [vmem:[#allocation7 + $0xbc] sm:$0xf]
        %v2372 = vld [vmem:[#allocation7 + $0xc0] sm:$0xf]
        %v2373 = vld [vmem:[#allocation7 + $0xc4] sm:$0xf]
        %v2374 = vld [vmem:[#allocation7 + $0xc8] sm:$0xf]
        %v2375 = vld [vmem:[#allocation7 + $0xcc] sm:$0xf]
        %v2376 = vld [vmem:[#allocation7 + $0xd0] sm:$0xf]
        %v2377 = vld [vmem:[#allocation7 + $0xd4] sm:$0xf]
        %v2378 = vld [vmem:[#allocation7 + $0xd8] sm:$0xf]
        %v2379 = vld [vmem:[#allocation7 + $0xdc] sm:$0xf]
        %v2380 = vld [vmem:[#allocation7 + $0xe0] sm:$0xf]
        %v2381 = vld [vmem:[#allocation7 + $0xe4] sm:$0xf]
        %v2382 = vld [vmem:[#allocation7 + $0xe8] sm:$0xf]
        %v2383 = vld [vmem:[#allocation7 + $0xec] sm:$0xf]
        %v2384 = vld [vmem:[#allocation7 + $0xf0] sm:$0xf]
        %v2385 = vld [vmem:[#allocation7 + $0xf4] sm:$0xf]
        %v2386 = vld [vmem:[#allocation7 + $0xf8] sm:$0xf]
        %v2387 = vld [vmem:[#allocation7 + $0xfc] sm:$0xf]
        %v2388 = vld [vmem:[#allocation7 + $0x100] sm:$0xf]
        %v2389 = vld [vmem:[#allocation7 + $0x104] sm:$0xf]
        %v2390 = vld [vmem:[#allocation7 + $0x108] sm:$0xf]
        %v2391 = vld [vmem:[#allocation7 + $0x10c] sm:$0xf]
        %v2392 = vld [vmem:[#allocation7 + $0x110] sm:$0xf]
        %v2393 = vld [vmem:[#allocation7 + $0x114] sm:$0xf]
        %v2394 = vld [vmem:[#allocation7 + $0x118] sm:$0xf]
        %v2395 = vld [vmem:[#allocation7 + $0x11c] sm:$0xf]
        %v2396 = vld [vmem:[#allocation7 + $0x120] sm:$0xf]
        %v2397 = vld [vmem:[#allocation7 + $0x124] sm:$0xf]
        %v2398 = vld [vmem:[#allocation7 + $0x128] sm:$0xf]
        %v2399 = vld [vmem:[#allocation7 + $0x12c] sm:$0xf]
        %v2400 = vld [vmem:[#allocation7 + $0x130] sm:$0xf]
        %v2401 = vld [vmem:[#allocation7 + $0x134] sm:$0xf]
        %v2402 = vld [vmem:[#allocation7 + $0x138] sm:$0xf]
        %v2403 = vld [vmem:[#allocation7 + $0x13c] sm:$0xf]
        %v2404 = vld [vmem:[#allocation7 + $0x140] sm:$0xf]
        %v2405 = vld [vmem:[#allocation7 + $0x144] sm:$0xf]
        %v2406 = vld [vmem:[#allocation7 + $0x148] sm:$0xf]
        %v2407 = vld [vmem:[#allocation7 + $0x14c] sm:$0xf]
        %v2408 = vld [vmem:[#allocation7 + $0x150] sm:$0xf]
        %v2409 = vld [vmem:[#allocation7 + $0x154] sm:$0xf]
        %v2410 = vld [vmem:[#allocation7 + $0x158] sm:$0xf]
        %v2411 = vld [vmem:[#allocation7 + $0x15c] sm:$0xf]
        %v2412 = vld [vmem:[#allocation7 + $0x160] sm:$0xf]
        %v2413 = vld [vmem:[#allocation7 + $0x164] sm:$0xf]
        %v2414 = vld [vmem:[#allocation7 + $0x168] sm:$0xf]
        %v2415 = vld [vmem:[#allocation7 + $0x16c] sm:$0xf]
        %v2416 = vld [vmem:[#allocation7 + $0x170] sm:$0xf]
        %v2417 = vld [vmem:[#allocation7 + $0x174] sm:$0xf]
        %v2418 = vld [vmem:[#allocation7 + $0x178] sm:$0xf]
        %v2419 = vld [vmem:[#allocation7 + $0x17c] sm:$0xf]
        %v2420 = vld [vmem:[#allocation7 + $0x180] sm:$0xf]
        %v2421 = vld [vmem:[#allocation7 + $0x184] sm:$0xf]
        %v2422 = vld [vmem:[#allocation7 + $0x188] sm:$0xf]
        %v2423 = vld [vmem:[#allocation7 + $0x18c] sm:$0xf]
        %v2424 = vld [vmem:[#allocation7 + $0x190] sm:$0xf]
        %v2425 = vld [vmem:[#allocation7 + $0x194] sm:$0xf]
        %v2426 = vld [vmem:[#allocation7 + $0x198] sm:$0xf]
        %v2427 = vld [vmem:[#allocation7 + $0x19c] sm:$0xf]
        %v2428 = vld [vmem:[#allocation7 + $0x1a0] sm:$0xf]
        %v2429 = vld [vmem:[#allocation7 + $0x1a4] sm:$0xf]
        %v2430 = vld [vmem:[#allocation7 + $0x1a8] sm:$0xf]
        %v2431 = vld [vmem:[#allocation7 + $0x1ac] sm:$0xf]
        %v2432 = vld [vmem:[#allocation7 + $0x1b0] sm:$0xf]
        %v2433 = vld [vmem:[#allocation7 + $0x1b4] sm:$0xf]
        %v2434 = vld [vmem:[#allocation7 + $0x1b8] sm:$0xf]
        %v2435 = vld [vmem:[#allocation7 + $0x1bc] sm:$0xf]
        %v2436 = vld [vmem:[#allocation7 + $0x1c0] sm:$0xf]
        %v2437 = vld [vmem:[#allocation7 + $0x1c4] sm:$0xf]
        %v2438 = vld [vmem:[#allocation7 + $0x1c8] sm:$0xf]
        %v2439 = vld [vmem:[#allocation7 + $0x1cc] sm:$0xf]
        %v2440 = vld [vmem:[#allocation7 + $0x1d0] sm:$0xf]
        %v2441 = vld [vmem:[#allocation7 + $0x1d4] sm:$0xf]
        %v2442 = vld [vmem:[#allocation7 + $0x1d8] sm:$0xf]
        %v2443 = vld [vmem:[#allocation7 + $0x1dc] sm:$0xf]
        %v2444 = vld [vmem:[#allocation7 + $0x1e0] sm:$0xf]
        %v2445 = vld [vmem:[#allocation7 + $0x1e4] sm:$0xf]
        %v2446 = vld [vmem:[#allocation7 + $0x1e8] sm:$0xf]
        %v2447 = vld [vmem:[#allocation7 + $0x1ec] sm:$0xf]
        %v2448 = vld [vmem:[#allocation7 + $0x1f0] sm:$0xf]
        %v2449 = vld [vmem:[#allocation7 + $0x1f4] sm:$0xf]
        %v2450 = vld [vmem:[#allocation7 + $0x1f8] sm:$0xf]
        %v2451 = vld [vmem:[#allocation7 + $0x1fc] sm:$0xf]
        %v2452 = vld [vmem:[#allocation7 + $0x200] sm:$0xf]
        %v2453 = vld [vmem:[#allocation7 + $0x204] sm:$0xf]
        %v2454 = vld [vmem:[#allocation7 + $0x208] sm:$0xf]
        %v2455 = vld [vmem:[#allocation7 + $0x20c] sm:$0xf]
        %v2456 = vld [vmem:[#allocation7 + $0x210] sm:$0xf]
        %v2457 = vld [vmem:[#allocation7 + $0x214] sm:$0xf]
        %v2458 = vld [vmem:[#allocation7 + $0x218] sm:$0xf]
        %v2459 = vld [vmem:[#allocation7 + $0x21c] sm:$0xf]
        %v2460 = vld [vmem:[#allocation7 + $0x220] sm:$0xf]
        %v2461 = vld [vmem:[#allocation7 + $0x224] sm:$0xf]
        %v2462 = vld [vmem:[#allocation7 + $0x228] sm:$0xf]
        %v2463 = vld [vmem:[#allocation7 + $0x22c] sm:$0xf]
        %v2464 = vld [vmem:[#allocation7 + $0x230] sm:$0xf]
        %v2465 = vld [vmem:[#allocation7 + $0x234] sm:$0xf]
        %v2466 = vld [vmem:[#allocation7 + $0x238] sm:$0xf]
        %v2467 = vld [vmem:[#allocation7 + $0x23c] sm:$0xf]
        %v2628 = vunpack.c.l.b16 %v2164
        %v2629 = vunpack.c.h.b16 %v2164
        %v2630 = vunpack.c.l.b16 %v2165
        %v2631 = vunpack.c.h.b16 %v2165
        %v2632 = vunpack.c.l.b16 %v2166
        %v2633 = vunpack.c.h.b16 %v2166
        %v2634 = vunpack.c.l.b16 %v2167
        %v2635 = vunpack.c.h.b16 %v2167
        %v2636 = vunpack.c.l.b16 %v2168
        %v2637 = vunpack.c.l.b16 %v2169
        %v2638 = vunpack.c.h.b16 %v2169
        %v2639 = vunpack.c.l.b16 %v2170
        %v2640 = vunpack.c.h.b16 %v2170
        %v2641 = vunpack.c.l.b16 %v2171
        %v2642 = vunpack.c.h.b16 %v2171
        %v2643 = vunpack.c.l.b16 %v2172
        %v2644 = vunpack.c.h.b16 %v2172
        %v2645 = vunpack.c.l.b16 %v2173
        %v2646 = vunpack.c.l.b16 %v2174
        %v2647 = vunpack.c.h.b16 %v2174
        %v2648 = vunpack.c.l.b16 %v2175
        %v2649 = vunpack.c.h.b16 %v2175
        %v2650 = vunpack.c.l.b16 %v2176
        %v2651 = vunpack.c.h.b16 %v2176
        %v2652 = vunpack.c.l.b16 %v2177
        %v2653 = vunpack.c.h.b16 %v2177
        %v2654 = vunpack.c.l.b16 %v2178
        %v2655 = vunpack.c.l.b16 %v2179
        %v2656 = vunpack.c.h.b16 %v2179
        %v2657 = vunpack.c.l.b16 %v2180
        %v2658 = vunpack.c.h.b16 %v2180
        %v2659 = vunpack.c.l.b16 %v2181
        %v2660 = vunpack.c.h.b16 %v2181
        %v2661 = vunpack.c.l.b16 %v2182
        %v2662 = vunpack.c.h.b16 %v2182
        %v2663 = vunpack.c.l.b16 %v2183
        %v2664 = vunpack.c.l.b16 %v2184
        %v2665 = vunpack.c.h.b16 %v2184
        %v2666 = vunpack.c.l.b16 %v2185
        %v2667 = vunpack.c.h.b16 %v2185
        %v2668 = vunpack.c.l.b16 %v2186
        %v2669 = vunpack.c.h.b16 %v2186
        %v2670 = vunpack.c.l.b16 %v2187
        %v2671 = vunpack.c.h.b16 %v2187
        %v2672 = vunpack.c.l.b16 %v2188
        %v2673 = vunpack.c.l.b16 %v2189
        %v2674 = vunpack.c.h.b16 %v2189
        %v2675 = vunpack.c.l.b16 %v2190
        %v2676 = vunpack.c.h.b16 %v2190
        %v2677 = vunpack.c.l.b16 %v2191
        %v2678 = vunpack.c.h.b16 %v2191
        %v2679 = vunpack.c.l.b16 %v2192
        %v2680 = vunpack.c.h.b16 %v2192
        %v2681 = vunpack.c.l.b16 %v2193
        %v2682 = vunpack.c.l.b16 %v2194
        %v2683 = vunpack.c.h.b16 %v2194
        %v2684 = vunpack.c.l.b16 %v2195
        %v2685 = vunpack.c.h.b16 %v2195
        %v2686 = vunpack.c.l.b16 %v2196
        %v2687 = vunpack.c.h.b16 %v2196
        %v2688 = vunpack.c.l.b16 %v2197
        %v2689 = vunpack.c.h.b16 %v2197
        %v2690 = vunpack.c.l.b16 %v2198
        %v2691 = vunpack.c.l.b16 %v2199
        %v2692 = vunpack.c.h.b16 %v2199
        %v2693 = vunpack.c.l.b16 %v2200
        %v2694 = vunpack.c.h.b16 %v2200
        %v2695 = vunpack.c.l.b16 %v2201
        %v2696 = vunpack.c.h.b16 %v2201
        %v2697 = vunpack.c.l.b16 %v2202
        %v2698 = vunpack.c.h.b16 %v2202
        %v2699 = vunpack.c.l.b16 %v2203
        %v2700 = vunpack.c.l.b16 %v2204
        %v2701 = vunpack.c.h.b16 %v2204
        %v2702 = vunpack.c.l.b16 %v2205
        %v2703 = vunpack.c.h.b16 %v2205
        %v2704 = vunpack.c.l.b16 %v2206
        %v2705 = vunpack.c.h.b16 %v2206
        %v2706 = vunpack.c.l.b16 %v2207
        %v2707 = vunpack.c.h.b16 %v2207
        %v2708 = vunpack.c.l.b16 %v2208
        %v2709 = vunpack.c.l.b16 %v2209
        %v2710 = vunpack.c.h.b16 %v2209
        %v2711 = vunpack.c.l.b16 %v2210
        %v2712 = vunpack.c.h.b16 %v2210
        %v2713 = vunpack.c.l.b16 %v2211
        %v2714 = vunpack.c.h.b16 %v2211
        %v2715 = vunpack.c.l.b16 %v2212
        %v2716 = vunpack.c.h.b16 %v2212
        %v2717 = vunpack.c.l.b16 %v2213
        %v2718 = vunpack.c.l.b16 %v2214
        %v2719 = vunpack.c.h.b16 %v2214
        %v2720 = vunpack.c.l.b16 %v2215
        %v2721 = vunpack.c.h.b16 %v2215
        %v2722 = vunpack.c.l.b16 %v2216
        %v2723 = vunpack.c.h.b16 %v2216
        %v2724 = vunpack.c.l.b16 %v2217
        %v2725 = vunpack.c.h.b16 %v2217
        %v2726 = vunpack.c.l.b16 %v2218
        %v2727 = vunpack.c.l.b16 %v2219
        %v2728 = vunpack.c.h.b16 %v2219
        %v2729 = vunpack.c.l.b16 %v2220
        %v2730 = vunpack.c.h.b16 %v2220
        %v2731 = vunpack.c.l.b16 %v2221
        %v2732 = vunpack.c.h.b16 %v2221
        %v2733 = vunpack.c.l.b16 %v2222
        %v2734 = vunpack.c.h.b16 %v2222
        %v2735 = vunpack.c.l.b16 %v2223
        %v2736 = vunpack.c.l.b16 %v2224
        %v2737 = vunpack.c.h.b16 %v2224
        %v2738 = vunpack.c.l.b16 %v2225
        %v2739 = vunpack.c.h.b16 %v2225
        %v2740 = vunpack.c.l.b16 %v2226
        %v2741 = vunpack.c.h.b16 %v2226
        %v2742 = vunpack.c.l.b16 %v2227
        %v2743 = vunpack.c.h.b16 %v2227
        %v2744 = vunpack.c.l.b16 %v2228
        %v2745 = vunpack.c.l.b16 %v2229
        %v2746 = vunpack.c.h.b16 %v2229
        %v2747 = vunpack.c.l.b16 %v2230
        %v2748 = vunpack.c.h.b16 %v2230
        %v2749 = vunpack.c.l.b16 %v2231
        %v2750 = vunpack.c.h.b16 %v2231
        %v2751 = vunpack.c.l.b16 %v2232
        %v2752 = vunpack.c.h.b16 %v2232
        %v2753 = vunpack.c.l.b16 %v2233
        %v2754 = vunpack.c.l.b16 %v2234
        %v2755 = vunpack.c.h.b16 %v2234
        %v2756 = vunpack.c.l.b16 %v2235
        %v2757 = vunpack.c.h.b16 %v2235
        %v2758 = vunpack.c.l.b16 %v2236
        %v2759 = vunpack.c.h.b16 %v2236
        %v2760 = vunpack.c.l.b16 %v2237
        %v2761 = vunpack.c.h.b16 %v2237
        %v2762 = vunpack.c.l.b16 %v2238
        %v2763 = vunpack.c.l.b16 %v2239
        %v2764 = vunpack.c.h.b16 %v2239
        %v2765 = vunpack.c.l.b16 %v2240
        %v2766 = vunpack.c.h.b16 %v2240
        %v2767 = vunpack.c.l.b16 %v2241
        %v2768 = vunpack.c.h.b16 %v2241
        %v2769 = vunpack.c.l.b16 %v2242
        %v2770 = vunpack.c.h.b16 %v2242
        %v2771 = vunpack.c.l.b16 %v2243
        %v2772 = vunpack.c.l.b16 %v2244
        %v2773 = vunpack.c.h.b16 %v2244
        %v2774 = vunpack.c.l.b16 %v2245
        %v2775 = vunpack.c.h.b16 %v2245
        %v2776 = vunpack.c.l.b16 %v2246
        %v2777 = vunpack.c.h.b16 %v2246
        %v2778 = vunpack.c.l.b16 %v2247
        %v2779 = vunpack.c.h.b16 %v2247
        %v2780 = vunpack.c.l.b16 %v2248
        %v2781 = vunpack.c.l.b16 %v2249
        %v2782 = vunpack.c.h.b16 %v2249
        %v2783 = vunpack.c.l.b16 %v2250
        %v2784 = vunpack.c.h.b16 %v2250
        %v2785 = vunpack.c.l.b16 %v2251
        %v2786 = vunpack.c.h.b16 %v2251
        %v2787 = vunpack.c.l.b16 %v2252
        %v2788 = vunpack.c.h.b16 %v2252
        %v2789 = vunpack.c.l.b16 %v2253
        %v2790 = vunpack.c.l.b16 %v2254
        %v2791 = vunpack.c.h.b16 %v2254
        %v2792 = vunpack.c.l.b16 %v2255
        %v2793 = vunpack.c.h.b16 %v2255
        %v2794 = vunpack.c.l.b16 %v2256
        %v2795 = vunpack.c.h.b16 %v2256
        %v2796 = vunpack.c.l.b16 %v2257
        %v2797 = vunpack.c.h.b16 %v2257
        %v2798 = vunpack.c.l.b16 %v2258
        %v2799 = vunpack.c.l.b16 %v2259
        %v2800 = vunpack.c.h.b16 %v2259
        %v2801 = vunpack.c.l.b16 %v2260
        %v2802 = vunpack.c.h.b16 %v2260
        %v2803 = vunpack.c.l.b16 %v2261
        %v2804 = vunpack.c.h.b16 %v2261
        %v2805 = vunpack.c.l.b16 %v2262
        %v2806 = vunpack.c.h.b16 %v2262
        %v2807 = vunpack.c.l.b16 %v2263
        %v2808 = vunpack.c.l.b16 %v2264
        %v2809 = vunpack.c.h.b16 %v2264
        %v2810 = vunpack.c.l.b16 %v2265
        %v2811 = vunpack.c.h.b16 %v2265
        %v2812 = vunpack.c.l.b16 %v2266
        %v2813 = vunpack.c.h.b16 %v2266
        %v2814 = vunpack.c.l.b16 %v2267
        %v2815 = vunpack.c.h.b16 %v2267
        %v2816 = vunpack.c.l.b16 %v2268
        %v2817 = vunpack.c.l.b16 %v2269
        %v2818 = vunpack.c.h.b16 %v2269
        %v2819 = vunpack.c.l.b16 %v2270
        %v2820 = vunpack.c.h.b16 %v2270
        %v2821 = vunpack.c.l.b16 %v2271
        %v2822 = vunpack.c.h.b16 %v2271
        %v2823 = vunpack.c.l.b16 %v2272
        %v2824 = vunpack.c.h.b16 %v2272
        %v2825 = vunpack.c.l.b16 %v2273
        %v2826 = vunpack.c.l.b16 %v2274
        %v2827 = vunpack.c.h.b16 %v2274
        %v2828 = vunpack.c.l.b16 %v2275
        %v2829 = vunpack.c.h.b16 %v2275
        %v2830 = vunpack.c.l.b16 %v2276
        %v2831 = vunpack.c.h.b16 %v2276
        %v2832 = vunpack.c.l.b16 %v2277
        %v2833 = vunpack.c.h.b16 %v2277
        %v2834 = vunpack.c.l.b16 %v2278
        %v2835 = vunpack.c.l.b16 %v2279
        %v2836 = vunpack.c.h.b16 %v2279
        %v2837 = vunpack.c.l.b16 %v2280
        %v2838 = vunpack.c.h.b16 %v2280
        %v2839 = vunpack.c.l.b16 %v2281
        %v2840 = vunpack.c.h.b16 %v2281
        %v2841 = vunpack.c.l.b16 %v2282
        %v2842 = vunpack.c.h.b16 %v2282
        %v2843 = vunpack.c.l.b16 %v2283
        %v2844 = vunpack.c.l.b16 %v2284
        %v2845 = vunpack.c.h.b16 %v2284
        %v2846 = vunpack.c.l.b16 %v2285
        %v2847 = vunpack.c.h.b16 %v2285
        %v2848 = vunpack.c.l.b16 %v2286
        %v2849 = vunpack.c.h.b16 %v2286
        %v2850 = vunpack.c.l.b16 %v2287
        %v2851 = vunpack.c.h.b16 %v2287
        %v2852 = vunpack.c.l.b16 %v2288
        %v2853 = vunpack.c.l.b16 %v2289
        %v2854 = vunpack.c.h.b16 %v2289
        %v2855 = vunpack.c.l.b16 %v2290
        %v2856 = vunpack.c.h.b16 %v2290
        %v2857 = vunpack.c.l.b16 %v2291
        %v2858 = vunpack.c.h.b16 %v2291
        %v2859 = vunpack.c.l.b16 %v2292
        %v2860 = vunpack.c.h.b16 %v2292
        %v2861 = vunpack.c.l.b16 %v2293
        %v2862 = vunpack.c.l.b16 %v2294
        %v2863 = vunpack.c.h.b16 %v2294
        %v2864 = vunpack.c.l.b16 %v2295
        %v2865 = vunpack.c.h.b16 %v2295
        %v2866 = vunpack.c.l.b16 %v2296
        %v2867 = vunpack.c.h.b16 %v2296
        %v2868 = vunpack.c.l.b16 %v2297
        %v2869 = vunpack.c.h.b16 %v2297
        %v2870 = vunpack.c.l.b16 %v2298
        %v2871 = vunpack.c.l.b16 %v2299
        %v2872 = vunpack.c.h.b16 %v2299
        %v2873 = vunpack.c.l.b16 %v2300
        %v2874 = vunpack.c.h.b16 %v2300
        %v2875 = vunpack.c.l.b16 %v2301
        %v2876 = vunpack.c.h.b16 %v2301
        %v2877 = vunpack.c.l.b16 %v2302
        %v2878 = vunpack.c.h.b16 %v2302
        %v2879 = vunpack.c.l.b16 %v2303
        %v2880 = vunpack.c.l.b16 %v2304
        %v2881 = vunpack.c.h.b16 %v2304
        %v2882 = vunpack.c.l.b16 %v2305
        %v2883 = vunpack.c.h.b16 %v2305
        %v2884 = vunpack.c.l.b16 %v2306
        %v2885 = vunpack.c.h.b16 %v2306
        %v2886 = vunpack.c.l.b16 %v2307
        %v2887 = vunpack.c.h.b16 %v2307
        %v2888 = vunpack.c.l.b16 %v2308
        %v2889 = vunpack.c.l.b16 %v2309
        %v2890 = vunpack.c.h.b16 %v2309
        %v2891 = vunpack.c.l.b16 %v2310
        %v2892 = vunpack.c.h.b16 %v2310
        %v2893 = vunpack.c.l.b16 %v2311
        %v2894 = vunpack.c.h.b16 %v2311
        %v2895 = vunpack.c.l.b16 %v2312
        %v2896 = vunpack.c.h.b16 %v2312
        %v2897 = vunpack.c.l.b16 %v2313
        %v2898 = vunpack.c.l.b16 %v2314
        %v2899 = vunpack.c.h.b16 %v2314
        %v2900 = vunpack.c.l.b16 %v2315
        %v2901 = vunpack.c.h.b16 %v2315
        %v2902 = vunpack.c.l.b16 %v2316
        %v2903 = vunpack.c.h.b16 %v2316
        %v2904 = vunpack.c.l.b16 %v2317
        %v2905 = vunpack.c.h.b16 %v2317
        %v2906 = vunpack.c.l.b16 %v2318
        %v2907 = vunpack.c.l.b16 %v2319
        %v2908 = vunpack.c.h.b16 %v2319
        %v2909 = vunpack.c.l.b16 %v2320
        %v2910 = vunpack.c.h.b16 %v2320
        %v2911 = vunpack.c.l.b16 %v2321
        %v2912 = vunpack.c.h.b16 %v2321
        %v2913 = vunpack.c.l.b16 %v2322
        %v2914 = vunpack.c.h.b16 %v2322
        %v2915 = vunpack.c.l.b16 %v2323
        %v2916 = vpack.c.b16 %v2637, %v2628
        %v2917 = vpack.c.b16 %v2638, %v2629
        %v2918 = vpack.c.b16 %v2639, %v2630
        %v2919 = vpack.c.b16 %v2640, %v2631
        %v2920 = vpack.c.b16 %v2641, %v2632
        %v2921 = vpack.c.b16 %v2642, %v2633
        %v2922 = vpack.c.b16 %v2643, %v2634
        %v2923 = vpack.c.b16 %v2644, %v2635
        %v2924 = vpack.c.b16 %v2645, %v2636
        %v2925 = vpack.c.b16 %v2655, %v2646
        %v2926 = vpack.c.b16 %v2656, %v2647
        %v2927 = vpack.c.b16 %v2657, %v2648
        %v2928 = vpack.c.b16 %v2658, %v2649
        %v2929 = vpack.c.b16 %v2659, %v2650
        %v2930 = vpack.c.b16 %v2660, %v2651
        %v2931 = vpack.c.b16 %v2661, %v2652
        %v2932 = vpack.c.b16 %v2662, %v2653
        %v2933 = vpack.c.b16 %v2663, %v2654
        %v2934 = vpack.c.b16 %v2673, %v2664
        %v2935 = vpack.c.b16 %v2674, %v2665
        %v2936 = vpack.c.b16 %v2675, %v2666
        %v2937 = vpack.c.b16 %v2676, %v2667
        %v2938 = vpack.c.b16 %v2677, %v2668
        %v2939 = vpack.c.b16 %v2678, %v2669
        %v2940 = vpack.c.b16 %v2679, %v2670
        %v2941 = vpack.c.b16 %v2680, %v2671
        %v2942 = vpack.c.b16 %v2681, %v2672
        %v2943 = vpack.c.b16 %v2691, %v2682
        %v2944 = vpack.c.b16 %v2692, %v2683
        %v2945 = vpack.c.b16 %v2693, %v2684
        %v2946 = vpack.c.b16 %v2694, %v2685
        %v2947 = vpack.c.b16 %v2695, %v2686
        %v2948 = vpack.c.b16 %v2696, %v2687
        %v2949 = vpack.c.b16 %v2697, %v2688
        %v2950 = vpack.c.b16 %v2698, %v2689
        %v2951 = vpack.c.b16 %v2699, %v2690
        %v2952 = vpack.c.b16 %v2709, %v2700
        %v2953 = vpack.c.b16 %v2710, %v2701
        %v2954 = vpack.c.b16 %v2711, %v2702
        %v2955 = vpack.c.b16 %v2712, %v2703
        %v2956 = vpack.c.b16 %v2713, %v2704
        %v2957 = vpack.c.b16 %v2714, %v2705
        %v2958 = vpack.c.b16 %v2715, %v2706
        %v2959 = vpack.c.b16 %v2716, %v2707
        %v2960 = vpack.c.b16 %v2717, %v2708
        %v2961 = vpack.c.b16 %v2727, %v2718
        %v2962 = vpack.c.b16 %v2728, %v2719
        %v2963 = vpack.c.b16 %v2729, %v2720
        %v2964 = vpack.c.b16 %v2730, %v2721
        %v2965 = vpack.c.b16 %v2731, %v2722
        %v2966 = vpack.c.b16 %v2732, %v2723
        %v2967 = vpack.c.b16 %v2733, %v2724
        %v2968 = vpack.c.b16 %v2734, %v2725
        %v2969 = vpack.c.b16 %v2735, %v2726
        %v2970 = vpack.c.b16 %v2745, %v2736
        %v2971 = vpack.c.b16 %v2746, %v2737
        %v2972 = vpack.c.b16 %v2747, %v2738
        %v2973 = vpack.c.b16 %v2748, %v2739
        %v2974 = vpack.c.b16 %v2749, %v2740
        %v2975 = vpack.c.b16 %v2750, %v2741
        %v2976 = vpack.c.b16 %v2751, %v2742
        %v2977 = vpack.c.b16 %v2752, %v2743
        %v2978 = vpack.c.b16 %v2753, %v2744
        %v2979 = vpack.c.b16 %v2763, %v2754
        %v2980 = vpack.c.b16 %v2764, %v2755
        %v2981 = vpack.c.b16 %v2765, %v2756
        %v2982 = vpack.c.b16 %v2766, %v2757
        %v2983 = vpack.c.b16 %v2767, %v2758
        %v2984 = vpack.c.b16 %v2768, %v2759
        %v2985 = vpack.c.b16 %v2769, %v2760
        %v2986 = vpack.c.b16 %v2770, %v2761
        %v2987 = vpack.c.b16 %v2771, %v2762
        %v2988 = vpack.c.b16 %v2781, %v2772
        %v2989 = vpack.c.b16 %v2782, %v2773
        %v2990 = vpack.c.b16 %v2783, %v2774
        %v2991 = vpack.c.b16 %v2784, %v2775
        %v2992 = vpack.c.b16 %v2785, %v2776
        %v2993 = vpack.c.b16 %v2786, %v2777
        %v2994 = vpack.c.b16 %v2787, %v2778
        %v2995 = vpack.c.b16 %v2788, %v2779
        %v2996 = vpack.c.b16 %v2789, %v2780
        %v2997 = vpack.c.b16 %v2799, %v2790
        %v2998 = vpack.c.b16 %v2800, %v2791
        %v2999 = vpack.c.b16 %v2801, %v2792
        %v3000 = vpack.c.b16 %v2802, %v2793
        %v3001 = vpack.c.b16 %v2803, %v2794
        %v3002 = vpack.c.b16 %v2804, %v2795
        %v3003 = vpack.c.b16 %v2805, %v2796
        %v3004 = vpack.c.b16 %v2806, %v2797
        %v3005 = vpack.c.b16 %v2807, %v2798
        %v3006 = vpack.c.b16 %v2817, %v2808
        %v3007 = vpack.c.b16 %v2818, %v2809
        %v3008 = vpack.c.b16 %v2819, %v2810
        %v3009 = vpack.c.b16 %v2820, %v2811
        %v3010 = vpack.c.b16 %v2821, %v2812
        %v3011 = vpack.c.b16 %v2822, %v2813
        %v3012 = vpack.c.b16 %v2823, %v2814
        %v3013 = vpack.c.b16 %v2824, %v2815
        %v3014 = vpack.c.b16 %v2825, %v2816
        %v3015 = vpack.c.b16 %v2835, %v2826
        %v3016 = vpack.c.b16 %v2836, %v2827
        %v3017 = vpack.c.b16 %v2837, %v2828
        %v3018 = vpack.c.b16 %v2838, %v2829
        %v3019 = vpack.c.b16 %v2839, %v2830
        %v3020 = vpack.c.b16 %v2840, %v2831
        %v3021 = vpack.c.b16 %v2841, %v2832
        %v3022 = vpack.c.b16 %v2842, %v2833
        %v3023 = vpack.c.b16 %v2843, %v2834
        %v3024 = vpack.c.b16 %v2853, %v2844
        %v3025 = vpack.c.b16 %v2854, %v2845
        %v3026 = vpack.c.b16 %v2855, %v2846
        %v3027 = vpack.c.b16 %v2856, %v2847
        %v3028 = vpack.c.b16 %v2857, %v2848
        %v3029 = vpack.c.b16 %v2858, %v2849
        %v3030 = vpack.c.b16 %v2859, %v2850
        %v3031 = vpack.c.b16 %v2860, %v2851
        %v3032 = vpack.c.b16 %v2861, %v2852
        %v3033 = vpack.c.b16 %v2871, %v2862
        %v3034 = vpack.c.b16 %v2872, %v2863
        %v3035 = vpack.c.b16 %v2873, %v2864
        %v3036 = vpack.c.b16 %v2874, %v2865
        %v3037 = vpack.c.b16 %v2875, %v2866
        %v3038 = vpack.c.b16 %v2876, %v2867
        %v3039 = vpack.c.b16 %v2877, %v2868
        %v3040 = vpack.c.b16 %v2878, %v2869
        %v3041 = vpack.c.b16 %v2879, %v2870
        %v3042 = vpack.c.b16 %v2889, %v2880
        %v3043 = vpack.c.b16 %v2890, %v2881
        %v3044 = vpack.c.b16 %v2891, %v2882
        %v3045 = vpack.c.b16 %v2892, %v2883
        %v3046 = vpack.c.b16 %v2893, %v2884
        %v3047 = vpack.c.b16 %v2894, %v2885
        %v3048 = vpack.c.b16 %v2895, %v2886
        %v3049 = vpack.c.b16 %v2896, %v2887
        %v3050 = vpack.c.b16 %v2897, %v2888
        %v3051 = vpack.c.b16 %v2907, %v2898
        %v3052 = vpack.c.b16 %v2908, %v2899
        %v3053 = vpack.c.b16 %v2909, %v2900
        %v3054 = vpack.c.b16 %v2910, %v2901
        %v3055 = vpack.c.b16 %v2911, %v2902
        %v3056 = vpack.c.b16 %v2912, %v2903
        %v3057 = vpack.c.b16 %v2913, %v2904
        %v3058 = vpack.c.b16 %v2914, %v2905
        %v3059 = vpack.c.b16 %v2915, %v2906
        %v3348 = vunpack.c.l.b16 %v2324
        %v3349 = vunpack.c.l.b16 %v2325
        %v3350 = vunpack.c.l.b16 %v2326
        %v3351 = vunpack.c.l.b16 %v2327
        %v3352 = vunpack.c.l.b16 %v2328
        %v3353 = vunpack.c.l.b16 %v2329
        %v3354 = vunpack.c.l.b16 %v2330
        %v3355 = vunpack.c.l.b16 %v2331
        %v3356 = vunpack.c.l.b16 %v2332
        %v3357 = vunpack.c.l.b16 %v2333
        %v3358 = vunpack.c.l.b16 %v2334
        %v3359 = vunpack.c.l.b16 %v2335
        %v3360 = vunpack.c.l.b16 %v2336
        %v3361 = vunpack.c.l.b16 %v2337
        %v3362 = vunpack.c.l.b16 %v2338
        %v3363 = vunpack.c.l.b16 %v2339
        %v3364 = vunpack.c.l.b16 %v2340
        %v3365 = vunpack.c.l.b16 %v2341
        %v3366 = vunpack.c.l.b16 %v2342
        %v3367 = vunpack.c.l.b16 %v2343
        %v3368 = vunpack.c.l.b16 %v2344
        %v3369 = vunpack.c.l.b16 %v2345
        %v3370 = vunpack.c.l.b16 %v2346
        %v3371 = vunpack.c.l.b16 %v2347
        %v3372 = vunpack.c.l.b16 %v2348
        %v3373 = vunpack.c.l.b16 %v2349
        %v3374 = vunpack.c.l.b16 %v2350
        %v3375 = vunpack.c.l.b16 %v2351
        %v3376 = vunpack.c.l.b16 %v2352
        %v3377 = vunpack.c.l.b16 %v2353
        %v3378 = vunpack.c.l.b16 %v2354
        %v3379 = vunpack.c.l.b16 %v2355
        %v3380 = vunpack.c.l.b16 %v2356
        %v3381 = vunpack.c.l.b16 %v2357
        %v3382 = vunpack.c.l.b16 %v2358
        %v3383 = vunpack.c.l.b16 %v2359
        %v3384 = vunpack.c.l.b16 %v2360
        %v3385 = vunpack.c.l.b16 %v2361
        %v3386 = vunpack.c.l.b16 %v2362
        %v3387 = vunpack.c.l.b16 %v2363
        %v3388 = vunpack.c.l.b16 %v2364
        %v3389 = vunpack.c.l.b16 %v2365
        %v3390 = vunpack.c.l.b16 %v2366
        %v3391 = vunpack.c.l.b16 %v2367
        %v3392 = vunpack.c.l.b16 %v2368
        %v3393 = vunpack.c.l.b16 %v2369
        %v3394 = vunpack.c.l.b16 %v2370
        %v3395 = vunpack.c.l.b16 %v2371
        %v3396 = vunpack.c.l.b16 %v2372
        %v3397 = vunpack.c.l.b16 %v2373
        %v3398 = vunpack.c.l.b16 %v2374
        %v3399 = vunpack.c.l.b16 %v2375
        %v3400 = vunpack.c.l.b16 %v2376
        %v3401 = vunpack.c.l.b16 %v2377
        %v3402 = vunpack.c.l.b16 %v2378
        %v3403 = vunpack.c.l.b16 %v2379
        %v3404 = vunpack.c.l.b16 %v2380
        %v3405 = vunpack.c.l.b16 %v2381
        %v3406 = vunpack.c.l.b16 %v2382
        %v3407 = vunpack.c.l.b16 %v2383
        %v3408 = vunpack.c.l.b16 %v2384
        %v3409 = vunpack.c.l.b16 %v2385
        %v3410 = vunpack.c.l.b16 %v2386
        %v3411 = vunpack.c.l.b16 %v2387
        %v3412 = vunpack.c.l.b16 %v2388
        %v3413 = vunpack.c.l.b16 %v2389
        %v3414 = vunpack.c.l.b16 %v2390
        %v3415 = vunpack.c.l.b16 %v2391
        %v3416 = vunpack.c.l.b16 %v2392
        %v3417 = vunpack.c.l.b16 %v2393
        %v3418 = vunpack.c.l.b16 %v2394
        %v3419 = vunpack.c.l.b16 %v2395
        %v3420 = vunpack.c.l.b16 %v2396
        %v3421 = vunpack.c.l.b16 %v2397
        %v3422 = vunpack.c.l.b16 %v2398
        %v3423 = vunpack.c.l.b16 %v2399
        %v3424 = vunpack.c.l.b16 %v2400
        %v3425 = vunpack.c.l.b16 %v2401
        %v3426 = vunpack.c.l.b16 %v2402
        %v3427 = vunpack.c.l.b16 %v2403
        %v3428 = vunpack.c.l.b16 %v2404
        %v3429 = vunpack.c.l.b16 %v2405
        %v3430 = vunpack.c.l.b16 %v2406
        %v3431 = vunpack.c.l.b16 %v2407
        %v3432 = vunpack.c.l.b16 %v2408
        %v3433 = vunpack.c.l.b16 %v2409
        %v3434 = vunpack.c.l.b16 %v2410
        %v3435 = vunpack.c.l.b16 %v2411
        %v3436 = vunpack.c.l.b16 %v2412
        %v3437 = vunpack.c.l.b16 %v2413
        %v3438 = vunpack.c.l.b16 %v2414
        %v3439 = vunpack.c.l.b16 %v2415
        %v3440 = vunpack.c.l.b16 %v2416
        %v3441 = vunpack.c.l.b16 %v2417
        %v3442 = vunpack.c.l.b16 %v2418
        %v3443 = vunpack.c.l.b16 %v2419
        %v3444 = vunpack.c.l.b16 %v2420
        %v3445 = vunpack.c.l.b16 %v2421
        %v3446 = vunpack.c.l.b16 %v2422
        %v3447 = vunpack.c.l.b16 %v2423
        %v3448 = vunpack.c.l.b16 %v2424
        %v3449 = vunpack.c.l.b16 %v2425
        %v3450 = vunpack.c.l.b16 %v2426
        %v3451 = vunpack.c.l.b16 %v2427
        %v3452 = vunpack.c.l.b16 %v2428
        %v3453 = vunpack.c.l.b16 %v2429
        %v3454 = vunpack.c.l.b16 %v2430
        %v3455 = vunpack.c.l.b16 %v2431
        %v3456 = vunpack.c.l.b16 %v2432
        %v3457 = vunpack.c.l.b16 %v2433
        %v3458 = vunpack.c.l.b16 %v2434
        %v3459 = vunpack.c.l.b16 %v2435
        %v3460 = vunpack.c.l.b16 %v2436
        %v3461 = vunpack.c.l.b16 %v2437
        %v3462 = vunpack.c.l.b16 %v2438
        %v3463 = vunpack.c.l.b16 %v2439
        %v3464 = vunpack.c.l.b16 %v2440
        %v3465 = vunpack.c.l.b16 %v2441
        %v3466 = vunpack.c.l.b16 %v2442
        %v3467 = vunpack.c.l.b16 %v2443
        %v3468 = vunpack.c.l.b16 %v2444
        %v3469 = vunpack.c.l.b16 %v2445
        %v3470 = vunpack.c.l.b16 %v2446
        %v3471 = vunpack.c.l.b16 %v2447
        %v3472 = vunpack.c.l.b16 %v2448
        %v3473 = vunpack.c.l.b16 %v2449
        %v3474 = vunpack.c.l.b16 %v2450
        %v3475 = vunpack.c.l.b16 %v2451
        %v3476 = vunpack.c.l.b16 %v2452
        %v3477 = vunpack.c.l.b16 %v2453
        %v3478 = vunpack.c.l.b16 %v2454
        %v3479 = vunpack.c.l.b16 %v2455
        %v3480 = vunpack.c.l.b16 %v2456
        %v3481 = vunpack.c.l.b16 %v2457
        %v3482 = vunpack.c.l.b16 %v2458
        %v3483 = vunpack.c.l.b16 %v2459
        %v3484 = vunpack.c.l.b16 %v2460
        %v3485 = vunpack.c.l.b16 %v2461
        %v3486 = vunpack.c.l.b16 %v2462
        %v3487 = vunpack.c.l.b16 %v2463
        %v3488 = vunpack.c.l.b16 %v2464
        %v3489 = vunpack.c.l.b16 %v2465
        %v3490 = vunpack.c.l.b16 %v2466
        %v3491 = vunpack.c.l.b16 %v2467
        %v3492 = vpack.c.b16 %v3349, %v3348
        %v3493 = vpack.c.b16 %v3351, %v3350
        %v3494 = vpack.c.b16 %v3353, %v3352
        %v3495 = vpack.c.b16 %v3355, %v3354
        %v3496 = vpack.c.b16 %v3357, %v3356
        %v3497 = vpack.c.b16 %v3359, %v3358
        %v3498 = vpack.c.b16 %v3361, %v3360
        %v3499 = vpack.c.b16 %v3363, %v3362
        %v3500 = vpack.c.b16 %v3365, %v3364
        %v3501 = vpack.c.b16 %v3367, %v3366
        %v3502 = vpack.c.b16 %v3369, %v3368
        %v3503 = vpack.c.b16 %v3371, %v3370
        %v3504 = vpack.c.b16 %v3373, %v3372
        %v3505 = vpack.c.b16 %v3375, %v3374
        %v3506 = vpack.c.b16 %v3377, %v3376
        %v3507 = vpack.c.b16 %v3379, %v3378
        %v3508 = vpack.c.b16 %v3381, %v3380
        %v3509 = vpack.c.b16 %v3383, %v3382
        %v3510 = vpack.c.b16 %v3385, %v3384
        %v3511 = vpack.c.b16 %v3387, %v3386
        %v3512 = vpack.c.b16 %v3389, %v3388
        %v3513 = vpack.c.b16 %v3391, %v3390
        %v3514 = vpack.c.b16 %v3393, %v3392
        %v3515 = vpack.c.b16 %v3395, %v3394
        %v3516 = vpack.c.b16 %v3397, %v3396
        %v3517 = vpack.c.b16 %v3399, %v3398
        %v3518 = vpack.c.b16 %v3401, %v3400
        %v3519 = vpack.c.b16 %v3403, %v3402
        %v3520 = vpack.c.b16 %v3405, %v3404
        %v3521 = vpack.c.b16 %v3407, %v3406
        %v3522 = vpack.c.b16 %v3409, %v3408
        %v3523 = vpack.c.b16 %v3411, %v3410
        %v3524 = vpack.c.b16 %v3413, %v3412
        %v3525 = vpack.c.b16 %v3415, %v3414
        %v3526 = vpack.c.b16 %v3417, %v3416
        %v3527 = vpack.c.b16 %v3419, %v3418
        %v3528 = vpack.c.b16 %v3421, %v3420
        %v3529 = vpack.c.b16 %v3423, %v3422
        %v3530 = vpack.c.b16 %v3425, %v3424
        %v3531 = vpack.c.b16 %v3427, %v3426
        %v3532 = vpack.c.b16 %v3429, %v3428
        %v3533 = vpack.c.b16 %v3431, %v3430
        %v3534 = vpack.c.b16 %v3433, %v3432
        %v3535 = vpack.c.b16 %v3435, %v3434
        %v3536 = vpack.c.b16 %v3437, %v3436
        %v3537 = vpack.c.b16 %v3439, %v3438
        %v3538 = vpack.c.b16 %v3441, %v3440
        %v3539 = vpack.c.b16 %v3443, %v3442
        %v3540 = vpack.c.b16 %v3445, %v3444
        %v3541 = vpack.c.b16 %v3447, %v3446
        %v3542 = vpack.c.b16 %v3449, %v3448
        %v3543 = vpack.c.b16 %v3451, %v3450
        %v3544 = vpack.c.b16 %v3453, %v3452
        %v3545 = vpack.c.b16 %v3455, %v3454
        %v3546 = vpack.c.b16 %v3457, %v3456
        %v3547 = vpack.c.b16 %v3459, %v3458
        %v3548 = vpack.c.b16 %v3461, %v3460
        %v3549 = vpack.c.b16 %v3463, %v3462
        %v3550 = vpack.c.b16 %v3465, %v3464
        %v3551 = vpack.c.b16 %v3467, %v3466
        %v3552 = vpack.c.b16 %v3469, %v3468
        %v3553 = vpack.c.b16 %v3471, %v3470
        %v3554 = vpack.c.b16 %v3473, %v3472
        %v3555 = vpack.c.b16 %v3475, %v3474
        %v3556 = vpack.c.b16 %v3477, %v3476
        %v3557 = vpack.c.b16 %v3479, %v3478
        %v3558 = vpack.c.b16 %v3481, %v3480
        %v3559 = vpack.c.b16 %v3483, %v3482
        %v3560 = vpack.c.b16 %v3485, %v3484
        %v3561 = vpack.c.b16 %v3487, %v3486
        %v3562 = vpack.c.b16 %v3489, %v3488
        %v3563 = vpack.c.b16 %v3491, %v3490
        %3636 = vmatprep.subr.bf16.mxu0 0
        %3637 = vmatpush1.bf16.msra.mxu0 %v3499
        %3638 = vmatprep.subr.bf16.mxu0 0
        %3639 = vmatpush1.bf16.msra.mxu0 %v3498
        %3640 = vmatprep.subr.bf16.mxu0 0
        %3641 = vmatpush1.bf16.msra.mxu0 %v3497
        %3642 = vmatprep.subr.bf16.mxu0 0
        %3643 = vmatpush1.bf16.msra.mxu0 %v3496
        %3644 = vmatprep.subr.bf16.mxu0 0
        %3645 = vmatpush1.bf16.msra.mxu0 %v3495
        %3646 = vmatprep.subr.bf16.mxu0 0
        %3647 = vmatpush1.bf16.msra.mxu0 %v3494
        %3648 = vmatprep.subr.bf16.mxu0 0
        %3649 = vmatpush1.bf16.msra.mxu0 %v3493
        %3650 = vmatprep.subr.bf16.mxu0 0
        %3651 = vmatpush1.bf16.msra.mxu0 %v3492
        %3652 = vmatprep.subr.bf16.mxu0 0
        %3653 = vmatpush2.bf16.msra.mxu0 %v3507
        %3654 = vmatprep.subr.bf16.mxu0 0
        %3655 = vmatpush2.bf16.msra.mxu0 %v3506
        %3656 = vmatprep.subr.bf16.mxu0 0
        %3657 = vmatpush2.bf16.msra.mxu0 %v3505
        %3658 = vmatprep.subr.bf16.mxu0 0
        %3659 = vmatpush2.bf16.msra.mxu0 %v3504
        %3660 = vmatprep.subr.bf16.mxu0 0
        %3661 = vmatpush2.bf16.msra.mxu0 %v3503
        %3662 = vmatprep.subr.bf16.mxu0 0
        %3663 = vmatpush2.bf16.msra.mxu0 %v3502
        %3664 = vmatprep.subr.bf16.mxu0 0
        %3665 = vmatpush2.bf16.msra.mxu0 %v3501
        %3666 = vmatprep.subr.bf16.mxu0 0
        %3667 = vmatpush2.bf16.msra.mxu0 %v3500
        %3668 = vmatprep.mubr.bf16.mxu0 %v2917
        %3669 = vmatmul.mubr.bf16.gmra.mxu0 %v2916
        %v3670 = vpop.f32.mrf.mxu0
        %v3671 = vadd.f32 0.0, %v3670
        %v3672 = vpop.f32.mrf.mxu0
        %v3673 = vpop.f32.mrf.mxu0
        %v3674 = vadd.f32 0.0, %v3673
        %v3675 = vpop.f32.mrf.mxu0
        %3676 = vmatprep.mubr.bf16.mxu0 %v2926
        %3677 = vmatmul.mubr.bf16.gmra.mxu0 %v2925
        %v3678 = vpop.f32.mrf.mxu0
        %v3679 = vadd.f32 0.0, %v3678
        %v3680 = vpop.f32.mrf.mxu0
        %v3681 = vpop.f32.mrf.mxu0
        %v3682 = vadd.f32 0.0, %v3681
        %v3683 = vpop.f32.mrf.mxu0
        %3684 = vmatprep.mubr.bf16.mxu0 %v2935
        %3685 = vmatmul.mubr.bf16.gmra.mxu0 %v2934
        %v3686 = vpop.f32.mrf.mxu0
        %v3687 = vadd.f32 0.0, %v3686
        %v3688 = vpop.f32.mrf.mxu0
        %v3689 = vpop.f32.mrf.mxu0
        %v3690 = vadd.f32 0.0, %v3689
        %v3691 = vpop.f32.mrf.mxu0
        %3692 = vmatprep.mubr.bf16.mxu0 %v2944
        %3693 = vmatmul.mubr.bf16.gmra.mxu0 %v2943
        %v3694 = vpop.f32.mrf.mxu0
        %v3695 = vadd.f32 0.0, %v3694
        %v3696 = vpop.f32.mrf.mxu0
        %v3697 = vpop.f32.mrf.mxu0
        %v3698 = vadd.f32 0.0, %v3697
        %v3699 = vpop.f32.mrf.mxu0
        %3700 = vmatprep.mubr.bf16.mxu0 %v2953
        %3701 = vmatmul.mubr.bf16.gmra.mxu0 %v2952
        %v3702 = vpop.f32.mrf.mxu0
        %v3703 = vadd.f32 0.0, %v3702
        %v3704 = vpop.f32.mrf.mxu0
        %v3705 = vpop.f32.mrf.mxu0
        %v3706 = vadd.f32 0.0, %v3705
        %v3707 = vpop.f32.mrf.mxu0
        %3708 = vmatprep.mubr.bf16.mxu0 %v2962
        %3709 = vmatmul.mubr.bf16.gmra.mxu0 %v2961
        %v3710 = vpop.f32.mrf.mxu0
        %v3711 = vadd.f32 0.0, %v3710
        %v3712 = vpop.f32.mrf.mxu0
        %v3713 = vpop.f32.mrf.mxu0
        %v3714 = vadd.f32 0.0, %v3713
        %v3715 = vpop.f32.mrf.mxu0
        %3716 = vmatprep.mubr.bf16.mxu0 %v2971
        %3717 = vmatmul.mubr.bf16.gmra.mxu0 %v2970
        %v3718 = vpop.f32.mrf.mxu0
        %v3719 = vadd.f32 0.0, %v3718
        %v3720 = vpop.f32.mrf.mxu0
        %v3721 = vpop.f32.mrf.mxu0
        %v3722 = vadd.f32 0.0, %v3721
        %v3723 = vpop.f32.mrf.mxu0
        %3724 = vmatprep.mubr.bf16.mxu0 %v2980
        %3725 = vmatmul.mubr.bf16.gmra.mxu0 %v2979
        %v3726 = vpop.f32.mrf.mxu0
        %v3727 = vadd.f32 0.0, %v3726
        %v3728 = vpop.f32.mrf.mxu0
        %v3729 = vpop.f32.mrf.mxu0
        %v3730 = vadd.f32 0.0, %v3729
        %v3731 = vpop.f32.mrf.mxu0
        %3732 = vmatprep.mubr.bf16.mxu0 %v2989
        %3733 = vmatmul.mubr.bf16.gmra.mxu0 %v2988
        %v3734 = vpop.f32.mrf.mxu0
        %v3735 = vadd.f32 0.0, %v3734
        %v3736 = vpop.f32.mrf.mxu0
        %v3737 = vpop.f32.mrf.mxu0
        %v3738 = vadd.f32 0.0, %v3737
        %v3739 = vpop.f32.mrf.mxu0
        %3740 = vmatprep.mubr.bf16.mxu0 %v2998
        %3741 = vmatmul.mubr.bf16.gmra.mxu0 %v2997
        %v3742 = vpop.f32.mrf.mxu0
        %v3743 = vadd.f32 0.0, %v3742
        %v3744 = vpop.f32.mrf.mxu0
        %v3745 = vpop.f32.mrf.mxu0
        %v3746 = vadd.f32 0.0, %v3745
        %v3747 = vpop.f32.mrf.mxu0
        %3748 = vmatprep.mubr.bf16.mxu0 %v3007
        %3749 = vmatmul.mubr.bf16.gmra.mxu0 %v3006
        %v3750 = vpop.f32.mrf.mxu0
        %v3751 = vadd.f32 0.0, %v3750
        %v3752 = vpop.f32.mrf.mxu0
        %v3753 = vpop.f32.mrf.mxu0
        %v3754 = vadd.f32 0.0, %v3753
        %v3755 = vpop.f32.mrf.mxu0
        %3756 = vmatprep.mubr.bf16.mxu0 %v3016
        %3757 = vmatmul.mubr.bf16.gmra.mxu0 %v3015
        %v3758 = vpop.f32.mrf.mxu0
        %v3759 = vadd.f32 0.0, %v3758
        %v3760 = vpop.f32.mrf.mxu0
        %v3761 = vpop.f32.mrf.mxu0
        %v3762 = vadd.f32 0.0, %v3761
        %v3763 = vpop.f32.mrf.mxu0
        %3764 = vmatprep.mubr.bf16.mxu0 %v3025
        %3765 = vmatmul.mubr.bf16.gmra.mxu0 %v3024
        %v3766 = vpop.f32.mrf.mxu0
        %v3767 = vadd.f32 0.0, %v3766
        %v3768 = vpop.f32.mrf.mxu0
        %v3769 = vpop.f32.mrf.mxu0
        %v3770 = vadd.f32 0.0, %v3769
        %v3771 = vpop.f32.mrf.mxu0
        %3772 = vmatprep.mubr.bf16.mxu0 %v3034
        %3773 = vmatmul.mubr.bf16.gmra.mxu0 %v3033
        %v3774 = vpop.f32.mrf.mxu0
        %v3775 = vadd.f32 0.0, %v3774
        %v3776 = vpop.f32.mrf.mxu0
        %v3777 = vpop.f32.mrf.mxu0
        %v3778 = vadd.f32 0.0, %v3777
        %v3779 = vpop.f32.mrf.mxu0
        %3780 = vmatprep.mubr.bf16.mxu0 %v3043
        %3781 = vmatmul.mubr.bf16.gmra.mxu0 %v3042
        %v3782 = vpop.f32.mrf.mxu0
        %v3783 = vadd.f32 0.0, %v3782
        %v3784 = vpop.f32.mrf.mxu0
        %v3785 = vpop.f32.mrf.mxu0
        %v3786 = vadd.f32 0.0, %v3785
        %v3787 = vpop.f32.mrf.mxu0
        %3788 = vmatprep.mubr.bf16.mxu0 %v3052
        %3789 = vmatmul.mubr.bf16.gmra.mxu0 %v3051
        %v3790 = vpop.f32.mrf.mxu0
        %v3791 = vadd.f32 0.0, %v3790
        %v3792 = vpop.f32.mrf.mxu0
        %v3793 = vpop.f32.mrf.mxu0
        %v3794 = vadd.f32 0.0, %v3793
        %v3795 = vpop.f32.mrf.mxu0
        %3796 = vdwg.mxu0
        %3797 = vmatprep.subr.bf16.mxu0 0
        %3798 = vmatpush1.bf16.msra.mxu0 %v3515
        %3799 = vmatprep.subr.bf16.mxu0 0
        %3800 = vmatpush1.bf16.msra.mxu0 %v3514
        %3801 = vmatprep.subr.bf16.mxu0 0
        %3802 = vmatpush1.bf16.msra.mxu0 %v3513
        %3803 = vmatprep.subr.bf16.mxu0 0
        %3804 = vmatpush1.bf16.msra.mxu0 %v3512
        %3805 = vmatprep.subr.bf16.mxu0 0
        %3806 = vmatpush1.bf16.msra.mxu0 %v3511
        %3807 = vmatprep.subr.bf16.mxu0 0
        %3808 = vmatpush1.bf16.msra.mxu0 %v3510
        %3809 = vmatprep.subr.bf16.mxu0 0
        %3810 = vmatpush1.bf16.msra.mxu0 %v3509
        %3811 = vmatprep.subr.bf16.mxu0 0
        %3812 = vmatpush1.bf16.msra.mxu0 %v3508
        %3813 = vmatprep.subr.bf16.mxu0 0
        %3814 = vmatpush2.bf16.msra.mxu0 %v3523
        %3815 = vmatprep.subr.bf16.mxu0 0
        %3816 = vmatpush2.bf16.msra.mxu0 %v3522
        %3817 = vmatprep.subr.bf16.mxu0 0
        %3818 = vmatpush2.bf16.msra.mxu0 %v3521
        %3819 = vmatprep.subr.bf16.mxu0 0
        %3820 = vmatpush2.bf16.msra.mxu0 %v3520
        %3821 = vmatprep.subr.bf16.mxu0 0
        %3822 = vmatpush2.bf16.msra.mxu0 %v3519
        %3823 = vmatprep.subr.bf16.mxu0 0
        %3824 = vmatpush2.bf16.msra.mxu0 %v3518
        %3825 = vmatprep.subr.bf16.mxu0 0
        %3826 = vmatpush2.bf16.msra.mxu0 %v3517
        %3827 = vmatprep.subr.bf16.mxu0 0
        %3828 = vmatpush2.bf16.msra.mxu0 %v3516
        %3829 = vmatprep.mubr.bf16.mxu0 %v2919
        %3830 = vmatmul.mubr.bf16.gmra.mxu0 %v2918
        %v3831 = vpop.f32.mrf.mxu0
        %v3832 = vadd.f32 %v3671, %v3831
        %v3833 = vpop.f32.mrf.mxu0
        %v3834 = vpop.f32.mrf.mxu0
        %v3835 = vadd.f32 %v3674, %v3834
        %v3836 = vpop.f32.mrf.mxu0
        %3837 = vmatprep.mubr.bf16.mxu0 %v2928
        %3838 = vmatmul.mubr.bf16.gmra.mxu0 %v2927
        %v3839 = vpop.f32.mrf.mxu0
        %v3840 = vadd.f32 %v3679, %v3839
        %v3841 = vpop.f32.mrf.mxu0
        %v3842 = vpop.f32.mrf.mxu0
        %v3843 = vadd.f32 %v3682, %v3842
        %v3844 = vpop.f32.mrf.mxu0
        %3845 = vmatprep.mubr.bf16.mxu0 %v2937
        %3846 = vmatmul.mubr.bf16.gmra.mxu0 %v2936
        %v3847 = vpop.f32.mrf.mxu0
        %v3848 = vadd.f32 %v3687, %v3847
        %v3849 = vpop.f32.mrf.mxu0
        %v3850 = vpop.f32.mrf.mxu0
        %v3851 = vadd.f32 %v3690, %v3850
        %v3852 = vpop.f32.mrf.mxu0
        %3853 = vmatprep.mubr.bf16.mxu0 %v2946
        %3854 = vmatmul.mubr.bf16.gmra.mxu0 %v2945
        %v3855 = vpop.f32.mrf.mxu0
        %v3856 = vadd.f32 %v3695, %v3855
        %v3857 = vpop.f32.mrf.mxu0
        %v3858 = vpop.f32.mrf.mxu0
        %v3859 = vadd.f32 %v3698, %v3858
        %v3860 = vpop.f32.mrf.mxu0
        %3861 = vmatprep.mubr.bf16.mxu0 %v2955
        %3862 = vmatmul.mubr.bf16.gmra.mxu0 %v2954
        %v3863 = vpop.f32.mrf.mxu0
        %v3864 = vadd.f32 %v3703, %v3863
        %v3865 = vpop.f32.mrf.mxu0
        %v3866 = vpop.f32.mrf.mxu0
        %v3867 = vadd.f32 %v3706, %v3866
        %v3868 = vpop.f32.mrf.mxu0
        %3869 = vmatprep.mubr.bf16.mxu0 %v2964
        %3870 = vmatmul.mubr.bf16.gmra.mxu0 %v2963
        %v3871 = vpop.f32.mrf.mxu0
        %v3872 = vadd.f32 %v3711, %v3871
        %v3873 = vpop.f32.mrf.mxu0
        %v3874 = vpop.f32.mrf.mxu0
        %v3875 = vadd.f32 %v3714, %v3874
        %v3876 = vpop.f32.mrf.mxu0
        %3877 = vmatprep.mubr.bf16.mxu0 %v2973
        %3878 = vmatmul.mubr.bf16.gmra.mxu0 %v2972
        %v3879 = vpop.f32.mrf.mxu0
        %v3880 = vadd.f32 %v3719, %v3879
        %v3881 = vpop.f32.mrf.mxu0
        %v3882 = vpop.f32.mrf.mxu0
        %v3883 = vadd.f32 %v3722, %v3882
        %v3884 = vpop.f32.mrf.mxu0
        %3885 = vmatprep.mubr.bf16.mxu0 %v2982
        %3886 = vmatmul.mubr.bf16.gmra.mxu0 %v2981
        %v3887 = vpop.f32.mrf.mxu0
        %v3888 = vadd.f32 %v3727, %v3887
        %v3889 = vpop.f32.mrf.mxu0
        %v3890 = vpop.f32.mrf.mxu0
        %v3891 = vadd.f32 %v3730, %v3890
        %v3892 = vpop.f32.mrf.mxu0
        %3893 = vmatprep.mubr.bf16.mxu0 %v2991
        %3894 = vmatmul.mubr.bf16.gmra.mxu0 %v2990
        %v3895 = vpop.f32.mrf.mxu0
        %v3896 = vadd.f32 %v3735, %v3895
        %v3897 = vpop.f32.mrf.mxu0
        %v3898 = vpop.f32.mrf.mxu0
        %v3899 = vadd.f32 %v3738, %v3898
        %v3900 = vpop.f32.mrf.mxu0
        %3901 = vmatprep.mubr.bf16.mxu0 %v3000
        %3902 = vmatmul.mubr.bf16.gmra.mxu0 %v2999
        %v3903 = vpop.f32.mrf.mxu0
        %v3904 = vadd.f32 %v3743, %v3903
        %v3905 = vpop.f32.mrf.mxu0
        %v3906 = vpop.f32.mrf.mxu0
        %v3907 = vadd.f32 %v3746, %v3906
        %v3908 = vpop.f32.mrf.mxu0
        %3909 = vmatprep.mubr.bf16.mxu0 %v3009
        %3910 = vmatmul.mubr.bf16.gmra.mxu0 %v3008
        %v3911 = vpop.f32.mrf.mxu0
        %v3912 = vadd.f32 %v3751, %v3911
        %v3913 = vpop.f32.mrf.mxu0
        %v3914 = vpop.f32.mrf.mxu0
        %v3915 = vadd.f32 %v3754, %v3914
        %v3916 = vpop.f32.mrf.mxu0
        %3917 = vmatprep.mubr.bf16.mxu0 %v3018
        %3918 = vmatmul.mubr.bf16.gmra.mxu0 %v3017
        %v3919 = vpop.f32.mrf.mxu0
        %v3920 = vadd.f32 %v3759, %v3919
        %v3921 = vpop.f32.mrf.mxu0
        %v3922 = vpop.f32.mrf.mxu0
        %v3923 = vadd.f32 %v3762, %v3922
        %v3924 = vpop.f32.mrf.mxu0
        %3925 = vmatprep.mubr.bf16.mxu0 %v3027
        %3926 = vmatmul.mubr.bf16.gmra.mxu0 %v3026
        %v3927 = vpop.f32.mrf.mxu0
        %v3928 = vadd.f32 %v3767, %v3927
        %v3929 = vpop.f32.mrf.mxu0
        %v3930 = vpop.f32.mrf.mxu0
        %v3931 = vadd.f32 %v3770, %v3930
        %v3932 = vpop.f32.mrf.mxu0
        %3933 = vmatprep.mubr.bf16.mxu0 %v3036
        %3934 = vmatmul.mubr.bf16.gmra.mxu0 %v3035
        %v3935 = vpop.f32.mrf.mxu0
        %v3936 = vadd.f32 %v3775, %v3935
        %v3937 = vpop.f32.mrf.mxu0
        %v3938 = vpop.f32.mrf.mxu0
        %v3939 = vadd.f32 %v3778, %v3938
        %v3940 = vpop.f32.mrf.mxu0
        %3941 = vmatprep.mubr.bf16.mxu0 %v3045
        %3942 = vmatmul.mubr.bf16.gmra.mxu0 %v3044
        %v3943 = vpop.f32.mrf.mxu0
        %v3944 = vadd.f32 %v3783, %v3943
        %v3945 = vpop.f32.mrf.mxu0
        %v3946 = vpop.f32.mrf.mxu0
        %v3947 = vadd.f32 %v3786, %v3946
        %v3948 = vpop.f32.mrf.mxu0
        %3949 = vmatprep.mubr.bf16.mxu0 %v3054
        %3950 = vmatmul.mubr.bf16.gmra.mxu0 %v3053
        %v3951 = vpop.f32.mrf.mxu0
        %v3952 = vadd.f32 %v3791, %v3951
        %v3953 = vpop.f32.mrf.mxu0
        %v3954 = vpop.f32.mrf.mxu0
        %v3955 = vadd.f32 %v3794, %v3954
        %v3956 = vpop.f32.mrf.mxu0
        %3957 = vdwg.mxu0
        %3958 = vmatprep.subr.bf16.mxu0 0
        %3959 = vmatpush1.bf16.msra.mxu0 %v3531
        %3960 = vmatprep.subr.bf16.mxu0 0
        %3961 = vmatpush1.bf16.msra.mxu0 %v3530
        %3962 = vmatprep.subr.bf16.mxu0 0
        %3963 = vmatpush1.bf16.msra.mxu0 %v3529
        %3964 = vmatprep.subr.bf16.mxu0 0
        %3965 = vmatpush1.bf16.msra.mxu0 %v3528
        %3966 = vmatprep.subr.bf16.mxu0 0
        %3967 = vmatpush1.bf16.msra.mxu0 %v3527
        %3968 = vmatprep.subr.bf16.mxu0 0
        %3969 = vmatpush1.bf16.msra.mxu0 %v3526
        %3970 = vmatprep.subr.bf16.mxu0 0
        %3971 = vmatpush1.bf16.msra.mxu0 %v3525
        %3972 = vmatprep.subr.bf16.mxu0 0
        %3973 = vmatpush1.bf16.msra.mxu0 %v3524
        %3974 = vmatprep.subr.bf16.mxu0 0
        %3975 = vmatpush2.bf16.msra.mxu0 %v3539
        %3976 = vmatprep.subr.bf16.mxu0 0
        %3977 = vmatpush2.bf16.msra.mxu0 %v3538
        %3978 = vmatprep.subr.bf16.mxu0 0
        %3979 = vmatpush2.bf16.msra.mxu0 %v3537
        %3980 = vmatprep.subr.bf16.mxu0 0
        %3981 = vmatpush2.bf16.msra.mxu0 %v3536
        %3982 = vmatprep.subr.bf16.mxu0 0
        %3983 = vmatpush2.bf16.msra.mxu0 %v3535
        %3984 = vmatprep.subr.bf16.mxu0 0
        %3985 = vmatpush2.bf16.msra.mxu0 %v3534
        %3986 = vmatprep.subr.bf16.mxu0 0
        %3987 = vmatpush2.bf16.msra.mxu0 %v3533
        %3988 = vmatprep.subr.bf16.mxu0 0
        %3989 = vmatpush2.bf16.msra.mxu0 %v3532
        %3990 = vmatprep.mubr.bf16.mxu0 %v2921
        %3991 = vmatmul.mubr.bf16.gmra.mxu0 %v2920
        %v3992 = vpop.f32.mrf.mxu0
        %v3993 = vadd.f32 %v3832, %v3992
        %v3994 = vpop.f32.mrf.mxu0
        %v3995 = vpop.f32.mrf.mxu0
        %v3996 = vadd.f32 %v3835, %v3995
        %v3997 = vpop.f32.mrf.mxu0
        %3998 = vmatprep.mubr.bf16.mxu0 %v2930
        %3999 = vmatmul.mubr.bf16.gmra.mxu0 %v2929
        %v4000 = vpop.f32.mrf.mxu0
        %v4001 = vadd.f32 %v3840, %v4000
        %v4002 = vpop.f32.mrf.mxu0
        %v4003 = vpop.f32.mrf.mxu0
        %v4004 = vadd.f32 %v3843, %v4003
        %v4005 = vpop.f32.mrf.mxu0
        %4006 = vmatprep.mubr.bf16.mxu0 %v2939
        %4007 = vmatmul.mubr.bf16.gmra.mxu0 %v2938
        %v4008 = vpop.f32.mrf.mxu0
        %v4009 = vadd.f32 %v3848, %v4008
        %v4010 = vpop.f32.mrf.mxu0
        %v4011 = vpop.f32.mrf.mxu0
        %v4012 = vadd.f32 %v3851, %v4011
        %v4013 = vpop.f32.mrf.mxu0
        %4014 = vmatprep.mubr.bf16.mxu0 %v2948
        %4015 = vmatmul.mubr.bf16.gmra.mxu0 %v2947
        %v4016 = vpop.f32.mrf.mxu0
        %v4017 = vadd.f32 %v3856, %v4016
        %v4018 = vpop.f32.mrf.mxu0
        %v4019 = vpop.f32.mrf.mxu0
        %v4020 = vadd.f32 %v3859, %v4019
        %v4021 = vpop.f32.mrf.mxu0
        %4022 = vmatprep.mubr.bf16.mxu0 %v2957
        %4023 = vmatmul.mubr.bf16.gmra.mxu0 %v2956
        %v4024 = vpop.f32.mrf.mxu0
        %v4025 = vadd.f32 %v3864, %v4024
        %v4026 = vpop.f32.mrf.mxu0
        %v4027 = vpop.f32.mrf.mxu0
        %v4028 = vadd.f32 %v3867, %v4027
        %v4029 = vpop.f32.mrf.mxu0
        %4030 = vmatprep.mubr.bf16.mxu0 %v2966
        %4031 = vmatmul.mubr.bf16.gmra.mxu0 %v2965
        %v4032 = vpop.f32.mrf.mxu0
        %v4033 = vadd.f32 %v3872, %v4032
        %v4034 = vpop.f32.mrf.mxu0
        %v4035 = vpop.f32.mrf.mxu0
        %v4036 = vadd.f32 %v3875, %v4035
        %v4037 = vpop.f32.mrf.mxu0
        %4038 = vmatprep.mubr.bf16.mxu0 %v2975
        %4039 = vmatmul.mubr.bf16.gmra.mxu0 %v2974
        %v4040 = vpop.f32.mrf.mxu0
        %v4041 = vadd.f32 %v3880, %v4040
        %v4042 = vpop.f32.mrf.mxu0
        %v4043 = vpop.f32.mrf.mxu0
        %v4044 = vadd.f32 %v3883, %v4043
        %v4045 = vpop.f32.mrf.mxu0
        %4046 = vmatprep.mubr.bf16.mxu0 %v2984
        %4047 = vmatmul.mubr.bf16.gmra.mxu0 %v2983
        %v4048 = vpop.f32.mrf.mxu0
        %v4049 = vadd.f32 %v3888, %v4048
        %v4050 = vpop.f32.mrf.mxu0
        %v4051 = vpop.f32.mrf.mxu0
        %v4052 = vadd.f32 %v3891, %v4051
        %v4053 = vpop.f32.mrf.mxu0
        %4054 = vmatprep.mubr.bf16.mxu0 %v2993
        %4055 = vmatmul.mubr.bf16.gmra.mxu0 %v2992
        %v4056 = vpop.f32.mrf.mxu0
        %v4057 = vadd.f32 %v3896, %v4056
        %v4058 = vpop.f32.mrf.mxu0
        %v4059 = vpop.f32.mrf.mxu0
        %v4060 = vadd.f32 %v3899, %v4059
        %v4061 = vpop.f32.mrf.mxu0
        %4062 = vmatprep.mubr.bf16.mxu0 %v3002
        %4063 = vmatmul.mubr.bf16.gmra.mxu0 %v3001
        %v4064 = vpop.f32.mrf.mxu0
        %v4065 = vadd.f32 %v3904, %v4064
        %v4066 = vpop.f32.mrf.mxu0
        %v4067 = vpop.f32.mrf.mxu0
        %v4068 = vadd.f32 %v3907, %v4067
        %v4069 = vpop.f32.mrf.mxu0
        %4070 = vmatprep.mubr.bf16.mxu0 %v3011
        %4071 = vmatmul.mubr.bf16.gmra.mxu0 %v3010
        %v4072 = vpop.f32.mrf.mxu0
        %v4073 = vadd.f32 %v3912, %v4072
        %v4074 = vpop.f32.mrf.mxu0
        %v4075 = vpop.f32.mrf.mxu0
        %v4076 = vadd.f32 %v3915, %v4075
        %v4077 = vpop.f32.mrf.mxu0
        %4078 = vmatprep.mubr.bf16.mxu0 %v3020
        %4079 = vmatmul.mubr.bf16.gmra.mxu0 %v3019
        %v4080 = vpop.f32.mrf.mxu0
        %v4081 = vadd.f32 %v3920, %v4080
        %v4082 = vpop.f32.mrf.mxu0
        %v4083 = vpop.f32.mrf.mxu0
        %v4084 = vadd.f32 %v3923, %v4083
        %v4085 = vpop.f32.mrf.mxu0
        %4086 = vmatprep.mubr.bf16.mxu0 %v3029
        %4087 = vmatmul.mubr.bf16.gmra.mxu0 %v3028
        %v4088 = vpop.f32.mrf.mxu0
        %v4089 = vadd.f32 %v3928, %v4088
        %v4090 = vpop.f32.mrf.mxu0
        %v4091 = vpop.f32.mrf.mxu0
        %v4092 = vadd.f32 %v3931, %v4091
        %v4093 = vpop.f32.mrf.mxu0
        %4094 = vmatprep.mubr.bf16.mxu0 %v3038
        %4095 = vmatmul.mubr.bf16.gmra.mxu0 %v3037
        %v4096 = vpop.f32.mrf.mxu0
        %v4097 = vadd.f32 %v3936, %v4096
        %v4098 = vpop.f32.mrf.mxu0
        %v4099 = vpop.f32.mrf.mxu0
        %v4100 = vadd.f32 %v3939, %v4099
        %v4101 = vpop.f32.mrf.mxu0
        %4102 = vmatprep.mubr.bf16.mxu0 %v3047
        %4103 = vmatmul.mubr.bf16.gmra.mxu0 %v3046
        %v4104 = vpop.f32.mrf.mxu0
        %v4105 = vadd.f32 %v3944, %v4104
        %v4106 = vpop.f32.mrf.mxu0
        %v4107 = vpop.f32.mrf.mxu0
        %v4108 = vadd.f32 %v3947, %v4107
        %v4109 = vpop.f32.mrf.mxu0
        %4110 = vmatprep.mubr.bf16.mxu0 %v3056
        %4111 = vmatmul.mubr.bf16.gmra.mxu0 %v3055
        %v4112 = vpop.f32.mrf.mxu0
        %v4113 = vadd.f32 %v3952, %v4112
        %v4114 = vpop.f32.mrf.mxu0
        %v4115 = vpop.f32.mrf.mxu0
        %v4116 = vadd.f32 %v3955, %v4115
        %v4117 = vpop.f32.mrf.mxu0
        %4118 = vdwg.mxu0
        %4119 = vmatprep.subr.bf16.mxu0 0
        %4120 = vmatpush1.bf16.msra.mxu0 %v3547
        %4121 = vmatprep.subr.bf16.mxu0 0
        %4122 = vmatpush1.bf16.msra.mxu0 %v3546
        %4123 = vmatprep.subr.bf16.mxu0 0
        %4124 = vmatpush1.bf16.msra.mxu0 %v3545
        %4125 = vmatprep.subr.bf16.mxu0 0
        %4126 = vmatpush1.bf16.msra.mxu0 %v3544
        %4127 = vmatprep.subr.bf16.mxu0 0
        %4128 = vmatpush1.bf16.msra.mxu0 %v3543
        %4129 = vmatprep.subr.bf16.mxu0 0
        %4130 = vmatpush1.bf16.msra.mxu0 %v3542
        %4131 = vmatprep.subr.bf16.mxu0 0
        %4132 = vmatpush1.bf16.msra.mxu0 %v3541
        %4133 = vmatprep.subr.bf16.mxu0 0
        %4134 = vmatpush1.bf16.msra.mxu0 %v3540
        %4135 = vmatprep.subr.bf16.mxu0 0
        %4136 = vmatpush2.bf16.msra.mxu0 %v3555
        %4137 = vmatprep.subr.bf16.mxu0 0
        %4138 = vmatpush2.bf16.msra.mxu0 %v3554
        %4139 = vmatprep.subr.bf16.mxu0 0
        %4140 = vmatpush2.bf16.msra.mxu0 %v3553
        %4141 = vmatprep.subr.bf16.mxu0 0
        %4142 = vmatpush2.bf16.msra.mxu0 %v3552
        %4143 = vmatprep.subr.bf16.mxu0 0
        %4144 = vmatpush2.bf16.msra.mxu0 %v3551
        %4145 = vmatprep.subr.bf16.mxu0 0
        %4146 = vmatpush2.bf16.msra.mxu0 %v3550
        %4147 = vmatprep.subr.bf16.mxu0 0
        %4148 = vmatpush2.bf16.msra.mxu0 %v3549
        %4149 = vmatprep.subr.bf16.mxu0 0
        %4150 = vmatpush2.bf16.msra.mxu0 %v3548
        %4151 = vmatprep.mubr.bf16.mxu0 %v2923
        %4152 = vmatmul.mubr.bf16.gmra.mxu0 %v2922
        %v4153 = vpop.f32.mrf.mxu0
        %v4154 = vadd.f32 %v3993, %v4153
        %v4155 = vpop.f32.mrf.mxu0
        %v4156 = vpop.f32.mrf.mxu0
        %v4157 = vadd.f32 %v3996, %v4156
        %v4158 = vpop.f32.mrf.mxu0
        %4159 = vmatprep.mubr.bf16.mxu0 %v2932
        %4160 = vmatmul.mubr.bf16.gmra.mxu0 %v2931
        %v4161 = vpop.f32.mrf.mxu0
        %v4162 = vadd.f32 %v4001, %v4161
        %v4163 = vpop.f32.mrf.mxu0
        %v4164 = vpop.f32.mrf.mxu0
        %v4165 = vadd.f32 %v4004, %v4164
        %v4166 = vpop.f32.mrf.mxu0
        %4167 = vmatprep.mubr.bf16.mxu0 %v2941
        %4168 = vmatmul.mubr.bf16.gmra.mxu0 %v2940
        %v4169 = vpop.f32.mrf.mxu0
        %v4170 = vadd.f32 %v4009, %v4169
        %v4171 = vpop.f32.mrf.mxu0
        %v4172 = vpop.f32.mrf.mxu0
        %v4173 = vadd.f32 %v4012, %v4172
        %v4174 = vpop.f32.mrf.mxu0
        %4175 = vmatprep.mubr.bf16.mxu0 %v2950
        %4176 = vmatmul.mubr.bf16.gmra.mxu0 %v2949
        %v4177 = vpop.f32.mrf.mxu0
        %v4178 = vadd.f32 %v4017, %v4177
        %v4179 = vpop.f32.mrf.mxu0
        %v4180 = vpop.f32.mrf.mxu0
        %v4181 = vadd.f32 %v4020, %v4180
        %v4182 = vpop.f32.mrf.mxu0
        %4183 = vmatprep.mubr.bf16.mxu0 %v2959
        %4184 = vmatmul.mubr.bf16.gmra.mxu0 %v2958
        %v4185 = vpop.f32.mrf.mxu0
        %v4186 = vadd.f32 %v4025, %v4185
        %v4187 = vpop.f32.mrf.mxu0
        %v4188 = vpop.f32.mrf.mxu0
        %v4189 = vadd.f32 %v4028, %v4188
        %v4190 = vpop.f32.mrf.mxu0
        %4191 = vmatprep.mubr.bf16.mxu0 %v2968
        %4192 = vmatmul.mubr.bf16.gmra.mxu0 %v2967
        %v4193 = vpop.f32.mrf.mxu0
        %v4194 = vadd.f32 %v4033, %v4193
        %v4195 = vpop.f32.mrf.mxu0
        %v4196 = vpop.f32.mrf.mxu0
        %v4197 = vadd.f32 %v4036, %v4196
        %v4198 = vpop.f32.mrf.mxu0
        %4199 = vmatprep.mubr.bf16.mxu0 %v2977
        %4200 = vmatmul.mubr.bf16.gmra.mxu0 %v2976
        %v4201 = vpop.f32.mrf.mxu0
        %v4202 = vadd.f32 %v4041, %v4201
        %v4203 = vpop.f32.mrf.mxu0
        %v4204 = vpop.f32.mrf.mxu0
        %v4205 = vadd.f32 %v4044, %v4204
        %v4206 = vpop.f32.mrf.mxu0
        %4207 = vmatprep.mubr.bf16.mxu0 %v2986
        %4208 = vmatmul.mubr.bf16.gmra.mxu0 %v2985
        %v4209 = vpop.f32.mrf.mxu0
        %v4210 = vadd.f32 %v4049, %v4209
        %v4211 = vpop.f32.mrf.mxu0
        %v4212 = vpop.f32.mrf.mxu0
        %v4213 = vadd.f32 %v4052, %v4212
        %v4214 = vpop.f32.mrf.mxu0
        %4215 = vmatprep.mubr.bf16.mxu0 %v2995
        %4216 = vmatmul.mubr.bf16.gmra.mxu0 %v2994
        %v4217 = vpop.f32.mrf.mxu0
        %v4218 = vadd.f32 %v4057, %v4217
        %v4219 = vpop.f32.mrf.mxu0
        %v4220 = vpop.f32.mrf.mxu0
        %v4221 = vadd.f32 %v4060, %v4220
        %v4222 = vpop.f32.mrf.mxu0
        %4223 = vmatprep.mubr.bf16.mxu0 %v3004
        %4224 = vmatmul.mubr.bf16.gmra.mxu0 %v3003
        %v4225 = vpop.f32.mrf.mxu0
        %v4226 = vadd.f32 %v4065, %v4225
        %v4227 = vpop.f32.mrf.mxu0
        %v4228 = vpop.f32.mrf.mxu0
        %v4229 = vadd.f32 %v4068, %v4228
        %v4230 = vpop.f32.mrf.mxu0
        %4231 = vmatprep.mubr.bf16.mxu0 %v3013
        %4232 = vmatmul.mubr.bf16.gmra.mxu0 %v3012
        %v4233 = vpop.f32.mrf.mxu0
        %v4234 = vadd.f32 %v4073, %v4233
        %v4235 = vpop.f32.mrf.mxu0
        %v4236 = vpop.f32.mrf.mxu0
        %v4237 = vadd.f32 %v4076, %v4236
        %v4238 = vpop.f32.mrf.mxu0
        %4239 = vmatprep.mubr.bf16.mxu0 %v3022
        %4240 = vmatmul.mubr.bf16.gmra.mxu0 %v3021
        %v4241 = vpop.f32.mrf.mxu0
        %v4242 = vadd.f32 %v4081, %v4241
        %v4243 = vpop.f32.mrf.mxu0
        %v4244 = vpop.f32.mrf.mxu0
        %v4245 = vadd.f32 %v4084, %v4244
        %v4246 = vpop.f32.mrf.mxu0
        %4247 = vmatprep.mubr.bf16.mxu0 %v3031
        %4248 = vmatmul.mubr.bf16.gmra.mxu0 %v3030
        %v4249 = vpop.f32.mrf.mxu0
        %v4250 = vadd.f32 %v4089, %v4249
        %v4251 = vpop.f32.mrf.mxu0
        %v4252 = vpop.f32.mrf.mxu0
        %v4253 = vadd.f32 %v4092, %v4252
        %v4254 = vpop.f32.mrf.mxu0
        %4255 = vmatprep.mubr.bf16.mxu0 %v3040
        %4256 = vmatmul.mubr.bf16.gmra.mxu0 %v3039
        %v4257 = vpop.f32.mrf.mxu0
        %v4258 = vadd.f32 %v4097, %v4257
        %v4259 = vpop.f32.mrf.mxu0
        %v4260 = vpop.f32.mrf.mxu0
        %v4261 = vadd.f32 %v4100, %v4260
        %v4262 = vpop.f32.mrf.mxu0
        %4263 = vmatprep.mubr.bf16.mxu0 %v3049
        %4264 = vmatmul.mubr.bf16.gmra.mxu0 %v3048
        %v4265 = vpop.f32.mrf.mxu0
        %v4266 = vadd.f32 %v4105, %v4265
        %v4267 = vpop.f32.mrf.mxu0
        %v4268 = vpop.f32.mrf.mxu0
        %v4269 = vadd.f32 %v4108, %v4268
        %v4270 = vpop.f32.mrf.mxu0
        %4271 = vmatprep.mubr.bf16.mxu0 %v3058
        %4272 = vmatmul.mubr.bf16.gmra.mxu0 %v3057
        %v4273 = vpop.f32.mrf.mxu0
        %v4274 = vadd.f32 %v4113, %v4273
        %v4275 = vpop.f32.mrf.mxu0
        %v4276 = vpop.f32.mrf.mxu0
        %v4277 = vadd.f32 %v4116, %v4276
        %v4278 = vpop.f32.mrf.mxu0
        %4279 = vdwg.mxu0
        %4280 = vmatprep.subr.bf16.mxu0 0
        %4281 = vmatpush1.bf16.msra.mxu0 %v3563
        %4282 = vmatprep.subr.bf16.mxu0 0
        %4283 = vmatpush1.bf16.msra.mxu0 %v3562
        %4284 = vmatprep.subr.bf16.mxu0 0
        %4285 = vmatpush1.bf16.msra.mxu0 %v3561
        %4286 = vmatprep.subr.bf16.mxu0 0
        %4287 = vmatpush1.bf16.msra.mxu0 %v3560
        %4288 = vmatprep.subr.bf16.mxu0 0
        %4289 = vmatpush1.bf16.msra.mxu0 %v3559
        %4290 = vmatprep.subr.bf16.mxu0 0
        %4291 = vmatpush1.bf16.msra.mxu0 %v3558
        %4292 = vmatprep.subr.bf16.mxu0 0
        %4293 = vmatpush1.bf16.msra.mxu0 %v3557
        %4294 = vmatprep.subr.bf16.mxu0 0
        %4295 = vmatpush1.bf16.msra.mxu0 %v3556
        %4296 = vmatprep.subr.bf16.mxu0 0
        %4297 = vmatpush2.bf16.msra.mxu0 0
        %4298 = vmatprep.subr.bf16.mxu0 0
        %4299 = vmatpush2.bf16.msra.mxu0 0
        %4300 = vmatprep.subr.bf16.mxu0 0
        %4301 = vmatpush2.bf16.msra.mxu0 0
        %4302 = vmatprep.subr.bf16.mxu0 0
        %4303 = vmatpush2.bf16.msra.mxu0 0
        %4304 = vmatprep.subr.bf16.mxu0 0
        %4305 = vmatpush2.bf16.msra.mxu0 0
        %4306 = vmatprep.subr.bf16.mxu0 0
        %4307 = vmatpush2.bf16.msra.mxu0 0
        %4308 = vmatprep.subr.bf16.mxu0 0
        %4309 = vmatpush2.bf16.msra.mxu0 0
        %4310 = vmatprep.subr.bf16.mxu0 0
        %4311 = vmatpush2.bf16.msra.mxu0 0
        %4312 = vmatprep.mubr.bf16.mxu0 0
        %4313 = vmatmul.mubr.bf16.gmra.mxu0 %v2924
        %v4314 = vpop.f32.mrf.mxu0
        %v4315 = vadd.f32 %v4154, %v4314
        %v4316 = vpop.f32.mrf.mxu0
        %v4317 = vpop.f32.mrf.mxu0
        %v4318 = vadd.f32 %v4157, %v4317
        %v4319 = vpop.f32.mrf.mxu0
        %4320 = vmatprep.mubr.bf16.mxu0 0
        %4321 = vmatmul.mubr.bf16.gmra.mxu0 %v2933
        %v4322 = vpop.f32.mrf.mxu0
        %v4323 = vadd.f32 %v4162, %v4322
        %v4324 = vpop.f32.mrf.mxu0
        %v4325 = vpop.f32.mrf.mxu0
        %v4326 = vadd.f32 %v4165, %v4325
        %v4327 = vpop.f32.mrf.mxu0
        %4328 = vmatprep.mubr.bf16.mxu0 0
        %4329 = vmatmul.mubr.bf16.gmra.mxu0 %v2942
        %v4330 = vpop.f32.mrf.mxu0
        %v4331 = vadd.f32 %v4170, %v4330
        %v4332 = vpop.f32.mrf.mxu0
        %v4333 = vpop.f32.mrf.mxu0
        %v4334 = vadd.f32 %v4173, %v4333
        %v4335 = vpop.f32.mrf.mxu0
        %4336 = vmatprep.mubr.bf16.mxu0 0
        %4337 = vmatmul.mubr.bf16.gmra.mxu0 %v2951
        %v4338 = vpop.f32.mrf.mxu0
        %v4339 = vadd.f32 %v4178, %v4338
        %v4340 = vpop.f32.mrf.mxu0
        %v4341 = vpop.f32.mrf.mxu0
        %v4342 = vadd.f32 %v4181, %v4341
        %v4343 = vpop.f32.mrf.mxu0
        %4344 = vmatprep.mubr.bf16.mxu0 0
        %4345 = vmatmul.mubr.bf16.gmra.mxu0 %v2960
        %v4346 = vpop.f32.mrf.mxu0
        %v4347 = vadd.f32 %v4186, %v4346
        %v4348 = vpop.f32.mrf.mxu0
        %v4349 = vpop.f32.mrf.mxu0
        %v4350 = vadd.f32 %v4189, %v4349
        %v4351 = vpop.f32.mrf.mxu0
        %4352 = vmatprep.mubr.bf16.mxu0 0
        %4353 = vmatmul.mubr.bf16.gmra.mxu0 %v2969
        %v4354 = vpop.f32.mrf.mxu0
        %v4355 = vadd.f32 %v4194, %v4354
        %v4356 = vpop.f32.mrf.mxu0
        %v4357 = vpop.f32.mrf.mxu0
        %v4358 = vadd.f32 %v4197, %v4357
        %v4359 = vpop.f32.mrf.mxu0
        %4360 = vmatprep.mubr.bf16.mxu0 0
        %4361 = vmatmul.mubr.bf16.gmra.mxu0 %v2978
        %v4362 = vpop.f32.mrf.mxu0
        %v4363 = vadd.f32 %v4202, %v4362
        %v4364 = vpop.f32.mrf.mxu0
        %v4365 = vpop.f32.mrf.mxu0
        %v4366 = vadd.f32 %v4205, %v4365
        %v4367 = vpop.f32.mrf.mxu0
        %4368 = vmatprep.mubr.bf16.mxu0 0
        %4369 = vmatmul.mubr.bf16.gmra.mxu0 %v2987
        %v4370 = vpop.f32.mrf.mxu0
        %v4371 = vadd.f32 %v4210, %v4370
        %v4372 = vpop.f32.mrf.mxu0
        %v4373 = vpop.f32.mrf.mxu0
        %v4374 = vadd.f32 %v4213, %v4373
        %v4375 = vpop.f32.mrf.mxu0
        %4376 = vmatprep.mubr.bf16.mxu0 0
        %4377 = vmatmul.mubr.bf16.gmra.mxu0 %v2996
        %v4378 = vpop.f32.mrf.mxu0
        %v4379 = vadd.f32 %v4218, %v4378
        %v4380 = vpop.f32.mrf.mxu0
        %v4381 = vpop.f32.mrf.mxu0
        %v4382 = vadd.f32 %v4221, %v4381
        %v4383 = vpop.f32.mrf.mxu0
        %4384 = vmatprep.mubr.bf16.mxu0 0
        %4385 = vmatmul.mubr.bf16.gmra.mxu0 %v3005
        %v4386 = vpop.f32.mrf.mxu0
        %v4387 = vadd.f32 %v4226, %v4386
        %v4388 = vpop.f32.mrf.mxu0
        %v4389 = vpop.f32.mrf.mxu0
        %v4390 = vadd.f32 %v4229, %v4389
        %v4391 = vpop.f32.mrf.mxu0
        %4392 = vmatprep.mubr.bf16.mxu0 0
        %4393 = vmatmul.mubr.bf16.gmra.mxu0 %v3014
        %v4394 = vpop.f32.mrf.mxu0
        %v4395 = vadd.f32 %v4234, %v4394
        %v4396 = vpop.f32.mrf.mxu0
        %v4397 = vpop.f32.mrf.mxu0
        %v4398 = vadd.f32 %v4237, %v4397
        %v4399 = vpop.f32.mrf.mxu0
        %4400 = vmatprep.mubr.bf16.mxu0 0
        %4401 = vmatmul.mubr.bf16.gmra.mxu0 %v3023
        %v4402 = vpop.f32.mrf.mxu0
        %v4403 = vadd.f32 %v4242, %v4402
        %v4404 = vpop.f32.mrf.mxu0
        %v4405 = vpop.f32.mrf.mxu0
        %v4406 = vadd.f32 %v4245, %v4405
        %v4407 = vpop.f32.mrf.mxu0
        %4408 = vmatprep.mubr.bf16.mxu0 0
        %4409 = vmatmul.mubr.bf16.gmra.mxu0 %v3032
        %v4410 = vpop.f32.mrf.mxu0
        %v4411 = vadd.f32 %v4250, %v4410
        %v4412 = vpop.f32.mrf.mxu0
        %v4413 = vpop.f32.mrf.mxu0
        %v4414 = vadd.f32 %v4253, %v4413
        %v4415 = vpop.f32.mrf.mxu0
        %4416 = vmatprep.mubr.bf16.mxu0 0
        %4417 = vmatmul.mubr.bf16.gmra.mxu0 %v3041
        %v4418 = vpop.f32.mrf.mxu0
        %v4419 = vadd.f32 %v4258, %v4418
        %v4420 = vpop.f32.mrf.mxu0
        %v4421 = vpop.f32.mrf.mxu0
        %v4422 = vadd.f32 %v4261, %v4421
        %v4423 = vpop.f32.mrf.mxu0
        %4424 = vmatprep.mubr.bf16.mxu0 0
        %4425 = vmatmul.mubr.bf16.gmra.mxu0 %v3050
        %v4426 = vpop.f32.mrf.mxu0
        %v4427 = vadd.f32 %v4266, %v4426
        %v4428 = vpop.f32.mrf.mxu0
        %v4429 = vpop.f32.mrf.mxu0
        %v4430 = vadd.f32 %v4269, %v4429
        %v4431 = vpop.f32.mrf.mxu0
        %4432 = vmatprep.mubr.bf16.mxu0 0
        %4433 = vmatmul.mubr.bf16.gmra.mxu0 %v3059
        %v4434 = vpop.f32.mrf.mxu0
        %v4435 = vadd.f32 %v4274, %v4434
        %v4436 = vpop.f32.mrf.mxu0
        %v4437 = vpop.f32.mrf.mxu0
        %v4438 = vadd.f32 %v4277, %v4437
        %v4439 = vpop.f32.mrf.mxu0
        %4440 = vdwg.mxu0
        %v4441 = vld [vmem:[%s2] sm:$0x1]
        %v4443 = vlaneseq
        %v4444 = vshrl.u32 %v4443, 7
        %v4445 = vsub.s32 0, %v4444
        %v4446 = vrot.slane %v4441, %v4445
        %v4448 = vmul.f32 %v4315, %v4446
        %v4449 = vmul.f32 %v4318, %v4446
        %v4450 = vmul.f32 %v4323, %v4446
        %v4451 = vmul.f32 %v4326, %v4446
        %v4452 = vmul.f32 %v4331, %v4446
        %v4453 = vmul.f32 %v4334, %v4446
        %v4454 = vmul.f32 %v4339, %v4446
        %v4455 = vmul.f32 %v4342, %v4446
        %v4456 = vmul.f32 %v4347, %v4446
        %v4457 = vmul.f32 %v4350, %v4446
        %v4458 = vmul.f32 %v4355, %v4446
        %v4459 = vmul.f32 %v4358, %v4446
        %v4460 = vmul.f32 %v4363, %v4446
        %v4461 = vmul.f32 %v4366, %v4446
        %v4462 = vmul.f32 %v4371, %v4446
        %v4463 = vmul.f32 %v4374, %v4446
        %v4464 = vmul.f32 %v4379, %v4446
        %v4465 = vmul.f32 %v4382, %v4446
        %v4466 = vmul.f32 %v4387, %v4446
        %v4467 = vmul.f32 %v4390, %v4446
        %v4468 = vmul.f32 %v4395, %v4446
        %v4469 = vmul.f32 %v4398, %v4446
        %v4470 = vmul.f32 %v4403, %v4446
        %v4471 = vmul.f32 %v4406, %v4446
        %v4472 = vmul.f32 %v4411, %v4446
        %v4473 = vmul.f32 %v4414, %v4446
        %v4474 = vmul.f32 %v4419, %v4446
        %v4475 = vmul.f32 %v4422, %v4446
        %v4476 = vmul.f32 %v4427, %v4446
        %v4477 = vmul.f32 %v4430, %v4446
        %v4478 = vmul.f32 %v4435, %v4446
        %v4479 = vmul.f32 %v4438, %v4446
        %v4480 = vld [vmem:[%s3] sm:$0x1]
        %v4482 = vlaneseq
        %v4483 = vshrl.u32 %v4482, 7
        %v4484 = vsub.s32 0, %v4483
        %v4485 = vrot.slane %v4480, %v4484
        %v4487 = vadd.f32 %v4448, %v4485
        %v4488 = vadd.f32 %v4449, %v4485
        %v4489 = vadd.f32 %v4450, %v4485
        %v4490 = vadd.f32 %v4451, %v4485
        %v4491 = vadd.f32 %v4452, %v4485
        %v4492 = vadd.f32 %v4453, %v4485
        %v4493 = vadd.f32 %v4454, %v4485
        %v4494 = vadd.f32 %v4455, %v4485
        %v4495 = vadd.f32 %v4456, %v4485
        %v4496 = vadd.f32 %v4457, %v4485
        %v4497 = vadd.f32 %v4458, %v4485
        %v4498 = vadd.f32 %v4459, %v4485
        %v4499 = vadd.f32 %v4460, %v4485
        %v4500 = vadd.f32 %v4461, %v4485
        %v4501 = vadd.f32 %v4462, %v4485
        %v4502 = vadd.f32 %v4463, %v4485
        %v4503 = vadd.f32 %v4464, %v4485
        %v4504 = vadd.f32 %v4465, %v4485
        %v4505 = vadd.f32 %v4466, %v4485
        %v4506 = vadd.f32 %v4467, %v4485
        %v4507 = vadd.f32 %v4468, %v4485
        %v4508 = vadd.f32 %v4469, %v4485
        %v4509 = vadd.f32 %v4470, %v4485
        %v4510 = vadd.f32 %v4471, %v4485
        %v4511 = vadd.f32 %v4472, %v4485
        %v4512 = vadd.f32 %v4473, %v4485
        %v4513 = vadd.f32 %v4474, %v4485
        %v4514 = vadd.f32 %v4475, %v4485
        %v4515 = vadd.f32 %v4476, %v4485
        %v4516 = vadd.f32 %v4477, %v4485
        %v4517 = vadd.f32 %v4478, %v4485
        %v4518 = vadd.f32 %v4479, %v4485
        %v4519 = vmax.f32 %v4487, 0.0
        %v4520 = vmax.f32 %v4488, 0.0
        %v4521 = vmax.f32 %v4489, 0.0
        %v4522 = vmax.f32 %v4490, 0.0
        %v4523 = vmax.f32 %v4491, 0.0
        %v4524 = vmax.f32 %v4492, 0.0
        %v4525 = vmax.f32 %v4493, 0.0
        %v4526 = vmax.f32 %v4494, 0.0
        %v4527 = vmax.f32 %v4495, 0.0
        %v4528 = vmax.f32 %v4496, 0.0
        %v4529 = vmax.f32 %v4497, 0.0
        %v4530 = vmax.f32 %v4498, 0.0
        %v4531 = vmax.f32 %v4499, 0.0
        %v4532 = vmax.f32 %v4500, 0.0
        %v4533 = vmax.f32 %v4501, 0.0
        %v4534 = vmax.f32 %v4502, 0.0
        %v4535 = vmax.f32 %v4503, 0.0
        %v4536 = vmax.f32 %v4504, 0.0
        %v4537 = vmax.f32 %v4505, 0.0
        %v4538 = vmax.f32 %v4506, 0.0
        %v4539 = vmax.f32 %v4507, 0.0
        %v4540 = vmax.f32 %v4508, 0.0
        %v4541 = vmax.f32 %v4509, 0.0
        %v4542 = vmax.f32 %v4510, 0.0
        %v4543 = vmax.f32 %v4511, 0.0
        %v4544 = vmax.f32 %v4512, 0.0
        %v4545 = vmax.f32 %v4513, 0.0
        %v4546 = vmax.f32 %v4514, 0.0
        %v4547 = vmax.f32 %v4515, 0.0
        %v4548 = vmax.f32 %v4516, 0.0
        %v4549 = vmax.f32 %v4517, 0.0
        %v4550 = vmax.f32 %v4518, 0.0
        %4551 = vst [vmem:[%s402 + $0x1] sm:$0xff] %v4519
        %4552 = vst [vmem:[%s402 + $0x9] sm:$0xff] %v4520
        %4553 = vst [vmem:[%s402 + $0x19] sm:$0xff] %v4521
        %4554 = vst [vmem:[%s402 + $0x21] sm:$0xff] %v4522
        %4555 = vst [vmem:[%s402 + $0x31] sm:$0xff] %v4523
        %4556 = vst [vmem:[%s402 + $0x39] sm:$0xff] %v4524
        %4557 = vst [vmem:[%s402 + $0x49] sm:$0xff] %v4525
        %4558 = vst [vmem:[%s402 + $0x51] sm:$0xff] %v4526
        %4559 = vst [vmem:[%s402 + $0x61] sm:$0xff] %v4527
        %4560 = vst [vmem:[%s402 + $0x69] sm:$0xff] %v4528
        %4561 = vst [vmem:[%s402 + $0x79] sm:$0xff] %v4529
        %4562 = vst [vmem:[%s402 + $0x81] sm:$0xff] %v4530
        %4563 = vst [vmem:[%s402 + $0x91] sm:$0xff] %v4531
        %4564 = vst [vmem:[%s402 + $0x99] sm:$0xff] %v4532
        %4565 = vst [vmem:[%s402 + $0xa9] sm:$0xff] %v4533
        %4566 = vst [vmem:[%s402 + $0xb1] sm:$0xff] %v4534
        %4567 = vst [vmem:[%s402 + $0xc1] sm:$0xff] %v4535
        %4568 = vst [vmem:[%s402 + $0xc9] sm:$0xff] %v4536
        %4569 = vst [vmem:[%s402 + $0xd9] sm:$0xff] %v4537
        %4570 = vst [vmem:[%s402 + $0xe1] sm:$0xff] %v4538
        %4571 = vst [vmem:[%s402 + $0xf1] sm:$0xff] %v4539
        %4572 = vst [vmem:[%s402 + $0xf9] sm:$0xff] %v4540
        %4573 = vst [vmem:[%s402 + $0x109] sm:$0xff] %v4541
        %4574 = vst [vmem:[%s402 + $0x111] sm:$0xff] %v4542
        %4575 = vst [vmem:[%s402 + $0x121] sm:$0xff] %v4543
        %4576 = vst [vmem:[%s402 + $0x129] sm:$0xff] %v4544
        %4577 = vst [vmem:[%s402 + $0x139] sm:$0xff] %v4545
        %4578 = vst [vmem:[%s402 + $0x141] sm:$0xff] %v4546
        %4579 = vst [vmem:[%s402 + $0x151] sm:$0xff] %v4547
        %4580 = vst [vmem:[%s402 + $0x159] sm:$0xff] %v4548
        %4581 = vst [vmem:[%s402 + $0x169] sm:$0xff] %v4549
        %4582 = vst [vmem:[%s402 + $0x171] sm:$0xff] %v4550
        %v4583 = vld [vmem:[#allocation2] sm:$0xff]
        %v4584 = vld [vmem:[#allocation2 + $0x8] sm:$0xff]
        %v4585 = vld [vmem:[#allocation2 + $0x18] sm:$0xff]
        %v4586 = vld [vmem:[#allocation2 + $0x20] sm:$0xff]
        %v4587 = vld [vmem:[#allocation2 + $0x30] sm:$0xff]
        %v4588 = vld [vmem:[#allocation2 + $0x38] sm:$0xff]
        %v4589 = vld [vmem:[#allocation2 + $0x48] sm:$0xff]
        %v4590 = vld [vmem:[#allocation2 + $0x50] sm:$0xff]
        %v4591 = vld [vmem:[#allocation2 + $0x60] sm:$0xff]
        %v4592 = vld [vmem:[#allocation2 + $0x68] sm:$0xff]
        %v4593 = vld [vmem:[#allocation2 + $0x78] sm:$0xff]
        %v4594 = vld [vmem:[#allocation2 + $0x80] sm:$0xff]
        %v4595 = vld [vmem:[#allocation2 + $0x90] sm:$0xff]
        %v4596 = vld [vmem:[#allocation2 + $0x98] sm:$0xff]
        %v4597 = vld [vmem:[#allocation2 + $0xa8] sm:$0xff]
        %v4598 = vld [vmem:[#allocation2 + $0xb0] sm:$0xff]
        %v4599 = vld [vmem:[#allocation2 + $0xc0] sm:$0xff]
        %v4600 = vld [vmem:[#allocation2 + $0xc8] sm:$0xff]
        %v4601 = vld [vmem:[#allocation2 + $0xd8] sm:$0xff]
        %v4602 = vld [vmem:[#allocation2 + $0xe0] sm:$0xff]
        %v4603 = vld [vmem:[#allocation2 + $0xf0] sm:$0xff]
        %v4604 = vld [vmem:[#allocation2 + $0xf8] sm:$0xff]
        %v4605 = vld [vmem:[#allocation2 + $0x108] sm:$0xff]
        %v4606 = vld [vmem:[#allocation2 + $0x110] sm:$0xff]
        %v4607 = vld [vmem:[#allocation2 + $0x120] sm:$0xff]
        %v4608 = vld [vmem:[#allocation2 + $0x128] sm:$0xff]
        %v4609 = vld [vmem:[#allocation2 + $0x138] sm:$0xff]
        %v4610 = vld [vmem:[#allocation2 + $0x140] sm:$0xff]
        %v4611 = vld [vmem:[#allocation2 + $0x150] sm:$0xff]
        %v4612 = vld [vmem:[#allocation2 + $0x158] sm:$0xff]
        %v4613 = vld [vmem:[#allocation2 + $0x168] sm:$0xff]
        %v4614 = vld [vmem:[#allocation2 + $0x170] sm:$0xff]
        %v4615 = vpack.c.bf16 %v4584, %v4583
        %v4616 = vpack.c.bf16 %v4586, %v4585
        %v4617 = vpack.c.bf16 %v4588, %v4587
        %v4618 = vpack.c.bf16 %v4590, %v4589
        %v4619 = vpack.c.bf16 %v4592, %v4591
        %v4620 = vpack.c.bf16 %v4594, %v4593
        %v4621 = vpack.c.bf16 %v4596, %v4595
        %v4622 = vpack.c.bf16 %v4598, %v4597
        %v4623 = vpack.c.bf16 %v4600, %v4599
        %v4624 = vpack.c.bf16 %v4602, %v4601
        %v4625 = vpack.c.bf16 %v4604, %v4603
        %v4626 = vpack.c.bf16 %v4606, %v4605
        %v4627 = vpack.c.bf16 %v4608, %v4607
        %v4628 = vpack.c.bf16 %v4610, %v4609
        %v4629 = vpack.c.bf16 %v4612, %v4611
        %v4630 = vpack.c.bf16 %v4614, %v4613
        %v4647 = vunpack.c.l.b16 %v4615
        %v4648 = vunpack.c.h.b16 %v4615
        %v4649 = vunpack.c.l.b16 %v4616
        %v4650 = vunpack.c.h.b16 %v4616
        %v4651 = vunpack.c.l.b16 %v4617
        %v4652 = vunpack.c.h.b16 %v4617
        %v4653 = vunpack.c.l.b16 %v4618
        %v4654 = vunpack.c.h.b16 %v4618
        %v4655 = vunpack.c.l.b16 %v4619
        %v4656 = vunpack.c.h.b16 %v4619
        %v4657 = vunpack.c.l.b16 %v4620
        %v4658 = vunpack.c.h.b16 %v4620
        %v4659 = vunpack.c.l.b16 %v4621
        %v4660 = vunpack.c.h.b16 %v4621
        %v4661 = vunpack.c.l.b16 %v4622
        %v4662 = vunpack.c.h.b16 %v4622
        %v4663 = vunpack.c.l.b16 %v4623
        %v4664 = vunpack.c.h.b16 %v4623
        %v4665 = vunpack.c.l.b16 %v4624
        %v4666 = vunpack.c.h.b16 %v4624
        %v4667 = vunpack.c.l.b16 %v4625
        %v4668 = vunpack.c.h.b16 %v4625
        %v4669 = vunpack.c.l.b16 %v4626
        %v4670 = vunpack.c.h.b16 %v4626
        %v4671 = vunpack.c.l.b16 %v4627
        %v4672 = vunpack.c.h.b16 %v4627
        %v4673 = vunpack.c.l.b16 %v4628
        %v4674 = vunpack.c.h.b16 %v4628
        %v4675 = vunpack.c.l.b16 %v4629
        %v4676 = vunpack.c.h.b16 %v4629
        %v4677 = vunpack.c.l.b16 %v4630
        %v4678 = vunpack.c.h.b16 %v4630
        %v4679 = vpack.c.b16 %v4647, %v4647
        %v4680 = vpack.c.b16 %v4648, %v4648
        %v4681 = vpack.c.b16 %v4649, %v4649
        %v4682 = vpack.c.b16 %v4650, %v4650
        %v4683 = vpack.c.b16 %v4651, %v4651
        %v4684 = vpack.c.b16 %v4652, %v4652
        %v4685 = vpack.c.b16 %v4653, %v4653
        %v4686 = vpack.c.b16 %v4654, %v4654
        %v4687 = vpack.c.b16 %v4655, %v4655
        %v4688 = vpack.c.b16 %v4656, %v4656
        %v4689 = vpack.c.b16 %v4657, %v4657
        %v4690 = vpack.c.b16 %v4658, %v4658
        %v4691 = vpack.c.b16 %v4659, %v4659
        %v4692 = vpack.c.b16 %v4660, %v4660
        %v4693 = vpack.c.b16 %v4661, %v4661
        %v4694 = vpack.c.b16 %v4662, %v4662
        %v4695 = vpack.c.b16 %v4663, %v4663
        %v4696 = vpack.c.b16 %v4664, %v4664
        %v4697 = vpack.c.b16 %v4665, %v4665
        %v4698 = vpack.c.b16 %v4666, %v4666
        %v4699 = vpack.c.b16 %v4667, %v4667
        %v4700 = vpack.c.b16 %v4668, %v4668
        %v4701 = vpack.c.b16 %v4669, %v4669
        %v4702 = vpack.c.b16 %v4670, %v4670
        %v4703 = vpack.c.b16 %v4671, %v4671
        %v4704 = vpack.c.b16 %v4672, %v4672
        %v4705 = vpack.c.b16 %v4673, %v4673
        %v4706 = vpack.c.b16 %v4674, %v4674
        %v4707 = vpack.c.b16 %v4675, %v4675
        %v4708 = vpack.c.b16 %v4676, %v4676
        %v4709 = vpack.c.b16 %v4677, %v4677
        %v4710 = vpack.c.b16 %v4678, %v4678
        %4743 = vst [vmem:[#allocation3] sm:$0xf] %v4679
        %4744 = vst [vmem:[#allocation3 + $0x24] sm:$0xf] %v4680
        %4745 = vst [vmem:[#allocation3 + $0x48] sm:$0xf] %v4681
        %4746 = vst [vmem:[#allocation3 + $0x6c] sm:$0xf] %v4682
        %4747 = vst [vmem:[#allocation3 + $0x90] sm:$0xf] %v4683
        %4748 = vst [vmem:[#allocation3 + $0xb4] sm:$0xf] %v4684
        %4749 = vst [vmem:[#allocation3 + $0xd8] sm:$0xf] %v4685
        %4750 = vst [vmem:[#allocation3 + $0xfc] sm:$0xf] %v4686
        %4751 = vst [vmem:[#allocation3 + $0x120] sm:$0xf] %v4687
        %4752 = vst [vmem:[#allocation3 + $0x144] sm:$0xf] %v4688
        %4753 = vst [vmem:[#allocation3 + $0x168] sm:$0xf] %v4689
        %4754 = vst [vmem:[#allocation3 + $0x18c] sm:$0xf] %v4690
        %4755 = vst [vmem:[#allocation3 + $0x1b0] sm:$0xf] %v4691
        %4756 = vst [vmem:[#allocation3 + $0x1d4] sm:$0xf] %v4692
        %4757 = vst [vmem:[#allocation3 + $0x1f8] sm:$0xf] %v4693
        %4758 = vst [vmem:[#allocation3 + $0x21c] sm:$0xf] %v4694
        %4759 = vst [vmem:[#allocation3 + $0x240] sm:$0xf] %v4695
        %4760 = vst [vmem:[#allocation3 + $0x264] sm:$0xf] %v4696
        %4761 = vst [vmem:[#allocation3 + $0x288] sm:$0xf] %v4697
        %4762 = vst [vmem:[#allocation3 + $0x2ac] sm:$0xf] %v4698
        %4763 = vst [vmem:[#allocation3 + $0x2d0] sm:$0xf] %v4699
        %4764 = vst [vmem:[#allocation3 + $0x2f4] sm:$0xf] %v4700
        %4765 = vst [vmem:[#allocation3 + $0x318] sm:$0xf] %v4701
        %4766 = vst [vmem:[#allocation3 + $0x33c] sm:$0xf] %v4702
        %4767 = vst [vmem:[#allocation3 + $0x360] sm:$0xf] %v4703
        %4768 = vst [vmem:[#allocation3 + $0x384] sm:$0xf] %v4704
        %4769 = vst [vmem:[#allocation3 + $0x3a8] sm:$0xf] %v4705
        %4770 = vst [vmem:[#allocation3 + $0x3cc] sm:$0xf] %v4706
        %4771 = vst [vmem:[#allocation3 + $0x3f0] sm:$0xf] %v4707
        %4772 = vst [vmem:[#allocation3 + $0x414] sm:$0xf] %v4708
        %4773 = vst [vmem:[#allocation3 + $0x438] sm:$0xf] %v4709
        %4774 = vst [vmem:[#allocation3 + $0x45c] sm:$0xf] %v4710
        %v4775 = vld [vmem:[#allocation2 + $0x1] sm:$0xff]
        %v4776 = vld [vmem:[#allocation2 + $0x9] sm:$0xff]
        %v4777 = vld [vmem:[#allocation2 + $0x19] sm:$0xff]
        %v4778 = vld [vmem:[#allocation2 + $0x21] sm:$0xff]
        %v4779 = vld [vmem:[#allocation2 + $0x31] sm:$0xff]
        %v4780 = vld [vmem:[#allocation2 + $0x39] sm:$0xff]
        %v4781 = vld [vmem:[#allocation2 + $0x49] sm:$0xff]
        %v4782 = vld [vmem:[#allocation2 + $0x51] sm:$0xff]
        %v4783 = vld [vmem:[#allocation2 + $0x61] sm:$0xff]
        %v4784 = vld [vmem:[#allocation2 + $0x69] sm:$0xff]
        %v4785 = vld [vmem:[#allocation2 + $0x79] sm:$0xff]
        %v4786 = vld [vmem:[#allocation2 + $0x81] sm:$0xff]
        %v4787 = vld [vmem:[#allocation2 + $0x91] sm:$0xff]
        %v4788 = vld [vmem:[#allocation2 + $0x99] sm:$0xff]
        %v4789 = vld [vmem:[#allocation2 + $0xa9] sm:$0xff]
        %v4790 = vld [vmem:[#allocation2 + $0xb1] sm:$0xff]
        %v4791 = vld [vmem:[#allocation2 + $0xc1] sm:$0xff]
        %v4792 = vld [vmem:[#allocation2 + $0xc9] sm:$0xff]
        %v4793 = vld [vmem:[#allocation2 + $0xd9] sm:$0xff]
        %v4794 = vld [vmem:[#allocation2 + $0xe1] sm:$0xff]
        %v4795 = vld [vmem:[#allocation2 + $0xf1] sm:$0xff]
        %v4796 = vld [vmem:[#allocation2 + $0xf9] sm:$0xff]
        %v4797 = vld [vmem:[#allocation2 + $0x109] sm:$0xff]
        %v4798 = vld [vmem:[#allocation2 + $0x111] sm:$0xff]
        %v4799 = vld [vmem:[#allocation2 + $0x121] sm:$0xff]
        %v4800 = vld [vmem:[#allocation2 + $0x129] sm:$0xff]
        %v4801 = vld [vmem:[#allocation2 + $0x139] sm:$0xff]
        %v4802 = vld [vmem:[#allocation2 + $0x141] sm:$0xff]
        %v4803 = vld [vmem:[#allocation2 + $0x151] sm:$0xff]
        %v4804 = vld [vmem:[#allocation2 + $0x159] sm:$0xff]
        %v4805 = vld [vmem:[#allocation2 + $0x169] sm:$0xff]
        %v4806 = vld [vmem:[#allocation2 + $0x171] sm:$0xff]
        %v4807 = vpack.c.bf16 %v4776, %v4775
        %v4808 = vpack.c.bf16 %v4778, %v4777
        %v4809 = vpack.c.bf16 %v4780, %v4779
        %v4810 = vpack.c.bf16 %v4782, %v4781
        %v4811 = vpack.c.bf16 %v4784, %v4783
        %v4812 = vpack.c.bf16 %v4786, %v4785
        %v4813 = vpack.c.bf16 %v4788, %v4787
        %v4814 = vpack.c.bf16 %v4790, %v4789
        %v4815 = vpack.c.bf16 %v4792, %v4791
        %v4816 = vpack.c.bf16 %v4794, %v4793
        %v4817 = vpack.c.bf16 %v4796, %v4795
        %v4818 = vpack.c.bf16 %v4798, %v4797
        %v4819 = vpack.c.bf16 %v4800, %v4799
        %v4820 = vpack.c.bf16 %v4802, %v4801
        %v4821 = vpack.c.bf16 %v4804, %v4803
        %v4822 = vpack.c.bf16 %v4806, %v4805
        %v4839 = vunpack.c.l.b16 %v4807
        %v4840 = vunpack.c.h.b16 %v4807
        %v4841 = vunpack.c.l.b16 %v4808
        %v4842 = vunpack.c.h.b16 %v4808
        %v4843 = vunpack.c.l.b16 %v4809
        %v4844 = vunpack.c.h.b16 %v4809
        %v4845 = vunpack.c.l.b16 %v4810
        %v4846 = vunpack.c.h.b16 %v4810
        %v4847 = vunpack.c.l.b16 %v4811
        %v4848 = vunpack.c.h.b16 %v4811
        %v4849 = vunpack.c.l.b16 %v4812
        %v4850 = vunpack.c.h.b16 %v4812
        %v4851 = vunpack.c.l.b16 %v4813
        %v4852 = vunpack.c.h.b16 %v4813
        %v4853 = vunpack.c.l.b16 %v4814
        %v4854 = vunpack.c.h.b16 %v4814
        %v4855 = vunpack.c.l.b16 %v4815
        %v4856 = vunpack.c.h.b16 %v4815
        %v4857 = vunpack.c.l.b16 %v4816
        %v4858 = vunpack.c.h.b16 %v4816
        %v4859 = vunpack.c.l.b16 %v4817
        %v4860 = vunpack.c.h.b16 %v4817
        %v4861 = vunpack.c.l.b16 %v4818
        %v4862 = vunpack.c.h.b16 %v4818
        %v4863 = vunpack.c.l.b16 %v4819
        %v4864 = vunpack.c.h.b16 %v4819
        %v4865 = vunpack.c.l.b16 %v4820
        %v4866 = vunpack.c.h.b16 %v4820
        %v4867 = vunpack.c.l.b16 %v4821
        %v4868 = vunpack.c.h.b16 %v4821
        %v4869 = vunpack.c.l.b16 %v4822
        %v4870 = vunpack.c.h.b16 %v4822
        %v4871 = vpack.c.b16 %v4839, %v4839
        %v4872 = vpack.c.b16 %v4840, %v4840
        %v4873 = vpack.c.b16 %v4841, %v4841
        %v4874 = vpack.c.b16 %v4842, %v4842
        %v4875 = vpack.c.b16 %v4843, %v4843
        %v4876 = vpack.c.b16 %v4844, %v4844
        %v4877 = vpack.c.b16 %v4845, %v4845
        %v4878 = vpack.c.b16 %v4846, %v4846
        %v4879 = vpack.c.b16 %v4847, %v4847
        %v4880 = vpack.c.b16 %v4848, %v4848
        %v4881 = vpack.c.b16 %v4849, %v4849
        %v4882 = vpack.c.b16 %v4850, %v4850
        %v4883 = vpack.c.b16 %v4851, %v4851
        %v4884 = vpack.c.b16 %v4852, %v4852
        %v4885 = vpack.c.b16 %v4853, %v4853
        %v4886 = vpack.c.b16 %v4854, %v4854
        %v4887 = vpack.c.b16 %v4855, %v4855
        %v4888 = vpack.c.b16 %v4856, %v4856
        %v4889 = vpack.c.b16 %v4857, %v4857
        %v4890 = vpack.c.b16 %v4858, %v4858
        %v4891 = vpack.c.b16 %v4859, %v4859
        %v4892 = vpack.c.b16 %v4860, %v4860
        %v4893 = vpack.c.b16 %v4861, %v4861
        %v4894 = vpack.c.b16 %v4862, %v4862
        %v4895 = vpack.c.b16 %v4863, %v4863
        %v4896 = vpack.c.b16 %v4864, %v4864
        %v4897 = vpack.c.b16 %v4865, %v4865
        %v4898 = vpack.c.b16 %v4866, %v4866
        %v4899 = vpack.c.b16 %v4867, %v4867
        %v4900 = vpack.c.b16 %v4868, %v4868
        %v4901 = vpack.c.b16 %v4869, %v4869
        %v4902 = vpack.c.b16 %v4870, %v4870
        %4935 = vst [vmem:[#allocation3 + $0x4] sm:$0xf] %v4871
        %4936 = vst [vmem:[#allocation3 + $0x28] sm:$0xf] %v4872
        %4937 = vst [vmem:[#allocation3 + $0x4c] sm:$0xf] %v4873
        %4938 = vst [vmem:[#allocation3 + $0x70] sm:$0xf] %v4874
        %4939 = vst [vmem:[#allocation3 + $0x94] sm:$0xf] %v4875
        %4940 = vst [vmem:[#allocation3 + $0xb8] sm:$0xf] %v4876
        %4941 = vst [vmem:[#allocation3 + $0xdc] sm:$0xf] %v4877
        %4942 = vst [vmem:[#allocation3 + $0x100] sm:$0xf] %v4878
        %4943 = vst [vmem:[#allocation3 + $0x124] sm:$0xf] %v4879
        %4944 = vst [vmem:[#allocation3 + $0x148] sm:$0xf] %v4880
        %4945 = vst [vmem:[#allocation3 + $0x16c] sm:$0xf] %v4881
        %4946 = vst [vmem:[#allocation3 + $0x190] sm:$0xf] %v4882
        %4947 = vst [vmem:[#allocation3 + $0x1b4] sm:$0xf] %v4883
        %4948 = vst [vmem:[#allocation3 + $0x1d8] sm:$0xf] %v4884
        %4949 = vst [vmem:[#allocation3 + $0x1fc] sm:$0xf] %v4885
        %4950 = vst [vmem:[#allocation3 + $0x220] sm:$0xf] %v4886
        %4951 = vst [vmem:[#allocation3 + $0x244] sm:$0xf] %v4887
        %4952 = vst [vmem:[#allocation3 + $0x268] sm:$0xf] %v4888
        %4953 = vst [vmem:[#allocation3 + $0x28c] sm:$0xf] %v4889
        %4954 = vst [vmem:[#allocation3 + $0x2b0] sm:$0xf] %v4890
        %4955 = vst [vmem:[#allocation3 + $0x2d4] sm:$0xf] %v4891
        %4956 = vst [vmem:[#allocation3 + $0x2f8] sm:$0xf] %v4892
        %4957 = vst [vmem:[#allocation3 + $0x31c] sm:$0xf] %v4893
        %4958 = vst [vmem:[#allocation3 + $0x340] sm:$0xf] %v4894
        %4959 = vst [vmem:[#allocation3 + $0x364] sm:$0xf] %v4895
        %4960 = vst [vmem:[#allocation3 + $0x388] sm:$0xf] %v4896
        %4961 = vst [vmem:[#allocation3 + $0x3ac] sm:$0xf] %v4897
        %4962 = vst [vmem:[#allocation3 + $0x3d0] sm:$0xf] %v4898
        %4963 = vst [vmem:[#allocation3 + $0x3f4] sm:$0xf] %v4899
        %4964 = vst [vmem:[#allocation3 + $0x418] sm:$0xf] %v4900
        %4965 = vst [vmem:[#allocation3 + $0x43c] sm:$0xf] %v4901
        %4966 = vst [vmem:[#allocation3 + $0x460] sm:$0xf] %v4902
        %v4967 = vld [vmem:[#allocation2 + $0x2] sm:$0xff]
        %v4968 = vld [vmem:[#allocation2 + $0xa] sm:$0xff]
        %v4969 = vld [vmem:[#allocation2 + $0x1a] sm:$0xff]
        %v4970 = vld [vmem:[#allocation2 + $0x22] sm:$0xff]
        %v4971 = vld [vmem:[#allocation2 + $0x32] sm:$0xff]
        %v4972 = vld [vmem:[#allocation2 + $0x3a] sm:$0xff]
        %v4973 = vld [vmem:[#allocation2 + $0x4a] sm:$0xff]
        %v4974 = vld [vmem:[#allocation2 + $0x52] sm:$0xff]
        %v4975 = vld [vmem:[#allocation2 + $0x62] sm:$0xff]
        %v4976 = vld [vmem:[#allocation2 + $0x6a] sm:$0xff]
        %v4977 = vld [vmem:[#allocation2 + $0x7a] sm:$0xff]
        %v4978 = vld [vmem:[#allocation2 + $0x82] sm:$0xff]
        %v4979 = vld [vmem:[#allocation2 + $0x92] sm:$0xff]
        %v4980 = vld [vmem:[#allocation2 + $0x9a] sm:$0xff]
        %v4981 = vld [vmem:[#allocation2 + $0xaa] sm:$0xff]
        %v4982 = vld [vmem:[#allocation2 + $0xb2] sm:$0xff]
        %v4983 = vld [vmem:[#allocation2 + $0xc2] sm:$0xff]
        %v4984 = vld [vmem:[#allocation2 + $0xca] sm:$0xff]
        %v4985 = vld [vmem:[#allocation2 + $0xda] sm:$0xff]
        %v4986 = vld [vmem:[#allocation2 + $0xe2] sm:$0xff]
        %v4987 = vld [vmem:[#allocation2 + $0xf2] sm:$0xff]
        %v4988 = vld [vmem:[#allocation2 + $0xfa] sm:$0xff]
        %v4989 = vld [vmem:[#allocation2 + $0x10a] sm:$0xff]
        %v4990 = vld [vmem:[#allocation2 + $0x112] sm:$0xff]
        %v4991 = vld [vmem:[#allocation2 + $0x122] sm:$0xff]
        %v4992 = vld [vmem:[#allocation2 + $0x12a] sm:$0xff]
        %v4993 = vld [vmem:[#allocation2 + $0x13a] sm:$0xff]
        %v4994 = vld [vmem:[#allocation2 + $0x142] sm:$0xff]
        %v4995 = vld [vmem:[#allocation2 + $0x152] sm:$0xff]
        %v4996 = vld [vmem:[#allocation2 + $0x15a] sm:$0xff]
        %v4997 = vld [vmem:[#allocation2 + $0x16a] sm:$0xff]
        %v4998 = vld [vmem:[#allocation2 + $0x172] sm:$0xff]
        %v4999 = vpack.c.bf16 %v4968, %v4967
        %v5000 = vpack.c.bf16 %v4970, %v4969
        %v5001 = vpack.c.bf16 %v4972, %v4971
        %v5002 = vpack.c.bf16 %v4974, %v4973
        %v5003 = vpack.c.bf16 %v4976, %v4975
        %v5004 = vpack.c.bf16 %v4978, %v4977
        %v5005 = vpack.c.bf16 %v4980, %v4979
        %v5006 = vpack.c.bf16 %v4982, %v4981
        %v5007 = vpack.c.bf16 %v4984, %v4983
        %v5008 = vpack.c.bf16 %v4986, %v4985
        %v5009 = vpack.c.bf16 %v4988, %v4987
        %v5010 = vpack.c.bf16 %v4990, %v4989
        %v5011 = vpack.c.bf16 %v4992, %v4991
        %v5012 = vpack.c.bf16 %v4994, %v4993
        %v5013 = vpack.c.bf16 %v4996, %v4995
        %v5014 = vpack.c.bf16 %v4998, %v4997
        %v5031 = vunpack.c.l.b16 %v4999
        %v5032 = vunpack.c.h.b16 %v4999
        %v5033 = vunpack.c.l.b16 %v5000
        %v5034 = vunpack.c.h.b16 %v5000
        %v5035 = vunpack.c.l.b16 %v5001
        %v5036 = vunpack.c.h.b16 %v5001
        %v5037 = vunpack.c.l.b16 %v5002
        %v5038 = vunpack.c.h.b16 %v5002
        %v5039 = vunpack.c.l.b16 %v5003
        %v5040 = vunpack.c.h.b16 %v5003
        %v5041 = vunpack.c.l.b16 %v5004
        %v5042 = vunpack.c.h.b16 %v5004
        %v5043 = vunpack.c.l.b16 %v5005
        %v5044 = vunpack.c.h.b16 %v5005
        %v5045 = vunpack.c.l.b16 %v5006
        %v5046 = vunpack.c.h.b16 %v5006
        %v5047 = vunpack.c.l.b16 %v5007
        %v5048 = vunpack.c.h.b16 %v5007
        %v5049 = vunpack.c.l.b16 %v5008
        %v5050 = vunpack.c.h.b16 %v5008
        %v5051 = vunpack.c.l.b16 %v5009
        %v5052 = vunpack.c.h.b16 %v5009
        %v5053 = vunpack.c.l.b16 %v5010
        %v5054 = vunpack.c.h.b16 %v5010
        %v5055 = vunpack.c.l.b16 %v5011
        %v5056 = vunpack.c.h.b16 %v5011
        %v5057 = vunpack.c.l.b16 %v5012
        %v5058 = vunpack.c.h.b16 %v5012
        %v5059 = vunpack.c.l.b16 %v5013
        %v5060 = vunpack.c.h.b16 %v5013
        %v5061 = vunpack.c.l.b16 %v5014
        %v5062 = vunpack.c.h.b16 %v5014
        %v5063 = vpack.c.b16 %v5031, %v5031
        %v5064 = vpack.c.b16 %v5032, %v5032
        %v5065 = vpack.c.b16 %v5033, %v5033
        %v5066 = vpack.c.b16 %v5034, %v5034
        %v5067 = vpack.c.b16 %v5035, %v5035
        %v5068 = vpack.c.b16 %v5036, %v5036
        %v5069 = vpack.c.b16 %v5037, %v5037
        %v5070 = vpack.c.b16 %v5038, %v5038
        %v5071 = vpack.c.b16 %v5039, %v5039
        %v5072 = vpack.c.b16 %v5040, %v5040
        %v5073 = vpack.c.b16 %v5041, %v5041
        %v5074 = vpack.c.b16 %v5042, %v5042
        %v5075 = vpack.c.b16 %v5043, %v5043
        %v5076 = vpack.c.b16 %v5044, %v5044
        %v5077 = vpack.c.b16 %v5045, %v5045
        %v5078 = vpack.c.b16 %v5046, %v5046
        %v5079 = vpack.c.b16 %v5047, %v5047
        %v5080 = vpack.c.b16 %v5048, %v5048
        %v5081 = vpack.c.b16 %v5049, %v5049
        %v5082 = vpack.c.b16 %v5050, %v5050
        %v5083 = vpack.c.b16 %v5051, %v5051
        %v5084 = vpack.c.b16 %v5052, %v5052
        %v5085 = vpack.c.b16 %v5053, %v5053
        %v5086 = vpack.c.b16 %v5054, %v5054
        %v5087 = vpack.c.b16 %v5055, %v5055
        %v5088 = vpack.c.b16 %v5056, %v5056
        %v5089 = vpack.c.b16 %v5057, %v5057
        %v5090 = vpack.c.b16 %v5058, %v5058
        %v5091 = vpack.c.b16 %v5059, %v5059
        %v5092 = vpack.c.b16 %v5060, %v5060
        %v5093 = vpack.c.b16 %v5061, %v5061
        %v5094 = vpack.c.b16 %v5062, %v5062
        %5127 = vst [vmem:[#allocation3 + $0x8] sm:$0xf] %v5063
        %5128 = vst [vmem:[#allocation3 + $0x2c] sm:$0xf] %v5064
        %5129 = vst [vmem:[#allocation3 + $0x50] sm:$0xf] %v5065
        %5130 = vst [vmem:[#allocation3 + $0x74] sm:$0xf] %v5066
        %5131 = vst [vmem:[#allocation3 + $0x98] sm:$0xf] %v5067
        %5132 = vst [vmem:[#allocation3 + $0xbc] sm:$0xf] %v5068
        %5133 = vst [vmem:[#allocation3 + $0xe0] sm:$0xf] %v5069
        %5134 = vst [vmem:[#allocation3 + $0x104] sm:$0xf] %v5070
        %5135 = vst [vmem:[#allocation3 + $0x128] sm:$0xf] %v5071
        %5136 = vst [vmem:[#allocation3 + $0x14c] sm:$0xf] %v5072
        %5137 = vst [vmem:[#allocation3 + $0x170] sm:$0xf] %v5073
        %5138 = vst [vmem:[#allocation3 + $0x194] sm:$0xf] %v5074
        %5139 = vst [vmem:[#allocation3 + $0x1b8] sm:$0xf] %v5075
        %5140 = vst [vmem:[#allocation3 + $0x1dc] sm:$0xf] %v5076
        %5141 = vst [vmem:[#allocation3 + $0x200] sm:$0xf] %v5077
        %5142 = vst [vmem:[#allocation3 + $0x224] sm:$0xf] %v5078
        %5143 = vst [vmem:[#allocation3 + $0x248] sm:$0xf] %v5079
        %5144 = vst [vmem:[#allocation3 + $0x26c] sm:$0xf] %v5080
        %5145 = vst [vmem:[#allocation3 + $0x290] sm:$0xf] %v5081
        %5146 = vst [vmem:[#allocation3 + $0x2b4] sm:$0xf] %v5082
        %5147 = vst [vmem:[#allocation3 + $0x2d8] sm:$0xf] %v5083
        %5148 = vst [vmem:[#allocation3 + $0x2fc] sm:$0xf] %v5084
        %5149 = vst [vmem:[#allocation3 + $0x320] sm:$0xf] %v5085
        %5150 = vst [vmem:[#allocation3 + $0x344] sm:$0xf] %v5086
        %5151 = vst [vmem:[#allocation3 + $0x368] sm:$0xf] %v5087
        %5152 = vst [vmem:[#allocation3 + $0x38c] sm:$0xf] %v5088
        %5153 = vst [vmem:[#allocation3 + $0x3b0] sm:$0xf] %v5089
        %5154 = vst [vmem:[#allocation3 + $0x3d4] sm:$0xf] %v5090
        %5155 = vst [vmem:[#allocation3 + $0x3f8] sm:$0xf] %v5091
        %5156 = vst [vmem:[#allocation3 + $0x41c] sm:$0xf] %v5092
        %5157 = vst [vmem:[#allocation3 + $0x440] sm:$0xf] %v5093
        %5158 = vst [vmem:[#allocation3 + $0x464] sm:$0xf] %v5094
        %v5159 = vld [vmem:[%s402] sm:$0xff]
        %v5160 = vld [vmem:[%s402 + $0x8] sm:$0xff]
        %v5161 = vld [vmem:[%s402 + $0x18] sm:$0xff]
        %v5162 = vld [vmem:[%s402 + $0x20] sm:$0xff]
        %v5163 = vld [vmem:[%s402 + $0x30] sm:$0xff]
        %v5164 = vld [vmem:[%s402 + $0x38] sm:$0xff]
        %v5165 = vld [vmem:[%s402 + $0x48] sm:$0xff]
        %v5166 = vld [vmem:[%s402 + $0x50] sm:$0xff]
        %v5167 = vld [vmem:[%s402 + $0x60] sm:$0xff]
        %v5168 = vld [vmem:[%s402 + $0x68] sm:$0xff]
        %v5169 = vld [vmem:[%s402 + $0x78] sm:$0xff]
        %v5170 = vld [vmem:[%s402 + $0x80] sm:$0xff]
        %v5171 = vld [vmem:[%s402 + $0x90] sm:$0xff]
        %v5172 = vld [vmem:[%s402 + $0x98] sm:$0xff]
        %v5173 = vld [vmem:[%s402 + $0xa8] sm:$0xff]
        %v5174 = vld [vmem:[%s402 + $0xb0] sm:$0xff]
        %v5175 = vld [vmem:[%s402 + $0xc0] sm:$0xff]
        %v5176 = vld [vmem:[%s402 + $0xc8] sm:$0xff]
        %v5177 = vld [vmem:[%s402 + $0xd8] sm:$0xff]
        %v5178 = vld [vmem:[%s402 + $0xe0] sm:$0xff]
        %v5179 = vld [vmem:[%s402 + $0xf0] sm:$0xff]
        %v5180 = vld [vmem:[%s402 + $0xf8] sm:$0xff]
        %v5181 = vld [vmem:[%s402 + $0x108] sm:$0xff]
        %v5182 = vld [vmem:[%s402 + $0x110] sm:$0xff]
        %v5183 = vld [vmem:[%s402 + $0x120] sm:$0xff]
        %v5184 = vld [vmem:[%s402 + $0x128] sm:$0xff]
        %v5185 = vld [vmem:[%s402 + $0x138] sm:$0xff]
        %v5186 = vld [vmem:[%s402 + $0x140] sm:$0xff]
        %v5187 = vld [vmem:[%s402 + $0x150] sm:$0xff]
        %v5188 = vld [vmem:[%s402 + $0x158] sm:$0xff]
        %v5189 = vld [vmem:[%s402 + $0x168] sm:$0xff]
        %v5190 = vld [vmem:[%s402 + $0x170] sm:$0xff]
        %v5191 = vpack.c.bf16 %v5160, %v5159
        %v5192 = vpack.c.bf16 %v5162, %v5161
        %v5193 = vpack.c.bf16 %v5164, %v5163
        %v5194 = vpack.c.bf16 %v5166, %v5165
        %v5195 = vpack.c.bf16 %v5168, %v5167
        %v5196 = vpack.c.bf16 %v5170, %v5169
        %v5197 = vpack.c.bf16 %v5172, %v5171
        %v5198 = vpack.c.bf16 %v5174, %v5173
        %v5199 = vpack.c.bf16 %v5176, %v5175
        %v5200 = vpack.c.bf16 %v5178, %v5177
        %v5201 = vpack.c.bf16 %v5180, %v5179
        %v5202 = vpack.c.bf16 %v5182, %v5181
        %v5203 = vpack.c.bf16 %v5184, %v5183
        %v5204 = vpack.c.bf16 %v5186, %v5185
        %v5205 = vpack.c.bf16 %v5188, %v5187
        %v5206 = vpack.c.bf16 %v5190, %v5189
        %v5223 = vunpack.c.l.b16 %v5191
        %v5224 = vunpack.c.h.b16 %v5191
        %v5225 = vunpack.c.l.b16 %v5192
        %v5226 = vunpack.c.h.b16 %v5192
        %v5227 = vunpack.c.l.b16 %v5193
        %v5228 = vunpack.c.h.b16 %v5193
        %v5229 = vunpack.c.l.b16 %v5194
        %v5230 = vunpack.c.h.b16 %v5194
        %v5231 = vunpack.c.l.b16 %v5195
        %v5232 = vunpack.c.h.b16 %v5195
        %v5233 = vunpack.c.l.b16 %v5196
        %v5234 = vunpack.c.h.b16 %v5196
        %v5235 = vunpack.c.l.b16 %v5197
        %v5236 = vunpack.c.h.b16 %v5197
        %v5237 = vunpack.c.l.b16 %v5198
        %v5238 = vunpack.c.h.b16 %v5198
        %v5239 = vunpack.c.l.b16 %v5199
        %v5240 = vunpack.c.h.b16 %v5199
        %v5241 = vunpack.c.l.b16 %v5200
        %v5242 = vunpack.c.h.b16 %v5200
        %v5243 = vunpack.c.l.b16 %v5201
        %v5244 = vunpack.c.h.b16 %v5201
        %v5245 = vunpack.c.l.b16 %v5202
        %v5246 = vunpack.c.h.b16 %v5202
        %v5247 = vunpack.c.l.b16 %v5203
        %v5248 = vunpack.c.h.b16 %v5203
        %v5249 = vunpack.c.l.b16 %v5204
        %v5250 = vunpack.c.h.b16 %v5204
        %v5251 = vunpack.c.l.b16 %v5205
        %v5252 = vunpack.c.h.b16 %v5205
        %v5253 = vunpack.c.l.b16 %v5206
        %v5254 = vunpack.c.h.b16 %v5206
        %v5255 = vpack.c.b16 %v5223, %v5223
        %v5256 = vpack.c.b16 %v5224, %v5224
        %v5257 = vpack.c.b16 %v5225, %v5225
        %v5258 = vpack.c.b16 %v5226, %v5226
        %v5259 = vpack.c.b16 %v5227, %v5227
        %v5260 = vpack.c.b16 %v5228, %v5228
        %v5261 = vpack.c.b16 %v5229, %v5229
        %v5262 = vpack.c.b16 %v5230, %v5230
        %v5263 = vpack.c.b16 %v5231, %v5231
        %v5264 = vpack.c.b16 %v5232, %v5232
        %v5265 = vpack.c.b16 %v5233, %v5233
        %v5266 = vpack.c.b16 %v5234, %v5234
        %v5267 = vpack.c.b16 %v5235, %v5235
        %v5268 = vpack.c.b16 %v5236, %v5236
        %v5269 = vpack.c.b16 %v5237, %v5237
        %v5270 = vpack.c.b16 %v5238, %v5238
        %v5271 = vpack.c.b16 %v5239, %v5239
        %v5272 = vpack.c.b16 %v5240, %v5240
        %v5273 = vpack.c.b16 %v5241, %v5241
        %v5274 = vpack.c.b16 %v5242, %v5242
        %v5275 = vpack.c.b16 %v5243, %v5243
        %v5276 = vpack.c.b16 %v5244, %v5244
        %v5277 = vpack.c.b16 %v5245, %v5245
        %v5278 = vpack.c.b16 %v5246, %v5246
        %v5279 = vpack.c.b16 %v5247, %v5247
        %v5280 = vpack.c.b16 %v5248, %v5248
        %v5281 = vpack.c.b16 %v5249, %v5249
        %v5282 = vpack.c.b16 %v5250, %v5250
        %v5283 = vpack.c.b16 %v5251, %v5251
        %v5284 = vpack.c.b16 %v5252, %v5252
        %v5285 = vpack.c.b16 %v5253, %v5253
        %v5286 = vpack.c.b16 %v5254, %v5254
        %5319 = vst [vmem:[#allocation3 + $0xc] sm:$0xf] %v5255
        %5320 = vst [vmem:[#allocation3 + $0x30] sm:$0xf] %v5256
        %5321 = vst [vmem:[#allocation3 + $0x54] sm:$0xf] %v5257
        %5322 = vst [vmem:[#allocation3 + $0x78] sm:$0xf] %v5258
        %5323 = vst [vmem:[#allocation3 + $0x9c] sm:$0xf] %v5259
        %5324 = vst [vmem:[#allocation3 + $0xc0] sm:$0xf] %v5260
        %5325 = vst [vmem:[#allocation3 + $0xe4] sm:$0xf] %v5261
        %5326 = vst [vmem:[#allocation3 + $0x108] sm:$0xf] %v5262
        %5327 = vst [vmem:[#allocation3 + $0x12c] sm:$0xf] %v5263
        %5328 = vst [vmem:[#allocation3 + $0x150] sm:$0xf] %v5264
        %5329 = vst [vmem:[#allocation3 + $0x174] sm:$0xf] %v5265
        %5330 = vst [vmem:[#allocation3 + $0x198] sm:$0xf] %v5266
        %5331 = vst [vmem:[#allocation3 + $0x1bc] sm:$0xf] %v5267
        %5332 = vst [vmem:[#allocation3 + $0x1e0] sm:$0xf] %v5268
        %5333 = vst [vmem:[#allocation3 + $0x204] sm:$0xf] %v5269
        %5334 = vst [vmem:[#allocation3 + $0x228] sm:$0xf] %v5270
        %5335 = vst [vmem:[#allocation3 + $0x24c] sm:$0xf] %v5271
        %5336 = vst [vmem:[#allocation3 + $0x270] sm:$0xf] %v5272
        %5337 = vst [vmem:[#allocation3 + $0x294] sm:$0xf] %v5273
        %5338 = vst [vmem:[#allocation3 + $0x2b8] sm:$0xf] %v5274
        %5339 = vst [vmem:[#allocation3 + $0x2dc] sm:$0xf] %v5275
        %5340 = vst [vmem:[#allocation3 + $0x300] sm:$0xf] %v5276
        %5341 = vst [vmem:[#allocation3 + $0x324] sm:$0xf] %v5277
        %5342 = vst [vmem:[#allocation3 + $0x348] sm:$0xf] %v5278
        %5343 = vst [vmem:[#allocation3 + $0x36c] sm:$0xf] %v5279
        %5344 = vst [vmem:[#allocation3 + $0x390] sm:$0xf] %v5280
        %5345 = vst [vmem:[#allocation3 + $0x3b4] sm:$0xf] %v5281
        %5346 = vst [vmem:[#allocation3 + $0x3d8] sm:$0xf] %v5282
        %5347 = vst [vmem:[#allocation3 + $0x3fc] sm:$0xf] %v5283
        %5348 = vst [vmem:[#allocation3 + $0x420] sm:$0xf] %v5284
        %5349 = vst [vmem:[#allocation3 + $0x444] sm:$0xf] %v5285
        %5350 = vst [vmem:[#allocation3 + $0x468] sm:$0xf] %v5286
        %v5351 = vld [vmem:[%s402 + $0x1] sm:$0xff]
        %v5352 = vld [vmem:[%s402 + $0x9] sm:$0xff]
        %v5353 = vld [vmem:[%s402 + $0x19] sm:$0xff]
        %v5354 = vld [vmem:[%s402 + $0x21] sm:$0xff]
        %v5355 = vld [vmem:[%s402 + $0x31] sm:$0xff]
        %v5356 = vld [vmem:[%s402 + $0x39] sm:$0xff]
        %v5357 = vld [vmem:[%s402 + $0x49] sm:$0xff]
        %v5358 = vld [vmem:[%s402 + $0x51] sm:$0xff]
        %v5359 = vld [vmem:[%s402 + $0x61] sm:$0xff]
        %v5360 = vld [vmem:[%s402 + $0x69] sm:$0xff]
        %v5361 = vld [vmem:[%s402 + $0x79] sm:$0xff]
        %v5362 = vld [vmem:[%s402 + $0x81] sm:$0xff]
        %v5363 = vld [vmem:[%s402 + $0x91] sm:$0xff]
        %v5364 = vld [vmem:[%s402 + $0x99] sm:$0xff]
        %v5365 = vld [vmem:[%s402 + $0xa9] sm:$0xff]
        %v5366 = vld [vmem:[%s402 + $0xb1] sm:$0xff]
        %v5367 = vld [vmem:[%s402 + $0xc1] sm:$0xff]
        %v5368 = vld [vmem:[%s402 + $0xc9] sm:$0xff]
        %v5369 = vld [vmem:[%s402 + $0xd9] sm:$0xff]
        %v5370 = vld [vmem:[%s402 + $0xe1] sm:$0xff]
        %v5371 = vld [vmem:[%s402 + $0xf1] sm:$0xff]
        %v5372 = vld [vmem:[%s402 + $0xf9] sm:$0xff]
        %v5373 = vld [vmem:[%s402 + $0x109] sm:$0xff]
        %v5374 = vld [vmem:[%s402 + $0x111] sm:$0xff]
        %v5375 = vld [vmem:[%s402 + $0x121] sm:$0xff]
        %v5376 = vld [vmem:[%s402 + $0x129] sm:$0xff]
        %v5377 = vld [vmem:[%s402 + $0x139] sm:$0xff]
        %v5378 = vld [vmem:[%s402 + $0x141] sm:$0xff]
        %v5379 = vld [vmem:[%s402 + $0x151] sm:$0xff]
        %v5380 = vld [vmem:[%s402 + $0x159] sm:$0xff]
        %v5381 = vld [vmem:[%s402 + $0x169] sm:$0xff]
        %v5382 = vld [vmem:[%s402 + $0x171] sm:$0xff]
        %v5383 = vpack.c.bf16 %v5352, %v5351
        %v5384 = vpack.c.bf16 %v5354, %v5353
        %v5385 = vpack.c.bf16 %v5356, %v5355
        %v5386 = vpack.c.bf16 %v5358, %v5357
        %v5387 = vpack.c.bf16 %v5360, %v5359
        %v5388 = vpack.c.bf16 %v5362, %v5361
        %v5389 = vpack.c.bf16 %v5364, %v5363
        %v5390 = vpack.c.bf16 %v5366, %v5365
        %v5391 = vpack.c.bf16 %v5368, %v5367
        %v5392 = vpack.c.bf16 %v5370, %v5369
        %v5393 = vpack.c.bf16 %v5372, %v5371
        %v5394 = vpack.c.bf16 %v5374, %v5373
        %v5395 = vpack.c.bf16 %v5376, %v5375
        %v5396 = vpack.c.bf16 %v5378, %v5377
        %v5397 = vpack.c.bf16 %v5380, %v5379
        %v5398 = vpack.c.bf16 %v5382, %v5381
        %v5415 = vunpack.c.l.b16 %v5383
        %v5416 = vunpack.c.h.b16 %v5383
        %v5417 = vunpack.c.l.b16 %v5384
        %v5418 = vunpack.c.h.b16 %v5384
        %v5419 = vunpack.c.l.b16 %v5385
        %v5420 = vunpack.c.h.b16 %v5385
        %v5421 = vunpack.c.l.b16 %v5386
        %v5422 = vunpack.c.h.b16 %v5386
        %v5423 = vunpack.c.l.b16 %v5387
        %v5424 = vunpack.c.h.b16 %v5387
        %v5425 = vunpack.c.l.b16 %v5388
        %v5426 = vunpack.c.h.b16 %v5388
        %v5427 = vunpack.c.l.b16 %v5389
        %v5428 = vunpack.c.h.b16 %v5389
        %v5429 = vunpack.c.l.b16 %v5390
        %v5430 = vunpack.c.h.b16 %v5390
        %v5431 = vunpack.c.l.b16 %v5391
        %v5432 = vunpack.c.h.b16 %v5391
        %v5433 = vunpack.c.l.b16 %v5392
        %v5434 = vunpack.c.h.b16 %v5392
        %v5435 = vunpack.c.l.b16 %v5393
        %v5436 = vunpack.c.h.b16 %v5393
        %v5437 = vunpack.c.l.b16 %v5394
        %v5438 = vunpack.c.h.b16 %v5394
        %v5439 = vunpack.c.l.b16 %v5395
        %v5440 = vunpack.c.h.b16 %v5395
        %v5441 = vunpack.c.l.b16 %v5396
        %v5442 = vunpack.c.h.b16 %v5396
        %v5443 = vunpack.c.l.b16 %v5397
        %v5444 = vunpack.c.h.b16 %v5397
        %v5445 = vunpack.c.l.b16 %v5398
        %v5446 = vunpack.c.h.b16 %v5398
        %v5447 = vpack.c.b16 %v5415, %v5415
        %v5448 = vpack.c.b16 %v5416, %v5416
        %v5449 = vpack.c.b16 %v5417, %v5417
        %v5450 = vpack.c.b16 %v5418, %v5418
        %v5451 = vpack.c.b16 %v5419, %v5419
        %v5452 = vpack.c.b16 %v5420, %v5420
        %v5453 = vpack.c.b16 %v5421, %v5421
        %v5454 = vpack.c.b16 %v5422, %v5422
        %v5455 = vpack.c.b16 %v5423, %v5423
        %v5456 = vpack.c.b16 %v5424, %v5424
        %v5457 = vpack.c.b16 %v5425, %v5425
        %v5458 = vpack.c.b16 %v5426, %v5426
        %v5459 = vpack.c.b16 %v5427, %v5427
        %v5460 = vpack.c.b16 %v5428, %v5428
        %v5461 = vpack.c.b16 %v5429, %v5429
        %v5462 = vpack.c.b16 %v5430, %v5430
        %v5463 = vpack.c.b16 %v5431, %v5431
        %v5464 = vpack.c.b16 %v5432, %v5432
        %v5465 = vpack.c.b16 %v5433, %v5433
        %v5466 = vpack.c.b16 %v5434, %v5434
        %v5467 = vpack.c.b16 %v5435, %v5435
        %v5468 = vpack.c.b16 %v5436, %v5436
        %v5469 = vpack.c.b16 %v5437, %v5437
        %v5470 = vpack.c.b16 %v5438, %v5438
        %v5471 = vpack.c.b16 %v5439, %v5439
        %v5472 = vpack.c.b16 %v5440, %v5440
        %v5473 = vpack.c.b16 %v5441, %v5441
        %v5474 = vpack.c.b16 %v5442, %v5442
        %v5475 = vpack.c.b16 %v5443, %v5443
        %v5476 = vpack.c.b16 %v5444, %v5444
        %v5477 = vpack.c.b16 %v5445, %v5445
        %v5478 = vpack.c.b16 %v5446, %v5446
        %5511 = vst [vmem:[#allocation3 + $0x10] sm:$0xf] %v5447
        %5512 = vst [vmem:[#allocation3 + $0x34] sm:$0xf] %v5448
        %5513 = vst [vmem:[#allocation3 + $0x58] sm:$0xf] %v5449
        %5514 = vst [vmem:[#allocation3 + $0x7c] sm:$0xf] %v5450
        %5515 = vst [vmem:[#allocation3 + $0xa0] sm:$0xf] %v5451
        %5516 = vst [vmem:[#allocation3 + $0xc4] sm:$0xf] %v5452
        %5517 = vst [vmem:[#allocation3 + $0xe8] sm:$0xf] %v5453
        %5518 = vst [vmem:[#allocation3 + $0x10c] sm:$0xf] %v5454
        %5519 = vst [vmem:[#allocation3 + $0x130] sm:$0xf] %v5455
        %5520 = vst [vmem:[#allocation3 + $0x154] sm:$0xf] %v5456
        %5521 = vst [vmem:[#allocation3 + $0x178] sm:$0xf] %v5457
        %5522 = vst [vmem:[#allocation3 + $0x19c] sm:$0xf] %v5458
        %5523 = vst [vmem:[#allocation3 + $0x1c0] sm:$0xf] %v5459
        %5524 = vst [vmem:[#allocation3 + $0x1e4] sm:$0xf] %v5460
        %5525 = vst [vmem:[#allocation3 + $0x208] sm:$0xf] %v5461
        %5526 = vst [vmem:[#allocation3 + $0x22c] sm:$0xf] %v5462
        %5527 = vst [vmem:[#allocation3 + $0x250] sm:$0xf] %v5463
        %5528 = vst [vmem:[#allocation3 + $0x274] sm:$0xf] %v5464
        %5529 = vst [vmem:[#allocation3 + $0x298] sm:$0xf] %v5465
        %5530 = vst [vmem:[#allocation3 + $0x2bc] sm:$0xf] %v5466
        %5531 = vst [vmem:[#allocation3 + $0x2e0] sm:$0xf] %v5467
        %5532 = vst [vmem:[#allocation3 + $0x304] sm:$0xf] %v5468
        %5533 = vst [vmem:[#allocation3 + $0x328] sm:$0xf] %v5469
        %5534 = vst [vmem:[#allocation3 + $0x34c] sm:$0xf] %v5470
        %5535 = vst [vmem:[#allocation3 + $0x370] sm:$0xf] %v5471
        %5536 = vst [vmem:[#allocation3 + $0x394] sm:$0xf] %v5472
        %5537 = vst [vmem:[#allocation3 + $0x3b8] sm:$0xf] %v5473
        %5538 = vst [vmem:[#allocation3 + $0x3dc] sm:$0xf] %v5474
        %5539 = vst [vmem:[#allocation3 + $0x400] sm:$0xf] %v5475
        %5540 = vst [vmem:[#allocation3 + $0x424] sm:$0xf] %v5476
        %5541 = vst [vmem:[#allocation3 + $0x448] sm:$0xf] %v5477
        %5542 = vst [vmem:[#allocation3 + $0x46c] sm:$0xf] %v5478
        %v5543 = vld [vmem:[%s402 + $0x2] sm:$0xff]
        %v5544 = vld [vmem:[%s402 + $0xa] sm:$0xff]
        %v5545 = vld [vmem:[%s402 + $0x1a] sm:$0xff]
        %v5546 = vld [vmem:[%s402 + $0x22] sm:$0xff]
        %v5547 = vld [vmem:[%s402 + $0x32] sm:$0xff]
        %v5548 = vld [vmem:[%s402 + $0x3a] sm:$0xff]
        %v5549 = vld [vmem:[%s402 + $0x4a] sm:$0xff]
        %v5550 = vld [vmem:[%s402 + $0x52] sm:$0xff]
        %v5551 = vld [vmem:[%s402 + $0x62] sm:$0xff]
        %v5552 = vld [vmem:[%s402 + $0x6a] sm:$0xff]
        %v5553 = vld [vmem:[%s402 + $0x7a] sm:$0xff]
        %v5554 = vld [vmem:[%s402 + $0x82] sm:$0xff]
        %v5555 = vld [vmem:[%s402 + $0x92] sm:$0xff]
        %v5556 = vld [vmem:[%s402 + $0x9a] sm:$0xff]
        %v5557 = vld [vmem:[%s402 + $0xaa] sm:$0xff]
        %v5558 = vld [vmem:[%s402 + $0xb2] sm:$0xff]
        %v5559 = vld [vmem:[%s402 + $0xc2] sm:$0xff]
        %v5560 = vld [vmem:[%s402 + $0xca] sm:$0xff]
        %v5561 = vld [vmem:[%s402 + $0xda] sm:$0xff]
        %v5562 = vld [vmem:[%s402 + $0xe2] sm:$0xff]
        %v5563 = vld [vmem:[%s402 + $0xf2] sm:$0xff]
        %v5564 = vld [vmem:[%s402 + $0xfa] sm:$0xff]
        %v5565 = vld [vmem:[%s402 + $0x10a] sm:$0xff]
        %v5566 = vld [vmem:[%s402 + $0x112] sm:$0xff]
        %v5567 = vld [vmem:[%s402 + $0x122] sm:$0xff]
        %v5568 = vld [vmem:[%s402 + $0x12a] sm:$0xff]
        %v5569 = vld [vmem:[%s402 + $0x13a] sm:$0xff]
        %v5570 = vld [vmem:[%s402 + $0x142] sm:$0xff]
        %v5571 = vld [vmem:[%s402 + $0x152] sm:$0xff]
        %v5572 = vld [vmem:[%s402 + $0x15a] sm:$0xff]
        %v5573 = vld [vmem:[%s402 + $0x16a] sm:$0xff]
        %v5574 = vld [vmem:[%s402 + $0x172] sm:$0xff]
        %v5575 = vpack.c.bf16 %v5544, %v5543
        %v5576 = vpack.c.bf16 %v5546, %v5545
        %v5577 = vpack.c.bf16 %v5548, %v5547
        %v5578 = vpack.c.bf16 %v5550, %v5549
        %v5579 = vpack.c.bf16 %v5552, %v5551
        %v5580 = vpack.c.bf16 %v5554, %v5553
        %v5581 = vpack.c.bf16 %v5556, %v5555
        %v5582 = vpack.c.bf16 %v5558, %v5557
        %v5583 = vpack.c.bf16 %v5560, %v5559
        %v5584 = vpack.c.bf16 %v5562, %v5561
        %v5585 = vpack.c.bf16 %v5564, %v5563
        %v5586 = vpack.c.bf16 %v5566, %v5565
        %v5587 = vpack.c.bf16 %v5568, %v5567
        %v5588 = vpack.c.bf16 %v5570, %v5569
        %v5589 = vpack.c.bf16 %v5572, %v5571
        %v5590 = vpack.c.bf16 %v5574, %v5573
        %v5607 = vunpack.c.l.b16 %v5575
        %v5608 = vunpack.c.h.b16 %v5575
        %v5609 = vunpack.c.l.b16 %v5576
        %v5610 = vunpack.c.h.b16 %v5576
        %v5611 = vunpack.c.l.b16 %v5577
        %v5612 = vunpack.c.h.b16 %v5577
        %v5613 = vunpack.c.l.b16 %v5578
        %v5614 = vunpack.c.h.b16 %v5578
        %v5615 = vunpack.c.l.b16 %v5579
        %v5616 = vunpack.c.h.b16 %v5579
        %v5617 = vunpack.c.l.b16 %v5580
        %v5618 = vunpack.c.h.b16 %v5580
        %v5619 = vunpack.c.l.b16 %v5581
        %v5620 = vunpack.c.h.b16 %v5581
        %v5621 = vunpack.c.l.b16 %v5582
        %v5622 = vunpack.c.h.b16 %v5582
        %v5623 = vunpack.c.l.b16 %v5583
        %v5624 = vunpack.c.h.b16 %v5583
        %v5625 = vunpack.c.l.b16 %v5584
        %v5626 = vunpack.c.h.b16 %v5584
        %v5627 = vunpack.c.l.b16 %v5585
        %v5628 = vunpack.c.h.b16 %v5585
        %v5629 = vunpack.c.l.b16 %v5586
        %v5630 = vunpack.c.h.b16 %v5586
        %v5631 = vunpack.c.l.b16 %v5587
        %v5632 = vunpack.c.h.b16 %v5587
        %v5633 = vunpack.c.l.b16 %v5588
        %v5634 = vunpack.c.h.b16 %v5588
        %v5635 = vunpack.c.l.b16 %v5589
        %v5636 = vunpack.c.h.b16 %v5589
        %v5637 = vunpack.c.l.b16 %v5590
        %v5638 = vunpack.c.h.b16 %v5590
        %v5639 = vpack.c.b16 %v5607, %v5607
        %v5640 = vpack.c.b16 %v5608, %v5608
        %v5641 = vpack.c.b16 %v5609, %v5609
        %v5642 = vpack.c.b16 %v5610, %v5610
        %v5643 = vpack.c.b16 %v5611, %v5611
        %v5644 = vpack.c.b16 %v5612, %v5612
        %v5645 = vpack.c.b16 %v5613, %v5613
        %v5646 = vpack.c.b16 %v5614, %v5614
        %v5647 = vpack.c.b16 %v5615, %v5615
        %v5648 = vpack.c.b16 %v5616, %v5616
        %v5649 = vpack.c.b16 %v5617, %v5617
        %v5650 = vpack.c.b16 %v5618, %v5618
        %v5651 = vpack.c.b16 %v5619, %v5619
        %v5652 = vpack.c.b16 %v5620, %v5620
        %v5653 = vpack.c.b16 %v5621, %v5621
        %v5654 = vpack.c.b16 %v5622, %v5622
        %v5655 = vpack.c.b16 %v5623, %v5623
        %v5656 = vpack.c.b16 %v5624, %v5624
        %v5657 = vpack.c.b16 %v5625, %v5625
        %v5658 = vpack.c.b16 %v5626, %v5626
        %v5659 = vpack.c.b16 %v5627, %v5627
        %v5660 = vpack.c.b16 %v5628, %v5628
        %v5661 = vpack.c.b16 %v5629, %v5629
        %v5662 = vpack.c.b16 %v5630, %v5630
        %v5663 = vpack.c.b16 %v5631, %v5631
        %v5664 = vpack.c.b16 %v5632, %v5632
        %v5665 = vpack.c.b16 %v5633, %v5633
        %v5666 = vpack.c.b16 %v5634, %v5634
        %v5667 = vpack.c.b16 %v5635, %v5635
        %v5668 = vpack.c.b16 %v5636, %v5636
        %v5669 = vpack.c.b16 %v5637, %v5637
        %v5670 = vpack.c.b16 %v5638, %v5638
        %5703 = vst [vmem:[#allocation3 + $0x14] sm:$0xf] %v5639
        %5704 = vst [vmem:[#allocation3 + $0x38] sm:$0xf] %v5640
        %5705 = vst [vmem:[#allocation3 + $0x5c] sm:$0xf] %v5641
        %5706 = vst [vmem:[#allocation3 + $0x80] sm:$0xf] %v5642
        %5707 = vst [vmem:[#allocation3 + $0xa4] sm:$0xf] %v5643
        %5708 = vst [vmem:[#allocation3 + $0xc8] sm:$0xf] %v5644
        %5709 = vst [vmem:[#allocation3 + $0xec] sm:$0xf] %v5645
        %5710 = vst [vmem:[#allocation3 + $0x110] sm:$0xf] %v5646
        %5711 = vst [vmem:[#allocation3 + $0x134] sm:$0xf] %v5647
        %5712 = vst [vmem:[#allocation3 + $0x158] sm:$0xf] %v5648
        %5713 = vst [vmem:[#allocation3 + $0x17c] sm:$0xf] %v5649
        %5714 = vst [vmem:[#allocation3 + $0x1a0] sm:$0xf] %v5650
        %5715 = vst [vmem:[#allocation3 + $0x1c4] sm:$0xf] %v5651
        %5716 = vst [vmem:[#allocation3 + $0x1e8] sm:$0xf] %v5652
        %5717 = vst [vmem:[#allocation3 + $0x20c] sm:$0xf] %v5653
        %5718 = vst [vmem:[#allocation3 + $0x230] sm:$0xf] %v5654
        %5719 = vst [vmem:[#allocation3 + $0x254] sm:$0xf] %v5655
        %5720 = vst [vmem:[#allocation3 + $0x278] sm:$0xf] %v5656
        %5721 = vst [vmem:[#allocation3 + $0x29c] sm:$0xf] %v5657
        %5722 = vst [vmem:[#allocation3 + $0x2c0] sm:$0xf] %v5658
        %5723 = vst [vmem:[#allocation3 + $0x2e4] sm:$0xf] %v5659
        %5724 = vst [vmem:[#allocation3 + $0x308] sm:$0xf] %v5660
        %5725 = vst [vmem:[#allocation3 + $0x32c] sm:$0xf] %v5661
        %5726 = vst [vmem:[#allocation3 + $0x350] sm:$0xf] %v5662
        %5727 = vst [vmem:[#allocation3 + $0x374] sm:$0xf] %v5663
        %5728 = vst [vmem:[#allocation3 + $0x398] sm:$0xf] %v5664
        %5729 = vst [vmem:[#allocation3 + $0x3bc] sm:$0xf] %v5665
        %5730 = vst [vmem:[#allocation3 + $0x3e0] sm:$0xf] %v5666
        %5731 = vst [vmem:[#allocation3 + $0x404] sm:$0xf] %v5667
        %5732 = vst [vmem:[#allocation3 + $0x428] sm:$0xf] %v5668
        %5733 = vst [vmem:[#allocation3 + $0x44c] sm:$0xf] %v5669
        %5734 = vst [vmem:[#allocation3 + $0x470] sm:$0xf] %v5670
        %v5735 = vld [vmem:[%s1587] sm:$0xff]
        %v5736 = vld [vmem:[%s1587 + $0x8] sm:$0xff]
        %v5737 = vld [vmem:[%s1587 + $0x18] sm:$0xff]
        %v5738 = vld [vmem:[%s1587 + $0x20] sm:$0xff]
        %v5739 = vld [vmem:[%s1587 + $0x30] sm:$0xff]
        %v5740 = vld [vmem:[%s1587 + $0x38] sm:$0xff]
        %v5741 = vld [vmem:[%s1587 + $0x48] sm:$0xff]
        %v5742 = vld [vmem:[%s1587 + $0x50] sm:$0xff]
        %v5743 = vld [vmem:[%s1587 + $0x60] sm:$0xff]
        %v5744 = vld [vmem:[%s1587 + $0x68] sm:$0xff]
        %v5745 = vld [vmem:[%s1587 + $0x78] sm:$0xff]
        %v5746 = vld [vmem:[%s1587 + $0x80] sm:$0xff]
        %v5747 = vld [vmem:[%s1587 + $0x90] sm:$0xff]
        %v5748 = vld [vmem:[%s1587 + $0x98] sm:$0xff]
        %v5749 = vld [vmem:[%s1587 + $0xa8] sm:$0xff]
        %v5750 = vld [vmem:[%s1587 + $0xb0] sm:$0xff]
        %v5751 = vld [vmem:[%s1587 + $0xc0] sm:$0xff]
        %v5752 = vld [vmem:[%s1587 + $0xc8] sm:$0xff]
        %v5753 = vld [vmem:[%s1587 + $0xd8] sm:$0xff]
        %v5754 = vld [vmem:[%s1587 + $0xe0] sm:$0xff]
        %v5755 = vld [vmem:[%s1587 + $0xf0] sm:$0xff]
        %v5756 = vld [vmem:[%s1587 + $0xf8] sm:$0xff]
        %v5757 = vld [vmem:[%s1587 + $0x108] sm:$0xff]
        %v5758 = vld [vmem:[%s1587 + $0x110] sm:$0xff]
        %v5759 = vld [vmem:[%s1587 + $0x120] sm:$0xff]
        %v5760 = vld [vmem:[%s1587 + $0x128] sm:$0xff]
        %v5761 = vld [vmem:[%s1587 + $0x138] sm:$0xff]
        %v5762 = vld [vmem:[%s1587 + $0x140] sm:$0xff]
        %v5763 = vld [vmem:[%s1587 + $0x150] sm:$0xff]
        %v5764 = vld [vmem:[%s1587 + $0x158] sm:$0xff]
        %v5765 = vld [vmem:[%s1587 + $0x168] sm:$0xff]
        %v5766 = vld [vmem:[%s1587 + $0x170] sm:$0xff]
        %v5767 = vpack.c.bf16 %v5736, %v5735
        %v5768 = vpack.c.bf16 %v5738, %v5737
        %v5769 = vpack.c.bf16 %v5740, %v5739
        %v5770 = vpack.c.bf16 %v5742, %v5741
        %v5771 = vpack.c.bf16 %v5744, %v5743
        %v5772 = vpack.c.bf16 %v5746, %v5745
        %v5773 = vpack.c.bf16 %v5748, %v5747
        %v5774 = vpack.c.bf16 %v5750, %v5749
        %v5775 = vpack.c.bf16 %v5752, %v5751
        %v5776 = vpack.c.bf16 %v5754, %v5753
        %v5777 = vpack.c.bf16 %v5756, %v5755
        %v5778 = vpack.c.bf16 %v5758, %v5757
        %v5779 = vpack.c.bf16 %v5760, %v5759
        %v5780 = vpack.c.bf16 %v5762, %v5761
        %v5781 = vpack.c.bf16 %v5764, %v5763
        %v5782 = vpack.c.bf16 %v5766, %v5765
        %v5799 = vunpack.c.l.b16 %v5767
        %v5800 = vunpack.c.h.b16 %v5767
        %v5801 = vunpack.c.l.b16 %v5768
        %v5802 = vunpack.c.h.b16 %v5768
        %v5803 = vunpack.c.l.b16 %v5769
        %v5804 = vunpack.c.h.b16 %v5769
        %v5805 = vunpack.c.l.b16 %v5770
        %v5806 = vunpack.c.h.b16 %v5770
        %v5807 = vunpack.c.l.b16 %v5771
        %v5808 = vunpack.c.h.b16 %v5771
        %v5809 = vunpack.c.l.b16 %v5772
        %v5810 = vunpack.c.h.b16 %v5772
        %v5811 = vunpack.c.l.b16 %v5773
        %v5812 = vunpack.c.h.b16 %v5773
        %v5813 = vunpack.c.l.b16 %v5774
        %v5814 = vunpack.c.h.b16 %v5774
        %v5815 = vunpack.c.l.b16 %v5775
        %v5816 = vunpack.c.h.b16 %v5775
        %v5817 = vunpack.c.l.b16 %v5776
        %v5818 = vunpack.c.h.b16 %v5776
        %v5819 = vunpack.c.l.b16 %v5777
        %v5820 = vunpack.c.h.b16 %v5777
        %v5821 = vunpack.c.l.b16 %v5778
        %v5822 = vunpack.c.h.b16 %v5778
        %v5823 = vunpack.c.l.b16 %v5779
        %v5824 = vunpack.c.h.b16 %v5779
        %v5825 = vunpack.c.l.b16 %v5780
        %v5826 = vunpack.c.h.b16 %v5780
        %v5827 = vunpack.c.l.b16 %v5781
        %v5828 = vunpack.c.h.b16 %v5781
        %v5829 = vunpack.c.l.b16 %v5782
        %v5830 = vunpack.c.h.b16 %v5782
        %v5831 = vpack.c.b16 %v5799, %v5799
        %v5832 = vpack.c.b16 %v5800, %v5800
        %v5833 = vpack.c.b16 %v5801, %v5801
        %v5834 = vpack.c.b16 %v5802, %v5802
        %v5835 = vpack.c.b16 %v5803, %v5803
        %v5836 = vpack.c.b16 %v5804, %v5804
        %v5837 = vpack.c.b16 %v5805, %v5805
        %v5838 = vpack.c.b16 %v5806, %v5806
        %v5839 = vpack.c.b16 %v5807, %v5807
        %v5840 = vpack.c.b16 %v5808, %v5808
        %v5841 = vpack.c.b16 %v5809, %v5809
        %v5842 = vpack.c.b16 %v5810, %v5810
        %v5843 = vpack.c.b16 %v5811, %v5811
        %v5844 = vpack.c.b16 %v5812, %v5812
        %v5845 = vpack.c.b16 %v5813, %v5813
        %v5846 = vpack.c.b16 %v5814, %v5814
        %v5847 = vpack.c.b16 %v5815, %v5815
        %v5848 = vpack.c.b16 %v5816, %v5816
        %v5849 = vpack.c.b16 %v5817, %v5817
        %v5850 = vpack.c.b16 %v5818, %v5818
        %v5851 = vpack.c.b16 %v5819, %v5819
        %v5852 = vpack.c.b16 %v5820, %v5820
        %v5853 = vpack.c.b16 %v5821, %v5821
        %v5854 = vpack.c.b16 %v5822, %v5822
        %v5855 = vpack.c.b16 %v5823, %v5823
        %v5856 = vpack.c.b16 %v5824, %v5824
        %v5857 = vpack.c.b16 %v5825, %v5825
        %v5858 = vpack.c.b16 %v5826, %v5826
        %v5859 = vpack.c.b16 %v5827, %v5827
        %v5860 = vpack.c.b16 %v5828, %v5828
        %v5861 = vpack.c.b16 %v5829, %v5829
        %v5862 = vpack.c.b16 %v5830, %v5830
        %5895 = vst [vmem:[#allocation3 + $0x18] sm:$0xf] %v5831
        %5896 = vst [vmem:[#allocation3 + $0x3c] sm:$0xf] %v5832
        %5897 = vst [vmem:[#allocation3 + $0x60] sm:$0xf] %v5833
        %5898 = vst [vmem:[#allocation3 + $0x84] sm:$0xf] %v5834
        %5899 = vst [vmem:[#allocation3 + $0xa8] sm:$0xf] %v5835
        %5900 = vst [vmem:[#allocation3 + $0xcc] sm:$0xf] %v5836
        %5901 = vst [vmem:[#allocation3 + $0xf0] sm:$0xf] %v5837
        %5902 = vst [vmem:[#allocation3 + $0x114] sm:$0xf] %v5838
        %5903 = vst [vmem:[#allocation3 + $0x138] sm:$0xf] %v5839
        %5904 = vst [vmem:[#allocation3 + $0x15c] sm:$0xf] %v5840
        %5905 = vst [vmem:[#allocation3 + $0x180] sm:$0xf] %v5841
        %5906 = vst [vmem:[#allocation3 + $0x1a4] sm:$0xf] %v5842
        %5907 = vst [vmem:[#allocation3 + $0x1c8] sm:$0xf] %v5843
        %5908 = vst [vmem:[#allocation3 + $0x1ec] sm:$0xf] %v5844
        %5909 = vst [vmem:[#allocation3 + $0x210] sm:$0xf] %v5845
        %5910 = vst [vmem:[#allocation3 + $0x234] sm:$0xf] %v5846
        %5911 = vst [vmem:[#allocation3 + $0x258] sm:$0xf] %v5847
        %5912 = vst [vmem:[#allocation3 + $0x27c] sm:$0xf] %v5848
        %5913 = vst [vmem:[#allocation3 + $0x2a0] sm:$0xf] %v5849
        %5914 = vst [vmem:[#allocation3 + $0x2c4] sm:$0xf] %v5850
        %5915 = vst [vmem:[#allocation3 + $0x2e8] sm:$0xf] %v5851
        %5916 = vst [vmem:[#allocation3 + $0x30c] sm:$0xf] %v5852
        %5917 = vst [vmem:[#allocation3 + $0x330] sm:$0xf] %v5853
        %5918 = vst [vmem:[#allocation3 + $0x354] sm:$0xf] %v5854
        %5919 = vst [vmem:[#allocation3 + $0x378] sm:$0xf] %v5855
        %5920 = vst [vmem:[#allocation3 + $0x39c] sm:$0xf] %v5856
        %5921 = vst [vmem:[#allocation3 + $0x3c0] sm:$0xf] %v5857
        %5922 = vst [vmem:[#allocation3 + $0x3e4] sm:$0xf] %v5858
        %5923 = vst [vmem:[#allocation3 + $0x408] sm:$0xf] %v5859
        %5924 = vst [vmem:[#allocation3 + $0x42c] sm:$0xf] %v5860
        %5925 = vst [vmem:[#allocation3 + $0x450] sm:$0xf] %v5861
        %5926 = vst [vmem:[#allocation3 + $0x474] sm:$0xf] %v5862
        %v5927 = vld [vmem:[%s1587 + $0x1] sm:$0xff]
        %v5928 = vld [vmem:[%s1587 + $0x9] sm:$0xff]
        %v5929 = vld [vmem:[%s1587 + $0x19] sm:$0xff]
        %v5930 = vld [vmem:[%s1587 + $0x21] sm:$0xff]
        %v5931 = vld [vmem:[%s1587 + $0x31] sm:$0xff]
        %v5932 = vld [vmem:[%s1587 + $0x39] sm:$0xff]
        %v5933 = vld [vmem:[%s1587 + $0x49] sm:$0xff]
        %v5934 = vld [vmem:[%s1587 + $0x51] sm:$0xff]
        %v5935 = vld [vmem:[%s1587 + $0x61] sm:$0xff]
        %v5936 = vld [vmem:[%s1587 + $0x69] sm:$0xff]
        %v5937 = vld [vmem:[%s1587 + $0x79] sm:$0xff]
        %v5938 = vld [vmem:[%s1587 + $0x81] sm:$0xff]
        %v5939 = vld [vmem:[%s1587 + $0x91] sm:$0xff]
        %v5940 = vld [vmem:[%s1587 + $0x99] sm:$0xff]
        %v5941 = vld [vmem:[%s1587 + $0xa9] sm:$0xff]
        %v5942 = vld [vmem:[%s1587 + $0xb1] sm:$0xff]
        %v5943 = vld [vmem:[%s1587 + $0xc1] sm:$0xff]
        %v5944 = vld [vmem:[%s1587 + $0xc9] sm:$0xff]
        %v5945 = vld [vmem:[%s1587 + $0xd9] sm:$0xff]
        %v5946 = vld [vmem:[%s1587 + $0xe1] sm:$0xff]
        %v5947 = vld [vmem:[%s1587 + $0xf1] sm:$0xff]
        %v5948 = vld [vmem:[%s1587 + $0xf9] sm:$0xff]
        %v5949 = vld [vmem:[%s1587 + $0x109] sm:$0xff]
        %v5950 = vld [vmem:[%s1587 + $0x111] sm:$0xff]
        %v5951 = vld [vmem:[%s1587 + $0x121] sm:$0xff]
        %v5952 = vld [vmem:[%s1587 + $0x129] sm:$0xff]
        %v5953 = vld [vmem:[%s1587 + $0x139] sm:$0xff]
        %v5954 = vld [vmem:[%s1587 + $0x141] sm:$0xff]
        %v5955 = vld [vmem:[%s1587 + $0x151] sm:$0xff]
        %v5956 = vld [vmem:[%s1587 + $0x159] sm:$0xff]
        %v5957 = vld [vmem:[%s1587 + $0x169] sm:$0xff]
        %v5958 = vld [vmem:[%s1587 + $0x171] sm:$0xff]
        %v5959 = vpack.c.bf16 %v5928, %v5927
        %v5960 = vpack.c.bf16 %v5930, %v5929
        %v5961 = vpack.c.bf16 %v5932, %v5931
        %v5962 = vpack.c.bf16 %v5934, %v5933
        %v5963 = vpack.c.bf16 %v5936, %v5935
        %v5964 = vpack.c.bf16 %v5938, %v5937
        %v5965 = vpack.c.bf16 %v5940, %v5939
        %v5966 = vpack.c.bf16 %v5942, %v5941
        %v5967 = vpack.c.bf16 %v5944, %v5943
        %v5968 = vpack.c.bf16 %v5946, %v5945
        %v5969 = vpack.c.bf16 %v5948, %v5947
        %v5970 = vpack.c.bf16 %v5950, %v5949
        %v5971 = vpack.c.bf16 %v5952, %v5951
        %v5972 = vpack.c.bf16 %v5954, %v5953
        %v5973 = vpack.c.bf16 %v5956, %v5955
        %v5974 = vpack.c.bf16 %v5958, %v5957
        %v5991 = vunpack.c.l.b16 %v5959
        %v5992 = vunpack.c.h.b16 %v5959
        %v5993 = vunpack.c.l.b16 %v5960
        %v5994 = vunpack.c.h.b16 %v5960
        %v5995 = vunpack.c.l.b16 %v5961
        %v5996 = vunpack.c.h.b16 %v5961
        %v5997 = vunpack.c.l.b16 %v5962
        %v5998 = vunpack.c.h.b16 %v5962
        %v5999 = vunpack.c.l.b16 %v5963
        %v6000 = vunpack.c.h.b16 %v5963
        %v6001 = vunpack.c.l.b16 %v5964
        %v6002 = vunpack.c.h.b16 %v5964
        %v6003 = vunpack.c.l.b16 %v5965
        %v6004 = vunpack.c.h.b16 %v5965
        %v6005 = vunpack.c.l.b16 %v5966
        %v6006 = vunpack.c.h.b16 %v5966
        %v6007 = vunpack.c.l.b16 %v5967
        %v6008 = vunpack.c.h.b16 %v5967
        %v6009 = vunpack.c.l.b16 %v5968
        %v6010 = vunpack.c.h.b16 %v5968
        %v6011 = vunpack.c.l.b16 %v5969
        %v6012 = vunpack.c.h.b16 %v5969
        %v6013 = vunpack.c.l.b16 %v5970
        %v6014 = vunpack.c.h.b16 %v5970
        %v6015 = vunpack.c.l.b16 %v5971
        %v6016 = vunpack.c.h.b16 %v5971
        %v6017 = vunpack.c.l.b16 %v5972
        %v6018 = vunpack.c.h.b16 %v5972
        %v6019 = vunpack.c.l.b16 %v5973
        %v6020 = vunpack.c.h.b16 %v5973
        %v6021 = vunpack.c.l.b16 %v5974
        %v6022 = vunpack.c.h.b16 %v5974
        %v6023 = vpack.c.b16 %v5991, %v5991
        %v6024 = vpack.c.b16 %v5992, %v5992
        %v6025 = vpack.c.b16 %v5993, %v5993
        %v6026 = vpack.c.b16 %v5994, %v5994
        %v6027 = vpack.c.b16 %v5995, %v5995
        %v6028 = vpack.c.b16 %v5996, %v5996
        %v6029 = vpack.c.b16 %v5997, %v5997
        %v6030 = vpack.c.b16 %v5998, %v5998
        %v6031 = vpack.c.b16 %v5999, %v5999
        %v6032 = vpack.c.b16 %v6000, %v6000
        %v6033 = vpack.c.b16 %v6001, %v6001
        %v6034 = vpack.c.b16 %v6002, %v6002
        %v6035 = vpack.c.b16 %v6003, %v6003
        %v6036 = vpack.c.b16 %v6004, %v6004
        %v6037 = vpack.c.b16 %v6005, %v6005
        %v6038 = vpack.c.b16 %v6006, %v6006
        %v6039 = vpack.c.b16 %v6007, %v6007
        %v6040 = vpack.c.b16 %v6008, %v6008
        %v6041 = vpack.c.b16 %v6009, %v6009
        %v6042 = vpack.c.b16 %v6010, %v6010
        %v6043 = vpack.c.b16 %v6011, %v6011
        %v6044 = vpack.c.b16 %v6012, %v6012
        %v6045 = vpack.c.b16 %v6013, %v6013
        %v6046 = vpack.c.b16 %v6014, %v6014
        %v6047 = vpack.c.b16 %v6015, %v6015
        %v6048 = vpack.c.b16 %v6016, %v6016
        %v6049 = vpack.c.b16 %v6017, %v6017
        %v6050 = vpack.c.b16 %v6018, %v6018
        %v6051 = vpack.c.b16 %v6019, %v6019
        %v6052 = vpack.c.b16 %v6020, %v6020
        %v6053 = vpack.c.b16 %v6021, %v6021
        %v6054 = vpack.c.b16 %v6022, %v6022
        %6087 = vst [vmem:[#allocation3 + $0x1c] sm:$0xf] %v6023
        %6088 = vst [vmem:[#allocation3 + $0x40] sm:$0xf] %v6024
        %6089 = vst [vmem:[#allocation3 + $0x64] sm:$0xf] %v6025
        %6090 = vst [vmem:[#allocation3 + $0x88] sm:$0xf] %v6026
        %6091 = vst [vmem:[#allocation3 + $0xac] sm:$0xf] %v6027
        %6092 = vst [vmem:[#allocation3 + $0xd0] sm:$0xf] %v6028
        %6093 = vst [vmem:[#allocation3 + $0xf4] sm:$0xf] %v6029
        %6094 = vst [vmem:[#allocation3 + $0x118] sm:$0xf] %v6030
        %6095 = vst [vmem:[#allocation3 + $0x13c] sm:$0xf] %v6031
        %6096 = vst [vmem:[#allocation3 + $0x160] sm:$0xf] %v6032
        %6097 = vst [vmem:[#allocation3 + $0x184] sm:$0xf] %v6033
        %6098 = vst [vmem:[#allocation3 + $0x1a8] sm:$0xf] %v6034
        %6099 = vst [vmem:[#allocation3 + $0x1cc] sm:$0xf] %v6035
        %6100 = vst [vmem:[#allocation3 + $0x1f0] sm:$0xf] %v6036
        %6101 = vst [vmem:[#allocation3 + $0x214] sm:$0xf] %v6037
        %6102 = vst [vmem:[#allocation3 + $0x238] sm:$0xf] %v6038
        %6103 = vst [vmem:[#allocation3 + $0x25c] sm:$0xf] %v6039
        %6104 = vst [vmem:[#allocation3 + $0x280] sm:$0xf] %v6040
        %6105 = vst [vmem:[#allocation3 + $0x2a4] sm:$0xf] %v6041
        %6106 = vst [vmem:[#allocation3 + $0x2c8] sm:$0xf] %v6042
        %6107 = vst [vmem:[#allocation3 + $0x2ec] sm:$0xf] %v6043
        %6108 = vst [vmem:[#allocation3 + $0x310] sm:$0xf] %v6044
        %6109 = vst [vmem:[#allocation3 + $0x334] sm:$0xf] %v6045
        %6110 = vst [vmem:[#allocation3 + $0x358] sm:$0xf] %v6046
        %6111 = vst [vmem:[#allocation3 + $0x37c] sm:$0xf] %v6047
        %6112 = vst [vmem:[#allocation3 + $0x3a0] sm:$0xf] %v6048
        %6113 = vst [vmem:[#allocation3 + $0x3c4] sm:$0xf] %v6049
        %6114 = vst [vmem:[#allocation3 + $0x3e8] sm:$0xf] %v6050
        %6115 = vst [vmem:[#allocation3 + $0x40c] sm:$0xf] %v6051
        %6116 = vst [vmem:[#allocation3 + $0x430] sm:$0xf] %v6052
        %6117 = vst [vmem:[#allocation3 + $0x454] sm:$0xf] %v6053
        %6118 = vst [vmem:[#allocation3 + $0x478] sm:$0xf] %v6054
        %v6119 = vld [vmem:[%s1587 + $0x2] sm:$0xff]
        %v6120 = vld [vmem:[%s1587 + $0xa] sm:$0xff]
        %v6121 = vld [vmem:[%s1587 + $0x1a] sm:$0xff]
        %v6122 = vld [vmem:[%s1587 + $0x22] sm:$0xff]
        %v6123 = vld [vmem:[%s1587 + $0x32] sm:$0xff]
        %v6124 = vld [vmem:[%s1587 + $0x3a] sm:$0xff]
        %v6125 = vld [vmem:[%s1587 + $0x4a] sm:$0xff]
        %v6126 = vld [vmem:[%s1587 + $0x52] sm:$0xff]
        %v6127 = vld [vmem:[%s1587 + $0x62] sm:$0xff]
        %v6128 = vld [vmem:[%s1587 + $0x6a] sm:$0xff]
        %v6129 = vld [vmem:[%s1587 + $0x7a] sm:$0xff]
        %v6130 = vld [vmem:[%s1587 + $0x82] sm:$0xff]
        %v6131 = vld [vmem:[%s1587 + $0x92] sm:$0xff]
        %v6132 = vld [vmem:[%s1587 + $0x9a] sm:$0xff]
        %v6133 = vld [vmem:[%s1587 + $0xaa] sm:$0xff]
        %v6134 = vld [vmem:[%s1587 + $0xb2] sm:$0xff]
        %v6135 = vld [vmem:[%s1587 + $0xc2] sm:$0xff]
        %v6136 = vld [vmem:[%s1587 + $0xca] sm:$0xff]
        %v6137 = vld [vmem:[%s1587 + $0xda] sm:$0xff]
        %v6138 = vld [vmem:[%s1587 + $0xe2] sm:$0xff]
        %v6139 = vld [vmem:[%s1587 + $0xf2] sm:$0xff]
        %v6140 = vld [vmem:[%s1587 + $0xfa] sm:$0xff]
        %v6141 = vld [vmem:[%s1587 + $0x10a] sm:$0xff]
        %v6142 = vld [vmem:[%s1587 + $0x112] sm:$0xff]
        %v6143 = vld [vmem:[%s1587 + $0x122] sm:$0xff]
        %v6144 = vld [vmem:[%s1587 + $0x12a] sm:$0xff]
        %v6145 = vld [vmem:[%s1587 + $0x13a] sm:$0xff]
        %v6146 = vld [vmem:[%s1587 + $0x142] sm:$0xff]
        %v6147 = vld [vmem:[%s1587 + $0x152] sm:$0xff]
        %v6148 = vld [vmem:[%s1587 + $0x15a] sm:$0xff]
        %v6149 = vld [vmem:[%s1587 + $0x16a] sm:$0xff]
        %v6150 = vld [vmem:[%s1587 + $0x172] sm:$0xff]
        %v6151 = vpack.c.bf16 %v6120, %v6119
        %v6152 = vpack.c.bf16 %v6122, %v6121
        %v6153 = vpack.c.bf16 %v6124, %v6123
        %v6154 = vpack.c.bf16 %v6126, %v6125
        %v6155 = vpack.c.bf16 %v6128, %v6127
        %v6156 = vpack.c.bf16 %v6130, %v6129
        %v6157 = vpack.c.bf16 %v6132, %v6131
        %v6158 = vpack.c.bf16 %v6134, %v6133
        %v6159 = vpack.c.bf16 %v6136, %v6135
        %v6160 = vpack.c.bf16 %v6138, %v6137
        %v6161 = vpack.c.bf16 %v6140, %v6139
        %v6162 = vpack.c.bf16 %v6142, %v6141
        %v6163 = vpack.c.bf16 %v6144, %v6143
        %v6164 = vpack.c.bf16 %v6146, %v6145
        %v6165 = vpack.c.bf16 %v6148, %v6147
        %v6166 = vpack.c.bf16 %v6150, %v6149
        %v6183 = vunpack.c.l.b16 %v6151
        %v6184 = vunpack.c.h.b16 %v6151
        %v6185 = vunpack.c.l.b16 %v6152
        %v6186 = vunpack.c.h.b16 %v6152
        %v6187 = vunpack.c.l.b16 %v6153
        %v6188 = vunpack.c.h.b16 %v6153
        %v6189 = vunpack.c.l.b16 %v6154
        %v6190 = vunpack.c.h.b16 %v6154
        %v6191 = vunpack.c.l.b16 %v6155
        %v6192 = vunpack.c.h.b16 %v6155
        %v6193 = vunpack.c.l.b16 %v6156
        %v6194 = vunpack.c.h.b16 %v6156
        %v6195 = vunpack.c.l.b16 %v6157
        %v6196 = vunpack.c.h.b16 %v6157
        %v6197 = vunpack.c.l.b16 %v6158
        %v6198 = vunpack.c.h.b16 %v6158
        %v6199 = vunpack.c.l.b16 %v6159
        %v6200 = vunpack.c.h.b16 %v6159
        %v6201 = vunpack.c.l.b16 %v6160
        %v6202 = vunpack.c.h.b16 %v6160
        %v6203 = vunpack.c.l.b16 %v6161
        %v6204 = vunpack.c.h.b16 %v6161
        %v6205 = vunpack.c.l.b16 %v6162
        %v6206 = vunpack.c.h.b16 %v6162
        %v6207 = vunpack.c.l.b16 %v6163
        %v6208 = vunpack.c.h.b16 %v6163
        %v6209 = vunpack.c.l.b16 %v6164
        %v6210 = vunpack.c.h.b16 %v6164
        %v6211 = vunpack.c.l.b16 %v6165
        %v6212 = vunpack.c.h.b16 %v6165
        %v6213 = vunpack.c.l.b16 %v6166
        %v6214 = vunpack.c.h.b16 %v6166
        %v6215 = vpack.c.b16 %v6183, %v6183
        %v6216 = vpack.c.b16 %v6184, %v6184
        %v6217 = vpack.c.b16 %v6185, %v6185
        %v6218 = vpack.c.b16 %v6186, %v6186
        %v6219 = vpack.c.b16 %v6187, %v6187
        %v6220 = vpack.c.b16 %v6188, %v6188
        %v6221 = vpack.c.b16 %v6189, %v6189
        %v6222 = vpack.c.b16 %v6190, %v6190
        %v6223 = vpack.c.b16 %v6191, %v6191
        %v6224 = vpack.c.b16 %v6192, %v6192
        %v6225 = vpack.c.b16 %v6193, %v6193
        %v6226 = vpack.c.b16 %v6194, %v6194
        %v6227 = vpack.c.b16 %v6195, %v6195
        %v6228 = vpack.c.b16 %v6196, %v6196
        %v6229 = vpack.c.b16 %v6197, %v6197
        %v6230 = vpack.c.b16 %v6198, %v6198
        %v6231 = vpack.c.b16 %v6199, %v6199
        %v6232 = vpack.c.b16 %v6200, %v6200
        %v6233 = vpack.c.b16 %v6201, %v6201
        %v6234 = vpack.c.b16 %v6202, %v6202
        %v6235 = vpack.c.b16 %v6203, %v6203
        %v6236 = vpack.c.b16 %v6204, %v6204
        %v6237 = vpack.c.b16 %v6205, %v6205
        %v6238 = vpack.c.b16 %v6206, %v6206
        %v6239 = vpack.c.b16 %v6207, %v6207
        %v6240 = vpack.c.b16 %v6208, %v6208
        %v6241 = vpack.c.b16 %v6209, %v6209
        %v6242 = vpack.c.b16 %v6210, %v6210
        %v6243 = vpack.c.b16 %v6211, %v6211
        %v6244 = vpack.c.b16 %v6212, %v6212
        %v6245 = vpack.c.b16 %v6213, %v6213
        %v6246 = vpack.c.b16 %v6214, %v6214
        %6279 = vst [vmem:[#allocation3 + $0x20] sm:$0xf] %v6215
        %6280 = vst [vmem:[#allocation3 + $0x44] sm:$0xf] %v6216
        %6281 = vst [vmem:[#allocation3 + $0x68] sm:$0xf] %v6217
        %6282 = vst [vmem:[#allocation3 + $0x8c] sm:$0xf] %v6218
        %6283 = vst [vmem:[#allocation3 + $0xb0] sm:$0xf] %v6219
        %6284 = vst [vmem:[#allocation3 + $0xd4] sm:$0xf] %v6220
        %6285 = vst [vmem:[#allocation3 + $0xf8] sm:$0xf] %v6221
        %6286 = vst [vmem:[#allocation3 + $0x11c] sm:$0xf] %v6222
        %6287 = vst [vmem:[#allocation3 + $0x140] sm:$0xf] %v6223
        %6288 = vst [vmem:[#allocation3 + $0x164] sm:$0xf] %v6224
        %6289 = vst [vmem:[#allocation3 + $0x188] sm:$0xf] %v6225
        %6290 = vst [vmem:[#allocation3 + $0x1ac] sm:$0xf] %v6226
        %6291 = vst [vmem:[#allocation3 + $0x1d0] sm:$0xf] %v6227
        %6292 = vst [vmem:[#allocation3 + $0x1f4] sm:$0xf] %v6228
        %6293 = vst [vmem:[#allocation3 + $0x218] sm:$0xf] %v6229
        %6294 = vst [vmem:[#allocation3 + $0x23c] sm:$0xf] %v6230
        %6295 = vst [vmem:[#allocation3 + $0x260] sm:$0xf] %v6231
        %6296 = vst [vmem:[#allocation3 + $0x284] sm:$0xf] %v6232
        %6297 = vst [vmem:[#allocation3 + $0x2a8] sm:$0xf] %v6233
        %6298 = vst [vmem:[#allocation3 + $0x2cc] sm:$0xf] %v6234
        %6299 = vst [vmem:[#allocation3 + $0x2f0] sm:$0xf] %v6235
        %6300 = vst [vmem:[#allocation3 + $0x314] sm:$0xf] %v6236
        %6301 = vst [vmem:[#allocation3 + $0x338] sm:$0xf] %v6237
        %6302 = vst [vmem:[#allocation3 + $0x35c] sm:$0xf] %v6238
        %6303 = vst [vmem:[#allocation3 + $0x380] sm:$0xf] %v6239
        %6304 = vst [vmem:[#allocation3 + $0x3a4] sm:$0xf] %v6240
        %6305 = vst [vmem:[#allocation3 + $0x3c8] sm:$0xf] %v6241
        %6306 = vst [vmem:[#allocation3 + $0x3ec] sm:$0xf] %v6242
        %6307 = vst [vmem:[#allocation3 + $0x410] sm:$0xf] %v6243
        %6308 = vst [vmem:[#allocation3 + $0x434] sm:$0xf] %v6244
        %6309 = vst [vmem:[#allocation3 + $0x458] sm:$0xf] %v6245
        %6310 = vst [vmem:[#allocation3 + $0x47c] sm:$0xf] %v6246
        %v6311 = vld [vmem:[#allocation3] sm:$0xff]
        %v6312 = vld [vmem:[#allocation3 + $0x8] sm:$0xff]
        %v6313 = vld [vmem:[#allocation3 + $0x10] sm:$0xff]
        %v6314 = vld [vmem:[#allocation3 + $0x18] sm:$0xff]
        %v6315 = vld [vmem:[#allocation3 + $0x20] sm:$0xf]
        %v6316 = vld [vmem:[#allocation3 + $0x24] sm:$0xff]
        %v6317 = vld [vmem:[#allocation3 + $0x2c] sm:$0xff]
        %v6318 = vld [vmem:[#allocation3 + $0x34] sm:$0xff]
        %v6319 = vld [vmem:[#allocation3 + $0x3c] sm:$0xff]
        %v6320 = vld [vmem:[#allocation3 + $0x44] sm:$0xf]
        %v6321 = vld [vmem:[#allocation3 + $0x48] sm:$0xff]
        %v6322 = vld [vmem:[#allocation3 + $0x50] sm:$0xff]
        %v6323 = vld [vmem:[#allocation3 + $0x58] sm:$0xff]
        %v6324 = vld [vmem:[#allocation3 + $0x60] sm:$0xff]
        %v6325 = vld [vmem:[#allocation3 + $0x68] sm:$0xf]
        %v6326 = vld [vmem:[#allocation3 + $0x6c] sm:$0xff]
        %v6327 = vld [vmem:[#allocation3 + $0x74] sm:$0xff]
        %v6328 = vld [vmem:[#allocation3 + $0x7c] sm:$0xff]
        %v6329 = vld [vmem:[#allocation3 + $0x84] sm:$0xff]
        %v6330 = vld [vmem:[#allocation3 + $0x8c] sm:$0xf]
        %v6331 = vld [vmem:[#allocation3 + $0x90] sm:$0xff]
        %v6332 = vld [vmem:[#allocation3 + $0x98] sm:$0xff]
        %v6333 = vld [vmem:[#allocation3 + $0xa0] sm:$0xff]
        %v6334 = vld [vmem:[#allocation3 + $0xa8] sm:$0xff]
        %v6335 = vld [vmem:[#allocation3 + $0xb0] sm:$0xf]
        %v6336 = vld [vmem:[#allocation3 + $0xb4] sm:$0xff]
        %v6337 = vld [vmem:[#allocation3 + $0xbc] sm:$0xff]
        %v6338 = vld [vmem:[#allocation3 + $0xc4] sm:$0xff]
        %v6339 = vld [vmem:[#allocation3 + $0xcc] sm:$0xff]
        %v6340 = vld [vmem:[#allocation3 + $0xd4] sm:$0xf]
        %v6341 = vld [vmem:[#allocation3 + $0xd8] sm:$0xff]
        %v6342 = vld [vmem:[#allocation3 + $0xe0] sm:$0xff]
        %v6343 = vld [vmem:[#allocation3 + $0xe8] sm:$0xff]
        %v6344 = vld [vmem:[#allocation3 + $0xf0] sm:$0xff]
        %v6345 = vld [vmem:[#allocation3 + $0xf8] sm:$0xf]
        %v6346 = vld [vmem:[#allocation3 + $0xfc] sm:$0xff]
        %v6347 = vld [vmem:[#allocation3 + $0x104] sm:$0xff]
        %v6348 = vld [vmem:[#allocation3 + $0x10c] sm:$0xff]
        %v6349 = vld [vmem:[#allocation3 + $0x114] sm:$0xff]
        %v6350 = vld [vmem:[#allocation3 + $0x11c] sm:$0xf]
        %v6351 = vld [vmem:[#allocation3 + $0x120] sm:$0xff]
        %v6352 = vld [vmem:[#allocation3 + $0x128] sm:$0xff]
        %v6353 = vld [vmem:[#allocation3 + $0x130] sm:$0xff]
        %v6354 = vld [vmem:[#allocation3 + $0x138] sm:$0xff]
        %v6355 = vld [vmem:[#allocation3 + $0x140] sm:$0xf]
        %v6356 = vld [vmem:[#allocation3 + $0x144] sm:$0xff]
        %v6357 = vld [vmem:[#allocation3 + $0x14c] sm:$0xff]
        %v6358 = vld [vmem:[#allocation3 + $0x154] sm:$0xff]
        %v6359 = vld [vmem:[#allocation3 + $0x15c] sm:$0xff]
        %v6360 = vld [vmem:[#allocation3 + $0x164] sm:$0xf]
        %v6361 = vld [vmem:[#allocation3 + $0x168] sm:$0xff]
        %v6362 = vld [vmem:[#allocation3 + $0x170] sm:$0xff]
        %v6363 = vld [vmem:[#allocation3 + $0x178] sm:$0xff]
        %v6364 = vld [vmem:[#allocation3 + $0x180] sm:$0xff]
        %v6365 = vld [vmem:[#allocation3 + $0x188] sm:$0xf]
        %v6366 = vld [vmem:[#allocation3 + $0x18c] sm:$0xff]
        %v6367 = vld [vmem:[#allocation3 + $0x194] sm:$0xff]
        %v6368 = vld [vmem:[#allocation3 + $0x19c] sm:$0xff]
        %v6369 = vld [vmem:[#allocation3 + $0x1a4] sm:$0xff]
        %v6370 = vld [vmem:[#allocation3 + $0x1ac] sm:$0xf]
        %v6371 = vld [vmem:[#allocation3 + $0x1b0] sm:$0xff]
        %v6372 = vld [vmem:[#allocation3 + $0x1b8] sm:$0xff]
        %v6373 = vld [vmem:[#allocation3 + $0x1c0] sm:$0xff]
        %v6374 = vld [vmem:[#allocation3 + $0x1c8] sm:$0xff]
        %v6375 = vld [vmem:[#allocation3 + $0x1d0] sm:$0xf]
        %v6376 = vld [vmem:[#allocation3 + $0x1d4] sm:$0xff]
        %v6377 = vld [vmem:[#allocation3 + $0x1dc] sm:$0xff]
        %v6378 = vld [vmem:[#allocation3 + $0x1e4] sm:$0xff]
        %v6379 = vld [vmem:[#allocation3 + $0x1ec] sm:$0xff]
        %v6380 = vld [vmem:[#allocation3 + $0x1f4] sm:$0xf]
        %v6381 = vld [vmem:[#allocation3 + $0x1f8] sm:$0xff]
        %v6382 = vld [vmem:[#allocation3 + $0x200] sm:$0xff]
        %v6383 = vld [vmem:[#allocation3 + $0x208] sm:$0xff]
        %v6384 = vld [vmem:[#allocation3 + $0x210] sm:$0xff]
        %v6385 = vld [vmem:[#allocation3 + $0x218] sm:$0xf]
        %v6386 = vld [vmem:[#allocation3 + $0x21c] sm:$0xff]
        %v6387 = vld [vmem:[#allocation3 + $0x224] sm:$0xff]
        %v6388 = vld [vmem:[#allocation3 + $0x22c] sm:$0xff]
        %v6389 = vld [vmem:[#allocation3 + $0x234] sm:$0xff]
        %v6390 = vld [vmem:[#allocation3 + $0x23c] sm:$0xf]
        %v6391 = vld [vmem:[#allocation3 + $0x240] sm:$0xff]
        %v6392 = vld [vmem:[#allocation3 + $0x248] sm:$0xff]
        %v6393 = vld [vmem:[#allocation3 + $0x250] sm:$0xff]
        %v6394 = vld [vmem:[#allocation3 + $0x258] sm:$0xff]
        %v6395 = vld [vmem:[#allocation3 + $0x260] sm:$0xf]
        %v6396 = vld [vmem:[#allocation3 + $0x264] sm:$0xff]
        %v6397 = vld [vmem:[#allocation3 + $0x26c] sm:$0xff]
        %v6398 = vld [vmem:[#allocation3 + $0x274] sm:$0xff]
        %v6399 = vld [vmem:[#allocation3 + $0x27c] sm:$0xff]
        %v6400 = vld [vmem:[#allocation3 + $0x284] sm:$0xf]
        %v6401 = vld [vmem:[#allocation3 + $0x288] sm:$0xff]
        %v6402 = vld [vmem:[#allocation3 + $0x290] sm:$0xff]
        %v6403 = vld [vmem:[#allocation3 + $0x298] sm:$0xff]
        %v6404 = vld [vmem:[#allocation3 + $0x2a0] sm:$0xff]
        %v6405 = vld [vmem:[#allocation3 + $0x2a8] sm:$0xf]
        %v6406 = vld [vmem:[#allocation3 + $0x2ac] sm:$0xff]
        %v6407 = vld [vmem:[#allocation3 + $0x2b4] sm:$0xff]
        %v6408 = vld [vmem:[#allocation3 + $0x2bc] sm:$0xff]
        %v6409 = vld [vmem:[#allocation3 + $0x2c4] sm:$0xff]
        %v6410 = vld [vmem:[#allocation3 + $0x2cc] sm:$0xf]
        %v6411 = vld [vmem:[#allocation3 + $0x2d0] sm:$0xff]
        %v6412 = vld [vmem:[#allocation3 + $0x2d8] sm:$0xff]
        %v6413 = vld [vmem:[#allocation3 + $0x2e0] sm:$0xff]
        %v6414 = vld [vmem:[#allocation3 + $0x2e8] sm:$0xff]
        %v6415 = vld [vmem:[#allocation3 + $0x2f0] sm:$0xf]
        %v6416 = vld [vmem:[#allocation3 + $0x2f4] sm:$0xff]
        %v6417 = vld [vmem:[#allocation3 + $0x2fc] sm:$0xff]
        %v6418 = vld [vmem:[#allocation3 + $0x304] sm:$0xff]
        %v6419 = vld [vmem:[#allocation3 + $0x30c] sm:$0xff]
        %v6420 = vld [vmem:[#allocation3 + $0x314] sm:$0xf]
        %v6421 = vld [vmem:[#allocation3 + $0x318] sm:$0xff]
        %v6422 = vld [vmem:[#allocation3 + $0x320] sm:$0xff]
        %v6423 = vld [vmem:[#allocation3 + $0x328] sm:$0xff]
        %v6424 = vld [vmem:[#allocation3 + $0x330] sm:$0xff]
        %v6425 = vld [vmem:[#allocation3 + $0x338] sm:$0xf]
        %v6426 = vld [vmem:[#allocation3 + $0x33c] sm:$0xff]
        %v6427 = vld [vmem:[#allocation3 + $0x344] sm:$0xff]
        %v6428 = vld [vmem:[#allocation3 + $0x34c] sm:$0xff]
        %v6429 = vld [vmem:[#allocation3 + $0x354] sm:$0xff]
        %v6430 = vld [vmem:[#allocation3 + $0x35c] sm:$0xf]
        %v6431 = vld [vmem:[#allocation3 + $0x360] sm:$0xff]
        %v6432 = vld [vmem:[#allocation3 + $0x368] sm:$0xff]
        %v6433 = vld [vmem:[#allocation3 + $0x370] sm:$0xff]
        %v6434 = vld [vmem:[#allocation3 + $0x378] sm:$0xff]
        %v6435 = vld [vmem:[#allocation3 + $0x380] sm:$0xf]
        %v6436 = vld [vmem:[#allocation3 + $0x384] sm:$0xff]
        %v6437 = vld [vmem:[#allocation3 + $0x38c] sm:$0xff]
        %v6438 = vld [vmem:[#allocation3 + $0x394] sm:$0xff]
        %v6439 = vld [vmem:[#allocation3 + $0x39c] sm:$0xff]
        %v6440 = vld [vmem:[#allocation3 + $0x3a4] sm:$0xf]
        %v6441 = vld [vmem:[#allocation3 + $0x3a8] sm:$0xff]
        %v6442 = vld [vmem:[#allocation3 + $0x3b0] sm:$0xff]
        %v6443 = vld [vmem:[#allocation3 + $0x3b8] sm:$0xff]
        %v6444 = vld [vmem:[#allocation3 + $0x3c0] sm:$0xff]
        %v6445 = vld [vmem:[#allocation3 + $0x3c8] sm:$0xf]
        %v6446 = vld [vmem:[#allocation3 + $0x3cc] sm:$0xff]
        %v6447 = vld [vmem:[#allocation3 + $0x3d4] sm:$0xff]
        %v6448 = vld [vmem:[#allocation3 + $0x3dc] sm:$0xff]
        %v6449 = vld [vmem:[#allocation3 + $0x3e4] sm:$0xff]
        %v6450 = vld [vmem:[#allocation3 + $0x3ec] sm:$0xf]
        %v6451 = vld [vmem:[#allocation3 + $0x3f0] sm:$0xff]
        %v6452 = vld [vmem:[#allocation3 + $0x3f8] sm:$0xff]
        %v6453 = vld [vmem:[#allocation3 + $0x400] sm:$0xff]
        %v6454 = vld [vmem:[#allocation3 + $0x408] sm:$0xff]
        %v6455 = vld [vmem:[#allocation3 + $0x410] sm:$0xf]
        %v6456 = vld [vmem:[#allocation3 + $0x414] sm:$0xff]
        %v6457 = vld [vmem:[#allocation3 + $0x41c] sm:$0xff]
        %v6458 = vld [vmem:[#allocation3 + $0x424] sm:$0xff]
        %v6459 = vld [vmem:[#allocation3 + $0x42c] sm:$0xff]
        %v6460 = vld [vmem:[#allocation3 + $0x434] sm:$0xf]
        %v6461 = vld [vmem:[#allocation3 + $0x438] sm:$0xff]
        %v6462 = vld [vmem:[#allocation3 + $0x440] sm:$0xff]
        %v6463 = vld [vmem:[#allocation3 + $0x448] sm:$0xff]
        %v6464 = vld [vmem:[#allocation3 + $0x450] sm:$0xff]
        %v6465 = vld [vmem:[#allocation3 + $0x458] sm:$0xf]
        %v6466 = vld [vmem:[#allocation3 + $0x45c] sm:$0xff]
        %v6467 = vld [vmem:[#allocation3 + $0x464] sm:$0xff]
        %v6468 = vld [vmem:[#allocation3 + $0x46c] sm:$0xff]
        %v6469 = vld [vmem:[#allocation3 + $0x474] sm:$0xff]
        %v6470 = vld [vmem:[#allocation3 + $0x47c] sm:$0xf]
        %v6471 = vld [vmem:[#allocation9] sm:$0xf]
        %v6472 = vld [vmem:[#allocation9 + $0x4] sm:$0xf]
        %v6473 = vld [vmem:[#allocation9 + $0x8] sm:$0xf]
        %v6474 = vld [vmem:[#allocation9 + $0xc] sm:$0xf]
        %v6475 = vld [vmem:[#allocation9 + $0x10] sm:$0xf]
        %v6476 = vld [vmem:[#allocation9 + $0x14] sm:$0xf]
        %v6477 = vld [vmem:[#allocation9 + $0x18] sm:$0xf]
        %v6478 = vld [vmem:[#allocation9 + $0x1c] sm:$0xf]
        %v6479 = vld [vmem:[#allocation9 + $0x20] sm:$0xf]
        %v6480 = vld [vmem:[#allocation9 + $0x24] sm:$0xf]
        %v6481 = vld [vmem:[#allocation9 + $0x28] sm:$0xf]
        %v6482 = vld [vmem:[#allocation9 + $0x2c] sm:$0xf]
        %v6483 = vld [vmem:[#allocation9 + $0x30] sm:$0xf]
        %v6484 = vld [vmem:[#allocation9 + $0x34] sm:$0xf]
        %v6485 = vld [vmem:[#allocation9 + $0x38] sm:$0xf]
        %v6486 = vld [vmem:[#allocation9 + $0x3c] sm:$0xf]
        %v6487 = vld [vmem:[#allocation9 + $0x40] sm:$0xf]
        %v6488 = vld [vmem:[#allocation9 + $0x44] sm:$0xf]
        %v6489 = vld [vmem:[#allocation9 + $0x48] sm:$0xf]
        %v6490 = vld [vmem:[#allocation9 + $0x4c] sm:$0xf]
        %v6491 = vld [vmem:[#allocation9 + $0x50] sm:$0xf]
        %v6492 = vld [vmem:[#allocation9 + $0x54] sm:$0xf]
        %v6493 = vld [vmem:[#allocation9 + $0x58] sm:$0xf]
        %v6494 = vld [vmem:[#allocation9 + $0x5c] sm:$0xf]
        %v6495 = vld [vmem:[#allocation9 + $0x60] sm:$0xf]
        %v6496 = vld [vmem:[#allocation9 + $0x64] sm:$0xf]
        %v6497 = vld [vmem:[#allocation9 + $0x68] sm:$0xf]
        %v6498 = vld [vmem:[#allocation9 + $0x6c] sm:$0xf]
        %v6499 = vld [vmem:[#allocation9 + $0x70] sm:$0xf]
        %v6500 = vld [vmem:[#allocation9 + $0x74] sm:$0xf]
        %v6501 = vld [vmem:[#allocation9 + $0x78] sm:$0xf]
        %v6502 = vld [vmem:[#allocation9 + $0x7c] sm:$0xf]
        %v6503 = vld [vmem:[#allocation9 + $0x80] sm:$0xf]
        %v6504 = vld [vmem:[#allocation9 + $0x84] sm:$0xf]
        %v6505 = vld [vmem:[#allocation9 + $0x88] sm:$0xf]
        %v6506 = vld [vmem:[#allocation9 + $0x8c] sm:$0xf]
        %v6507 = vld [vmem:[#allocation9 + $0x90] sm:$0xf]
        %v6508 = vld [vmem:[#allocation9 + $0x94] sm:$0xf]
        %v6509 = vld [vmem:[#allocation9 + $0x98] sm:$0xf]
        %v6510 = vld [vmem:[#allocation9 + $0x9c] sm:$0xf]
        %v6511 = vld [vmem:[#allocation9 + $0xa0] sm:$0xf]
        %v6512 = vld [vmem:[#allocation9 + $0xa4] sm:$0xf]
        %v6513 = vld [vmem:[#allocation9 + $0xa8] sm:$0xf]
        %v6514 = vld [vmem:[#allocation9 + $0xac] sm:$0xf]
        %v6515 = vld [vmem:[#allocation9 + $0xb0] sm:$0xf]
        %v6516 = vld [vmem:[#allocation9 + $0xb4] sm:$0xf]
        %v6517 = vld [vmem:[#allocation9 + $0xb8] sm:$0xf]
        %v6518 = vld [vmem:[#allocation9 + $0xbc] sm:$0xf]
        %v6519 = vld [vmem:[#allocation9 + $0xc0] sm:$0xf]
        %v6520 = vld [vmem:[#allocation9 + $0xc4] sm:$0xf]
        %v6521 = vld [vmem:[#allocation9 + $0xc8] sm:$0xf]
        %v6522 = vld [vmem:[#allocation9 + $0xcc] sm:$0xf]
        %v6523 = vld [vmem:[#allocation9 + $0xd0] sm:$0xf]
        %v6524 = vld [vmem:[#allocation9 + $0xd4] sm:$0xf]
        %v6525 = vld [vmem:[#allocation9 + $0xd8] sm:$0xf]
        %v6526 = vld [vmem:[#allocation9 + $0xdc] sm:$0xf]
        %v6527 = vld [vmem:[#allocation9 + $0xe0] sm:$0xf]
        %v6528 = vld [vmem:[#allocation9 + $0xe4] sm:$0xf]
        %v6529 = vld [vmem:[#allocation9 + $0xe8] sm:$0xf]
        %v6530 = vld [vmem:[#allocation9 + $0xec] sm:$0xf]
        %v6531 = vld [vmem:[#allocation9 + $0xf0] sm:$0xf]
        %v6532 = vld [vmem:[#allocation9 + $0xf4] sm:$0xf]
        %v6533 = vld [vmem:[#allocation9 + $0xf8] sm:$0xf]
        %v6534 = vld [vmem:[#allocation9 + $0xfc] sm:$0xf]
        %v6535 = vld [vmem:[#allocation9 + $0x100] sm:$0xf]
        %v6536 = vld [vmem:[#allocation9 + $0x104] sm:$0xf]
        %v6537 = vld [vmem:[#allocation9 + $0x108] sm:$0xf]
        %v6538 = vld [vmem:[#allocation9 + $0x10c] sm:$0xf]
        %v6539 = vld [vmem:[#allocation9 + $0x110] sm:$0xf]
        %v6540 = vld [vmem:[#allocation9 + $0x114] sm:$0xf]
        %v6541 = vld [vmem:[#allocation9 + $0x118] sm:$0xf]
        %v6542 = vld [vmem:[#allocation9 + $0x11c] sm:$0xf]
        %v6543 = vld [vmem:[#allocation9 + $0x120] sm:$0xf]
        %v6544 = vld [vmem:[#allocation9 + $0x124] sm:$0xf]
        %v6545 = vld [vmem:[#allocation9 + $0x128] sm:$0xf]
        %v6546 = vld [vmem:[#allocation9 + $0x12c] sm:$0xf]
        %v6547 = vld [vmem:[#allocation9 + $0x130] sm:$0xf]
        %v6548 = vld [vmem:[#allocation9 + $0x134] sm:$0xf]
        %v6549 = vld [vmem:[#allocation9 + $0x138] sm:$0xf]
        %v6550 = vld [vmem:[#allocation9 + $0x13c] sm:$0xf]
        %v6551 = vld [vmem:[#allocation9 + $0x140] sm:$0xf]
        %v6552 = vld [vmem:[#allocation9 + $0x144] sm:$0xf]
        %v6553 = vld [vmem:[#allocation9 + $0x148] sm:$0xf]
        %v6554 = vld [vmem:[#allocation9 + $0x14c] sm:$0xf]
        %v6555 = vld [vmem:[#allocation9 + $0x150] sm:$0xf]
        %v6556 = vld [vmem:[#allocation9 + $0x154] sm:$0xf]
        %v6557 = vld [vmem:[#allocation9 + $0x158] sm:$0xf]
        %v6558 = vld [vmem:[#allocation9 + $0x15c] sm:$0xf]
        %v6559 = vld [vmem:[#allocation9 + $0x160] sm:$0xf]
        %v6560 = vld [vmem:[#allocation9 + $0x164] sm:$0xf]
        %v6561 = vld [vmem:[#allocation9 + $0x168] sm:$0xf]
        %v6562 = vld [vmem:[#allocation9 + $0x16c] sm:$0xf]
        %v6563 = vld [vmem:[#allocation9 + $0x170] sm:$0xf]
        %v6564 = vld [vmem:[#allocation9 + $0x174] sm:$0xf]
        %v6565 = vld [vmem:[#allocation9 + $0x178] sm:$0xf]
        %v6566 = vld [vmem:[#allocation9 + $0x17c] sm:$0xf]
        %v6567 = vld [vmem:[#allocation9 + $0x180] sm:$0xf]
        %v6568 = vld [vmem:[#allocation9 + $0x184] sm:$0xf]
        %v6569 = vld [vmem:[#allocation9 + $0x188] sm:$0xf]
        %v6570 = vld [vmem:[#allocation9 + $0x18c] sm:$0xf]
        %v6571 = vld [vmem:[#allocation9 + $0x190] sm:$0xf]
        %v6572 = vld [vmem:[#allocation9 + $0x194] sm:$0xf]
        %v6573 = vld [vmem:[#allocation9 + $0x198] sm:$0xf]
        %v6574 = vld [vmem:[#allocation9 + $0x19c] sm:$0xf]
        %v6575 = vld [vmem:[#allocation9 + $0x1a0] sm:$0xf]
        %v6576 = vld [vmem:[#allocation9 + $0x1a4] sm:$0xf]
        %v6577 = vld [vmem:[#allocation9 + $0x1a8] sm:$0xf]
        %v6578 = vld [vmem:[#allocation9 + $0x1ac] sm:$0xf]
        %v6579 = vld [vmem:[#allocation9 + $0x1b0] sm:$0xf]
        %v6580 = vld [vmem:[#allocation9 + $0x1b4] sm:$0xf]
        %v6581 = vld [vmem:[#allocation9 + $0x1b8] sm:$0xf]
        %v6582 = vld [vmem:[#allocation9 + $0x1bc] sm:$0xf]
        %v6583 = vld [vmem:[#allocation9 + $0x1c0] sm:$0xf]
        %v6584 = vld [vmem:[#allocation9 + $0x1c4] sm:$0xf]
        %v6585 = vld [vmem:[#allocation9 + $0x1c8] sm:$0xf]
        %v6586 = vld [vmem:[#allocation9 + $0x1cc] sm:$0xf]
        %v6587 = vld [vmem:[#allocation9 + $0x1d0] sm:$0xf]
        %v6588 = vld [vmem:[#allocation9 + $0x1d4] sm:$0xf]
        %v6589 = vld [vmem:[#allocation9 + $0x1d8] sm:$0xf]
        %v6590 = vld [vmem:[#allocation9 + $0x1dc] sm:$0xf]
        %v6591 = vld [vmem:[#allocation9 + $0x1e0] sm:$0xf]
        %v6592 = vld [vmem:[#allocation9 + $0x1e4] sm:$0xf]
        %v6593 = vld [vmem:[#allocation9 + $0x1e8] sm:$0xf]
        %v6594 = vld [vmem:[#allocation9 + $0x1ec] sm:$0xf]
        %v6595 = vld [vmem:[#allocation9 + $0x1f0] sm:$0xf]
        %v6596 = vld [vmem:[#allocation9 + $0x1f4] sm:$0xf]
        %v6597 = vld [vmem:[#allocation9 + $0x1f8] sm:$0xf]
        %v6598 = vld [vmem:[#allocation9 + $0x1fc] sm:$0xf]
        %v6599 = vld [vmem:[#allocation9 + $0x200] sm:$0xf]
        %v6600 = vld [vmem:[#allocation9 + $0x204] sm:$0xf]
        %v6601 = vld [vmem:[#allocation9 + $0x208] sm:$0xf]
        %v6602 = vld [vmem:[#allocation9 + $0x20c] sm:$0xf]
        %v6603 = vld [vmem:[#allocation9 + $0x210] sm:$0xf]
        %v6604 = vld [vmem:[#allocation9 + $0x214] sm:$0xf]
        %v6605 = vld [vmem:[#allocation9 + $0x218] sm:$0xf]
        %v6606 = vld [vmem:[#allocation9 + $0x21c] sm:$0xf]
        %v6607 = vld [vmem:[#allocation9 + $0x220] sm:$0xf]
        %v6608 = vld [vmem:[#allocation9 + $0x224] sm:$0xf]
        %v6609 = vld [vmem:[#allocation9 + $0x228] sm:$0xf]
        %v6610 = vld [vmem:[#allocation9 + $0x22c] sm:$0xf]
        %v6611 = vld [vmem:[#allocation9 + $0x230] sm:$0xf]
        %v6612 = vld [vmem:[#allocation9 + $0x234] sm:$0xf]
        %v6613 = vld [vmem:[#allocation9 + $0x238] sm:$0xf]
        %v6614 = vld [vmem:[#allocation9 + $0x23c] sm:$0xf]
        %v6775 = vunpack.c.l.b16 %v6311
        %v6776 = vunpack.c.h.b16 %v6311
        %v6777 = vunpack.c.l.b16 %v6312
        %v6778 = vunpack.c.h.b16 %v6312
        %v6779 = vunpack.c.l.b16 %v6313
        %v6780 = vunpack.c.h.b16 %v6313
        %v6781 = vunpack.c.l.b16 %v6314
        %v6782 = vunpack.c.h.b16 %v6314
        %v6783 = vunpack.c.l.b16 %v6315
        %v6784 = vunpack.c.l.b16 %v6316
        %v6785 = vunpack.c.h.b16 %v6316
        %v6786 = vunpack.c.l.b16 %v6317
        %v6787 = vunpack.c.h.b16 %v6317
        %v6788 = vunpack.c.l.b16 %v6318
        %v6789 = vunpack.c.h.b16 %v6318
        %v6790 = vunpack.c.l.b16 %v6319
        %v6791 = vunpack.c.h.b16 %v6319
        %v6792 = vunpack.c.l.b16 %v6320
        %v6793 = vunpack.c.l.b16 %v6321
        %v6794 = vunpack.c.h.b16 %v6321
        %v6795 = vunpack.c.l.b16 %v6322
        %v6796 = vunpack.c.h.b16 %v6322
        %v6797 = vunpack.c.l.b16 %v6323
        %v6798 = vunpack.c.h.b16 %v6323
        %v6799 = vunpack.c.l.b16 %v6324
        %v6800 = vunpack.c.h.b16 %v6324
        %v6801 = vunpack.c.l.b16 %v6325
        %v6802 = vunpack.c.l.b16 %v6326
        %v6803 = vunpack.c.h.b16 %v6326
        %v6804 = vunpack.c.l.b16 %v6327
        %v6805 = vunpack.c.h.b16 %v6327
        %v6806 = vunpack.c.l.b16 %v6328
        %v6807 = vunpack.c.h.b16 %v6328
        %v6808 = vunpack.c.l.b16 %v6329
        %v6809 = vunpack.c.h.b16 %v6329
        %v6810 = vunpack.c.l.b16 %v6330
        %v6811 = vunpack.c.l.b16 %v6331
        %v6812 = vunpack.c.h.b16 %v6331
        %v6813 = vunpack.c.l.b16 %v6332
        %v6814 = vunpack.c.h.b16 %v6332
        %v6815 = vunpack.c.l.b16 %v6333
        %v6816 = vunpack.c.h.b16 %v6333
        %v6817 = vunpack.c.l.b16 %v6334
        %v6818 = vunpack.c.h.b16 %v6334
        %v6819 = vunpack.c.l.b16 %v6335
        %v6820 = vunpack.c.l.b16 %v6336
        %v6821 = vunpack.c.h.b16 %v6336
        %v6822 = vunpack.c.l.b16 %v6337
        %v6823 = vunpack.c.h.b16 %v6337
        %v6824 = vunpack.c.l.b16 %v6338
        %v6825 = vunpack.c.h.b16 %v6338
        %v6826 = vunpack.c.l.b16 %v6339
        %v6827 = vunpack.c.h.b16 %v6339
        %v6828 = vunpack.c.l.b16 %v6340
        %v6829 = vunpack.c.l.b16 %v6341
        %v6830 = vunpack.c.h.b16 %v6341
        %v6831 = vunpack.c.l.b16 %v6342
        %v6832 = vunpack.c.h.b16 %v6342
        %v6833 = vunpack.c.l.b16 %v6343
        %v6834 = vunpack.c.h.b16 %v6343
        %v6835 = vunpack.c.l.b16 %v6344
        %v6836 = vunpack.c.h.b16 %v6344
        %v6837 = vunpack.c.l.b16 %v6345
        %v6838 = vunpack.c.l.b16 %v6346
        %v6839 = vunpack.c.h.b16 %v6346
        %v6840 = vunpack.c.l.b16 %v6347
        %v6841 = vunpack.c.h.b16 %v6347
        %v6842 = vunpack.c.l.b16 %v6348
        %v6843 = vunpack.c.h.b16 %v6348
        %v6844 = vunpack.c.l.b16 %v6349
        %v6845 = vunpack.c.h.b16 %v6349
        %v6846 = vunpack.c.l.b16 %v6350
        %v6847 = vunpack.c.l.b16 %v6351
        %v6848 = vunpack.c.h.b16 %v6351
        %v6849 = vunpack.c.l.b16 %v6352
        %v6850 = vunpack.c.h.b16 %v6352
        %v6851 = vunpack.c.l.b16 %v6353
        %v6852 = vunpack.c.h.b16 %v6353
        %v6853 = vunpack.c.l.b16 %v6354
        %v6854 = vunpack.c.h.b16 %v6354
        %v6855 = vunpack.c.l.b16 %v6355
        %v6856 = vunpack.c.l.b16 %v6356
        %v6857 = vunpack.c.h.b16 %v6356
        %v6858 = vunpack.c.l.b16 %v6357
        %v6859 = vunpack.c.h.b16 %v6357
        %v6860 = vunpack.c.l.b16 %v6358
        %v6861 = vunpack.c.h.b16 %v6358
        %v6862 = vunpack.c.l.b16 %v6359
        %v6863 = vunpack.c.h.b16 %v6359
        %v6864 = vunpack.c.l.b16 %v6360
        %v6865 = vunpack.c.l.b16 %v6361
        %v6866 = vunpack.c.h.b16 %v6361
        %v6867 = vunpack.c.l.b16 %v6362
        %v6868 = vunpack.c.h.b16 %v6362
        %v6869 = vunpack.c.l.b16 %v6363
        %v6870 = vunpack.c.h.b16 %v6363
        %v6871 = vunpack.c.l.b16 %v6364
        %v6872 = vunpack.c.h.b16 %v6364
        %v6873 = vunpack.c.l.b16 %v6365
        %v6874 = vunpack.c.l.b16 %v6366
        %v6875 = vunpack.c.h.b16 %v6366
        %v6876 = vunpack.c.l.b16 %v6367
        %v6877 = vunpack.c.h.b16 %v6367
        %v6878 = vunpack.c.l.b16 %v6368
        %v6879 = vunpack.c.h.b16 %v6368
        %v6880 = vunpack.c.l.b16 %v6369
        %v6881 = vunpack.c.h.b16 %v6369
        %v6882 = vunpack.c.l.b16 %v6370
        %v6883 = vunpack.c.l.b16 %v6371
        %v6884 = vunpack.c.h.b16 %v6371
        %v6885 = vunpack.c.l.b16 %v6372
        %v6886 = vunpack.c.h.b16 %v6372
        %v6887 = vunpack.c.l.b16 %v6373
        %v6888 = vunpack.c.h.b16 %v6373
        %v6889 = vunpack.c.l.b16 %v6374
        %v6890 = vunpack.c.h.b16 %v6374
        %v6891 = vunpack.c.l.b16 %v6375
        %v6892 = vunpack.c.l.b16 %v6376
        %v6893 = vunpack.c.h.b16 %v6376
        %v6894 = vunpack.c.l.b16 %v6377
        %v6895 = vunpack.c.h.b16 %v6377
        %v6896 = vunpack.c.l.b16 %v6378
        %v6897 = vunpack.c.h.b16 %v6378
        %v6898 = vunpack.c.l.b16 %v6379
        %v6899 = vunpack.c.h.b16 %v6379
        %v6900 = vunpack.c.l.b16 %v6380
        %v6901 = vunpack.c.l.b16 %v6381
        %v6902 = vunpack.c.h.b16 %v6381
        %v6903 = vunpack.c.l.b16 %v6382
        %v6904 = vunpack.c.h.b16 %v6382
        %v6905 = vunpack.c.l.b16 %v6383
        %v6906 = vunpack.c.h.b16 %v6383
        %v6907 = vunpack.c.l.b16 %v6384
        %v6908 = vunpack.c.h.b16 %v6384
        %v6909 = vunpack.c.l.b16 %v6385
        %v6910 = vunpack.c.l.b16 %v6386
        %v6911 = vunpack.c.h.b16 %v6386
        %v6912 = vunpack.c.l.b16 %v6387
        %v6913 = vunpack.c.h.b16 %v6387
        %v6914 = vunpack.c.l.b16 %v6388
        %v6915 = vunpack.c.h.b16 %v6388
        %v6916 = vunpack.c.l.b16 %v6389
        %v6917 = vunpack.c.h.b16 %v6389
        %v6918 = vunpack.c.l.b16 %v6390
        %v6919 = vunpack.c.l.b16 %v6391
        %v6920 = vunpack.c.h.b16 %v6391
        %v6921 = vunpack.c.l.b16 %v6392
        %v6922 = vunpack.c.h.b16 %v6392
        %v6923 = vunpack.c.l.b16 %v6393
        %v6924 = vunpack.c.h.b16 %v6393
        %v6925 = vunpack.c.l.b16 %v6394
        %v6926 = vunpack.c.h.b16 %v6394
        %v6927 = vunpack.c.l.b16 %v6395
        %v6928 = vunpack.c.l.b16 %v6396
        %v6929 = vunpack.c.h.b16 %v6396
        %v6930 = vunpack.c.l.b16 %v6397
        %v6931 = vunpack.c.h.b16 %v6397
        %v6932 = vunpack.c.l.b16 %v6398
        %v6933 = vunpack.c.h.b16 %v6398
        %v6934 = vunpack.c.l.b16 %v6399
        %v6935 = vunpack.c.h.b16 %v6399
        %v6936 = vunpack.c.l.b16 %v6400
        %v6937 = vunpack.c.l.b16 %v6401
        %v6938 = vunpack.c.h.b16 %v6401
        %v6939 = vunpack.c.l.b16 %v6402
        %v6940 = vunpack.c.h.b16 %v6402
        %v6941 = vunpack.c.l.b16 %v6403
        %v6942 = vunpack.c.h.b16 %v6403
        %v6943 = vunpack.c.l.b16 %v6404
        %v6944 = vunpack.c.h.b16 %v6404
        %v6945 = vunpack.c.l.b16 %v6405
        %v6946 = vunpack.c.l.b16 %v6406
        %v6947 = vunpack.c.h.b16 %v6406
        %v6948 = vunpack.c.l.b16 %v6407
        %v6949 = vunpack.c.h.b16 %v6407
        %v6950 = vunpack.c.l.b16 %v6408
        %v6951 = vunpack.c.h.b16 %v6408
        %v6952 = vunpack.c.l.b16 %v6409
        %v6953 = vunpack.c.h.b16 %v6409
        %v6954 = vunpack.c.l.b16 %v6410
        %v6955 = vunpack.c.l.b16 %v6411
        %v6956 = vunpack.c.h.b16 %v6411
        %v6957 = vunpack.c.l.b16 %v6412
        %v6958 = vunpack.c.h.b16 %v6412
        %v6959 = vunpack.c.l.b16 %v6413
        %v6960 = vunpack.c.h.b16 %v6413
        %v6961 = vunpack.c.l.b16 %v6414
        %v6962 = vunpack.c.h.b16 %v6414
        %v6963 = vunpack.c.l.b16 %v6415
        %v6964 = vunpack.c.l.b16 %v6416
        %v6965 = vunpack.c.h.b16 %v6416
        %v6966 = vunpack.c.l.b16 %v6417
        %v6967 = vunpack.c.h.b16 %v6417
        %v6968 = vunpack.c.l.b16 %v6418
        %v6969 = vunpack.c.h.b16 %v6418
        %v6970 = vunpack.c.l.b16 %v6419
        %v6971 = vunpack.c.h.b16 %v6419
        %v6972 = vunpack.c.l.b16 %v6420
        %v6973 = vunpack.c.l.b16 %v6421
        %v6974 = vunpack.c.h.b16 %v6421
        %v6975 = vunpack.c.l.b16 %v6422
        %v6976 = vunpack.c.h.b16 %v6422
        %v6977 = vunpack.c.l.b16 %v6423
        %v6978 = vunpack.c.h.b16 %v6423
        %v6979 = vunpack.c.l.b16 %v6424
        %v6980 = vunpack.c.h.b16 %v6424
        %v6981 = vunpack.c.l.b16 %v6425
        %v6982 = vunpack.c.l.b16 %v6426
        %v6983 = vunpack.c.h.b16 %v6426
        %v6984 = vunpack.c.l.b16 %v6427
        %v6985 = vunpack.c.h.b16 %v6427
        %v6986 = vunpack.c.l.b16 %v6428
        %v6987 = vunpack.c.h.b16 %v6428
        %v6988 = vunpack.c.l.b16 %v6429
        %v6989 = vunpack.c.h.b16 %v6429
        %v6990 = vunpack.c.l.b16 %v6430
        %v6991 = vunpack.c.l.b16 %v6431
        %v6992 = vunpack.c.h.b16 %v6431
        %v6993 = vunpack.c.l.b16 %v6432
        %v6994 = vunpack.c.h.b16 %v6432
        %v6995 = vunpack.c.l.b16 %v6433
        %v6996 = vunpack.c.h.b16 %v6433
        %v6997 = vunpack.c.l.b16 %v6434
        %v6998 = vunpack.c.h.b16 %v6434
        %v6999 = vunpack.c.l.b16 %v6435
        %v7000 = vunpack.c.l.b16 %v6436
        %v7001 = vunpack.c.h.b16 %v6436
        %v7002 = vunpack.c.l.b16 %v6437
        %v7003 = vunpack.c.h.b16 %v6437
        %v7004 = vunpack.c.l.b16 %v6438
        %v7005 = vunpack.c.h.b16 %v6438
        %v7006 = vunpack.c.l.b16 %v6439
        %v7007 = vunpack.c.h.b16 %v6439
        %v7008 = vunpack.c.l.b16 %v6440
        %v7009 = vunpack.c.l.b16 %v6441
        %v7010 = vunpack.c.h.b16 %v6441
        %v7011 = vunpack.c.l.b16 %v6442
        %v7012 = vunpack.c.h.b16 %v6442
        %v7013 = vunpack.c.l.b16 %v6443
        %v7014 = vunpack.c.h.b16 %v6443
        %v7015 = vunpack.c.l.b16 %v6444
        %v7016 = vunpack.c.h.b16 %v6444
        %v7017 = vunpack.c.l.b16 %v6445
        %v7018 = vunpack.c.l.b16 %v6446
        %v7019 = vunpack.c.h.b16 %v6446
        %v7020 = vunpack.c.l.b16 %v6447
        %v7021 = vunpack.c.h.b16 %v6447
        %v7022 = vunpack.c.l.b16 %v6448
        %v7023 = vunpack.c.h.b16 %v6448
        %v7024 = vunpack.c.l.b16 %v6449
        %v7025 = vunpack.c.h.b16 %v6449
        %v7026 = vunpack.c.l.b16 %v6450
        %v7027 = vunpack.c.l.b16 %v6451
        %v7028 = vunpack.c.h.b16 %v6451
        %v7029 = vunpack.c.l.b16 %v6452
        %v7030 = vunpack.c.h.b16 %v6452
        %v7031 = vunpack.c.l.b16 %v6453
        %v7032 = vunpack.c.h.b16 %v6453
        %v7033 = vunpack.c.l.b16 %v6454
        %v7034 = vunpack.c.h.b16 %v6454
        %v7035 = vunpack.c.l.b16 %v6455
        %v7036 = vunpack.c.l.b16 %v6456
        %v7037 = vunpack.c.h.b16 %v6456
        %v7038 = vunpack.c.l.b16 %v6457
        %v7039 = vunpack.c.h.b16 %v6457
        %v7040 = vunpack.c.l.b16 %v6458
        %v7041 = vunpack.c.h.b16 %v6458
        %v7042 = vunpack.c.l.b16 %v6459
        %v7043 = vunpack.c.h.b16 %v6459
        %v7044 = vunpack.c.l.b16 %v6460
        %v7045 = vunpack.c.l.b16 %v6461
        %v7046 = vunpack.c.h.b16 %v6461
        %v7047 = vunpack.c.l.b16 %v6462
        %v7048 = vunpack.c.h.b16 %v6462
        %v7049 = vunpack.c.l.b16 %v6463
        %v7050 = vunpack.c.h.b16 %v6463
        %v7051 = vunpack.c.l.b16 %v6464
        %v7052 = vunpack.c.h.b16 %v6464
        %v7053 = vunpack.c.l.b16 %v6465
        %v7054 = vunpack.c.l.b16 %v6466
        %v7055 = vunpack.c.h.b16 %v6466
        %v7056 = vunpack.c.l.b16 %v6467
        %v7057 = vunpack.c.h.b16 %v6467
        %v7058 = vunpack.c.l.b16 %v6468
        %v7059 = vunpack.c.h.b16 %v6468
        %v7060 = vunpack.c.l.b16 %v6469
        %v7061 = vunpack.c.h.b16 %v6469
        %v7062 = vunpack.c.l.b16 %v6470
        %v7063 = vpack.c.b16 %v6784, %v6775
        %v7064 = vpack.c.b16 %v6785, %v6776
        %v7065 = vpack.c.b16 %v6786, %v6777
        %v7066 = vpack.c.b16 %v6787, %v6778
        %v7067 = vpack.c.b16 %v6788, %v6779
        %v7068 = vpack.c.b16 %v6789, %v6780
        %v7069 = vpack.c.b16 %v6790, %v6781
        %v7070 = vpack.c.b16 %v6791, %v6782
        %v7071 = vpack.c.b16 %v6792, %v6783
        %v7072 = vpack.c.b16 %v6802, %v6793
        %v7073 = vpack.c.b16 %v6803, %v6794
        %v7074 = vpack.c.b16 %v6804, %v6795
        %v7075 = vpack.c.b16 %v6805, %v6796
        %v7076 = vpack.c.b16 %v6806, %v6797
        %v7077 = vpack.c.b16 %v6807, %v6798
        %v7078 = vpack.c.b16 %v6808, %v6799
        %v7079 = vpack.c.b16 %v6809, %v6800
        %v7080 = vpack.c.b16 %v6810, %v6801
        %v7081 = vpack.c.b16 %v6820, %v6811
        %v7082 = vpack.c.b16 %v6821, %v6812
        %v7083 = vpack.c.b16 %v6822, %v6813
        %v7084 = vpack.c.b16 %v6823, %v6814
        %v7085 = vpack.c.b16 %v6824, %v6815
        %v7086 = vpack.c.b16 %v6825, %v6816
        %v7087 = vpack.c.b16 %v6826, %v6817
        %v7088 = vpack.c.b16 %v6827, %v6818
        %v7089 = vpack.c.b16 %v6828, %v6819
        %v7090 = vpack.c.b16 %v6838, %v6829
        %v7091 = vpack.c.b16 %v6839, %v6830
        %v7092 = vpack.c.b16 %v6840, %v6831
        %v7093 = vpack.c.b16 %v6841, %v6832
        %v7094 = vpack.c.b16 %v6842, %v6833
        %v7095 = vpack.c.b16 %v6843, %v6834
        %v7096 = vpack.c.b16 %v6844, %v6835
        %v7097 = vpack.c.b16 %v6845, %v6836
        %v7098 = vpack.c.b16 %v6846, %v6837
        %v7099 = vpack.c.b16 %v6856, %v6847
        %v7100 = vpack.c.b16 %v6857, %v6848
        %v7101 = vpack.c.b16 %v6858, %v6849
        %v7102 = vpack.c.b16 %v6859, %v6850
        %v7103 = vpack.c.b16 %v6860, %v6851
        %v7104 = vpack.c.b16 %v6861, %v6852
        %v7105 = vpack.c.b16 %v6862, %v6853
        %v7106 = vpack.c.b16 %v6863, %v6854
        %v7107 = vpack.c.b16 %v6864, %v6855
        %v7108 = vpack.c.b16 %v6874, %v6865
        %v7109 = vpack.c.b16 %v6875, %v6866
        %v7110 = vpack.c.b16 %v6876, %v6867
        %v7111 = vpack.c.b16 %v6877, %v6868
        %v7112 = vpack.c.b16 %v6878, %v6869
        %v7113 = vpack.c.b16 %v6879, %v6870
        %v7114 = vpack.c.b16 %v6880, %v6871
        %v7115 = vpack.c.b16 %v6881, %v6872
        %v7116 = vpack.c.b16 %v6882, %v6873
        %v7117 = vpack.c.b16 %v6892, %v6883
        %v7118 = vpack.c.b16 %v6893, %v6884
        %v7119 = vpack.c.b16 %v6894, %v6885
        %v7120 = vpack.c.b16 %v6895, %v6886
        %v7121 = vpack.c.b16 %v6896, %v6887
        %v7122 = vpack.c.b16 %v6897, %v6888
        %v7123 = vpack.c.b16 %v6898, %v6889
        %v7124 = vpack.c.b16 %v6899, %v6890
        %v7125 = vpack.c.b16 %v6900, %v6891
        %v7126 = vpack.c.b16 %v6910, %v6901
        %v7127 = vpack.c.b16 %v6911, %v6902
        %v7128 = vpack.c.b16 %v6912, %v6903
        %v7129 = vpack.c.b16 %v6913, %v6904
        %v7130 = vpack.c.b16 %v6914, %v6905
        %v7131 = vpack.c.b16 %v6915, %v6906
        %v7132 = vpack.c.b16 %v6916, %v6907
        %v7133 = vpack.c.b16 %v6917, %v6908
        %v7134 = vpack.c.b16 %v6918, %v6909
        %v7135 = vpack.c.b16 %v6928, %v6919
        %v7136 = vpack.c.b16 %v6929, %v6920
        %v7137 = vpack.c.b16 %v6930, %v6921
        %v7138 = vpack.c.b16 %v6931, %v6922
        %v7139 = vpack.c.b16 %v6932, %v6923
        %v7140 = vpack.c.b16 %v6933, %v6924
        %v7141 = vpack.c.b16 %v6934, %v6925
        %v7142 = vpack.c.b16 %v6935, %v6926
        %v7143 = vpack.c.b16 %v6936, %v6927
        %v7144 = vpack.c.b16 %v6946, %v6937
        %v7145 = vpack.c.b16 %v6947, %v6938
        %v7146 = vpack.c.b16 %v6948, %v6939
        %v7147 = vpack.c.b16 %v6949, %v6940
        %v7148 = vpack.c.b16 %v6950, %v6941
        %v7149 = vpack.c.b16 %v6951, %v6942
        %v7150 = vpack.c.b16 %v6952, %v6943
        %v7151 = vpack.c.b16 %v6953, %v6944
        %v7152 = vpack.c.b16 %v6954, %v6945
        %v7153 = vpack.c.b16 %v6964, %v6955
        %v7154 = vpack.c.b16 %v6965, %v6956
        %v7155 = vpack.c.b16 %v6966, %v6957
        %v7156 = vpack.c.b16 %v6967, %v6958
        %v7157 = vpack.c.b16 %v6968, %v6959
        %v7158 = vpack.c.b16 %v6969, %v6960
        %v7159 = vpack.c.b16 %v6970, %v6961
        %v7160 = vpack.c.b16 %v6971, %v6962
        %v7161 = vpack.c.b16 %v6972, %v6963
        %v7162 = vpack.c.b16 %v6982, %v6973
        %v7163 = vpack.c.b16 %v6983, %v6974
        %v7164 = vpack.c.b16 %v6984, %v6975
        %v7165 = vpack.c.b16 %v6985, %v6976
        %v7166 = vpack.c.b16 %v6986, %v6977
        %v7167 = vpack.c.b16 %v6987, %v6978
        %v7168 = vpack.c.b16 %v6988, %v6979
        %v7169 = vpack.c.b16 %v6989, %v6980
        %v7170 = vpack.c.b16 %v6990, %v6981
        %v7171 = vpack.c.b16 %v7000, %v6991
        %v7172 = vpack.c.b16 %v7001, %v6992
        %v7173 = vpack.c.b16 %v7002, %v6993
        %v7174 = vpack.c.b16 %v7003, %v6994
        %v7175 = vpack.c.b16 %v7004, %v6995
        %v7176 = vpack.c.b16 %v7005, %v6996
        %v7177 = vpack.c.b16 %v7006, %v6997
        %v7178 = vpack.c.b16 %v7007, %v6998
        %v7179 = vpack.c.b16 %v7008, %v6999
        %v7180 = vpack.c.b16 %v7018, %v7009
        %v7181 = vpack.c.b16 %v7019, %v7010
        %v7182 = vpack.c.b16 %v7020, %v7011
        %v7183 = vpack.c.b16 %v7021, %v7012
        %v7184 = vpack.c.b16 %v7022, %v7013
        %v7185 = vpack.c.b16 %v7023, %v7014
        %v7186 = vpack.c.b16 %v7024, %v7015
        %v7187 = vpack.c.b16 %v7025, %v7016
        %v7188 = vpack.c.b16 %v7026, %v7017
        %v7189 = vpack.c.b16 %v7036, %v7027
        %v7190 = vpack.c.b16 %v7037, %v7028
        %v7191 = vpack.c.b16 %v7038, %v7029
        %v7192 = vpack.c.b16 %v7039, %v7030
        %v7193 = vpack.c.b16 %v7040, %v7031
        %v7194 = vpack.c.b16 %v7041, %v7032
        %v7195 = vpack.c.b16 %v7042, %v7033
        %v7196 = vpack.c.b16 %v7043, %v7034
        %v7197 = vpack.c.b16 %v7044, %v7035
        %v7198 = vpack.c.b16 %v7054, %v7045
        %v7199 = vpack.c.b16 %v7055, %v7046
        %v7200 = vpack.c.b16 %v7056, %v7047
        %v7201 = vpack.c.b16 %v7057, %v7048
        %v7202 = vpack.c.b16 %v7058, %v7049
        %v7203 = vpack.c.b16 %v7059, %v7050
        %v7204 = vpack.c.b16 %v7060, %v7051
        %v7205 = vpack.c.b16 %v7061, %v7052
        %v7206 = vpack.c.b16 %v7062, %v7053
        %v7495 = vunpack.c.l.b16 %v6471
        %v7496 = vunpack.c.l.b16 %v6472
        %v7497 = vunpack.c.l.b16 %v6473
        %v7498 = vunpack.c.l.b16 %v6474
        %v7499 = vunpack.c.l.b16 %v6475
        %v7500 = vunpack.c.l.b16 %v6476
        %v7501 = vunpack.c.l.b16 %v6477
        %v7502 = vunpack.c.l.b16 %v6478
        %v7503 = vunpack.c.l.b16 %v6479
        %v7504 = vunpack.c.l.b16 %v6480
        %v7505 = vunpack.c.l.b16 %v6481
        %v7506 = vunpack.c.l.b16 %v6482
        %v7507 = vunpack.c.l.b16 %v6483
        %v7508 = vunpack.c.l.b16 %v6484
        %v7509 = vunpack.c.l.b16 %v6485
        %v7510 = vunpack.c.l.b16 %v6486
        %v7511 = vunpack.c.l.b16 %v6487
        %v7512 = vunpack.c.l.b16 %v6488
        %v7513 = vunpack.c.l.b16 %v6489
        %v7514 = vunpack.c.l.b16 %v6490
        %v7515 = vunpack.c.l.b16 %v6491
        %v7516 = vunpack.c.l.b16 %v6492
        %v7517 = vunpack.c.l.b16 %v6493
        %v7518 = vunpack.c.l.b16 %v6494
        %v7519 = vunpack.c.l.b16 %v6495
        %v7520 = vunpack.c.l.b16 %v6496
        %v7521 = vunpack.c.l.b16 %v6497
        %v7522 = vunpack.c.l.b16 %v6498
        %v7523 = vunpack.c.l.b16 %v6499
        %v7524 = vunpack.c.l.b16 %v6500
        %v7525 = vunpack.c.l.b16 %v6501
        %v7526 = vunpack.c.l.b16 %v6502
        %v7527 = vunpack.c.l.b16 %v6503
        %v7528 = vunpack.c.l.b16 %v6504
        %v7529 = vunpack.c.l.b16 %v6505
        %v7530 = vunpack.c.l.b16 %v6506
        %v7531 = vunpack.c.l.b16 %v6507
        %v7532 = vunpack.c.l.b16 %v6508
        %v7533 = vunpack.c.l.b16 %v6509
        %v7534 = vunpack.c.l.b16 %v6510
        %v7535 = vunpack.c.l.b16 %v6511
        %v7536 = vunpack.c.l.b16 %v6512
        %v7537 = vunpack.c.l.b16 %v6513
        %v7538 = vunpack.c.l.b16 %v6514
        %v7539 = vunpack.c.l.b16 %v6515
        %v7540 = vunpack.c.l.b16 %v6516
        %v7541 = vunpack.c.l.b16 %v6517
        %v7542 = vunpack.c.l.b16 %v6518
        %v7543 = vunpack.c.l.b16 %v6519
        %v7544 = vunpack.c.l.b16 %v6520
        %v7545 = vunpack.c.l.b16 %v6521
        %v7546 = vunpack.c.l.b16 %v6522
        %v7547 = vunpack.c.l.b16 %v6523
        %v7548 = vunpack.c.l.b16 %v6524
        %v7549 = vunpack.c.l.b16 %v6525
        %v7550 = vunpack.c.l.b16 %v6526
        %v7551 = vunpack.c.l.b16 %v6527
        %v7552 = vunpack.c.l.b16 %v6528
        %v7553 = vunpack.c.l.b16 %v6529
        %v7554 = vunpack.c.l.b16 %v6530
        %v7555 = vunpack.c.l.b16 %v6531
        %v7556 = vunpack.c.l.b16 %v6532
        %v7557 = vunpack.c.l.b16 %v6533
        %v7558 = vunpack.c.l.b16 %v6534
        %v7559 = vunpack.c.l.b16 %v6535
        %v7560 = vunpack.c.l.b16 %v6536
        %v7561 = vunpack.c.l.b16 %v6537
        %v7562 = vunpack.c.l.b16 %v6538
        %v7563 = vunpack.c.l.b16 %v6539
        %v7564 = vunpack.c.l.b16 %v6540
        %v7565 = vunpack.c.l.b16 %v6541
        %v7566 = vunpack.c.l.b16 %v6542
        %v7567 = vunpack.c.l.b16 %v6543
        %v7568 = vunpack.c.l.b16 %v6544
        %v7569 = vunpack.c.l.b16 %v6545
        %v7570 = vunpack.c.l.b16 %v6546
        %v7571 = vunpack.c.l.b16 %v6547
        %v7572 = vunpack.c.l.b16 %v6548
        %v7573 = vunpack.c.l.b16 %v6549
        %v7574 = vunpack.c.l.b16 %v6550
        %v7575 = vunpack.c.l.b16 %v6551
        %v7576 = vunpack.c.l.b16 %v6552
        %v7577 = vunpack.c.l.b16 %v6553
        %v7578 = vunpack.c.l.b16 %v6554
        %v7579 = vunpack.c.l.b16 %v6555
        %v7580 = vunpack.c.l.b16 %v6556
        %v7581 = vunpack.c.l.b16 %v6557
        %v7582 = vunpack.c.l.b16 %v6558
        %v7583 = vunpack.c.l.b16 %v6559
        %v7584 = vunpack.c.l.b16 %v6560
        %v7585 = vunpack.c.l.b16 %v6561
        %v7586 = vunpack.c.l.b16 %v6562
        %v7587 = vunpack.c.l.b16 %v6563
        %v7588 = vunpack.c.l.b16 %v6564
        %v7589 = vunpack.c.l.b16 %v6565
        %v7590 = vunpack.c.l.b16 %v6566
        %v7591 = vunpack.c.l.b16 %v6567
        %v7592 = vunpack.c.l.b16 %v6568
        %v7593 = vunpack.c.l.b16 %v6569
        %v7594 = vunpack.c.l.b16 %v6570
        %v7595 = vunpack.c.l.b16 %v6571
        %v7596 = vunpack.c.l.b16 %v6572
        %v7597 = vunpack.c.l.b16 %v6573
        %v7598 = vunpack.c.l.b16 %v6574
        %v7599 = vunpack.c.l.b16 %v6575
        %v7600 = vunpack.c.l.b16 %v6576
        %v7601 = vunpack.c.l.b16 %v6577
        %v7602 = vunpack.c.l.b16 %v6578
        %v7603 = vunpack.c.l.b16 %v6579
        %v7604 = vunpack.c.l.b16 %v6580
        %v7605 = vunpack.c.l.b16 %v6581
        %v7606 = vunpack.c.l.b16 %v6582
        %v7607 = vunpack.c.l.b16 %v6583
        %v7608 = vunpack.c.l.b16 %v6584
        %v7609 = vunpack.c.l.b16 %v6585
        %v7610 = vunpack.c.l.b16 %v6586
        %v7611 = vunpack.c.l.b16 %v6587
        %v7612 = vunpack.c.l.b16 %v6588
        %v7613 = vunpack.c.l.b16 %v6589
        %v7614 = vunpack.c.l.b16 %v6590
        %v7615 = vunpack.c.l.b16 %v6591
        %v7616 = vunpack.c.l.b16 %v6592
        %v7617 = vunpack.c.l.b16 %v6593
        %v7618 = vunpack.c.l.b16 %v6594
        %v7619 = vunpack.c.l.b16 %v6595
        %v7620 = vunpack.c.l.b16 %v6596
        %v7621 = vunpack.c.l.b16 %v6597
        %v7622 = vunpack.c.l.b16 %v6598
        %v7623 = vunpack.c.l.b16 %v6599
        %v7624 = vunpack.c.l.b16 %v6600
        %v7625 = vunpack.c.l.b16 %v6601
        %v7626 = vunpack.c.l.b16 %v6602
        %v7627 = vunpack.c.l.b16 %v6603
        %v7628 = vunpack.c.l.b16 %v6604
        %v7629 = vunpack.c.l.b16 %v6605
        %v7630 = vunpack.c.l.b16 %v6606
        %v7631 = vunpack.c.l.b16 %v6607
        %v7632 = vunpack.c.l.b16 %v6608
        %v7633 = vunpack.c.l.b16 %v6609
        %v7634 = vunpack.c.l.b16 %v6610
        %v7635 = vunpack.c.l.b16 %v6611
        %v7636 = vunpack.c.l.b16 %v6612
        %v7637 = vunpack.c.l.b16 %v6613
        %v7638 = vunpack.c.l.b16 %v6614
        %v7639 = vpack.c.b16 %v7496, %v7495
        %v7640 = vpack.c.b16 %v7498, %v7497
        %v7641 = vpack.c.b16 %v7500, %v7499
        %v7642 = vpack.c.b16 %v7502, %v7501
        %v7643 = vpack.c.b16 %v7504, %v7503
        %v7644 = vpack.c.b16 %v7506, %v7505
        %v7645 = vpack.c.b16 %v7508, %v7507
        %v7646 = vpack.c.b16 %v7510, %v7509
        %v7647 = vpack.c.b16 %v7512, %v7511
        %v7648 = vpack.c.b16 %v7514, %v7513
        %v7649 = vpack.c.b16 %v7516, %v7515
        %v7650 = vpack.c.b16 %v7518, %v7517
        %v7651 = vpack.c.b16 %v7520, %v7519
        %v7652 = vpack.c.b16 %v7522, %v7521
        %v7653 = vpack.c.b16 %v7524, %v7523
        %v7654 = vpack.c.b16 %v7526, %v7525
        %v7655 = vpack.c.b16 %v7528, %v7527
        %v7656 = vpack.c.b16 %v7530, %v7529
        %v7657 = vpack.c.b16 %v7532, %v7531
        %v7658 = vpack.c.b16 %v7534, %v7533
        %v7659 = vpack.c.b16 %v7536, %v7535
        %v7660 = vpack.c.b16 %v7538, %v7537
        %v7661 = vpack.c.b16 %v7540, %v7539
        %v7662 = vpack.c.b16 %v7542, %v7541
        %v7663 = vpack.c.b16 %v7544, %v7543
        %v7664 = vpack.c.b16 %v7546, %v7545
        %v7665 = vpack.c.b16 %v7548, %v7547
        %v7666 = vpack.c.b16 %v7550, %v7549
        %v7667 = vpack.c.b16 %v7552, %v7551
        %v7668 = vpack.c.b16 %v7554, %v7553
        %v7669 = vpack.c.b16 %v7556, %v7555
        %v7670 = vpack.c.b16 %v7558, %v7557
        %v7671 = vpack.c.b16 %v7560, %v7559
        %v7672 = vpack.c.b16 %v7562, %v7561
        %v7673 = vpack.c.b16 %v7564, %v7563
        %v7674 = vpack.c.b16 %v7566, %v7565
        %v7675 = vpack.c.b16 %v7568, %v7567
        %v7676 = vpack.c.b16 %v7570, %v7569
        %v7677 = vpack.c.b16 %v7572, %v7571
        %v7678 = vpack.c.b16 %v7574, %v7573
        %v7679 = vpack.c.b16 %v7576, %v7575
        %v7680 = vpack.c.b16 %v7578, %v7577
        %v7681 = vpack.c.b16 %v7580, %v7579
        %v7682 = vpack.c.b16 %v7582, %v7581
        %v7683 = vpack.c.b16 %v7584, %v7583
        %v7684 = vpack.c.b16 %v7586, %v7585
        %v7685 = vpack.c.b16 %v7588, %v7587
        %v7686 = vpack.c.b16 %v7590, %v7589
        %v7687 = vpack.c.b16 %v7592, %v7591
        %v7688 = vpack.c.b16 %v7594, %v7593
        %v7689 = vpack.c.b16 %v7596, %v7595
        %v7690 = vpack.c.b16 %v7598, %v7597
        %v7691 = vpack.c.b16 %v7600, %v7599
        %v7692 = vpack.c.b16 %v7602, %v7601
        %v7693 = vpack.c.b16 %v7604, %v7603
        %v7694 = vpack.c.b16 %v7606, %v7605
        %v7695 = vpack.c.b16 %v7608, %v7607
        %v7696 = vpack.c.b16 %v7610, %v7609
        %v7697 = vpack.c.b16 %v7612, %v7611
        %v7698 = vpack.c.b16 %v7614, %v7613
        %v7699 = vpack.c.b16 %v7616, %v7615
        %v7700 = vpack.c.b16 %v7618, %v7617
        %v7701 = vpack.c.b16 %v7620, %v7619
        %v7702 = vpack.c.b16 %v7622, %v7621
        %v7703 = vpack.c.b16 %v7624, %v7623
        %v7704 = vpack.c.b16 %v7626, %v7625
        %v7705 = vpack.c.b16 %v7628, %v7627
        %v7706 = vpack.c.b16 %v7630, %v7629
        %v7707 = vpack.c.b16 %v7632, %v7631
        %v7708 = vpack.c.b16 %v7634, %v7633
        %v7709 = vpack.c.b16 %v7636, %v7635
        %v7710 = vpack.c.b16 %v7638, %v7637
        %7783 = vmatprep.subr.bf16.mxu0 0
        %7784 = vmatpush1.bf16.msra.mxu0 %v7646
        %7785 = vmatprep.subr.bf16.mxu0 0
        %7786 = vmatpush1.bf16.msra.mxu0 %v7645
        %7787 = vmatprep.subr.bf16.mxu0 0
        %7788 = vmatpush1.bf16.msra.mxu0 %v7644
        %7789 = vmatprep.subr.bf16.mxu0 0
        %7790 = vmatpush1.bf16.msra.mxu0 %v7643
        %7791 = vmatprep.subr.bf16.mxu0 0
        %7792 = vmatpush1.bf16.msra.mxu0 %v7642
        %7793 = vmatprep.subr.bf16.mxu0 0
        %7794 = vmatpush1.bf16.msra.mxu0 %v7641
        %7795 = vmatprep.subr.bf16.mxu0 0
        %7796 = vmatpush1.bf16.msra.mxu0 %v7640
        %7797 = vmatprep.subr.bf16.mxu0 0
        %7798 = vmatpush1.bf16.msra.mxu0 %v7639
        %7799 = vmatprep.subr.bf16.mxu0 0
        %7800 = vmatpush2.bf16.msra.mxu0 %v7654
        %7801 = vmatprep.subr.bf16.mxu0 0
        %7802 = vmatpush2.bf16.msra.mxu0 %v7653
        %7803 = vmatprep.subr.bf16.mxu0 0
        %7804 = vmatpush2.bf16.msra.mxu0 %v7652
        %7805 = vmatprep.subr.bf16.mxu0 0
        %7806 = vmatpush2.bf16.msra.mxu0 %v7651
        %7807 = vmatprep.subr.bf16.mxu0 0
        %7808 = vmatpush2.bf16.msra.mxu0 %v7650
        %7809 = vmatprep.subr.bf16.mxu0 0
        %7810 = vmatpush2.bf16.msra.mxu0 %v7649
        %7811 = vmatprep.subr.bf16.mxu0 0
        %7812 = vmatpush2.bf16.msra.mxu0 %v7648
        %7813 = vmatprep.subr.bf16.mxu0 0
        %7814 = vmatpush2.bf16.msra.mxu0 %v7647
        %7815 = vmatprep.mubr.bf16.mxu0 %v7064
        %7816 = vmatmul.mubr.bf16.gmra.mxu0 %v7063
        %v7817 = vpop.f32.mrf.mxu0
        %v7818 = vadd.f32 0.0, %v7817
        %v7819 = vpop.f32.mrf.mxu0
        %v7820 = vpop.f32.mrf.mxu0
        %v7821 = vadd.f32 0.0, %v7820
        %v7822 = vpop.f32.mrf.mxu0
        %7823 = vmatprep.mubr.bf16.mxu0 %v7073
        %7824 = vmatmul.mubr.bf16.gmra.mxu0 %v7072
        %v7825 = vpop.f32.mrf.mxu0
        %v7826 = vadd.f32 0.0, %v7825
        %v7827 = vpop.f32.mrf.mxu0
        %v7828 = vpop.f32.mrf.mxu0
        %v7829 = vadd.f32 0.0, %v7828
        %v7830 = vpop.f32.mrf.mxu0
        %7831 = vmatprep.mubr.bf16.mxu0 %v7082
        %7832 = vmatmul.mubr.bf16.gmra.mxu0 %v7081
        %v7833 = vpop.f32.mrf.mxu0
        %v7834 = vadd.f32 0.0, %v7833
        %v7835 = vpop.f32.mrf.mxu0
        %v7836 = vpop.f32.mrf.mxu0
        %v7837 = vadd.f32 0.0, %v7836
        %v7838 = vpop.f32.mrf.mxu0
        %7839 = vmatprep.mubr.bf16.mxu0 %v7091
        %7840 = vmatmul.mubr.bf16.gmra.mxu0 %v7090
        %v7841 = vpop.f32.mrf.mxu0
        %v7842 = vadd.f32 0.0, %v7841
        %v7843 = vpop.f32.mrf.mxu0
        %v7844 = vpop.f32.mrf.mxu0
        %v7845 = vadd.f32 0.0, %v7844
        %v7846 = vpop.f32.mrf.mxu0
        %7847 = vmatprep.mubr.bf16.mxu0 %v7100
        %7848 = vmatmul.mubr.bf16.gmra.mxu0 %v7099
        %v7849 = vpop.f32.mrf.mxu0
        %v7850 = vadd.f32 0.0, %v7849
        %v7851 = vpop.f32.mrf.mxu0
        %v7852 = vpop.f32.mrf.mxu0
        %v7853 = vadd.f32 0.0, %v7852
        %v7854 = vpop.f32.mrf.mxu0
        %7855 = vmatprep.mubr.bf16.mxu0 %v7109
        %7856 = vmatmul.mubr.bf16.gmra.mxu0 %v7108
        %v7857 = vpop.f32.mrf.mxu0
        %v7858 = vadd.f32 0.0, %v7857
        %v7859 = vpop.f32.mrf.mxu0
        %v7860 = vpop.f32.mrf.mxu0
        %v7861 = vadd.f32 0.0, %v7860
        %v7862 = vpop.f32.mrf.mxu0
        %7863 = vmatprep.mubr.bf16.mxu0 %v7118
        %7864 = vmatmul.mubr.bf16.gmra.mxu0 %v7117
        %v7865 = vpop.f32.mrf.mxu0
        %v7866 = vadd.f32 0.0, %v7865
        %v7867 = vpop.f32.mrf.mxu0
        %v7868 = vpop.f32.mrf.mxu0
        %v7869 = vadd.f32 0.0, %v7868
        %v7870 = vpop.f32.mrf.mxu0
        %7871 = vmatprep.mubr.bf16.mxu0 %v7127
        %7872 = vmatmul.mubr.bf16.gmra.mxu0 %v7126
        %v7873 = vpop.f32.mrf.mxu0
        %v7874 = vadd.f32 0.0, %v7873
        %v7875 = vpop.f32.mrf.mxu0
        %v7876 = vpop.f32.mrf.mxu0
        %v7877 = vadd.f32 0.0, %v7876
        %v7878 = vpop.f32.mrf.mxu0
        %7879 = vmatprep.mubr.bf16.mxu0 %v7136
        %7880 = vmatmul.mubr.bf16.gmra.mxu0 %v7135
        %v7881 = vpop.f32.mrf.mxu0
        %v7882 = vadd.f32 0.0, %v7881
        %v7883 = vpop.f32.mrf.mxu0
        %v7884 = vpop.f32.mrf.mxu0
        %v7885 = vadd.f32 0.0, %v7884
        %v7886 = vpop.f32.mrf.mxu0
        %7887 = vmatprep.mubr.bf16.mxu0 %v7145
        %7888 = vmatmul.mubr.bf16.gmra.mxu0 %v7144
        %v7889 = vpop.f32.mrf.mxu0
        %v7890 = vadd.f32 0.0, %v7889
        %v7891 = vpop.f32.mrf.mxu0
        %v7892 = vpop.f32.mrf.mxu0
        %v7893 = vadd.f32 0.0, %v7892
        %v7894 = vpop.f32.mrf.mxu0
        %7895 = vmatprep.mubr.bf16.mxu0 %v7154
        %7896 = vmatmul.mubr.bf16.gmra.mxu0 %v7153
        %v7897 = vpop.f32.mrf.mxu0
        %v7898 = vadd.f32 0.0, %v7897
        %v7899 = vpop.f32.mrf.mxu0
        %v7900 = vpop.f32.mrf.mxu0
        %v7901 = vadd.f32 0.0, %v7900
        %v7902 = vpop.f32.mrf.mxu0
        %7903 = vmatprep.mubr.bf16.mxu0 %v7163
        %7904 = vmatmul.mubr.bf16.gmra.mxu0 %v7162
        %v7905 = vpop.f32.mrf.mxu0
        %v7906 = vadd.f32 0.0, %v7905
        %v7907 = vpop.f32.mrf.mxu0
        %v7908 = vpop.f32.mrf.mxu0
        %v7909 = vadd.f32 0.0, %v7908
        %v7910 = vpop.f32.mrf.mxu0
        %7911 = vmatprep.mubr.bf16.mxu0 %v7172
        %7912 = vmatmul.mubr.bf16.gmra.mxu0 %v7171
        %v7913 = vpop.f32.mrf.mxu0
        %v7914 = vadd.f32 0.0, %v7913
        %v7915 = vpop.f32.mrf.mxu0
        %v7916 = vpop.f32.mrf.mxu0
        %v7917 = vadd.f32 0.0, %v7916
        %v7918 = vpop.f32.mrf.mxu0
        %7919 = vmatprep.mubr.bf16.mxu0 %v7181
        %7920 = vmatmul.mubr.bf16.gmra.mxu0 %v7180
        %v7921 = vpop.f32.mrf.mxu0
        %v7922 = vadd.f32 0.0, %v7921
        %v7923 = vpop.f32.mrf.mxu0
        %v7924 = vpop.f32.mrf.mxu0
        %v7925 = vadd.f32 0.0, %v7924
        %v7926 = vpop.f32.mrf.mxu0
        %7927 = vmatprep.mubr.bf16.mxu0 %v7190
        %7928 = vmatmul.mubr.bf16.gmra.mxu0 %v7189
        %v7929 = vpop.f32.mrf.mxu0
        %v7930 = vadd.f32 0.0, %v7929
        %v7931 = vpop.f32.mrf.mxu0
        %v7932 = vpop.f32.mrf.mxu0
        %v7933 = vadd.f32 0.0, %v7932
        %v7934 = vpop.f32.mrf.mxu0
        %7935 = vmatprep.mubr.bf16.mxu0 %v7199
        %7936 = vmatmul.mubr.bf16.gmra.mxu0 %v7198
        %v7937 = vpop.f32.mrf.mxu0
        %v7938 = vadd.f32 0.0, %v7937
        %v7939 = vpop.f32.mrf.mxu0
        %v7940 = vpop.f32.mrf.mxu0
        %v7941 = vadd.f32 0.0, %v7940
        %v7942 = vpop.f32.mrf.mxu0
        %7943 = vdwg.mxu0
        %7944 = vmatprep.subr.bf16.mxu0 0
        %7945 = vmatpush1.bf16.msra.mxu0 %v7662
        %7946 = vmatprep.subr.bf16.mxu0 0
        %7947 = vmatpush1.bf16.msra.mxu0 %v7661
        %7948 = vmatprep.subr.bf16.mxu0 0
        %7949 = vmatpush1.bf16.msra.mxu0 %v7660
        %7950 = vmatprep.subr.bf16.mxu0 0
        %7951 = vmatpush1.bf16.msra.mxu0 %v7659
        %7952 = vmatprep.subr.bf16.mxu0 0
        %7953 = vmatpush1.bf16.msra.mxu0 %v7658
        %7954 = vmatprep.subr.bf16.mxu0 0
        %7955 = vmatpush1.bf16.msra.mxu0 %v7657
        %7956 = vmatprep.subr.bf16.mxu0 0
        %7957 = vmatpush1.bf16.msra.mxu0 %v7656
        %7958 = vmatprep.subr.bf16.mxu0 0
        %7959 = vmatpush1.bf16.msra.mxu0 %v7655
        %7960 = vmatprep.subr.bf16.mxu0 0
        %7961 = vmatpush2.bf16.msra.mxu0 %v7670
        %7962 = vmatprep.subr.bf16.mxu0 0
        %7963 = vmatpush2.bf16.msra.mxu0 %v7669
        %7964 = vmatprep.subr.bf16.mxu0 0
        %7965 = vmatpush2.bf16.msra.mxu0 %v7668
        %7966 = vmatprep.subr.bf16.mxu0 0
        %7967 = vmatpush2.bf16.msra.mxu0 %v7667
        %7968 = vmatprep.subr.bf16.mxu0 0
        %7969 = vmatpush2.bf16.msra.mxu0 %v7666
        %7970 = vmatprep.subr.bf16.mxu0 0
        %7971 = vmatpush2.bf16.msra.mxu0 %v7665
        %7972 = vmatprep.subr.bf16.mxu0 0
        %7973 = vmatpush2.bf16.msra.mxu0 %v7664
        %7974 = vmatprep.subr.bf16.mxu0 0
        %7975 = vmatpush2.bf16.msra.mxu0 %v7663
        %7976 = vmatprep.mubr.bf16.mxu0 %v7066
        %7977 = vmatmul.mubr.bf16.gmra.mxu0 %v7065
        %v7978 = vpop.f32.mrf.mxu0
        %v7979 = vadd.f32 %v7818, %v7978
        %v7980 = vpop.f32.mrf.mxu0
        %v7981 = vpop.f32.mrf.mxu0
        %v7982 = vadd.f32 %v7821, %v7981
        %v7983 = vpop.f32.mrf.mxu0
        %7984 = vmatprep.mubr.bf16.mxu0 %v7075
        %7985 = vmatmul.mubr.bf16.gmra.mxu0 %v7074
        %v7986 = vpop.f32.mrf.mxu0
        %v7987 = vadd.f32 %v7826, %v7986
        %v7988 = vpop.f32.mrf.mxu0
        %v7989 = vpop.f32.mrf.mxu0
        %v7990 = vadd.f32 %v7829, %v7989
        %v7991 = vpop.f32.mrf.mxu0
        %7992 = vmatprep.mubr.bf16.mxu0 %v7084
        %7993 = vmatmul.mubr.bf16.gmra.mxu0 %v7083
        %v7994 = vpop.f32.mrf.mxu0
        %v7995 = vadd.f32 %v7834, %v7994
        %v7996 = vpop.f32.mrf.mxu0
        %v7997 = vpop.f32.mrf.mxu0
        %v7998 = vadd.f32 %v7837, %v7997
        %v7999 = vpop.f32.mrf.mxu0
        %8000 = vmatprep.mubr.bf16.mxu0 %v7093
        %8001 = vmatmul.mubr.bf16.gmra.mxu0 %v7092
        %v8002 = vpop.f32.mrf.mxu0
        %v8003 = vadd.f32 %v7842, %v8002
        %v8004 = vpop.f32.mrf.mxu0
        %v8005 = vpop.f32.mrf.mxu0
        %v8006 = vadd.f32 %v7845, %v8005
        %v8007 = vpop.f32.mrf.mxu0
        %8008 = vmatprep.mubr.bf16.mxu0 %v7102
        %8009 = vmatmul.mubr.bf16.gmra.mxu0 %v7101
        %v8010 = vpop.f32.mrf.mxu0
        %v8011 = vadd.f32 %v7850, %v8010
        %v8012 = vpop.f32.mrf.mxu0
        %v8013 = vpop.f32.mrf.mxu0
        %v8014 = vadd.f32 %v7853, %v8013
        %v8015 = vpop.f32.mrf.mxu0
        %8016 = vmatprep.mubr.bf16.mxu0 %v7111
        %8017 = vmatmul.mubr.bf16.gmra.mxu0 %v7110
        %v8018 = vpop.f32.mrf.mxu0
        %v8019 = vadd.f32 %v7858, %v8018
        %v8020 = vpop.f32.mrf.mxu0
        %v8021 = vpop.f32.mrf.mxu0
        %v8022 = vadd.f32 %v7861, %v8021
        %v8023 = vpop.f32.mrf.mxu0
        %8024 = vmatprep.mubr.bf16.mxu0 %v7120
        %8025 = vmatmul.mubr.bf16.gmra.mxu0 %v7119
        %v8026 = vpop.f32.mrf.mxu0
        %v8027 = vadd.f32 %v7866, %v8026
        %v8028 = vpop.f32.mrf.mxu0
        %v8029 = vpop.f32.mrf.mxu0
        %v8030 = vadd.f32 %v7869, %v8029
        %v8031 = vpop.f32.mrf.mxu0
        %8032 = vmatprep.mubr.bf16.mxu0 %v7129
        %8033 = vmatmul.mubr.bf16.gmra.mxu0 %v7128
        %v8034 = vpop.f32.mrf.mxu0
        %v8035 = vadd.f32 %v7874, %v8034
        %v8036 = vpop.f32.mrf.mxu0
        %v8037 = vpop.f32.mrf.mxu0
        %v8038 = vadd.f32 %v7877, %v8037
        %v8039 = vpop.f32.mrf.mxu0
        %8040 = vmatprep.mubr.bf16.mxu0 %v7138
        %8041 = vmatmul.mubr.bf16.gmra.mxu0 %v7137
        %v8042 = vpop.f32.mrf.mxu0
        %v8043 = vadd.f32 %v7882, %v8042
        %v8044 = vpop.f32.mrf.mxu0
        %v8045 = vpop.f32.mrf.mxu0
        %v8046 = vadd.f32 %v7885, %v8045
        %v8047 = vpop.f32.mrf.mxu0
        %8048 = vmatprep.mubr.bf16.mxu0 %v7147
        %8049 = vmatmul.mubr.bf16.gmra.mxu0 %v7146
        %v8050 = vpop.f32.mrf.mxu0
        %v8051 = vadd.f32 %v7890, %v8050
        %v8052 = vpop.f32.mrf.mxu0
        %v8053 = vpop.f32.mrf.mxu0
        %v8054 = vadd.f32 %v7893, %v8053
        %v8055 = vpop.f32.mrf.mxu0
        %8056 = vmatprep.mubr.bf16.mxu0 %v7156
        %8057 = vmatmul.mubr.bf16.gmra.mxu0 %v7155
        %v8058 = vpop.f32.mrf.mxu0
        %v8059 = vadd.f32 %v7898, %v8058
        %v8060 = vpop.f32.mrf.mxu0
        %v8061 = vpop.f32.mrf.mxu0
        %v8062 = vadd.f32 %v7901, %v8061
        %v8063 = vpop.f32.mrf.mxu0
        %8064 = vmatprep.mubr.bf16.mxu0 %v7165
        %8065 = vmatmul.mubr.bf16.gmra.mxu0 %v7164
        %v8066 = vpop.f32.mrf.mxu0
        %v8067 = vadd.f32 %v7906, %v8066
        %v8068 = vpop.f32.mrf.mxu0
        %v8069 = vpop.f32.mrf.mxu0
        %v8070 = vadd.f32 %v7909, %v8069
        %v8071 = vpop.f32.mrf.mxu0
        %8072 = vmatprep.mubr.bf16.mxu0 %v7174
        %8073 = vmatmul.mubr.bf16.gmra.mxu0 %v7173
        %v8074 = vpop.f32.mrf.mxu0
        %v8075 = vadd.f32 %v7914, %v8074
        %v8076 = vpop.f32.mrf.mxu0
        %v8077 = vpop.f32.mrf.mxu0
        %v8078 = vadd.f32 %v7917, %v8077
        %v8079 = vpop.f32.mrf.mxu0
        %8080 = vmatprep.mubr.bf16.mxu0 %v7183
        %8081 = vmatmul.mubr.bf16.gmra.mxu0 %v7182
        %v8082 = vpop.f32.mrf.mxu0
        %v8083 = vadd.f32 %v7922, %v8082
        %v8084 = vpop.f32.mrf.mxu0
        %v8085 = vpop.f32.mrf.mxu0
        %v8086 = vadd.f32 %v7925, %v8085
        %v8087 = vpop.f32.mrf.mxu0
        %8088 = vmatprep.mubr.bf16.mxu0 %v7192
        %8089 = vmatmul.mubr.bf16.gmra.mxu0 %v7191
        %v8090 = vpop.f32.mrf.mxu0
        %v8091 = vadd.f32 %v7930, %v8090
        %v8092 = vpop.f32.mrf.mxu0
        %v8093 = vpop.f32.mrf.mxu0
        %v8094 = vadd.f32 %v7933, %v8093
        %v8095 = vpop.f32.mrf.mxu0
        %8096 = vmatprep.mubr.bf16.mxu0 %v7201
        %8097 = vmatmul.mubr.bf16.gmra.mxu0 %v7200
        %v8098 = vpop.f32.mrf.mxu0
        %v8099 = vadd.f32 %v7938, %v8098
        %v8100 = vpop.f32.mrf.mxu0
        %v8101 = vpop.f32.mrf.mxu0
        %v8102 = vadd.f32 %v7941, %v8101
        %v8103 = vpop.f32.mrf.mxu0
        %8104 = vdwg.mxu0
        %8105 = vmatprep.subr.bf16.mxu0 0
        %8106 = vmatpush1.bf16.msra.mxu0 %v7678
        %8107 = vmatprep.subr.bf16.mxu0 0
        %8108 = vmatpush1.bf16.msra.mxu0 %v7677
        %8109 = vmatprep.subr.bf16.mxu0 0
        %8110 = vmatpush1.bf16.msra.mxu0 %v7676
        %8111 = vmatprep.subr.bf16.mxu0 0
        %8112 = vmatpush1.bf16.msra.mxu0 %v7675
        %8113 = vmatprep.subr.bf16.mxu0 0
        %8114 = vmatpush1.bf16.msra.mxu0 %v7674
        %8115 = vmatprep.subr.bf16.mxu0 0
        %8116 = vmatpush1.bf16.msra.mxu0 %v7673
        %8117 = vmatprep.subr.bf16.mxu0 0
        %8118 = vmatpush1.bf16.msra.mxu0 %v7672
        %8119 = vmatprep.subr.bf16.mxu0 0
        %8120 = vmatpush1.bf16.msra.mxu0 %v7671
        %8121 = vmatprep.subr.bf16.mxu0 0
        %8122 = vmatpush2.bf16.msra.mxu0 %v7686
        %8123 = vmatprep.subr.bf16.mxu0 0
        %8124 = vmatpush2.bf16.msra.mxu0 %v7685
        %8125 = vmatprep.subr.bf16.mxu0 0
        %8126 = vmatpush2.bf16.msra.mxu0 %v7684
        %8127 = vmatprep.subr.bf16.mxu0 0
        %8128 = vmatpush2.bf16.msra.mxu0 %v7683
        %8129 = vmatprep.subr.bf16.mxu0 0
        %8130 = vmatpush2.bf16.msra.mxu0 %v7682
        %8131 = vmatprep.subr.bf16.mxu0 0
        %8132 = vmatpush2.bf16.msra.mxu0 %v7681
        %8133 = vmatprep.subr.bf16.mxu0 0
        %8134 = vmatpush2.bf16.msra.mxu0 %v7680
        %8135 = vmatprep.subr.bf16.mxu0 0
        %8136 = vmatpush2.bf16.msra.mxu0 %v7679
        %8137 = vmatprep.mubr.bf16.mxu0 %v7068
        %8138 = vmatmul.mubr.bf16.gmra.mxu0 %v7067
        %v8139 = vpop.f32.mrf.mxu0
        %v8140 = vadd.f32 %v7979, %v8139
        %v8141 = vpop.f32.mrf.mxu0
        %v8142 = vpop.f32.mrf.mxu0
        %v8143 = vadd.f32 %v7982, %v8142
        %v8144 = vpop.f32.mrf.mxu0
        %8145 = vmatprep.mubr.bf16.mxu0 %v7077
        %8146 = vmatmul.mubr.bf16.gmra.mxu0 %v7076
        %v8147 = vpop.f32.mrf.mxu0
        %v8148 = vadd.f32 %v7987, %v8147
        %v8149 = vpop.f32.mrf.mxu0
        %v8150 = vpop.f32.mrf.mxu0
        %v8151 = vadd.f32 %v7990, %v8150
        %v8152 = vpop.f32.mrf.mxu0
        %8153 = vmatprep.mubr.bf16.mxu0 %v7086
        %8154 = vmatmul.mubr.bf16.gmra.mxu0 %v7085
        %v8155 = vpop.f32.mrf.mxu0
        %v8156 = vadd.f32 %v7995, %v8155
        %v8157 = vpop.f32.mrf.mxu0
        %v8158 = vpop.f32.mrf.mxu0
        %v8159 = vadd.f32 %v7998, %v8158
        %v8160 = vpop.f32.mrf.mxu0
        %8161 = vmatprep.mubr.bf16.mxu0 %v7095
        %8162 = vmatmul.mubr.bf16.gmra.mxu0 %v7094
        %v8163 = vpop.f32.mrf.mxu0
        %v8164 = vadd.f32 %v8003, %v8163
        %v8165 = vpop.f32.mrf.mxu0
        %v8166 = vpop.f32.mrf.mxu0
        %v8167 = vadd.f32 %v8006, %v8166
        %v8168 = vpop.f32.mrf.mxu0
        %8169 = vmatprep.mubr.bf16.mxu0 %v7104
        %8170 = vmatmul.mubr.bf16.gmra.mxu0 %v7103
        %v8171 = vpop.f32.mrf.mxu0
        %v8172 = vadd.f32 %v8011, %v8171
        %v8173 = vpop.f32.mrf.mxu0
        %v8174 = vpop.f32.mrf.mxu0
        %v8175 = vadd.f32 %v8014, %v8174
        %v8176 = vpop.f32.mrf.mxu0
        %8177 = vmatprep.mubr.bf16.mxu0 %v7113
        %8178 = vmatmul.mubr.bf16.gmra.mxu0 %v7112
        %v8179 = vpop.f32.mrf.mxu0
        %v8180 = vadd.f32 %v8019, %v8179
        %v8181 = vpop.f32.mrf.mxu0
        %v8182 = vpop.f32.mrf.mxu0
        %v8183 = vadd.f32 %v8022, %v8182
        %v8184 = vpop.f32.mrf.mxu0
        %8185 = vmatprep.mubr.bf16.mxu0 %v7122
        %8186 = vmatmul.mubr.bf16.gmra.mxu0 %v7121
        %v8187 = vpop.f32.mrf.mxu0
        %v8188 = vadd.f32 %v8027, %v8187
        %v8189 = vpop.f32.mrf.mxu0
        %v8190 = vpop.f32.mrf.mxu0
        %v8191 = vadd.f32 %v8030, %v8190
        %v8192 = vpop.f32.mrf.mxu0
        %8193 = vmatprep.mubr.bf16.mxu0 %v7131
        %8194 = vmatmul.mubr.bf16.gmra.mxu0 %v7130
        %v8195 = vpop.f32.mrf.mxu0
        %v8196 = vadd.f32 %v8035, %v8195
        %v8197 = vpop.f32.mrf.mxu0
        %v8198 = vpop.f32.mrf.mxu0
        %v8199 = vadd.f32 %v8038, %v8198
        %v8200 = vpop.f32.mrf.mxu0
        %8201 = vmatprep.mubr.bf16.mxu0 %v7140
        %8202 = vmatmul.mubr.bf16.gmra.mxu0 %v7139
        %v8203 = vpop.f32.mrf.mxu0
        %v8204 = vadd.f32 %v8043, %v8203
        %v8205 = vpop.f32.mrf.mxu0
        %v8206 = vpop.f32.mrf.mxu0
        %v8207 = vadd.f32 %v8046, %v8206
        %v8208 = vpop.f32.mrf.mxu0
        %8209 = vmatprep.mubr.bf16.mxu0 %v7149
        %8210 = vmatmul.mubr.bf16.gmra.mxu0 %v7148
        %v8211 = vpop.f32.mrf.mxu0
        %v8212 = vadd.f32 %v8051, %v8211
        %v8213 = vpop.f32.mrf.mxu0
        %v8214 = vpop.f32.mrf.mxu0
        %v8215 = vadd.f32 %v8054, %v8214
        %v8216 = vpop.f32.mrf.mxu0
        %8217 = vmatprep.mubr.bf16.mxu0 %v7158
        %8218 = vmatmul.mubr.bf16.gmra.mxu0 %v7157
        %v8219 = vpop.f32.mrf.mxu0
        %v8220 = vadd.f32 %v8059, %v8219
        %v8221 = vpop.f32.mrf.mxu0
        %v8222 = vpop.f32.mrf.mxu0
        %v8223 = vadd.f32 %v8062, %v8222
        %v8224 = vpop.f32.mrf.mxu0
        %8225 = vmatprep.mubr.bf16.mxu0 %v7167
        %8226 = vmatmul.mubr.bf16.gmra.mxu0 %v7166
        %v8227 = vpop.f32.mrf.mxu0
        %v8228 = vadd.f32 %v8067, %v8227
        %v8229 = vpop.f32.mrf.mxu0
        %v8230 = vpop.f32.mrf.mxu0
        %v8231 = vadd.f32 %v8070, %v8230
        %v8232 = vpop.f32.mrf.mxu0
        %8233 = vmatprep.mubr.bf16.mxu0 %v7176
        %8234 = vmatmul.mubr.bf16.gmra.mxu0 %v7175
        %v8235 = vpop.f32.mrf.mxu0
        %v8236 = vadd.f32 %v8075, %v8235
        %v8237 = vpop.f32.mrf.mxu0
        %v8238 = vpop.f32.mrf.mxu0
        %v8239 = vadd.f32 %v8078, %v8238
        %v8240 = vpop.f32.mrf.mxu0
        %8241 = vmatprep.mubr.bf16.mxu0 %v7185
        %8242 = vmatmul.mubr.bf16.gmra.mxu0 %v7184
        %v8243 = vpop.f32.mrf.mxu0
        %v8244 = vadd.f32 %v8083, %v8243
        %v8245 = vpop.f32.mrf.mxu0
        %v8246 = vpop.f32.mrf.mxu0
        %v8247 = vadd.f32 %v8086, %v8246
        %v8248 = vpop.f32.mrf.mxu0
        %8249 = vmatprep.mubr.bf16.mxu0 %v7194
        %8250 = vmatmul.mubr.bf16.gmra.mxu0 %v7193
        %v8251 = vpop.f32.mrf.mxu0
        %v8252 = vadd.f32 %v8091, %v8251
        %v8253 = vpop.f32.mrf.mxu0
        %v8254 = vpop.f32.mrf.mxu0
        %v8255 = vadd.f32 %v8094, %v8254
        %v8256 = vpop.f32.mrf.mxu0
        %8257 = vmatprep.mubr.bf16.mxu0 %v7203
        %8258 = vmatmul.mubr.bf16.gmra.mxu0 %v7202
        %v8259 = vpop.f32.mrf.mxu0
        %v8260 = vadd.f32 %v8099, %v8259
        %v8261 = vpop.f32.mrf.mxu0
        %v8262 = vpop.f32.mrf.mxu0
        %v8263 = vadd.f32 %v8102, %v8262
        %v8264 = vpop.f32.mrf.mxu0
        %8265 = vdwg.mxu0
        %8266 = vmatprep.subr.bf16.mxu0 0
        %8267 = vmatpush1.bf16.msra.mxu0 %v7694
        %8268 = vmatprep.subr.bf16.mxu0 0
        %8269 = vmatpush1.bf16.msra.mxu0 %v7693
        %8270 = vmatprep.subr.bf16.mxu0 0
        %8271 = vmatpush1.bf16.msra.mxu0 %v7692
        %8272 = vmatprep.subr.bf16.mxu0 0
        %8273 = vmatpush1.bf16.msra.mxu0 %v7691
        %8274 = vmatprep.subr.bf16.mxu0 0
        %8275 = vmatpush1.bf16.msra.mxu0 %v7690
        %8276 = vmatprep.subr.bf16.mxu0 0
        %8277 = vmatpush1.bf16.msra.mxu0 %v7689
        %8278 = vmatprep.subr.bf16.mxu0 0
        %8279 = vmatpush1.bf16.msra.mxu0 %v7688
        %8280 = vmatprep.subr.bf16.mxu0 0
        %8281 = vmatpush1.bf16.msra.mxu0 %v7687
        %8282 = vmatprep.subr.bf16.mxu0 0
        %8283 = vmatpush2.bf16.msra.mxu0 %v7702
        %8284 = vmatprep.subr.bf16.mxu0 0
        %8285 = vmatpush2.bf16.msra.mxu0 %v7701
        %8286 = vmatprep.subr.bf16.mxu0 0
        %8287 = vmatpush2.bf16.msra.mxu0 %v7700
        %8288 = vmatprep.subr.bf16.mxu0 0
        %8289 = vmatpush2.bf16.msra.mxu0 %v7699
        %8290 = vmatprep.subr.bf16.mxu0 0
        %8291 = vmatpush2.bf16.msra.mxu0 %v7698
        %8292 = vmatprep.subr.bf16.mxu0 0
        %8293 = vmatpush2.bf16.msra.mxu0 %v7697
        %8294 = vmatprep.subr.bf16.mxu0 0
        %8295 = vmatpush2.bf16.msra.mxu0 %v7696
        %8296 = vmatprep.subr.bf16.mxu0 0
        %8297 = vmatpush2.bf16.msra.mxu0 %v7695
        %8298 = vmatprep.mubr.bf16.mxu0 %v7070
        %8299 = vmatmul.mubr.bf16.gmra.mxu0 %v7069
        %v8300 = vpop.f32.mrf.mxu0
        %v8301 = vadd.f32 %v8140, %v8300
        %v8302 = vpop.f32.mrf.mxu0
        %v8303 = vpop.f32.mrf.mxu0
        %v8304 = vadd.f32 %v8143, %v8303
        %v8305 = vpop.f32.mrf.mxu0
        %8306 = vmatprep.mubr.bf16.mxu0 %v7079
        %8307 = vmatmul.mubr.bf16.gmra.mxu0 %v7078
        %v8308 = vpop.f32.mrf.mxu0
        %v8309 = vadd.f32 %v8148, %v8308
        %v8310 = vpop.f32.mrf.mxu0
        %v8311 = vpop.f32.mrf.mxu0
        %v8312 = vadd.f32 %v8151, %v8311
        %v8313 = vpop.f32.mrf.mxu0
        %8314 = vmatprep.mubr.bf16.mxu0 %v7088
        %8315 = vmatmul.mubr.bf16.gmra.mxu0 %v7087
        %v8316 = vpop.f32.mrf.mxu0
        %v8317 = vadd.f32 %v8156, %v8316
        %v8318 = vpop.f32.mrf.mxu0
        %v8319 = vpop.f32.mrf.mxu0
        %v8320 = vadd.f32 %v8159, %v8319
        %v8321 = vpop.f32.mrf.mxu0
        %8322 = vmatprep.mubr.bf16.mxu0 %v7097
        %8323 = vmatmul.mubr.bf16.gmra.mxu0 %v7096
        %v8324 = vpop.f32.mrf.mxu0
        %v8325 = vadd.f32 %v8164, %v8324
        %v8326 = vpop.f32.mrf.mxu0
        %v8327 = vpop.f32.mrf.mxu0
        %v8328 = vadd.f32 %v8167, %v8327
        %v8329 = vpop.f32.mrf.mxu0
        %8330 = vmatprep.mubr.bf16.mxu0 %v7106
        %8331 = vmatmul.mubr.bf16.gmra.mxu0 %v7105
        %v8332 = vpop.f32.mrf.mxu0
        %v8333 = vadd.f32 %v8172, %v8332
        %v8334 = vpop.f32.mrf.mxu0
        %v8335 = vpop.f32.mrf.mxu0
        %v8336 = vadd.f32 %v8175, %v8335
        %v8337 = vpop.f32.mrf.mxu0
        %8338 = vmatprep.mubr.bf16.mxu0 %v7115
        %8339 = vmatmul.mubr.bf16.gmra.mxu0 %v7114
        %v8340 = vpop.f32.mrf.mxu0
        %v8341 = vadd.f32 %v8180, %v8340
        %v8342 = vpop.f32.mrf.mxu0
        %v8343 = vpop.f32.mrf.mxu0
        %v8344 = vadd.f32 %v8183, %v8343
        %v8345 = vpop.f32.mrf.mxu0
        %8346 = vmatprep.mubr.bf16.mxu0 %v7124
        %8347 = vmatmul.mubr.bf16.gmra.mxu0 %v7123
        %v8348 = vpop.f32.mrf.mxu0
        %v8349 = vadd.f32 %v8188, %v8348
        %v8350 = vpop.f32.mrf.mxu0
        %v8351 = vpop.f32.mrf.mxu0
        %v8352 = vadd.f32 %v8191, %v8351
        %v8353 = vpop.f32.mrf.mxu0
        %8354 = vmatprep.mubr.bf16.mxu0 %v7133
        %8355 = vmatmul.mubr.bf16.gmra.mxu0 %v7132
        %v8356 = vpop.f32.mrf.mxu0
        %v8357 = vadd.f32 %v8196, %v8356
        %v8358 = vpop.f32.mrf.mxu0
        %v8359 = vpop.f32.mrf.mxu0
        %v8360 = vadd.f32 %v8199, %v8359
        %v8361 = vpop.f32.mrf.mxu0
        %8362 = vmatprep.mubr.bf16.mxu0 %v7142
        %8363 = vmatmul.mubr.bf16.gmra.mxu0 %v7141
        %v8364 = vpop.f32.mrf.mxu0
        %v8365 = vadd.f32 %v8204, %v8364
        %v8366 = vpop.f32.mrf.mxu0
        %v8367 = vpop.f32.mrf.mxu0
        %v8368 = vadd.f32 %v8207, %v8367
        %v8369 = vpop.f32.mrf.mxu0
        %8370 = vmatprep.mubr.bf16.mxu0 %v7151
        %8371 = vmatmul.mubr.bf16.gmra.mxu0 %v7150
        %v8372 = vpop.f32.mrf.mxu0
        %v8373 = vadd.f32 %v8212, %v8372
        %v8374 = vpop.f32.mrf.mxu0
        %v8375 = vpop.f32.mrf.mxu0
        %v8376 = vadd.f32 %v8215, %v8375
        %v8377 = vpop.f32.mrf.mxu0
        %8378 = vmatprep.mubr.bf16.mxu0 %v7160
        %8379 = vmatmul.mubr.bf16.gmra.mxu0 %v7159
        %v8380 = vpop.f32.mrf.mxu0
        %v8381 = vadd.f32 %v8220, %v8380
        %v8382 = vpop.f32.mrf.mxu0
        %v8383 = vpop.f32.mrf.mxu0
        %v8384 = vadd.f32 %v8223, %v8383
        %v8385 = vpop.f32.mrf.mxu0
        %8386 = vmatprep.mubr.bf16.mxu0 %v7169
        %8387 = vmatmul.mubr.bf16.gmra.mxu0 %v7168
        %v8388 = vpop.f32.mrf.mxu0
        %v8389 = vadd.f32 %v8228, %v8388
        %v8390 = vpop.f32.mrf.mxu0
        %v8391 = vpop.f32.mrf.mxu0
        %v8392 = vadd.f32 %v8231, %v8391
        %v8393 = vpop.f32.mrf.mxu0
        %8394 = vmatprep.mubr.bf16.mxu0 %v7178
        %8395 = vmatmul.mubr.bf16.gmra.mxu0 %v7177
        %v8396 = vpop.f32.mrf.mxu0
        %v8397 = vadd.f32 %v8236, %v8396
        %v8398 = vpop.f32.mrf.mxu0
        %v8399 = vpop.f32.mrf.mxu0
        %v8400 = vadd.f32 %v8239, %v8399
        %v8401 = vpop.f32.mrf.mxu0
        %8402 = vmatprep.mubr.bf16.mxu0 %v7187
        %8403 = vmatmul.mubr.bf16.gmra.mxu0 %v7186
        %v8404 = vpop.f32.mrf.mxu0
        %v8405 = vadd.f32 %v8244, %v8404
        %v8406 = vpop.f32.mrf.mxu0
        %v8407 = vpop.f32.mrf.mxu0
        %v8408 = vadd.f32 %v8247, %v8407
        %v8409 = vpop.f32.mrf.mxu0
        %8410 = vmatprep.mubr.bf16.mxu0 %v7196
        %8411 = vmatmul.mubr.bf16.gmra.mxu0 %v7195
        %v8412 = vpop.f32.mrf.mxu0
        %v8413 = vadd.f32 %v8252, %v8412
        %v8414 = vpop.f32.mrf.mxu0
        %v8415 = vpop.f32.mrf.mxu0
        %v8416 = vadd.f32 %v8255, %v8415
        %v8417 = vpop.f32.mrf.mxu0
        %8418 = vmatprep.mubr.bf16.mxu0 %v7205
        %8419 = vmatmul.mubr.bf16.gmra.mxu0 %v7204
        %v8420 = vpop.f32.mrf.mxu0
        %v8421 = vadd.f32 %v8260, %v8420
        %v8422 = vpop.f32.mrf.mxu0
        %v8423 = vpop.f32.mrf.mxu0
        %v8424 = vadd.f32 %v8263, %v8423
        %v8425 = vpop.f32.mrf.mxu0
        %8426 = vdwg.mxu0
        %8427 = vmatprep.subr.bf16.mxu0 0
        %8428 = vmatpush1.bf16.msra.mxu0 %v7710
        %8429 = vmatprep.subr.bf16.mxu0 0
        %8430 = vmatpush1.bf16.msra.mxu0 %v7709
        %8431 = vmatprep.subr.bf16.mxu0 0
        %8432 = vmatpush1.bf16.msra.mxu0 %v7708
        %8433 = vmatprep.subr.bf16.mxu0 0
        %8434 = vmatpush1.bf16.msra.mxu0 %v7707
        %8435 = vmatprep.subr.bf16.mxu0 0
        %8436 = vmatpush1.bf16.msra.mxu0 %v7706
        %8437 = vmatprep.subr.bf16.mxu0 0
        %8438 = vmatpush1.bf16.msra.mxu0 %v7705
        %8439 = vmatprep.subr.bf16.mxu0 0
        %8440 = vmatpush1.bf16.msra.mxu0 %v7704
        %8441 = vmatprep.subr.bf16.mxu0 0
        %8442 = vmatpush1.bf16.msra.mxu0 %v7703
        %8443 = vmatprep.subr.bf16.mxu0 0
        %8444 = vmatpush2.bf16.msra.mxu0 0
        %8445 = vmatprep.subr.bf16.mxu0 0
        %8446 = vmatpush2.bf16.msra.mxu0 0
        %8447 = vmatprep.subr.bf16.mxu0 0
        %8448 = vmatpush2.bf16.msra.mxu0 0
        %8449 = vmatprep.subr.bf16.mxu0 0
        %8450 = vmatpush2.bf16.msra.mxu0 0
        %8451 = vmatprep.subr.bf16.mxu0 0
        %8452 = vmatpush2.bf16.msra.mxu0 0
        %8453 = vmatprep.subr.bf16.mxu0 0
        %8454 = vmatpush2.bf16.msra.mxu0 0
        %8455 = vmatprep.subr.bf16.mxu0 0
        %8456 = vmatpush2.bf16.msra.mxu0 0
        %8457 = vmatprep.subr.bf16.mxu0 0
        %8458 = vmatpush2.bf16.msra.mxu0 0
        %8459 = vmatprep.mubr.bf16.mxu0 0
        %8460 = vmatmul.mubr.bf16.gmra.mxu0 %v7071
        %v8461 = vpop.f32.mrf.mxu0
        %v8462 = vadd.f32 %v8301, %v8461
        %v8463 = vpop.f32.mrf.mxu0
        %v8464 = vpop.f32.mrf.mxu0
        %v8465 = vadd.f32 %v8304, %v8464
        %v8466 = vpop.f32.mrf.mxu0
        %8467 = vmatprep.mubr.bf16.mxu0 0
        %8468 = vmatmul.mubr.bf16.gmra.mxu0 %v7080
        %v8469 = vpop.f32.mrf.mxu0
        %v8470 = vadd.f32 %v8309, %v8469
        %v8471 = vpop.f32.mrf.mxu0
        %v8472 = vpop.f32.mrf.mxu0
        %v8473 = vadd.f32 %v8312, %v8472
        %v8474 = vpop.f32.mrf.mxu0
        %8475 = vmatprep.mubr.bf16.mxu0 0
        %8476 = vmatmul.mubr.bf16.gmra.mxu0 %v7089
        %v8477 = vpop.f32.mrf.mxu0
        %v8478 = vadd.f32 %v8317, %v8477
        %v8479 = vpop.f32.mrf.mxu0
        %v8480 = vpop.f32.mrf.mxu0
        %v8481 = vadd.f32 %v8320, %v8480
        %v8482 = vpop.f32.mrf.mxu0
        %8483 = vmatprep.mubr.bf16.mxu0 0
        %8484 = vmatmul.mubr.bf16.gmra.mxu0 %v7098
        %v8485 = vpop.f32.mrf.mxu0
        %v8486 = vadd.f32 %v8325, %v8485
        %v8487 = vpop.f32.mrf.mxu0
        %v8488 = vpop.f32.mrf.mxu0
        %v8489 = vadd.f32 %v8328, %v8488
        %v8490 = vpop.f32.mrf.mxu0
        %8491 = vmatprep.mubr.bf16.mxu0 0
        %8492 = vmatmul.mubr.bf16.gmra.mxu0 %v7107
        %v8493 = vpop.f32.mrf.mxu0
        %v8494 = vadd.f32 %v8333, %v8493
        %v8495 = vpop.f32.mrf.mxu0
        %v8496 = vpop.f32.mrf.mxu0
        %v8497 = vadd.f32 %v8336, %v8496
        %v8498 = vpop.f32.mrf.mxu0
        %8499 = vmatprep.mubr.bf16.mxu0 0
        %8500 = vmatmul.mubr.bf16.gmra.mxu0 %v7116
        %v8501 = vpop.f32.mrf.mxu0
        %v8502 = vadd.f32 %v8341, %v8501
        %v8503 = vpop.f32.mrf.mxu0
        %v8504 = vpop.f32.mrf.mxu0
        %v8505 = vadd.f32 %v8344, %v8504
        %v8506 = vpop.f32.mrf.mxu0
        %8507 = vmatprep.mubr.bf16.mxu0 0
        %8508 = vmatmul.mubr.bf16.gmra.mxu0 %v7125
        %v8509 = vpop.f32.mrf.mxu0
        %v8510 = vadd.f32 %v8349, %v8509
        %v8511 = vpop.f32.mrf.mxu0
        %v8512 = vpop.f32.mrf.mxu0
        %v8513 = vadd.f32 %v8352, %v8512
        %v8514 = vpop.f32.mrf.mxu0
        %8515 = vmatprep.mubr.bf16.mxu0 0
        %8516 = vmatmul.mubr.bf16.gmra.mxu0 %v7134
        %v8517 = vpop.f32.mrf.mxu0
        %v8518 = vadd.f32 %v8357, %v8517
        %v8519 = vpop.f32.mrf.mxu0
        %v8520 = vpop.f32.mrf.mxu0
        %v8521 = vadd.f32 %v8360, %v8520
        %v8522 = vpop.f32.mrf.mxu0
        %8523 = vmatprep.mubr.bf16.mxu0 0
        %8524 = vmatmul.mubr.bf16.gmra.mxu0 %v7143
        %v8525 = vpop.f32.mrf.mxu0
        %v8526 = vadd.f32 %v8365, %v8525
        %v8527 = vpop.f32.mrf.mxu0
        %v8528 = vpop.f32.mrf.mxu0
        %v8529 = vadd.f32 %v8368, %v8528
        %v8530 = vpop.f32.mrf.mxu0
        %8531 = vmatprep.mubr.bf16.mxu0 0
        %8532 = vmatmul.mubr.bf16.gmra.mxu0 %v7152
        %v8533 = vpop.f32.mrf.mxu0
        %v8534 = vadd.f32 %v8373, %v8533
        %v8535 = vpop.f32.mrf.mxu0
        %v8536 = vpop.f32.mrf.mxu0
        %v8537 = vadd.f32 %v8376, %v8536
        %v8538 = vpop.f32.mrf.mxu0
        %8539 = vmatprep.mubr.bf16.mxu0 0
        %8540 = vmatmul.mubr.bf16.gmra.mxu0 %v7161
        %v8541 = vpop.f32.mrf.mxu0
        %v8542 = vadd.f32 %v8381, %v8541
        %v8543 = vpop.f32.mrf.mxu0
        %v8544 = vpop.f32.mrf.mxu0
        %v8545 = vadd.f32 %v8384, %v8544
        %v8546 = vpop.f32.mrf.mxu0
        %8547 = vmatprep.mubr.bf16.mxu0 0
        %8548 = vmatmul.mubr.bf16.gmra.mxu0 %v7170
        %v8549 = vpop.f32.mrf.mxu0
        %v8550 = vadd.f32 %v8389, %v8549
        %v8551 = vpop.f32.mrf.mxu0
        %v8552 = vpop.f32.mrf.mxu0
        %v8553 = vadd.f32 %v8392, %v8552
        %v8554 = vpop.f32.mrf.mxu0
        %8555 = vmatprep.mubr.bf16.mxu0 0
        %8556 = vmatmul.mubr.bf16.gmra.mxu0 %v7179
        %v8557 = vpop.f32.mrf.mxu0
        %v8558 = vadd.f32 %v8397, %v8557
        %v8559 = vpop.f32.mrf.mxu0
        %v8560 = vpop.f32.mrf.mxu0
        %v8561 = vadd.f32 %v8400, %v8560
        %v8562 = vpop.f32.mrf.mxu0
        %8563 = vmatprep.mubr.bf16.mxu0 0
        %8564 = vmatmul.mubr.bf16.gmra.mxu0 %v7188
        %v8565 = vpop.f32.mrf.mxu0
        %v8566 = vadd.f32 %v8405, %v8565
        %v8567 = vpop.f32.mrf.mxu0
        %v8568 = vpop.f32.mrf.mxu0
        %v8569 = vadd.f32 %v8408, %v8568
        %v8570 = vpop.f32.mrf.mxu0
        %8571 = vmatprep.mubr.bf16.mxu0 0
        %8572 = vmatmul.mubr.bf16.gmra.mxu0 %v7197
        %v8573 = vpop.f32.mrf.mxu0
        %v8574 = vadd.f32 %v8413, %v8573
        %v8575 = vpop.f32.mrf.mxu0
        %v8576 = vpop.f32.mrf.mxu0
        %v8577 = vadd.f32 %v8416, %v8576
        %v8578 = vpop.f32.mrf.mxu0
        %8579 = vmatprep.mubr.bf16.mxu0 0
        %8580 = vmatmul.mubr.bf16.gmra.mxu0 %v7206
        %v8581 = vpop.f32.mrf.mxu0
        %v8582 = vadd.f32 %v8421, %v8581
        %v8583 = vpop.f32.mrf.mxu0
        %v8584 = vpop.f32.mrf.mxu0
        %v8585 = vadd.f32 %v8424, %v8584
        %v8586 = vpop.f32.mrf.mxu0
        %8587 = vdwg.mxu0
        %v8588 = vld [vmem:[%s5] sm:$0x1]
        %v8590 = vlaneseq
        %v8591 = vshrl.u32 %v8590, 7
        %v8592 = vsub.s32 0, %v8591
        %v8593 = vrot.slane %v8588, %v8592
        %v8595 = vmul.f32 %v8462, %v8593
        %v8596 = vmul.f32 %v8465, %v8593
        %v8597 = vmul.f32 %v8470, %v8593
        %v8598 = vmul.f32 %v8473, %v8593
        %v8599 = vmul.f32 %v8478, %v8593
        %v8600 = vmul.f32 %v8481, %v8593
        %v8601 = vmul.f32 %v8486, %v8593
        %v8602 = vmul.f32 %v8489, %v8593
        %v8603 = vmul.f32 %v8494, %v8593
        %v8604 = vmul.f32 %v8497, %v8593
        %v8605 = vmul.f32 %v8502, %v8593
        %v8606 = vmul.f32 %v8505, %v8593
        %v8607 = vmul.f32 %v8510, %v8593
        %v8608 = vmul.f32 %v8513, %v8593
        %v8609 = vmul.f32 %v8518, %v8593
        %v8610 = vmul.f32 %v8521, %v8593
        %v8611 = vmul.f32 %v8526, %v8593
        %v8612 = vmul.f32 %v8529, %v8593
        %v8613 = vmul.f32 %v8534, %v8593
        %v8614 = vmul.f32 %v8537, %v8593
        %v8615 = vmul.f32 %v8542, %v8593
        %v8616 = vmul.f32 %v8545, %v8593
        %v8617 = vmul.f32 %v8550, %v8593
        %v8618 = vmul.f32 %v8553, %v8593
        %v8619 = vmul.f32 %v8558, %v8593
        %v8620 = vmul.f32 %v8561, %v8593
        %v8621 = vmul.f32 %v8566, %v8593
        %v8622 = vmul.f32 %v8569, %v8593
        %v8623 = vmul.f32 %v8574, %v8593
        %v8624 = vmul.f32 %v8577, %v8593
        %v8625 = vmul.f32 %v8582, %v8593
        %v8626 = vmul.f32 %v8585, %v8593
        %v8627 = vld [vmem:[%s6] sm:$0x1]
        %v8629 = vlaneseq
        %v8630 = vshrl.u32 %v8629, 7
        %v8631 = vsub.s32 0, %v8630
        %v8632 = vrot.slane %v8627, %v8631
        %v8634 = vadd.f32 %v8595, %v8632
        %v8635 = vadd.f32 %v8596, %v8632
        %v8636 = vadd.f32 %v8597, %v8632
        %v8637 = vadd.f32 %v8598, %v8632
        %v8638 = vadd.f32 %v8599, %v8632
        %v8639 = vadd.f32 %v8600, %v8632
        %v8640 = vadd.f32 %v8601, %v8632
        %v8641 = vadd.f32 %v8602, %v8632
        %v8642 = vadd.f32 %v8603, %v8632
        %v8643 = vadd.f32 %v8604, %v8632
        %v8644 = vadd.f32 %v8605, %v8632
        %v8645 = vadd.f32 %v8606, %v8632
        %v8646 = vadd.f32 %v8607, %v8632
        %v8647 = vadd.f32 %v8608, %v8632
        %v8648 = vadd.f32 %v8609, %v8632
        %v8649 = vadd.f32 %v8610, %v8632
        %v8650 = vadd.f32 %v8611, %v8632
        %v8651 = vadd.f32 %v8612, %v8632
        %v8652 = vadd.f32 %v8613, %v8632
        %v8653 = vadd.f32 %v8614, %v8632
        %v8654 = vadd.f32 %v8615, %v8632
        %v8655 = vadd.f32 %v8616, %v8632
        %v8656 = vadd.f32 %v8617, %v8632
        %v8657 = vadd.f32 %v8618, %v8632
        %v8658 = vadd.f32 %v8619, %v8632
        %v8659 = vadd.f32 %v8620, %v8632
        %v8660 = vadd.f32 %v8621, %v8632
        %v8661 = vadd.f32 %v8622, %v8632
        %v8662 = vadd.f32 %v8623, %v8632
        %v8663 = vadd.f32 %v8624, %v8632
        %v8664 = vadd.f32 %v8625, %v8632
        %v8665 = vadd.f32 %v8626, %v8632
        %v8666 = vadd.f32 %v8634, %v327
        %v8667 = vadd.f32 %v8635, %v328
        %v8668 = vadd.f32 %v8636, %v329
        %v8669 = vadd.f32 %v8637, %v330
        %v8670 = vadd.f32 %v8638, %v331
        %v8671 = vadd.f32 %v8639, %v332
        %v8672 = vadd.f32 %v8640, %v333
        %v8673 = vadd.f32 %v8641, %v334
        %v8674 = vadd.f32 %v8642, %v335
        %v8675 = vadd.f32 %v8643, %v336
        %v8676 = vadd.f32 %v8644, %v337
        %v8677 = vadd.f32 %v8645, %v338
        %v8678 = vadd.f32 %v8646, %v339
        %v8679 = vadd.f32 %v8647, %v340
        %v8680 = vadd.f32 %v8648, %v341
        %v8681 = vadd.f32 %v8649, %v342
        %v8682 = vadd.f32 %v8650, %v343
        %v8683 = vadd.f32 %v8651, %v344
        %v8684 = vadd.f32 %v8652, %v345
        %v8685 = vadd.f32 %v8653, %v346
        %v8686 = vadd.f32 %v8654, %v347
        %v8687 = vadd.f32 %v8655, %v348
        %v8688 = vadd.f32 %v8656, %v349
        %v8689 = vadd.f32 %v8657, %v350
        %v8690 = vadd.f32 %v8658, %v351
        %v8691 = vadd.f32 %v8659, %v352
        %v8692 = vadd.f32 %v8660, %v353
        %v8693 = vadd.f32 %v8661, %v354
        %v8694 = vadd.f32 %v8662, %v355
        %v8695 = vadd.f32 %v8663, %v356
        %v8696 = vadd.f32 %v8664, %v357
        %v8697 = vadd.f32 %v8665, %v358
        %v8698 = vmax.f32 %v8666, 0.0
        %v8699 = vmax.f32 %v8667, 0.0
        %v8700 = vmax.f32 %v8668, 0.0
        %v8701 = vmax.f32 %v8669, 0.0
        %v8702 = vmax.f32 %v8670, 0.0
        %v8703 = vmax.f32 %v8671, 0.0
        %v8704 = vmax.f32 %v8672, 0.0
        %v8705 = vmax.f32 %v8673, 0.0
        %v8706 = vmax.f32 %v8674, 0.0
        %v8707 = vmax.f32 %v8675, 0.0
        %v8708 = vmax.f32 %v8676, 0.0
        %v8709 = vmax.f32 %v8677, 0.0
        %v8710 = vmax.f32 %v8678, 0.0
        %v8711 = vmax.f32 %v8679, 0.0
        %v8712 = vmax.f32 %v8680, 0.0
        %v8713 = vmax.f32 %v8681, 0.0
        %v8714 = vmax.f32 %v8682, 0.0
        %v8715 = vmax.f32 %v8683, 0.0
        %v8716 = vmax.f32 %v8684, 0.0
        %v8717 = vmax.f32 %v8685, 0.0
        %v8718 = vmax.f32 %v8686, 0.0
        %v8719 = vmax.f32 %v8687, 0.0
        %v8720 = vmax.f32 %v8688, 0.0
        %v8721 = vmax.f32 %v8689, 0.0
        %v8722 = vmax.f32 %v8690, 0.0
        %v8723 = vmax.f32 %v8691, 0.0
        %v8724 = vmax.f32 %v8692, 0.0
        %v8725 = vmax.f32 %v8693, 0.0
        %v8726 = vmax.f32 %v8694, 0.0
        %v8727 = vmax.f32 %v8695, 0.0
        %v8728 = vmax.f32 %v8696, 0.0
        %v8729 = vmax.f32 %v8697, 0.0
        %8730 = vst [vmem:[%s325] sm:$0xff] %v8698
        %8731 = vst [vmem:[%s325 + $0x8] sm:$0xff] %v8699
        %8732 = vst [vmem:[%s325 + $0x10] sm:$0xff] %v8700
        %8733 = vst [vmem:[%s325 + $0x18] sm:$0xff] %v8701
        %8734 = vst [vmem:[%s325 + $0x20] sm:$0xff] %v8702
        %8735 = vst [vmem:[%s325 + $0x28] sm:$0xff] %v8703
        %8736 = vst [vmem:[%s325 + $0x30] sm:$0xff] %v8704
        %8737 = vst [vmem:[%s325 + $0x38] sm:$0xff] %v8705
        %8738 = vst [vmem:[%s325 + $0x40] sm:$0xff] %v8706
        %8739 = vst [vmem:[%s325 + $0x48] sm:$0xff] %v8707
        %8740 = vst [vmem:[%s325 + $0x50] sm:$0xff] %v8708
        %8741 = vst [vmem:[%s325 + $0x58] sm:$0xff] %v8709
        %8742 = vst [vmem:[%s325 + $0x60] sm:$0xff] %v8710
        %8743 = vst [vmem:[%s325 + $0x68] sm:$0xff] %v8711
        %8744 = vst [vmem:[%s325 + $0x70] sm:$0xff] %v8712
        %8745 = vst [vmem:[%s325 + $0x78] sm:$0xff] %v8713
        %8746 = vst [vmem:[%s325 + $0x80] sm:$0xff] %v8714
        %8747 = vst [vmem:[%s325 + $0x88] sm:$0xff] %v8715
        %8748 = vst [vmem:[%s325 + $0x90] sm:$0xff] %v8716
        %8749 = vst [vmem:[%s325 + $0x98] sm:$0xff] %v8717
        %8750 = vst [vmem:[%s325 + $0xa0] sm:$0xff] %v8718
        %8751 = vst [vmem:[%s325 + $0xa8] sm:$0xff] %v8719
        %8752 = vst [vmem:[%s325 + $0xb0] sm:$0xff] %v8720
        %8753 = vst [vmem:[%s325 + $0xb8] sm:$0xff] %v8721
        %8754 = vst [vmem:[%s325 + $0xc0] sm:$0xff] %v8722
        %8755 = vst [vmem:[%s325 + $0xc8] sm:$0xff] %v8723
        %8756 = vst [vmem:[%s325 + $0xd0] sm:$0xff] %v8724
        %8757 = vst [vmem:[%s325 + $0xd8] sm:$0xff] %v8725
        %8758 = vst [vmem:[%s325 + $0xe0] sm:$0xff] %v8726
        %8759 = vst [vmem:[%s325 + $0xe8] sm:$0xff] %v8727
        %8760 = vst [vmem:[%s325 + $0xf0] sm:$0xff] %v8728
        %8761 = vst [vmem:[%s325 + $0xf8] sm:$0xff] %v8729
        %s8762 = sand.u32 %s185, 1
        %s8763 = scalar_lea.sflag [#allocation6], %s8762
        %s8764 = sand.u32 %s185, 1
        %s8765 = smul.addr %s8764, 256
        %s8766 = scalar_lea.vmem [#allocation10], %s8765
        // Predicated region
        $region61: #{tpu_custom_call.1} parent=47 // pred_check
          %p8767 = pneg %p195
        $region62: #{tpu_custom_call.1} parent=47 // pred_check_branch
          %8769 = sbr.rel (%p8767) target = $region64
        $region63: #{tpu_custom_call.1} parent=47 // pred_region
          %s8771 = ssub.s32 4096, 4096
          %8772 = vsyncadd %s8763, %s8771
          %s8773 = smul.addr %s25, 32
          %s8774 = smul.addr %s8773, 128
          %s8775 = scalar_lea.hbm %s7, %s8774
          %s8776 = sshll.u32 %s8766, 4
          %s8777 = int_to_ptr.vmem [resolvable:$true] %s8776
          %8782 = dma.vmem_to_hbm [thread:$0]  %s8777, 4096, %s8775, %s8763, 128, 128, 8
        $region64: #{tpu_custom_call.1} parent=47 // pred_fallthru
          _
      $region48: #{tpu_custom_call.1} parent=5 // pred_fallthru
        _
      %p8783 = scmp.le.s32.totalorder 2, %s20
      // Predicated region
      $region65: #{tpu_custom_call.1} parent=5 // pred_check
        %p8784 = pneg %p8783
      $region66: #{tpu_custom_call.1} parent=5 // pred_check_branch
        %8786 = sbr.rel (%p8784) target = $region68
      $region67: #{tpu_custom_call.1} parent=5 // pred_region
        %s8787 = ssub.s32 %s20, 2
        // Predicated region
        $region69: #{tpu_custom_call.1} parent=67 // pred_check
          %p8788 = pneg %p201
        $region70: #{tpu_custom_call.1} parent=67 // pred_check_branch
          %8790 = sbr.rel (%p8788) target = $region72
        $region71: #{tpu_custom_call.1} parent=67 // pred_region
          %s8791 = sand.u32 %s186, 1
          %s8792 = scalar_lea.sflag [#allocation6], %s8791
          %s8793 = sand.u32 %s186, 1
          %s8794 = smul.addr %s8793, 256
          %s8795 = scalar_lea.vmem [#allocation10], %s8794
          %8796 = dma.done %s8792, 4096
        $region72: #{tpu_custom_call.1} parent=67 // pred_fallthru
          _
      $region68: #{tpu_custom_call.1} parent=5 // pred_fallthru
        _
    $region6: #{tpu_custom_call.1} parent=1 // loop_footer
      %s24 = sadd.s32 1, %s20
    $region7: #{tpu_custom_call.1} parent=1 // loop_footer_branch
      %19 = sbr.rel target = $region3
    $region8: #{tpu_custom_call.1} parent=1 // loop_exit
      _
    %8797 = vsyncpa [#allocation5], 1
    %s8798 = scalar_lea.sflag [#allocation5], 1
    %8799 = vsyncpa %s8798, 1
    %8800 = vsyncpa [#allocation8], 1
    %8801 = vsyncpa [#allocation6], 1
    %s8802 = scalar_lea.sflag [#allocation6], 1
    %8803 = vsyncpa %s8802, 1

</llo_original>
